<compile_context>
chip_gen: v6e
topology: v6e:2x2x1
jax: 0.10.0
libtpu: 0.0.40
codegen_flags: <defaults>
</compile_context>

<pallas_src>
import jax
import jax.numpy as jnp
from jax.experimental import pallas as pl
from jax.experimental.pallas import tpu as pltpu

# Hyperparameters of the torch module (module-level constants; chosen small).
PAST_HISTORY = 16      # P : LSTM input_size == hidden_size == LayerNorm dims
STACK_DEPTH = 2        # number of (shared-weight) LSTM cell applications
LN_EPS = 1e-5          # nn.LayerNorm default eps

# Samples per grid step.  B_TILE * P = 2048 lanes -> lane-dense vregs and a
# 256-multiple MXU N dim.  Pooling matrices are (B_TILE*P, B_TILE) f32
# (~1 MiB at 128), so keep B_TILE <= ~256; total per-step VMEM ~8 MiB, well
# under the default scoped limit on v5e/v6e/v7x (no vmem_limit override needed).
B_TILE = 128


def stockbot_kernel(xt_ref, gamma_t_ref, beta_t_ref, wx_ioc_ref, wxh_ref,
                    w1_ref, g_mean_ref, g_exp_ref, g_w2_ref, out_ref):
    """One batch tile (B_TILE samples), feature-major layout.

    xt_ref      : (P, B_TILE*P)   xt[k, b*P+p] = x[b, p, k]
    gamma_t_ref : (P, B_TILE*P)   gamma^T tiled per sample
    beta_t_ref  : (P, B_TILE*P)   beta^T tiled per sample
    wx_ioc_ref  : (3P, P)         x-side gate weights, rows [input|output|cell]
    wxh_ref     : (4P, P)         Wx + Wh, rows [forget|input|output|cell]
    w1_ref      : (1, P)          ffn1 weight
    g_mean_ref  : (B_TILE*P, B_TILE)  block-diag pooling, entries 1/(P*P)
    g_exp_ref   : (B_TILE, B_TILE*P)  block-diag un-pooling, entries 1
    g_w2_ref    : (B_TILE*P, B_TILE)  block-diag pooling weighted by w2[p]
    out_ref     : (1, 1, B_TILE)  lane-dense per-sample results
    """
    P = xt_ref.shape[0]
    xt = xt_ref[...]                                     # (P, BtP)

    # ---- LayerNorm: per-sample moments via MXU pooling (two-pass variance) ----
    col_sum = jnp.sum(xt, axis=0, keepdims=True)         # (1, BtP) sublane reduce
    mu = jnp.dot(col_sum, g_mean_ref[...],
                 preferred_element_type=jnp.float32)     # (1, Bt)
    mu_e = jnp.dot(mu, g_exp_ref[...],
                   preferred_element_type=jnp.float32)   # (1, BtP)
    d = xt - mu_e
    var = jnp.dot(jnp.sum(d * d, axis=0, keepdims=True), g_mean_ref[...],
                  preferred_element_type=jnp.float32)    # (1, Bt)
    rstd_e = jnp.dot(jax.lax.rsqrt(var + LN_EPS), g_exp_ref[...],
                     preferred_element_type=jnp.float32)  # (1, BtP)
    xn = d * rstd_e * gamma_t_ref[...] + beta_t_ref[...]  # (P, BtP)

    # ---- LSTM iteration 0 (h = c = 0): forget gate unused, f*c == 0 ----
    # Cell gate is sigmoid (DoubleLinear default activation), matching the module.
    s0 = jax.nn.sigmoid(jnp.dot(wx_ioc_ref[...], xn,
                                preferred_element_type=jnp.float32))  # (3P, BtP)
    c = s0[0:P] * s0[2 * P:3 * P]                        # i * g
    h = s0[P:2 * P] * jnp.tanh(c)                        # o * tanh(c)

    # ---- LSTM iterations >= 1: output feeds back as both x and h -> (Wx+Wh)@h ----
    for _ in range(1, STACK_DEPTH):                      # static, small unroll
        s = jax.nn.sigmoid(jnp.dot(wxh_ref[...], h,
                                   preferred_element_type=jnp.float32))  # (4P, BtP)
        c = s[0:P] * c + s[P:2 * P] * s[3 * P:4 * P]     # f*c + i*g
        h = s[2 * P:3 * P] * jnp.tanh(c)                 # o * tanh(c)

    # ---- heads: ffn1 contracts features on the MXU; ffn2 + per-sample packing
    # via the w2-weighted block-diagonal pooling -> lane-dense (1, B_TILE) row ----
    y1 = jnp.dot(w1_ref[...], h, preferred_element_type=jnp.float32)     # (1, BtP)
    y2 = jnp.dot(y1, g_w2_ref[...], preferred_element_type=jnp.float32)  # (1, Bt)
    out_ref[...] = y2.reshape(1, 1, y2.shape[-1])


def stockbot_forward(x, kernel_params, *, b_tile=B_TILE):
    """x: (B, P, P) float32, B divisible by b_tile.  Returns (B,) float32."""
    B, P, _ = x.shape
    assert B % b_tile == 0, "pad the batch to a multiple of b_tile"
    gT, bT, wx_ioc, wxh, w1row, g_mean, g_exp, g_w2 = kernel_params
    num_tiles = B // b_tile
    btp = b_tile * P

    # Layout plumbing (not compute): feature-major, samples along lanes.
    xt = jnp.transpose(x, (2, 0, 1)).reshape(P, B * P)   # xt[k, b*P+p] = x[b,p,k]

    out = pl.pallas_call(
        stockbot_kernel,
        grid=(num_tiles,),
        in_specs=[
            pl.BlockSpec((P, btp), lambda i: (0, i)),        # batch-tiled input
            pl.BlockSpec(gT.shape, lambda i: (0, 0)),        # VMEM-resident consts
            pl.BlockSpec(bT.shape, lambda i: (0, 0)),
            pl.BlockSpec(wx_ioc.shape, lambda i: (0, 0)),
            pl.BlockSpec(wxh.shape, lambda i: (0, 0)),
            pl.BlockSpec(w1row.shape, lambda i: (0, 0)),
            pl.BlockSpec(g_mean.shape, lambda i: (0, 0)),
            pl.BlockSpec(g_exp.shape, lambda i: (0, 0)),
            pl.BlockSpec(g_w2.shape, lambda i: (0, 0)),
        ],
        out_specs=pl.BlockSpec((1, 1, b_tile), lambda i: (i, 0, 0)),
        out_shape=jax.ShapeDtypeStruct((num_tiles, 1, b_tile), jnp.float32),
        compiler_params=pltpu.CompilerParams(
            dimension_semantics=("parallel",)),              # 2 TCs on v7x
    )(xt, gT, bT, wx_ioc, wxh, w1row, g_mean, g_exp, g_w2)
    return out.reshape(B)


def make_params(key, P):
    """Deterministic synthetic parameters (torch-Linear layout: (out, in))."""
    ks = jax.random.split(key, 12)
    gamma = 1.0 + 0.1 * jax.random.normal(ks[10], (P, P), jnp.float32)
    beta = 0.05 * jax.random.normal(ks[11], (P, P), jnp.float32)
    scale = 1.0 / jnp.sqrt(jnp.float32(P))
    # 4 x-side and 4 h-side gate weights, order [forget, input, output, cell].
    wx = jnp.stack([jax.random.normal(ks[i], (P, P), jnp.float32) * scale
                    for i in range(4)])                      # (4, P, P)
    wh = jnp.stack([jax.random.normal(ks[4 + i], (P, P), jnp.float32) * scale
                    for i in range(4)])                      # (4, P, P)
    w1 = jax.random.normal(ks[8], (1, P), jnp.float32) * scale   # ffn1 (1, P)
    w2 = jax.random.normal(ks[9], (1, P), jnp.float32) * scale   # ffn2 (1, P)
    return gamma, beta, wx, wh, w1, w2


def prepare_kernel_params(raw_params, b_tile):
    """Pre-stack / pre-fuse weights + build the block-diagonal pooling matrices."""
    gamma, beta, wx, wh, w1, w2 = raw_params
    P = gamma.shape[0]
    gT = jnp.tile(gamma.T, (1, b_tile))                      # (P, b_tile*P)
    bT = jnp.tile(beta.T, (1, b_tile))
    # Valid only because bias=False, h0=c0=0, and x==h feedback (see header).
    wx_ioc = jnp.concatenate([wx[1], wx[2], wx[3]], axis=0)  # (3P, P) rows [i|o|c]
    wxh = jnp.concatenate([wx[g] + wh[g] for g in range(4)], axis=0)  # (4P, P) [f|i|o|c]
    w1row = w1                                               # (1, P)
    eye = jnp.eye(b_tile, dtype=jnp.float32)
    rep = jnp.repeat(eye, P, axis=0)                         # (b_tile*P, b_tile)
    g_mean = rep / float(P * P)
    g_exp = jnp.repeat(eye, P, axis=1)                       # (b_tile, b_tile*P)
    g_w2 = rep * jnp.tile(w2.reshape(-1), b_tile)[:, None]   # w2[p] on the diag blocks
    return gT, bT, wx_ioc, wxh, w1row, g_mean, g_exp, g_w2


def reference_forward(x, raw_params):
    """Pure-JAX reference mirroring the torch module exactly (f32 throughout)."""
    gamma, beta, wx, wh, w1, w2 = raw_params
    mu = jnp.mean(x, axis=(1, 2), keepdims=True)
    var = jnp.mean((x - mu) ** 2, axis=(1, 2), keepdims=True)
    x = (x - mu) / jnp.sqrt(var + LN_EPS)
    x = x * gamma + beta
    h = jnp.zeros_like(x)
    c = jnp.zeros_like(x)
    for _ in range(STACK_DEPTH):
        f = jax.nn.sigmoid(x @ wx[0].T + h @ wh[0].T)
        i = jax.nn.sigmoid(x @ wx[1].T + h @ wh[1].T)
        o = jax.nn.sigmoid(x @ wx[2].T + h @ wh[2].T)
        g = jax.nn.sigmoid(x @ wx[3].T + h @ wh[3].T)   # sigmoid cell gate (module default)
        c = f * c + i * g
        h = o * jnp.tanh(c)
        x = h
    y1 = jnp.squeeze(x @ w1.T, axis=-1)    # (B, P)
    y2 = jnp.squeeze(y1 @ w2.T, axis=-1)   # (B,)
    return y2


if __name__ == "__main__":
    key = jax.random.PRNGKey(0)
    kx, kp = jax.random.split(key)

    P = PAST_HISTORY
    B = 2 * B_TILE                     # 256 samples -> grid=(2,), small & fast
    x = jax.random.normal(kx, (B, P, P), jnp.float32)

    raw_params = make_params(kp, P)
    kernel_params = prepare_kernel_params(raw_params, B_TILE)

    out = stockbot_forward(x, kernel_params, b_tile=B_TILE)
    out = jax.block_until_ready(out)

    ref = reference_forward(x, raw_params)
    assert out.shape == (B,)
    assert jnp.allclose(out, ref, atol=1e-4, rtol=1e-4), \
        float(jnp.max(jnp.abs(out - ref)))

    print("KERNEL_OK")
</pallas_src>

<mosaic_0001>
module attributes {stable_mosaic.version = 11 : i64} {
  func.func @stockbot_kernel(%arg0: i32, %arg1: memref<16x2048xf32, #tpu.memory_space<vmem>>, %arg2: memref<16x2048xf32, #tpu.memory_space<vmem>>, %arg3: memref<16x2048xf32, #tpu.memory_space<vmem>>, %arg4: memref<48x16xf32, #tpu.memory_space<vmem>>, %arg5: memref<64x16xf32, #tpu.memory_space<vmem>>, %arg6: memref<1x16xf32, #tpu.memory_space<vmem>>, %arg7: memref<2048x128xf32, #tpu.memory_space<vmem>>, %arg8: memref<128x2048xf32, #tpu.memory_space<vmem>>, %arg9: memref<2048x128xf32, #tpu.memory_space<vmem>>, %arg10: memref<1x1x128xf32, #tpu.memory_space<vmem>>) attributes {dimension_semantics = [#tpu.dimension_semantics<parallel>], iteration_bounds = array<i64: 2>, scalar_prefetch = 0 : i64, scratch_operands = 0 : i64, tpu.core_type = #tpu.core_type<tc>, window_params = [{transform_indices = @transform_0, window_bounds = array<i64: 16, 2048>}, {pipeline_mode = #tpu.pipeline_mode<synchronous>, transform_indices = @transform_1, window_bounds = array<i64: 16, 2048>}, {pipeline_mode = #tpu.pipeline_mode<synchronous>, transform_indices = @transform_2, window_bounds = array<i64: 16, 2048>}, {pipeline_mode = #tpu.pipeline_mode<synchronous>, transform_indices = @transform_3, window_bounds = array<i64: 48, 16>}, {pipeline_mode = #tpu.pipeline_mode<synchronous>, transform_indices = @transform_4, window_bounds = array<i64: 64, 16>}, {pipeline_mode = #tpu.pipeline_mode<synchronous>, transform_indices = @transform_5, window_bounds = array<i64: 1, 16>}, {pipeline_mode = #tpu.pipeline_mode<synchronous>, transform_indices = @transform_6, window_bounds = array<i64: 2048, 128>}, {pipeline_mode = #tpu.pipeline_mode<synchronous>, transform_indices = @transform_7, window_bounds = array<i64: 128, 2048>}, {pipeline_mode = #tpu.pipeline_mode<synchronous>, transform_indices = @transform_8, window_bounds = array<i64: 2048, 128>}, {transform_indices = @transform_9, window_bounds = array<i64: 1, 1, 128>}]} {
    %c0 = arith.constant 0 : index
    %c0_0 = arith.constant 0 : index
    %0 = vector.load %arg1[%c0, %c0_0] : memref<16x2048xf32, #tpu.memory_space<vmem>>, vector<16x2048xf32>
    %cst = arith.constant dense<0.000000e+00> : vector<2048xf32>
    %1 = vector.multi_reduction <add>, %0, %cst [0] : vector<16x2048xf32> to vector<2048xf32>
    %2 = vector.shape_cast %1 : vector<2048xf32> to vector<1x2048xf32>
    %c0_1 = arith.constant 0 : index
    %c0_2 = arith.constant 0 : index
    %3 = vector.load %arg7[%c0_1, %c0_2] : memref<2048x128xf32, #tpu.memory_space<vmem>>, vector<2048x128xf32>
    %cst_3 = arith.constant dense<0.000000e+00> : vector<1x128xf32>
    %4 = tpu.matmul %2, %3, %cst_3 {dimension_numbers = #tpu.dot_dimension_numbers<[1], [0], [0], [1], [0, 0, 1, 1], [], []>} : vector<1x2048xf32>, vector<2048x128xf32>, vector<1x128xf32> -> vector<1x128xf32>
    %c0_4 = arith.constant 0 : index
    %c0_5 = arith.constant 0 : index
    %5 = vector.load %arg8[%c0_4, %c0_5] : memref<128x2048xf32, #tpu.memory_space<vmem>>, vector<128x2048xf32>
    %cst_6 = arith.constant dense<0.000000e+00> : vector<1x2048xf32>
    %6 = tpu.matmul %4, %5, %cst_6 {dimension_numbers = #tpu.dot_dimension_numbers<[1], [0], [0], [1], [0, 0, 1, 1], [], []>} : vector<1x128xf32>, vector<128x2048xf32>, vector<1x2048xf32> -> vector<1x2048xf32>
    %7 = vector.broadcast %6 : vector<1x2048xf32> to vector<16x2048xf32>
    %8 = arith.subf %0, %7 : vector<16x2048xf32>
    %9 = arith.mulf %8, %8 : vector<16x2048xf32>
    %cst_7 = arith.constant dense<0.000000e+00> : vector<2048xf32>
    %10 = vector.multi_reduction <add>, %9, %cst_7 [0] : vector<16x2048xf32> to vector<2048xf32>
    %11 = vector.shape_cast %10 : vector<2048xf32> to vector<1x2048xf32>
    %c0_8 = arith.constant 0 : index
    %c0_9 = arith.constant 0 : index
    %12 = vector.load %arg7[%c0_8, %c0_9] : memref<2048x128xf32, #tpu.memory_space<vmem>>, vector<2048x128xf32>
    %cst_10 = arith.constant dense<0.000000e+00> : vector<1x128xf32>
    %13 = tpu.matmul %11, %12, %cst_10 {dimension_numbers = #tpu.dot_dimension_numbers<[1], [0], [0], [1], [0, 0, 1, 1], [], []>} : vector<1x2048xf32>, vector<2048x128xf32>, vector<1x128xf32> -> vector<1x128xf32>
    %cst_11 = arith.constant 9.99999974E-6 : f32
    %14 = vector.broadcast %cst_11 : f32 to vector<1x128xf32>
    %15 = arith.addf %13, %14 : vector<1x128xf32>
    %16 = math.rsqrt %15 : vector<1x128xf32>
    %c0_12 = arith.constant 0 : index
    %c0_13 = arith.constant 0 : index
    %17 = vector.load %arg8[%c0_12, %c0_13] : memref<128x2048xf32, #tpu.memory_space<vmem>>, vector<128x2048xf32>
    %cst_14 = arith.constant dense<0.000000e+00> : vector<1x2048xf32>
    %18 = tpu.matmul %16, %17, %cst_14 {dimension_numbers = #tpu.dot_dimension_numbers<[1], [0], [0], [1], [0, 0, 1, 1], [], []>} : vector<1x128xf32>, vector<128x2048xf32>, vector<1x2048xf32> -> vector<1x2048xf32>
    %19 = vector.broadcast %18 : vector<1x2048xf32> to vector<16x2048xf32>
    %20 = arith.mulf %8, %19 : vector<16x2048xf32>
    %c0_15 = arith.constant 0 : index
    %c0_16 = arith.constant 0 : index
    %21 = vector.load %arg2[%c0_15, %c0_16] : memref<16x2048xf32, #tpu.memory_space<vmem>>, vector<16x2048xf32>
    %22 = arith.mulf %20, %21 : vector<16x2048xf32>
    %c0_17 = arith.constant 0 : index
    %c0_18 = arith.constant 0 : index
    %23 = vector.load %arg3[%c0_17, %c0_18] : memref<16x2048xf32, #tpu.memory_space<vmem>>, vector<16x2048xf32>
    %24 = arith.addf %22, %23 : vector<16x2048xf32>
    %c0_19 = arith.constant 0 : index
    %c0_20 = arith.constant 0 : index
    %25 = vector.load %arg4[%c0_19, %c0_20] : memref<48x16xf32, #tpu.memory_space<vmem>>, vector<48x16xf32>
    %cst_21 = arith.constant dense<0.000000e+00> : vector<48x2048xf32>
    %26 = tpu.matmul %25, %24, %cst_21 {dimension_numbers = #tpu.dot_dimension_numbers<[1], [0], [0], [1], [0, 0, 1, 1], [], []>} : vector<48x16xf32>, vector<16x2048xf32>, vector<48x2048xf32> -> vector<48x2048xf32>
    %27 = arith.negf %26 : vector<48x2048xf32>
    %28 = math.exp %27 : vector<48x2048xf32>
    %cst_22 = arith.constant 1.000000e+00 : f32
    %29 = vector.broadcast %cst_22 : f32 to vector<48x2048xf32>
    %30 = arith.addf %29, %28 : vector<48x2048xf32>
    %31 = arith.divf %29, %30 : vector<48x2048xf32>
    %32 = vector.extract_strided_slice %31 {offsets = [0, 0], sizes = [16, 2048], strides = [1, 1]} : vector<48x2048xf32> to vector<16x2048xf32>
    %33 = vector.extract_strided_slice %31 {offsets = [32, 0], sizes = [16, 2048], strides = [1, 1]} : vector<48x2048xf32> to vector<16x2048xf32>
    %34 = arith.mulf %32, %33 : vector<16x2048xf32>
    %35 = vector.extract_strided_slice %31 {offsets = [16, 0], sizes = [16, 2048], strides = [1, 1]} : vector<48x2048xf32> to vector<16x2048xf32>
    %36 = math.tanh %34 : vector<16x2048xf32>
    %37 = arith.mulf %35, %36 : vector<16x2048xf32>
    %c0_23 = arith.constant 0 : index
    %c0_24 = arith.constant 0 : index
    %38 = vector.load %arg5[%c0_23, %c0_24] : memref<64x16xf32, #tpu.memory_space<vmem>>, vector<64x16xf32>
    %cst_25 = arith.constant dense<0.000000e+00> : vector<64x2048xf32>
    %39 = tpu.matmul %38, %37, %cst_25 {dimension_numbers = #tpu.dot_dimension_numbers<[1], [0], [0], [1], [0, 0, 1, 1], [], []>} : vector<64x16xf32>, vector<16x2048xf32>, vector<64x2048xf32> -> vector<64x2048xf32>
    %40 = arith.negf %39 : vector<64x2048xf32>
    %41 = math.exp %40 : vector<64x2048xf32>
    %cst_26 = arith.constant 1.000000e+00 : f32
    %42 = vector.broadcast %cst_26 : f32 to vector<64x2048xf32>
    %43 = arith.addf %42, %41 : vector<64x2048xf32>
    %44 = arith.divf %42, %43 : vector<64x2048xf32>
    %45 = vector.extract_strided_slice %44 {offsets = [0, 0], sizes = [16, 2048], strides = [1, 1]} : vector<64x2048xf32> to vector<16x2048xf32>
    %46 = arith.mulf %45, %34 : vector<16x2048xf32>
    %47 = vector.extract_strided_slice %44 {offsets = [16, 0], sizes = [16, 2048], strides = [1, 1]} : vector<64x2048xf32> to vector<16x2048xf32>
    %48 = vector.extract_strided_slice %44 {offsets = [48, 0], sizes = [16, 2048], strides = [1, 1]} : vector<64x2048xf32> to vector<16x2048xf32>
    %49 = arith.mulf %47, %48 : vector<16x2048xf32>
    %50 = arith.addf %46, %49 : vector<16x2048xf32>
    %51 = vector.extract_strided_slice %44 {offsets = [32, 0], sizes = [16, 2048], strides = [1, 1]} : vector<64x2048xf32> to vector<16x2048xf32>
    %52 = math.tanh %50 : vector<16x2048xf32>
    %53 = arith.mulf %51, %52 : vector<16x2048xf32>
    %c0_27 = arith.constant 0 : index
    %c0_28 = arith.constant 0 : index
    %54 = vector.load %arg6[%c0_27, %c0_28] : memref<1x16xf32, #tpu.memory_space<vmem>>, vector<1x16xf32>
    %cst_29 = arith.constant dense<0.000000e+00> : vector<1x2048xf32>
    %55 = tpu.matmul %54, %53, %cst_29 {dimension_numbers = #tpu.dot_dimension_numbers<[1], [0], [0], [1], [0, 0, 1, 1], [], []>} : vector<1x16xf32>, vector<16x2048xf32>, vector<1x2048xf32> -> vector<1x2048xf32>
    %c0_30 = arith.constant 0 : index
    %c0_31 = arith.constant 0 : index
    %56 = vector.load %arg9[%c0_30, %c0_31] : memref<2048x128xf32, #tpu.memory_space<vmem>>, vector<2048x128xf32>
    %cst_32 = arith.constant dense<0.000000e+00> : vector<1x128xf32>
    %57 = tpu.matmul %55, %56, %cst_32 {dimension_numbers = #tpu.dot_dimension_numbers<[1], [0], [0], [1], [0, 0, 1, 1], [], []>} : vector<1x2048xf32>, vector<2048x128xf32>, vector<1x128xf32> -> vector<1x128xf32>
    %58 = vector.shape_cast %57 : vector<1x128xf32> to vector<1x1x128xf32>
    %c0_33 = arith.constant 0 : index
    %c0_34 = arith.constant 0 : index
    %c0_35 = arith.constant 0 : index
    %59 = vector.load %arg10[%c0_33, %c0_34, %c0_35] : memref<1x1x128xf32, #tpu.memory_space<vmem>>, vector<1x1x128xf32>
    tpu.vector_store %arg10[%c0_33, %c0_34, %c0_35], %58 {strides = array<i32>} : memref<1x1x128xf32, #tpu.memory_space<vmem>>, vector<1x1x128xf32>,
    return
  }
  func.func @transform_0(%arg0: i32) -> (i32, i32) {
    %c0_i32 = arith.constant 0 : i32
    %c0_i32_0 = arith.constant 0 : i32
    return %c0_i32, %arg0 : i32, i32
  }
  func.func @transform_1(%arg0: i32) -> (i32, i32) {
    %c0_i32 = arith.constant 0 : i32
    %c0_i32_0 = arith.constant 0 : i32
    %c0_i32_1 = arith.constant 0 : i32
    return %c0_i32, %c0_i32_0 : i32, i32
  }
  func.func @transform_2(%arg0: i32) -> (i32, i32) {
    %c0_i32 = arith.constant 0 : i32
    %c0_i32_0 = arith.constant 0 : i32
    %c0_i32_1 = arith.constant 0 : i32
    return %c0_i32, %c0_i32_0 : i32, i32
  }
  func.func @transform_3(%arg0: i32) -> (i32, i32) {
    %c0_i32 = arith.constant 0 : i32
    %c0_i32_0 = arith.constant 0 : i32
    %c0_i32_1 = arith.constant 0 : i32
    return %c0_i32, %c0_i32_0 : i32, i32
  }
  func.func @transform_4(%arg0: i32) -> (i32, i32) {
    %c0_i32 = arith.constant 0 : i32
    %c0_i32_0 = arith.constant 0 : i32
    %c0_i32_1 = arith.constant 0 : i32
    return %c0_i32, %c0_i32_0 : i32, i32
  }
  func.func @transform_5(%arg0: i32) -> (i32, i32) {
    %c0_i32 = arith.constant 0 : i32
    %c0_i32_0 = arith.constant 0 : i32
    %c0_i32_1 = arith.constant 0 : i32
    return %c0_i32, %c0_i32_0 : i32, i32
  }
  func.func @transform_6(%arg0: i32) -> (i32, i32) {
    %c0_i32 = arith.constant 0 : i32
    %c0_i32_0 = arith.constant 0 : i32
    %c0_i32_1 = arith.constant 0 : i32
    return %c0_i32, %c0_i32_0 : i32, i32
  }
  func.func @transform_7(%arg0: i32) -> (i32, i32) {
    %c0_i32 = arith.constant 0 : i32
    %c0_i32_0 = arith.constant 0 : i32
    %c0_i32_1 = arith.constant 0 : i32
    return %c0_i32, %c0_i32_0 : i32, i32
  }
  func.func @transform_8(%arg0: i32) -> (i32, i32) {
    %c0_i32 = arith.constant 0 : i32
    %c0_i32_0 = arith.constant 0 : i32
    %c0_i32_1 = arith.constant 0 : i32
    return %c0_i32, %c0_i32_0 : i32, i32
  }
  func.func @transform_9(%arg0: i32) -> (i32, i32, i32) {
    %c0_i32 = arith.constant 0 : i32
    %c0_i32_0 = arith.constant 0 : i32
    %c0_i32_1 = arith.constant 0 : i32
    return %arg0, %c0_i32, %c0_i32_0 : i32, i32, i32
  }
}

</mosaic_0001>

<llo_original>
// kernel: tpu_custom_call.1
$region0: #{tpu_custom_call.1}
  #allocation0 [shape = 'u32[]', space=smem, size = 0x4, offset = 0x4, fixed_abs, tag = 'smem constant byte address 0x4 - core index']
  #allocation1 [shape = 'u32[144,128]{1,0:T(1,128)}', space=vmem, size = 0x12000, scoped, tag = 'internal scratch']
  %s0 = inlined_call_operand.hbm [shape: f32[16,4096], index: 0, kind: input, shape index: {}]
  %s1 = inlined_call_operand.hbm [shape: f32[16,2048], index: 1, kind: input, shape index: {}]
  %s2 = inlined_call_operand.hbm [shape: f32[16,2048], index: 2, kind: input, shape index: {}]
  %s3 = inlined_call_operand.vmem [shape: f32[48,16], index: 3, kind: input, shape index: {}]
  %s4 = inlined_call_operand.vmem [shape: f32[64,16], index: 4, kind: input, shape index: {}]
  %s5 = inlined_call_operand.vmem [shape: f32[1,16], index: 5, kind: input, shape index: {}]
  %s6 = inlined_call_operand.hbm [shape: f32[2048,128], index: 6, kind: input, shape index: {}]
  %s7 = inlined_call_operand.hbm [shape: f32[128,2048], index: 7, kind: input, shape index: {}]
  %s8 = inlined_call_operand.hbm [shape: f32[2048,128], index: 8, kind: input, shape index: {}]
  %s9 = inlined_call_operand.hbm [shape: f32[2,1,128], index: 9, kind: output, shape index: {}]
  %s10 = sld [smem:[#allocation0]]
  $region93: #{tpu_custom_call.1} parent=0
    _
  %s12 = ssub.s32 1, %s10
  %s13 = scalar_select 0, %s12, %s10
  $region1: #{tpu_custom_call.1} parent=0
    #allocation2 [shape = 'u8[262144]{0}', space=vmem, size = 0x40000, scoped, tag = 'input window, operand 0']
    #allocation3 [shape = 's32[2]{0}', space=sflag, size = 0x8, scoped, tag = 'scoped memory for tpu_custom_call.1']
    #allocation4 [shape = 's32[2]{0}', space=sflag, size = 0x8, scoped, tag = 'scoped memory for tpu_custom_call.1']
    #allocation5 [shape = 'u8[131072]{0}', space=vmem, size = 0x20000, scoped, tag = 'input window, operand 1, single buffered']
    #allocation6 [shape = 's32[1]{0}', space=sflag, size = 0x4, scoped, tag = 'scoped memory for tpu_custom_call.1']
    #allocation7 [shape = 'u8[131072]{0}', space=vmem, size = 0x20000, scoped, tag = 'input window, operand 2, single buffered']
    #allocation8 [shape = 'u8[1048576]{0}', space=vmem, size = 0x100000, scoped, tag = 'input window, operand 6, single buffered']
    #allocation9 [shape = 's32[1]{0}', space=sflag, size = 0x4, scoped, tag = 'scoped memory for tpu_custom_call.1']
    #allocation10 [shape = 'u8[1048576]{0}', space=vmem, size = 0x100000, scoped, tag = 'input window, operand 7, single buffered']
    #allocation11 [shape = 'u8[1048576]{0}', space=vmem, size = 0x100000, scoped, tag = 'input window, operand 8, single buffered']
    #allocation12 [shape = 's32[1]{0}', space=sflag, size = 0x4, scoped, tag = 'scoped memory for tpu_custom_call.1']
    #allocation13 [shape = 'u8[1024]{0}', space=vmem, size = 0x400, scoped, tag = 'output window, operand 0']
    %14 = vsyncpa [#allocation3], 0
    %s15 = scalar_lea.sflag [#allocation3], 1
    %16 = vsyncpa %s15, 0
    %17 = vsyncpa [#allocation6], 0
    %18 = vsyncpa [#allocation9], 0
    %19 = vsyncpa [#allocation12], 0
    %20 = vsyncpa [#allocation4], 0
    %s21 = scalar_lea.sflag [#allocation4], 1
    %22 = vsyncpa %s21, 0
    loop: start=0, step=1, limit=4
    $region2: #{tpu_custom_call.1} parent=1 // loop_pre_header
      _
    $region3: #{tpu_custom_call.1} parent=1 // loop_header
      %s24 = sphi 0, %s28
      %p25 = scmp.ge.s32.totalorder %s24, 4
      %s34 = sphi 0, %s36
      %s37 = sphi 0, %s34
      %s38 = sphi 0, %s37
      %s54 = sphi 0, %s38
      %s58 = sphi 0, %s58
      %s60 = sphi 0, %s58
      %s61 = sphi 0, %s60
      %s75 = sphi 0, %s61
      %s79 = sphi 0, %s79
      %s81 = sphi 0, %s79
      %s82 = sphi 0, %s81
      %s96 = sphi 0, %s82
      %s100 = sphi 0, %s100
      %s102 = sphi 0, %s100
      %s103 = sphi 0, %s102
      %s117 = sphi 0, %s103
      %s121 = sphi 0, %s121
      %s123 = sphi 0, %s121
      %s124 = sphi 0, %s123
      %s138 = sphi 0, %s124
      %s142 = sphi 0, %s142
      %s144 = sphi 0, %s142
      %s145 = sphi 0, %s144
      %s159 = sphi 0, %s145
      %s163 = sphi 0, %s163
      %s165 = sphi 0, %s163
      %s166 = sphi 0, %s165
      %s180 = sphi 0, %s166
      %s184 = sphi 0, %s184
      %s186 = sphi 0, %s184
      %s187 = sphi 0, %s186
      %s201 = sphi 0, %s187
      %s205 = sphi 0, %s205
      %s207 = sphi 0, %s205
      %s208 = sphi 0, %s207
      %s222 = sphi 0, %s208
      %s228 = sphi 0, %s230
      %s231 = sphi 0, %s228
      %s232 = sphi 0, %s231
      %s248 = sphi 0, %s232
    $region4: #{tpu_custom_call.1} parent=1 // loop_header_branch
      %27 = sbr.rel (%p25) target = $region8
    $region5: #{tpu_custom_call.1} parent=1 // loop_body
      %s29 = ssub.s32 %s24, 1
      %s30 = ssub.s32 %s24, 2
      %s31 = sadd.s32 %s24, 1
      %s32 = ssub.s32 %s24, %s31
      %p33 = scmp.eq.s32.totalorder %s32, 0
      %s35 = sadd.s32 %s34, 1
      %s36 = scalar_select %p33, %s34, %s35
      %p39 = pneg %p33
      %p40 = scmp.eq.s32.totalorder %s24, 1
      %p41 = por %p39, %p40
      %p42 = scmp.ne.s32.totalorder %s34, %s37
      %p43 = scmp.eq.s32.totalorder %s24, 0
      %p44 = por %p42, %p43
      %p45 = scmp.ne.s32.totalorder %s34, %s37
      %p46 = scmp.eq.s32.totalorder %s29, 1
      %p47 = por %p45, %p46
      %p48 = scmp.ne.s32.totalorder %s37, %s38
      %p49 = scmp.eq.s32.totalorder %s29, 0
      %p50 = por %p48, %p49
      %p51 = scmp.ne.s32.totalorder %s37, %s38
      %p52 = scmp.eq.s32.totalorder %s30, 1
      %p53 = por %p51, %p52
      %p55 = scmp.ne.s32.totalorder %s38, %s54
      %p56 = scmp.eq.s32.totalorder %s30, 0
      %p57 = por %p55, %p56
      %s59 = sadd.s32 %s58, 1
      %p62 = scmp.eq.s32.totalorder %s24, 1
      %p63 = scmp.ne.s32.totalorder %s58, %s60
      %p64 = scmp.eq.s32.totalorder %s24, 0
      %p65 = por %p63, %p64
      %p66 = scmp.ne.s32.totalorder %s58, %s60
      %p67 = scmp.eq.s32.totalorder %s29, 1
      %p68 = por %p66, %p67
      %p69 = scmp.ne.s32.totalorder %s60, %s61
      %p70 = scmp.eq.s32.totalorder %s29, 0
      %p71 = por %p69, %p70
      %p72 = scmp.ne.s32.totalorder %s60, %s61
      %p73 = scmp.eq.s32.totalorder %s30, 1
      %p74 = por %p72, %p73
      %p76 = scmp.ne.s32.totalorder %s61, %s75
      %p77 = scmp.eq.s32.totalorder %s30, 0
      %p78 = por %p76, %p77
      %s80 = sadd.s32 %s79, 1
      %p83 = scmp.eq.s32.totalorder %s24, 1
      %p84 = scmp.ne.s32.totalorder %s79, %s81
      %p85 = scmp.eq.s32.totalorder %s24, 0
      %p86 = por %p84, %p85
      %p87 = scmp.ne.s32.totalorder %s79, %s81
      %p88 = scmp.eq.s32.totalorder %s29, 1
      %p89 = por %p87, %p88
      %p90 = scmp.ne.s32.totalorder %s81, %s82
      %p91 = scmp.eq.s32.totalorder %s29, 0
      %p92 = por %p90, %p91
      %p93 = scmp.ne.s32.totalorder %s81, %s82
      %p94 = scmp.eq.s32.totalorder %s30, 1
      %p95 = por %p93, %p94
      %p97 = scmp.ne.s32.totalorder %s82, %s96
      %p98 = scmp.eq.s32.totalorder %s30, 0
      %p99 = por %p97, %p98
      %s101 = sadd.s32 %s100, 1
      %p104 = scmp.eq.s32.totalorder %s24, 1
      %p105 = scmp.ne.s32.totalorder %s100, %s102
      %p106 = scmp.eq.s32.totalorder %s24, 0
      %p107 = por %p105, %p106
      %p108 = scmp.ne.s32.totalorder %s100, %s102
      %p109 = scmp.eq.s32.totalorder %s29, 1
      %p110 = por %p108, %p109
      %p111 = scmp.ne.s32.totalorder %s102, %s103
      %p112 = scmp.eq.s32.totalorder %s29, 0
      %p113 = por %p111, %p112
      %p114 = scmp.ne.s32.totalorder %s102, %s103
      %p115 = scmp.eq.s32.totalorder %s30, 1
      %p116 = por %p114, %p115
      %p118 = scmp.ne.s32.totalorder %s103, %s117
      %p119 = scmp.eq.s32.totalorder %s30, 0
      %p120 = por %p118, %p119
      %s122 = sadd.s32 %s121, 1
      %p125 = scmp.eq.s32.totalorder %s24, 1
      %p126 = scmp.ne.s32.totalorder %s121, %s123
      %p127 = scmp.eq.s32.totalorder %s24, 0
      %p128 = por %p126, %p127
      %p129 = scmp.ne.s32.totalorder %s121, %s123
      %p130 = scmp.eq.s32.totalorder %s29, 1
      %p131 = por %p129, %p130
      %p132 = scmp.ne.s32.totalorder %s123, %s124
      %p133 = scmp.eq.s32.totalorder %s29, 0
      %p134 = por %p132, %p133
      %p135 = scmp.ne.s32.totalorder %s123, %s124
      %p136 = scmp.eq.s32.totalorder %s30, 1
      %p137 = por %p135, %p136
      %p139 = scmp.ne.s32.totalorder %s124, %s138
      %p140 = scmp.eq.s32.totalorder %s30, 0
      %p141 = por %p139, %p140
      %s143 = sadd.s32 %s142, 1
      %p146 = scmp.eq.s32.totalorder %s24, 1
      %p147 = scmp.ne.s32.totalorder %s142, %s144
      %p148 = scmp.eq.s32.totalorder %s24, 0
      %p149 = por %p147, %p148
      %p150 = scmp.ne.s32.totalorder %s142, %s144
      %p151 = scmp.eq.s32.totalorder %s29, 1
      %p152 = por %p150, %p151
      %p153 = scmp.ne.s32.totalorder %s144, %s145
      %p154 = scmp.eq.s32.totalorder %s29, 0
      %p155 = por %p153, %p154
      %p156 = scmp.ne.s32.totalorder %s144, %s145
      %p157 = scmp.eq.s32.totalorder %s30, 1
      %p158 = por %p156, %p157
      %p160 = scmp.ne.s32.totalorder %s145, %s159
      %p161 = scmp.eq.s32.totalorder %s30, 0
      %p162 = por %p160, %p161
      %s164 = sadd.s32 %s163, 1
      %p167 = scmp.eq.s32.totalorder %s24, 1
      %p168 = scmp.ne.s32.totalorder %s163, %s165
      %p169 = scmp.eq.s32.totalorder %s24, 0
      %p170 = por %p168, %p169
      %p171 = scmp.ne.s32.totalorder %s163, %s165
      %p172 = scmp.eq.s32.totalorder %s29, 1
      %p173 = por %p171, %p172
      %p174 = scmp.ne.s32.totalorder %s165, %s166
      %p175 = scmp.eq.s32.totalorder %s29, 0
      %p176 = por %p174, %p175
      %p177 = scmp.ne.s32.totalorder %s165, %s166
      %p178 = scmp.eq.s32.totalorder %s30, 1
      %p179 = por %p177, %p178
      %p181 = scmp.ne.s32.totalorder %s166, %s180
      %p182 = scmp.eq.s32.totalorder %s30, 0
      %p183 = por %p181, %p182
      %s185 = sadd.s32 %s184, 1
      %p188 = scmp.eq.s32.totalorder %s24, 1
      %p189 = scmp.ne.s32.totalorder %s184, %s186
      %p190 = scmp.eq.s32.totalorder %s24, 0
      %p191 = por %p189, %p190
      %p192 = scmp.ne.s32.totalorder %s184, %s186
      %p193 = scmp.eq.s32.totalorder %s29, 1
      %p194 = por %p192, %p193
      %p195 = scmp.ne.s32.totalorder %s186, %s187
      %p196 = scmp.eq.s32.totalorder %s29, 0
      %p197 = por %p195, %p196
      %p198 = scmp.ne.s32.totalorder %s186, %s187
      %p199 = scmp.eq.s32.totalorder %s30, 1
      %p200 = por %p198, %p199
      %p202 = scmp.ne.s32.totalorder %s187, %s201
      %p203 = scmp.eq.s32.totalorder %s30, 0
      %p204 = por %p202, %p203
      %s206 = sadd.s32 %s205, 1
      %p209 = scmp.eq.s32.totalorder %s24, 1
      %p210 = scmp.ne.s32.totalorder %s205, %s207
      %p211 = scmp.eq.s32.totalorder %s24, 0
      %p212 = por %p210, %p211
      %p213 = scmp.ne.s32.totalorder %s205, %s207
      %p214 = scmp.eq.s32.totalorder %s29, 1
      %p215 = por %p213, %p214
      %p216 = scmp.ne.s32.totalorder %s207, %s208
      %p217 = scmp.eq.s32.totalorder %s29, 0
      %p218 = por %p216, %p217
      %p219 = scmp.ne.s32.totalorder %s207, %s208
      %p220 = scmp.eq.s32.totalorder %s30, 1
      %p221 = por %p219, %p220
      %p223 = scmp.ne.s32.totalorder %s208, %s222
      %p224 = scmp.eq.s32.totalorder %s30, 0
      %p225 = por %p223, %p224
      %s226 = ssub.s32 %s24, %s31
      %p227 = scmp.eq.s32.totalorder %s226, 0
      %s229 = sadd.s32 %s228, 1
      %s230 = scalar_select %p227, %s228, %s229
      %p233 = pneg %p227
      %p234 = scmp.eq.s32.totalorder %s24, 1
      %p235 = por %p233, %p234
      %p236 = scmp.ne.s32.totalorder %s228, %s231
      %p237 = scmp.eq.s32.totalorder %s24, 0
      %p238 = por %p236, %p237
      %p239 = scmp.ne.s32.totalorder %s228, %s231
      %p240 = scmp.eq.s32.totalorder %s29, 1
      %p241 = por %p239, %p240
      %p242 = scmp.ne.s32.totalorder %s231, %s232
      %p243 = scmp.eq.s32.totalorder %s29, 0
      %p244 = por %p242, %p243
      %p245 = scmp.ne.s32.totalorder %s231, %s232
      %p246 = scmp.eq.s32.totalorder %s30, 1
      %p247 = por %p245, %p246
      %p249 = scmp.ne.s32.totalorder %s232, %s248
      %p250 = scmp.eq.s32.totalorder %s30, 0
      %p251 = por %p249, %p250
      %p252 = scmp.le.s32.totalorder 1, %s24
      %p253 = scmp.lt.s32.totalorder %s24, 3
      %p254 = pnand %p252, %p253
      %p255 = pneg %p254
      // Predicated region
      $region9: #{tpu_custom_call.1} parent=5 // pred_check
        _
      $region10: #{tpu_custom_call.1} parent=5 // pred_check_branch
        %257 = sbr.rel (%p254) target = $region12
      $region11: #{tpu_custom_call.1} parent=5 // pred_region
        %s258 = ssub.s32 %s24, 1
        // Predicated region
        $region13: #{tpu_custom_call.1} parent=11 // pred_check
          %p259 = pneg %p71
        $region14: #{tpu_custom_call.1} parent=11 // pred_check_branch
          %261 = sbr.rel (%p259) target = $region16
        $region15: #{tpu_custom_call.1} parent=11 // pred_region
          %s263 = ssub.s32 4096, 4096
          %264 = vsyncadd [#allocation6], %s263
          %s265 = sshll.u32 [#allocation5], 4
          %s266 = int_to_ptr.vmem [resolvable:$true] %s265
          %271 = dma.hbm_to_vmem [thread:$0]  %s1, 4096, %s266, [#allocation6], 2048, 2048, 128
        $region16: #{tpu_custom_call.1} parent=11 // pred_fallthru
          _
        // Predicated region
        $region17: #{tpu_custom_call.1} parent=11 // pred_check
          %p272 = pneg %p92
        $region18: #{tpu_custom_call.1} parent=11 // pred_check_branch
          %274 = sbr.rel (%p272) target = $region20
        $region19: #{tpu_custom_call.1} parent=11 // pred_region
          %s276 = ssub.s32 4096, 4096
          %277 = vsyncadd [#allocation6], %s276
          %s278 = sshll.u32 [#allocation7], 4
          %s279 = int_to_ptr.vmem [resolvable:$true] %s278
          %284 = dma.hbm_to_vmem [thread:$0]  %s2, 4096, %s279, [#allocation6], 2048, 2048, 128
        $region20: #{tpu_custom_call.1} parent=11 // pred_fallthru
          _
        // Predicated region
        $region21: #{tpu_custom_call.1} parent=11 // pred_check
          %p285 = pneg %p113
        $region22: #{tpu_custom_call.1} parent=11 // pred_check_branch
          %287 = sbr.rel (%p285) target = $region24
        $region23: #{tpu_custom_call.1} parent=11 // pred_region
          _
        $region24: #{tpu_custom_call.1} parent=11 // pred_fallthru
          _
        // Predicated region
        $region25: #{tpu_custom_call.1} parent=11 // pred_check
          %p288 = pneg %p134
        $region26: #{tpu_custom_call.1} parent=11 // pred_check_branch
          %290 = sbr.rel (%p288) target = $region28
        $region27: #{tpu_custom_call.1} parent=11 // pred_region
          _
        $region28: #{tpu_custom_call.1} parent=11 // pred_fallthru
          _
        // Predicated region
        $region29: #{tpu_custom_call.1} parent=11 // pred_check
          %p291 = pneg %p155
        $region30: #{tpu_custom_call.1} parent=11 // pred_check_branch
          %293 = sbr.rel (%p291) target = $region32
        $region31: #{tpu_custom_call.1} parent=11 // pred_region
          _
        $region32: #{tpu_custom_call.1} parent=11 // pred_fallthru
          _
        // Predicated region
        $region33: #{tpu_custom_call.1} parent=11 // pred_check
          %p294 = pneg %p176
        $region34: #{tpu_custom_call.1} parent=11 // pred_check_branch
          %296 = sbr.rel (%p294) target = $region36
        $region35: #{tpu_custom_call.1} parent=11 // pred_region
          %s298 = ssub.s32 32768, 32768
          %299 = vsyncadd [#allocation9], %s298
          %s300 = sshll.u32 [#allocation8], 4
          %s301 = int_to_ptr.vmem [resolvable:$true] %s300
          %306 = dma.hbm_to_vmem [thread:$0]  %s6, 32768, %s301, [#allocation9], 128, 128, 8
        $region36: #{tpu_custom_call.1} parent=11 // pred_fallthru
          _
        // Predicated region
        $region37: #{tpu_custom_call.1} parent=11 // pred_check
          %p307 = pneg %p197
        $region38: #{tpu_custom_call.1} parent=11 // pred_check_branch
          %309 = sbr.rel (%p307) target = $region40
        $region39: #{tpu_custom_call.1} parent=11 // pred_region
          %s311 = ssub.s32 32768, 32768
          %312 = vsyncadd [#allocation9], %s311
          %s313 = sshll.u32 [#allocation10], 4
          %s314 = int_to_ptr.vmem [resolvable:$true] %s313
          %319 = dma.hbm_to_vmem [thread:$0]  %s7, 32768, %s314, [#allocation9], 2048, 2048, 128
        $region40: #{tpu_custom_call.1} parent=11 // pred_fallthru
          _
        // Predicated region
        $region41: #{tpu_custom_call.1} parent=11 // pred_check
          %p320 = pneg %p218
        $region42: #{tpu_custom_call.1} parent=11 // pred_check_branch
          %322 = sbr.rel (%p320) target = $region44
        $region43: #{tpu_custom_call.1} parent=11 // pred_region
          %s324 = ssub.s32 32768, 32768
          %325 = vsyncadd [#allocation12], %s324
          %s326 = sshll.u32 [#allocation11], 4
          %s327 = int_to_ptr.vmem [resolvable:$true] %s326
          %332 = dma.hbm_to_vmem [thread:$0]  %s8, 32768, %s327, [#allocation12], 128, 128, 8
        $region44: #{tpu_custom_call.1} parent=11 // pred_fallthru
          _
      $region12: #{tpu_custom_call.1} parent=5 // pred_fallthru
        _
      %p333 = scmp.lt.s32.totalorder %s24, 2
      // Predicated region
      $region45: #{tpu_custom_call.1} parent=5 // pred_check
        %p334 = pneg %p333
      $region46: #{tpu_custom_call.1} parent=5 // pred_check_branch
        %336 = sbr.rel (%p334) target = $region48
      $region47: #{tpu_custom_call.1} parent=5 // pred_region
        // Predicated region
        $region49: #{tpu_custom_call.1} parent=47 // pred_check
          %p337 = pneg %p44
        $region50: #{tpu_custom_call.1} parent=47 // pred_check_branch
          %339 = sbr.rel (%p337) target = $region52
        $region51: #{tpu_custom_call.1} parent=47 // pred_region
          %s340 = sand.u32 %s34, 1
          %s341 = scalar_lea.sflag [#allocation3], %s340
          %s342 = sand.u32 %s34, 1
          %s343 = smul.addr %s342, 256
          %s344 = scalar_lea.vmem [#allocation2], %s343
          %s345 = smul.u32 16, %s24
          %s347 = ssub.s32 4096, 4096
          %348 = vsyncadd %s341, %s347
          %s349 = smul.addr %s345, 128
          %s350 = scalar_lea.hbm %s0, %s349
          %s351 = sshll.u32 %s344, 4
          %s352 = int_to_ptr.vmem [resolvable:$true] %s351
          %357 = dma.hbm_to_vmem [thread:$0]  %s350, 4096, %s352, %s341, 4096, 2048, 128
        $region52: #{tpu_custom_call.1} parent=47 // pred_fallthru
          _
      $region48: #{tpu_custom_call.1} parent=5 // pred_fallthru
        _
      %p358 = scmp.le.s32.totalorder 1, %s24
      %p359 = scmp.lt.s32.totalorder %s24, 3
      %p360 = pnand %p358, %p359
      %p361 = pneg %p360
      // Predicated region
      $region53: #{tpu_custom_call.1} parent=5 // pred_check
        _
      $region54: #{tpu_custom_call.1} parent=5 // pred_check_branch
        %363 = sbr.rel (%p360) target = $region56
      $region55: #{tpu_custom_call.1} parent=5 // pred_region
        %s364 = ssub.s32 %s24, 1
        %s365 = sand.u32 %s37, 1
        %s366 = scalar_lea.sflag [#allocation3], %s365
        %s367 = sand.u32 %s37, 1
        %s368 = smul.addr %s367, 256
        %s369 = scalar_lea.vmem [#allocation2], %s368
        // Predicated region
        $region57: #{tpu_custom_call.1} parent=55 // pred_check
          %p370 = pneg %p50
        $region58: #{tpu_custom_call.1} parent=55 // pred_check_branch
          %372 = sbr.rel (%p370) target = $region60
        $region59: #{tpu_custom_call.1} parent=55 // pred_region
          %373 = dma.done %s366, 4096
        $region60: #{tpu_custom_call.1} parent=55 // pred_fallthru
          _
        // Predicated region
        $region61: #{tpu_custom_call.1} parent=55 // pred_check
          %p374 = pneg %p71
        $region62: #{tpu_custom_call.1} parent=55 // pred_check_branch
          %376 = sbr.rel (%p374) target = $region64
        $region63: #{tpu_custom_call.1} parent=55 // pred_region
          %377 = dma.done [#allocation6], 4096
        $region64: #{tpu_custom_call.1} parent=55 // pred_fallthru
          _
        // Predicated region
        $region65: #{tpu_custom_call.1} parent=55 // pred_check
          %p378 = pneg %p92
        $region66: #{tpu_custom_call.1} parent=55 // pred_check_branch
          %380 = sbr.rel (%p378) target = $region68
        $region67: #{tpu_custom_call.1} parent=55 // pred_region
          %381 = dma.done [#allocation6], 4096
        $region68: #{tpu_custom_call.1} parent=55 // pred_fallthru
          _
        // Predicated region
        $region69: #{tpu_custom_call.1} parent=55 // pred_check
          %p382 = pneg %p176
        $region70: #{tpu_custom_call.1} parent=55 // pred_check_branch
          %384 = sbr.rel (%p382) target = $region72
        $region71: #{tpu_custom_call.1} parent=55 // pred_region
          %385 = dma.done [#allocation9], 32768
        $region72: #{tpu_custom_call.1} parent=55 // pred_fallthru
          _
        // Predicated region
        $region73: #{tpu_custom_call.1} parent=55 // pred_check
          %p386 = pneg %p197
        $region74: #{tpu_custom_call.1} parent=55 // pred_check_branch
          %388 = sbr.rel (%p386) target = $region76
        $region75: #{tpu_custom_call.1} parent=55 // pred_region
          %389 = dma.done [#allocation9], 32768
        $region76: #{tpu_custom_call.1} parent=55 // pred_fallthru
          _
        // Predicated region
        $region77: #{tpu_custom_call.1} parent=55 // pred_check
          %p390 = pneg %p218
        $region78: #{tpu_custom_call.1} parent=55 // pred_check_branch
          %392 = sbr.rel (%p390) target = $region80
        $region79: #{tpu_custom_call.1} parent=55 // pred_region
          %393 = dma.done [#allocation12], 32768
        $region80: #{tpu_custom_call.1} parent=55 // pred_fallthru
          _
        %s394 = sand.u32 %s37, 1
        %s395 = scalar_lea.sflag [#allocation3], %s394
        %s396 = sand.u32 %s37, 1
        %s397 = smul.addr %s396, 256
        %s398 = scalar_lea.vmem [#allocation2], %s397
        %p399 = pneg %p50
        %p400 = pneg %p47
        %p401 = pneg %p71
        %p402 = pneg %p68
        %p403 = pneg %p92
        %p404 = pneg %p89
        %p405 = pneg %p113
        %p406 = pneg %p110
        %p407 = pneg %p134
        %p408 = pneg %p131
        %p409 = pneg %p155
        %p410 = pneg %p152
        %p411 = pneg %p176
        %p412 = pneg %p173
        %p413 = pneg %p197
        %p414 = pneg %p194
        %p415 = pneg %p218
        %p416 = pneg %p215
        %p417 = pneg %p244
        %p418 = pneg %p241
        %s419 = sand.u32 %s231, 1
        %s420 = scalar_lea.sflag [#allocation4], %s419
        %s421 = sand.u32 %s231, 1
        %s422 = scalar_lea.vmem [#allocation13], %s421
        %s423 = smul.u32 16, %s29
        %v424 = vld [vmem:[%s369] sm:$0xff]
        %v425 = vld [vmem:[%s369 + $0x8] sm:$0xff]
        %v426 = vld [vmem:[%s369 + $0x10] sm:$0xff]
        %v427 = vld [vmem:[%s369 + $0x18] sm:$0xff]
        %v428 = vld [vmem:[%s369 + $0x20] sm:$0xff]
        %v429 = vld [vmem:[%s369 + $0x28] sm:$0xff]
        %v430 = vld [vmem:[%s369 + $0x30] sm:$0xff]
        %v431 = vld [vmem:[%s369 + $0x38] sm:$0xff]
        %v432 = vld [vmem:[%s369 + $0x40] sm:$0xff]
        %v433 = vld [vmem:[%s369 + $0x48] sm:$0xff]
        %v434 = vld [vmem:[%s369 + $0x50] sm:$0xff]
        %v435 = vld [vmem:[%s369 + $0x58] sm:$0xff]
        %v436 = vld [vmem:[%s369 + $0x60] sm:$0xff]
        %v437 = vld [vmem:[%s369 + $0x68] sm:$0xff]
        %v438 = vld [vmem:[%s369 + $0x70] sm:$0xff]
        %v439 = vld [vmem:[%s369 + $0x78] sm:$0xff]
        %v440 = vld [vmem:[%s369 + $0x80] sm:$0xff]
        %v441 = vld [vmem:[%s369 + $0x88] sm:$0xff]
        %v442 = vld [vmem:[%s369 + $0x90] sm:$0xff]
        %v443 = vld [vmem:[%s369 + $0x98] sm:$0xff]
        %v444 = vld [vmem:[%s369 + $0xa0] sm:$0xff]
        %v445 = vld [vmem:[%s369 + $0xa8] sm:$0xff]
        %v446 = vld [vmem:[%s369 + $0xb0] sm:$0xff]
        %v447 = vld [vmem:[%s369 + $0xb8] sm:$0xff]
        %v448 = vld [vmem:[%s369 + $0xc0] sm:$0xff]
        %v449 = vld [vmem:[%s369 + $0xc8] sm:$0xff]
        %v450 = vld [vmem:[%s369 + $0xd0] sm:$0xff]
        %v451 = vld [vmem:[%s369 + $0xd8] sm:$0xff]
        %v452 = vld [vmem:[%s369 + $0xe0] sm:$0xff]
        %v453 = vld [vmem:[%s369 + $0xe8] sm:$0xff]
        %v454 = vld [vmem:[%s369 + $0xf0] sm:$0xff]
        %v455 = vld [vmem:[%s369 + $0xf8] sm:$0xff]
        %v456 = vadd.f32 %v424, %v440
        %v457 = vrot.slane %v456, 4
        %v458 = vadd.f32 %v456, %v457
        %v459 = vrot.slane %v458, 2
        %v460 = vadd.f32 %v458, %v459
        %v461 = vrot.slane %v460, 1
        %v462 = vadd.f32 %v460, %v461
        %v463 = vadd.f32 %v425, %v441
        %v464 = vrot.slane %v463, 4
        %v465 = vadd.f32 %v463, %v464
        %v466 = vrot.slane %v465, 2
        %v467 = vadd.f32 %v465, %v466
        %v468 = vrot.slane %v467, 1
        %v469 = vadd.f32 %v467, %v468
        %v470 = vadd.f32 %v426, %v442
        %v471 = vrot.slane %v470, 4
        %v472 = vadd.f32 %v470, %v471
        %v473 = vrot.slane %v472, 2
        %v474 = vadd.f32 %v472, %v473
        %v475 = vrot.slane %v474, 1
        %v476 = vadd.f32 %v474, %v475
        %v477 = vadd.f32 %v427, %v443
        %v478 = vrot.slane %v477, 4
        %v479 = vadd.f32 %v477, %v478
        %v480 = vrot.slane %v479, 2
        %v481 = vadd.f32 %v479, %v480
        %v482 = vrot.slane %v481, 1
        %v483 = vadd.f32 %v481, %v482
        %v484 = vadd.f32 %v428, %v444
        %v485 = vrot.slane %v484, 4
        %v486 = vadd.f32 %v484, %v485
        %v487 = vrot.slane %v486, 2
        %v488 = vadd.f32 %v486, %v487
        %v489 = vrot.slane %v488, 1
        %v490 = vadd.f32 %v488, %v489
        %v491 = vadd.f32 %v429, %v445
        %v492 = vrot.slane %v491, 4
        %v493 = vadd.f32 %v491, %v492
        %v494 = vrot.slane %v493, 2
        %v495 = vadd.f32 %v493, %v494
        %v496 = vrot.slane %v495, 1
        %v497 = vadd.f32 %v495, %v496
        %v498 = vadd.f32 %v430, %v446
        %v499 = vrot.slane %v498, 4
        %v500 = vadd.f32 %v498, %v499
        %v501 = vrot.slane %v500, 2
        %v502 = vadd.f32 %v500, %v501
        %v503 = vrot.slane %v502, 1
        %v504 = vadd.f32 %v502, %v503
        %v505 = vadd.f32 %v431, %v447
        %v506 = vrot.slane %v505, 4
        %v507 = vadd.f32 %v505, %v506
        %v508 = vrot.slane %v507, 2
        %v509 = vadd.f32 %v507, %v508
        %v510 = vrot.slane %v509, 1
        %v511 = vadd.f32 %v509, %v510
        %v512 = vadd.f32 %v432, %v448
        %v513 = vrot.slane %v512, 4
        %v514 = vadd.f32 %v512, %v513
        %v515 = vrot.slane %v514, 2
        %v516 = vadd.f32 %v514, %v515
        %v517 = vrot.slane %v516, 1
        %v518 = vadd.f32 %v516, %v517
        %v519 = vadd.f32 %v433, %v449
        %v520 = vrot.slane %v519, 4
        %v521 = vadd.f32 %v519, %v520
        %v522 = vrot.slane %v521, 2
        %v523 = vadd.f32 %v521, %v522
        %v524 = vrot.slane %v523, 1
        %v525 = vadd.f32 %v523, %v524
        %v526 = vadd.f32 %v434, %v450
        %v527 = vrot.slane %v526, 4
        %v528 = vadd.f32 %v526, %v527
        %v529 = vrot.slane %v528, 2
        %v530 = vadd.f32 %v528, %v529
        %v531 = vrot.slane %v530, 1
        %v532 = vadd.f32 %v530, %v531
        %v533 = vadd.f32 %v435, %v451
        %v534 = vrot.slane %v533, 4
        %v535 = vadd.f32 %v533, %v534
        %v536 = vrot.slane %v535, 2
        %v537 = vadd.f32 %v535, %v536
        %v538 = vrot.slane %v537, 1
        %v539 = vadd.f32 %v537, %v538
        %v540 = vadd.f32 %v436, %v452
        %v541 = vrot.slane %v540, 4
        %v542 = vadd.f32 %v540, %v541
        %v543 = vrot.slane %v542, 2
        %v544 = vadd.f32 %v542, %v543
        %v545 = vrot.slane %v544, 1
        %v546 = vadd.f32 %v544, %v545
        %v547 = vadd.f32 %v437, %v453
        %v548 = vrot.slane %v547, 4
        %v549 = vadd.f32 %v547, %v548
        %v550 = vrot.slane %v549, 2
        %v551 = vadd.f32 %v549, %v550
        %v552 = vrot.slane %v551, 1
        %v553 = vadd.f32 %v551, %v552
        %v554 = vadd.f32 %v438, %v454
        %v555 = vrot.slane %v554, 4
        %v556 = vadd.f32 %v554, %v555
        %v557 = vrot.slane %v556, 2
        %v558 = vadd.f32 %v556, %v557
        %v559 = vrot.slane %v558, 1
        %v560 = vadd.f32 %v558, %v559
        %v561 = vadd.f32 %v439, %v455
        %v562 = vrot.slane %v561, 4
        %v563 = vadd.f32 %v561, %v562
        %v564 = vrot.slane %v563, 2
        %v565 = vadd.f32 %v563, %v564
        %v566 = vrot.slane %v565, 1
        %v567 = vadd.f32 %v565, %v566
        %v568 = vld [vmem:[#allocation8] sm:$0xff]
        %v569 = vld [vmem:[#allocation8 + $0x8] sm:$0xff]
        %v570 = vld [vmem:[#allocation8 + $0x10] sm:$0xff]
        %v571 = vld [vmem:[#allocation8 + $0x18] sm:$0xff]
        %v572 = vld [vmem:[#allocation8 + $0x20] sm:$0xff]
        %v573 = vld [vmem:[#allocation8 + $0x28] sm:$0xff]
        %v574 = vld [vmem:[#allocation8 + $0x30] sm:$0xff]
        %v575 = vld [vmem:[#allocation8 + $0x38] sm:$0xff]
        %v576 = vld [vmem:[#allocation8 + $0x40] sm:$0xff]
        %v577 = vld [vmem:[#allocation8 + $0x48] sm:$0xff]
        %v578 = vld [vmem:[#allocation8 + $0x50] sm:$0xff]
        %v579 = vld [vmem:[#allocation8 + $0x58] sm:$0xff]
        %v580 = vld [vmem:[#allocation8 + $0x60] sm:$0xff]
        %v581 = vld [vmem:[#allocation8 + $0x68] sm:$0xff]
        %v582 = vld [vmem:[#allocation8 + $0x70] sm:$0xff]
        %v583 = vld [vmem:[#allocation8 + $0x78] sm:$0xff]
        %v584 = vld [vmem:[#allocation8 + $0x80] sm:$0xff]
        %v585 = vld [vmem:[#allocation8 + $0x88] sm:$0xff]
        %v586 = vld [vmem:[#allocation8 + $0x90] sm:$0xff]
        %v587 = vld [vmem:[#allocation8 + $0x98] sm:$0xff]
        %v588 = vld [vmem:[#allocation8 + $0xa0] sm:$0xff]
        %v589 = vld [vmem:[#allocation8 + $0xa8] sm:$0xff]
        %v590 = vld [vmem:[#allocation8 + $0xb0] sm:$0xff]
        %v591 = vld [vmem:[#allocation8 + $0xb8] sm:$0xff]
        %v592 = vld [vmem:[#allocation8 + $0xc0] sm:$0xff]
        %v593 = vld [vmem:[#allocation8 + $0xc8] sm:$0xff]
        %v594 = vld [vmem:[#allocation8 + $0xd0] sm:$0xff]
        %v595 = vld [vmem:[#allocation8 + $0xd8] sm:$0xff]
        %v596 = vld [vmem:[#allocation8 + $0xe0] sm:$0xff]
        %v597 = vld [vmem:[#allocation8 + $0xe8] sm:$0xff]
        %v598 = vld [vmem:[#allocation8 + $0xf0] sm:$0xff]
        %v599 = vld [vmem:[#allocation8 + $0xf8] sm:$0xff]
        %v600 = vld [vmem:[#allocation8 + $0x100] sm:$0xff]
        %v601 = vld [vmem:[#allocation8 + $0x108] sm:$0xff]
        %v602 = vld [vmem:[#allocation8 + $0x110] sm:$0xff]
        %v603 = vld [vmem:[#allocation8 + $0x118] sm:$0xff]
        %v604 = vld [vmem:[#allocation8 + $0x120] sm:$0xff]
        %v605 = vld [vmem:[#allocation8 + $0x128] sm:$0xff]
        %v606 = vld [vmem:[#allocation8 + $0x130] sm:$0xff]
        %v607 = vld [vmem:[#allocation8 + $0x138] sm:$0xff]
        %v608 = vld [vmem:[#allocation8 + $0x140] sm:$0xff]
        %v609 = vld [vmem:[#allocation8 + $0x148] sm:$0xff]
        %v610 = vld [vmem:[#allocation8 + $0x150] sm:$0xff]
        %v611 = vld [vmem:[#allocation8 + $0x158] sm:$0xff]
        %v612 = vld [vmem:[#allocation8 + $0x160] sm:$0xff]
        %v613 = vld [vmem:[#allocation8 + $0x168] sm:$0xff]
        %v614 = vld [vmem:[#allocation8 + $0x170] sm:$0xff]
        %v615 = vld [vmem:[#allocation8 + $0x178] sm:$0xff]
        %v616 = vld [vmem:[#allocation8 + $0x180] sm:$0xff]
        %v617 = vld [vmem:[#allocation8 + $0x188] sm:$0xff]
        %v618 = vld [vmem:[#allocation8 + $0x190] sm:$0xff]
        %v619 = vld [vmem:[#allocation8 + $0x198] sm:$0xff]
        %v620 = vld [vmem:[#allocation8 + $0x1a0] sm:$0xff]
        %v621 = vld [vmem:[#allocation8 + $0x1a8] sm:$0xff]
        %v622 = vld [vmem:[#allocation8 + $0x1b0] sm:$0xff]
        %v623 = vld [vmem:[#allocation8 + $0x1b8] sm:$0xff]
        %v624 = vld [vmem:[#allocation8 + $0x1c0] sm:$0xff]
        %v625 = vld [vmem:[#allocation8 + $0x1c8] sm:$0xff]
        %v626 = vld [vmem:[#allocation8 + $0x1d0] sm:$0xff]
        %v627 = vld [vmem:[#allocation8 + $0x1d8] sm:$0xff]
        %v628 = vld [vmem:[#allocation8 + $0x1e0] sm:$0xff]
        %v629 = vld [vmem:[#allocation8 + $0x1e8] sm:$0xff]
        %v630 = vld [vmem:[#allocation8 + $0x1f0] sm:$0xff]
        %v631 = vld [vmem:[#allocation8 + $0x1f8] sm:$0xff]
        %v632 = vld [vmem:[#allocation8 + $0x200] sm:$0xff]
        %v633 = vld [vmem:[#allocation8 + $0x208] sm:$0xff]
        %v634 = vld [vmem:[#allocation8 + $0x210] sm:$0xff]
        %v635 = vld [vmem:[#allocation8 + $0x218] sm:$0xff]
        %v636 = vld [vmem:[#allocation8 + $0x220] sm:$0xff]
        %v637 = vld [vmem:[#allocation8 + $0x228] sm:$0xff]
        %v638 = vld [vmem:[#allocation8 + $0x230] sm:$0xff]
        %v639 = vld [vmem:[#allocation8 + $0x238] sm:$0xff]
        %v640 = vld [vmem:[#allocation8 + $0x240] sm:$0xff]
        %v641 = vld [vmem:[#allocation8 + $0x248] sm:$0xff]
        %v642 = vld [vmem:[#allocation8 + $0x250] sm:$0xff]
        %v643 = vld [vmem:[#allocation8 + $0x258] sm:$0xff]
        %v644 = vld [vmem:[#allocation8 + $0x260] sm:$0xff]
        %v645 = vld [vmem:[#allocation8 + $0x268] sm:$0xff]
        %v646 = vld [vmem:[#allocation8 + $0x270] sm:$0xff]
        %v647 = vld [vmem:[#allocation8 + $0x278] sm:$0xff]
        %v648 = vld [vmem:[#allocation8 + $0x280] sm:$0xff]
        %v649 = vld [vmem:[#allocation8 + $0x288] sm:$0xff]
        %v650 = vld [vmem:[#allocation8 + $0x290] sm:$0xff]
        %v651 = vld [vmem:[#allocation8 + $0x298] sm:$0xff]
        %v652 = vld [vmem:[#allocation8 + $0x2a0] sm:$0xff]
        %v653 = vld [vmem:[#allocation8 + $0x2a8] sm:$0xff]
        %v654 = vld [vmem:[#allocation8 + $0x2b0] sm:$0xff]
        %v655 = vld [vmem:[#allocation8 + $0x2b8] sm:$0xff]
        %v656 = vld [vmem:[#allocation8 + $0x2c0] sm:$0xff]
        %v657 = vld [vmem:[#allocation8 + $0x2c8] sm:$0xff]
        %v658 = vld [vmem:[#allocation8 + $0x2d0] sm:$0xff]
        %v659 = vld [vmem:[#allocation8 + $0x2d8] sm:$0xff]
        %v660 = vld [vmem:[#allocation8 + $0x2e0] sm:$0xff]
        %v661 = vld [vmem:[#allocation8 + $0x2e8] sm:$0xff]
        %v662 = vld [vmem:[#allocation8 + $0x2f0] sm:$0xff]
        %v663 = vld [vmem:[#allocation8 + $0x2f8] sm:$0xff]
        %v664 = vld [vmem:[#allocation8 + $0x300] sm:$0xff]
        %v665 = vld [vmem:[#allocation8 + $0x308] sm:$0xff]
        %v666 = vld [vmem:[#allocation8 + $0x310] sm:$0xff]
        %v667 = vld [vmem:[#allocation8 + $0x318] sm:$0xff]
        %v668 = vld [vmem:[#allocation8 + $0x320] sm:$0xff]
        %v669 = vld [vmem:[#allocation8 + $0x328] sm:$0xff]
        %v670 = vld [vmem:[#allocation8 + $0x330] sm:$0xff]
        %v671 = vld [vmem:[#allocation8 + $0x338] sm:$0xff]
        %v672 = vld [vmem:[#allocation8 + $0x340] sm:$0xff]
        %v673 = vld [vmem:[#allocation8 + $0x348] sm:$0xff]
        %v674 = vld [vmem:[#allocation8 + $0x350] sm:$0xff]
        %v675 = vld [vmem:[#allocation8 + $0x358] sm:$0xff]
        %v676 = vld [vmem:[#allocation8 + $0x360] sm:$0xff]
        %v677 = vld [vmem:[#allocation8 + $0x368] sm:$0xff]
        %v678 = vld [vmem:[#allocation8 + $0x370] sm:$0xff]
        %v679 = vld [vmem:[#allocation8 + $0x378] sm:$0xff]
        %v680 = vld [vmem:[#allocation8 + $0x380] sm:$0xff]
        %v681 = vld [vmem:[#allocation8 + $0x388] sm:$0xff]
        %v682 = vld [vmem:[#allocation8 + $0x390] sm:$0xff]
        %v683 = vld [vmem:[#allocation8 + $0x398] sm:$0xff]
        %v684 = vld [vmem:[#allocation8 + $0x3a0] sm:$0xff]
        %v685 = vld [vmem:[#allocation8 + $0x3a8] sm:$0xff]
        %v686 = vld [vmem:[#allocation8 + $0x3b0] sm:$0xff]
        %v687 = vld [vmem:[#allocation8 + $0x3b8] sm:$0xff]
        %v688 = vld [vmem:[#allocation8 + $0x3c0] sm:$0xff]
        %v689 = vld [vmem:[#allocation8 + $0x3c8] sm:$0xff]
        %v690 = vld [vmem:[#allocation8 + $0x3d0] sm:$0xff]
        %v691 = vld [vmem:[#allocation8 + $0x3d8] sm:$0xff]
        %v692 = vld [vmem:[#allocation8 + $0x3e0] sm:$0xff]
        %v693 = vld [vmem:[#allocation8 + $0x3e8] sm:$0xff]
        %v694 = vld [vmem:[#allocation8 + $0x3f0] sm:$0xff]
        %v695 = vld [vmem:[#allocation8 + $0x3f8] sm:$0xff]
        %v696 = vld [vmem:[#allocation8 + $0x400] sm:$0xff]
        %v697 = vld [vmem:[#allocation8 + $0x408] sm:$0xff]
        %v698 = vld [vmem:[#allocation8 + $0x410] sm:$0xff]
        %v699 = vld [vmem:[#allocation8 + $0x418] sm:$0xff]
        %v700 = vld [vmem:[#allocation8 + $0x420] sm:$0xff]
        %v701 = vld [vmem:[#allocation8 + $0x428] sm:$0xff]
        %v702 = vld [vmem:[#allocation8 + $0x430] sm:$0xff]
        %v703 = vld [vmem:[#allocation8 + $0x438] sm:$0xff]
        %v704 = vld [vmem:[#allocation8 + $0x440] sm:$0xff]
        %v705 = vld [vmem:[#allocation8 + $0x448] sm:$0xff]
        %v706 = vld [vmem:[#allocation8 + $0x450] sm:$0xff]
        %v707 = vld [vmem:[#allocation8 + $0x458] sm:$0xff]
        %v708 = vld [vmem:[#allocation8 + $0x460] sm:$0xff]
        %v709 = vld [vmem:[#allocation8 + $0x468] sm:$0xff]
        %v710 = vld [vmem:[#allocation8 + $0x470] sm:$0xff]
        %v711 = vld [vmem:[#allocation8 + $0x478] sm:$0xff]
        %v712 = vld [vmem:[#allocation8 + $0x480] sm:$0xff]
        %v713 = vld [vmem:[#allocation8 + $0x488] sm:$0xff]
        %v714 = vld [vmem:[#allocation8 + $0x490] sm:$0xff]
        %v715 = vld [vmem:[#allocation8 + $0x498] sm:$0xff]
        %v716 = vld [vmem:[#allocation8 + $0x4a0] sm:$0xff]
        %v717 = vld [vmem:[#allocation8 + $0x4a8] sm:$0xff]
        %v718 = vld [vmem:[#allocation8 + $0x4b0] sm:$0xff]
        %v719 = vld [vmem:[#allocation8 + $0x4b8] sm:$0xff]
        %v720 = vld [vmem:[#allocation8 + $0x4c0] sm:$0xff]
        %v721 = vld [vmem:[#allocation8 + $0x4c8] sm:$0xff]
        %v722 = vld [vmem:[#allocation8 + $0x4d0] sm:$0xff]
        %v723 = vld [vmem:[#allocation8 + $0x4d8] sm:$0xff]
        %v724 = vld [vmem:[#allocation8 + $0x4e0] sm:$0xff]
        %v725 = vld [vmem:[#allocation8 + $0x4e8] sm:$0xff]
        %v726 = vld [vmem:[#allocation8 + $0x4f0] sm:$0xff]
        %v727 = vld [vmem:[#allocation8 + $0x4f8] sm:$0xff]
        %v728 = vld [vmem:[#allocation8 + $0x500] sm:$0xff]
        %v729 = vld [vmem:[#allocation8 + $0x508] sm:$0xff]
        %v730 = vld [vmem:[#allocation8 + $0x510] sm:$0xff]
        %v731 = vld [vmem:[#allocation8 + $0x518] sm:$0xff]
        %v732 = vld [vmem:[#allocation8 + $0x520] sm:$0xff]
        %v733 = vld [vmem:[#allocation8 + $0x528] sm:$0xff]
        %v734 = vld [vmem:[#allocation8 + $0x530] sm:$0xff]
        %v735 = vld [vmem:[#allocation8 + $0x538] sm:$0xff]
        %v736 = vld [vmem:[#allocation8 + $0x540] sm:$0xff]
        %v737 = vld [vmem:[#allocation8 + $0x548] sm:$0xff]
        %v738 = vld [vmem:[#allocation8 + $0x550] sm:$0xff]
        %v739 = vld [vmem:[#allocation8 + $0x558] sm:$0xff]
        %v740 = vld [vmem:[#allocation8 + $0x560] sm:$0xff]
        %v741 = vld [vmem:[#allocation8 + $0x568] sm:$0xff]
        %v742 = vld [vmem:[#allocation8 + $0x570] sm:$0xff]
        %v743 = vld [vmem:[#allocation8 + $0x578] sm:$0xff]
        %v744 = vld [vmem:[#allocation8 + $0x580] sm:$0xff]
        %v745 = vld [vmem:[#allocation8 + $0x588] sm:$0xff]
        %v746 = vld [vmem:[#allocation8 + $0x590] sm:$0xff]
        %v747 = vld [vmem:[#allocation8 + $0x598] sm:$0xff]
        %v748 = vld [vmem:[#allocation8 + $0x5a0] sm:$0xff]
        %v749 = vld [vmem:[#allocation8 + $0x5a8] sm:$0xff]
        %v750 = vld [vmem:[#allocation8 + $0x5b0] sm:$0xff]
        %v751 = vld [vmem:[#allocation8 + $0x5b8] sm:$0xff]
        %v752 = vld [vmem:[#allocation8 + $0x5c0] sm:$0xff]
        %v753 = vld [vmem:[#allocation8 + $0x5c8] sm:$0xff]
        %v754 = vld [vmem:[#allocation8 + $0x5d0] sm:$0xff]
        %v755 = vld [vmem:[#allocation8 + $0x5d8] sm:$0xff]
        %v756 = vld [vmem:[#allocation8 + $0x5e0] sm:$0xff]
        %v757 = vld [vmem:[#allocation8 + $0x5e8] sm:$0xff]
        %v758 = vld [vmem:[#allocation8 + $0x5f0] sm:$0xff]
        %v759 = vld [vmem:[#allocation8 + $0x5f8] sm:$0xff]
        %v760 = vld [vmem:[#allocation8 + $0x600] sm:$0xff]
        %v761 = vld [vmem:[#allocation8 + $0x608] sm:$0xff]
        %v762 = vld [vmem:[#allocation8 + $0x610] sm:$0xff]
        %v763 = vld [vmem:[#allocation8 + $0x618] sm:$0xff]
        %v764 = vld [vmem:[#allocation8 + $0x620] sm:$0xff]
        %v765 = vld [vmem:[#allocation8 + $0x628] sm:$0xff]
        %v766 = vld [vmem:[#allocation8 + $0x630] sm:$0xff]
        %v767 = vld [vmem:[#allocation8 + $0x638] sm:$0xff]
        %v768 = vld [vmem:[#allocation8 + $0x640] sm:$0xff]
        %v769 = vld [vmem:[#allocation8 + $0x648] sm:$0xff]
        %v770 = vld [vmem:[#allocation8 + $0x650] sm:$0xff]
        %v771 = vld [vmem:[#allocation8 + $0x658] sm:$0xff]
        %v772 = vld [vmem:[#allocation8 + $0x660] sm:$0xff]
        %v773 = vld [vmem:[#allocation8 + $0x668] sm:$0xff]
        %v774 = vld [vmem:[#allocation8 + $0x670] sm:$0xff]
        %v775 = vld [vmem:[#allocation8 + $0x678] sm:$0xff]
        %v776 = vld [vmem:[#allocation8 + $0x680] sm:$0xff]
        %v777 = vld [vmem:[#allocation8 + $0x688] sm:$0xff]
        %v778 = vld [vmem:[#allocation8 + $0x690] sm:$0xff]
        %v779 = vld [vmem:[#allocation8 + $0x698] sm:$0xff]
        %v780 = vld [vmem:[#allocation8 + $0x6a0] sm:$0xff]
        %v781 = vld [vmem:[#allocation8 + $0x6a8] sm:$0xff]
        %v782 = vld [vmem:[#allocation8 + $0x6b0] sm:$0xff]
        %v783 = vld [vmem:[#allocation8 + $0x6b8] sm:$0xff]
        %v784 = vld [vmem:[#allocation8 + $0x6c0] sm:$0xff]
        %v785 = vld [vmem:[#allocation8 + $0x6c8] sm:$0xff]
        %v786 = vld [vmem:[#allocation8 + $0x6d0] sm:$0xff]
        %v787 = vld [vmem:[#allocation8 + $0x6d8] sm:$0xff]
        %v788 = vld [vmem:[#allocation8 + $0x6e0] sm:$0xff]
        %v789 = vld [vmem:[#allocation8 + $0x6e8] sm:$0xff]
        %v790 = vld [vmem:[#allocation8 + $0x6f0] sm:$0xff]
        %v791 = vld [vmem:[#allocation8 + $0x6f8] sm:$0xff]
        %v792 = vld [vmem:[#allocation8 + $0x700] sm:$0xff]
        %v793 = vld [vmem:[#allocation8 + $0x708] sm:$0xff]
        %v794 = vld [vmem:[#allocation8 + $0x710] sm:$0xff]
        %v795 = vld [vmem:[#allocation8 + $0x718] sm:$0xff]
        %v796 = vld [vmem:[#allocation8 + $0x720] sm:$0xff]
        %v797 = vld [vmem:[#allocation8 + $0x728] sm:$0xff]
        %v798 = vld [vmem:[#allocation8 + $0x730] sm:$0xff]
        %v799 = vld [vmem:[#allocation8 + $0x738] sm:$0xff]
        %v800 = vld [vmem:[#allocation8 + $0x740] sm:$0xff]
        %v801 = vld [vmem:[#allocation8 + $0x748] sm:$0xff]
        %v802 = vld [vmem:[#allocation8 + $0x750] sm:$0xff]
        %v803 = vld [vmem:[#allocation8 + $0x758] sm:$0xff]
        %v804 = vld [vmem:[#allocation8 + $0x760] sm:$0xff]
        %v805 = vld [vmem:[#allocation8 + $0x768] sm:$0xff]
        %v806 = vld [vmem:[#allocation8 + $0x770] sm:$0xff]
        %v807 = vld [vmem:[#allocation8 + $0x778] sm:$0xff]
        %v808 = vld [vmem:[#allocation8 + $0x780] sm:$0xff]
        %v809 = vld [vmem:[#allocation8 + $0x788] sm:$0xff]
        %v810 = vld [vmem:[#allocation8 + $0x790] sm:$0xff]
        %v811 = vld [vmem:[#allocation8 + $0x798] sm:$0xff]
        %v812 = vld [vmem:[#allocation8 + $0x7a0] sm:$0xff]
        %v813 = vld [vmem:[#allocation8 + $0x7a8] sm:$0xff]
        %v814 = vld [vmem:[#allocation8 + $0x7b0] sm:$0xff]
        %v815 = vld [vmem:[#allocation8 + $0x7b8] sm:$0xff]
        %v816 = vld [vmem:[#allocation8 + $0x7c0] sm:$0xff]
        %v817 = vld [vmem:[#allocation8 + $0x7c8] sm:$0xff]
        %v818 = vld [vmem:[#allocation8 + $0x7d0] sm:$0xff]
        %v819 = vld [vmem:[#allocation8 + $0x7d8] sm:$0xff]
        %v820 = vld [vmem:[#allocation8 + $0x7e0] sm:$0xff]
        %v821 = vld [vmem:[#allocation8 + $0x7e8] sm:$0xff]
        %v822 = vld [vmem:[#allocation8 + $0x7f0] sm:$0xff]
        %v823 = vld [vmem:[#allocation8 + $0x7f8] sm:$0xff]
        %824 = vmatprep.subr.mxu0 0.0
        %825 = vmatpush1.msra.mxu0 %v583
        %826 = vmatprep.subr.mxu0 0.0
        %827 = vmatpush1.msra.mxu0 %v582
        %828 = vmatprep.subr.mxu0 0.0
        %829 = vmatpush1.msra.mxu0 %v581
        %830 = vmatprep.subr.mxu0 0.0
        %831 = vmatpush1.msra.mxu0 %v580
        %832 = vmatprep.subr.mxu0 0.0
        %833 = vmatpush1.msra.mxu0 %v579
        %834 = vmatprep.subr.mxu0 0.0
        %835 = vmatpush1.msra.mxu0 %v578
        %836 = vmatprep.subr.mxu0 0.0
        %837 = vmatpush1.msra.mxu0 %v577
        %838 = vmatprep.subr.mxu0 0.0
        %839 = vmatpush1.msra.mxu0 %v576
        %840 = vmatprep.subr.mxu0 0.0
        %841 = vmatpush1.msra.mxu0 %v575
        %842 = vmatprep.subr.mxu0 0.0
        %843 = vmatpush1.msra.mxu0 %v574
        %844 = vmatprep.subr.mxu0 0.0
        %845 = vmatpush1.msra.mxu0 %v573
        %846 = vmatprep.subr.mxu0 0.0
        %847 = vmatpush1.msra.mxu0 %v572
        %848 = vmatprep.subr.mxu0 0.0
        %849 = vmatpush1.msra.mxu0 %v571
        %850 = vmatprep.subr.mxu0 0.0
        %851 = vmatpush1.msra.mxu0 %v570
        %852 = vmatprep.subr.mxu0 0.0
        %853 = vmatpush1.msra.mxu0 %v569
        %854 = vmatprep.subr.mxu0 0.0
        %855 = vmatpush1.msra.mxu0 %v568
        %856 = vmatprep.subr.mxu0 0.0
        %857 = vmatpush2.msra.mxu0 %v599
        %858 = vmatprep.subr.mxu0 0.0
        %859 = vmatpush2.msra.mxu0 %v598
        %860 = vmatprep.subr.mxu0 0.0
        %861 = vmatpush2.msra.mxu0 %v597
        %862 = vmatprep.subr.mxu0 0.0
        %863 = vmatpush2.msra.mxu0 %v596
        %864 = vmatprep.subr.mxu0 0.0
        %865 = vmatpush2.msra.mxu0 %v595
        %866 = vmatprep.subr.mxu0 0.0
        %867 = vmatpush2.msra.mxu0 %v594
        %868 = vmatprep.subr.mxu0 0.0
        %869 = vmatpush2.msra.mxu0 %v593
        %870 = vmatprep.subr.mxu0 0.0
        %871 = vmatpush2.msra.mxu0 %v592
        %872 = vmatprep.subr.mxu0 0.0
        %873 = vmatpush2.msra.mxu0 %v591
        %874 = vmatprep.subr.mxu0 0.0
        %875 = vmatpush2.msra.mxu0 %v590
        %876 = vmatprep.subr.mxu0 0.0
        %877 = vmatpush2.msra.mxu0 %v589
        %878 = vmatprep.subr.mxu0 0.0
        %879 = vmatpush2.msra.mxu0 %v588
        %880 = vmatprep.subr.mxu0 0.0
        %881 = vmatpush2.msra.mxu0 %v587
        %882 = vmatprep.subr.mxu0 0.0
        %883 = vmatpush2.msra.mxu0 %v586
        %884 = vmatprep.subr.mxu0 0.0
        %885 = vmatpush2.msra.mxu0 %v585
        %886 = vmatprep.subr.mxu0 0.0
        %887 = vmatpush2.msra.mxu0 %v584
        %888 = vmatprep.mubr.f32.mxu0 %v469
        %889 = vmatmul.mubr.f32.gmra.mxu0 %v462
        %v890 = vpop.f32.mrf.mxu0
        %v891 = vadd.f32 0.0, %v890
        %v892 = vpop.f32.mrf.mxu0
        %893 = vdwg.mxu0
        %894 = vmatprep.subr.mxu0 0.0
        %895 = vmatpush1.msra.mxu0 %v615
        %896 = vmatprep.subr.mxu0 0.0
        %897 = vmatpush1.msra.mxu0 %v614
        %898 = vmatprep.subr.mxu0 0.0
        %899 = vmatpush1.msra.mxu0 %v613
        %900 = vmatprep.subr.mxu0 0.0
        %901 = vmatpush1.msra.mxu0 %v612
        %902 = vmatprep.subr.mxu0 0.0
        %903 = vmatpush1.msra.mxu0 %v611
        %904 = vmatprep.subr.mxu0 0.0
        %905 = vmatpush1.msra.mxu0 %v610
        %906 = vmatprep.subr.mxu0 0.0
        %907 = vmatpush1.msra.mxu0 %v609
        %908 = vmatprep.subr.mxu0 0.0
        %909 = vmatpush1.msra.mxu0 %v608
        %910 = vmatprep.subr.mxu0 0.0
        %911 = vmatpush1.msra.mxu0 %v607
        %912 = vmatprep.subr.mxu0 0.0
        %913 = vmatpush1.msra.mxu0 %v606
        %914 = vmatprep.subr.mxu0 0.0
        %915 = vmatpush1.msra.mxu0 %v605
        %916 = vmatprep.subr.mxu0 0.0
        %917 = vmatpush1.msra.mxu0 %v604
        %918 = vmatprep.subr.mxu0 0.0
        %919 = vmatpush1.msra.mxu0 %v603
        %920 = vmatprep.subr.mxu0 0.0
        %921 = vmatpush1.msra.mxu0 %v602
        %922 = vmatprep.subr.mxu0 0.0
        %923 = vmatpush1.msra.mxu0 %v601
        %924 = vmatprep.subr.mxu0 0.0
        %925 = vmatpush1.msra.mxu0 %v600
        %926 = vmatprep.subr.mxu0 0.0
        %927 = vmatpush2.msra.mxu0 %v631
        %928 = vmatprep.subr.mxu0 0.0
        %929 = vmatpush2.msra.mxu0 %v630
        %930 = vmatprep.subr.mxu0 0.0
        %931 = vmatpush2.msra.mxu0 %v629
        %932 = vmatprep.subr.mxu0 0.0
        %933 = vmatpush2.msra.mxu0 %v628
        %934 = vmatprep.subr.mxu0 0.0
        %935 = vmatpush2.msra.mxu0 %v627
        %936 = vmatprep.subr.mxu0 0.0
        %937 = vmatpush2.msra.mxu0 %v626
        %938 = vmatprep.subr.mxu0 0.0
        %939 = vmatpush2.msra.mxu0 %v625
        %940 = vmatprep.subr.mxu0 0.0
        %941 = vmatpush2.msra.mxu0 %v624
        %942 = vmatprep.subr.mxu0 0.0
        %943 = vmatpush2.msra.mxu0 %v623
        %944 = vmatprep.subr.mxu0 0.0
        %945 = vmatpush2.msra.mxu0 %v622
        %946 = vmatprep.subr.mxu0 0.0
        %947 = vmatpush2.msra.mxu0 %v621
        %948 = vmatprep.subr.mxu0 0.0
        %949 = vmatpush2.msra.mxu0 %v620
        %950 = vmatprep.subr.mxu0 0.0
        %951 = vmatpush2.msra.mxu0 %v619
        %952 = vmatprep.subr.mxu0 0.0
        %953 = vmatpush2.msra.mxu0 %v618
        %954 = vmatprep.subr.mxu0 0.0
        %955 = vmatpush2.msra.mxu0 %v617
        %956 = vmatprep.subr.mxu0 0.0
        %957 = vmatpush2.msra.mxu0 %v616
        %958 = vmatprep.mubr.f32.mxu0 %v483
        %959 = vmatmul.mubr.f32.gmra.mxu0 %v476
        %v960 = vpop.f32.mrf.mxu0
        %v961 = vadd.f32 %v891, %v960
        %v962 = vpop.f32.mrf.mxu0
        %963 = vdwg.mxu0
        %964 = vmatprep.subr.mxu0 0.0
        %965 = vmatpush1.msra.mxu0 %v647
        %966 = vmatprep.subr.mxu0 0.0
        %967 = vmatpush1.msra.mxu0 %v646
        %968 = vmatprep.subr.mxu0 0.0
        %969 = vmatpush1.msra.mxu0 %v645
        %970 = vmatprep.subr.mxu0 0.0
        %971 = vmatpush1.msra.mxu0 %v644
        %972 = vmatprep.subr.mxu0 0.0
        %973 = vmatpush1.msra.mxu0 %v643
        %974 = vmatprep.subr.mxu0 0.0
        %975 = vmatpush1.msra.mxu0 %v642
        %976 = vmatprep.subr.mxu0 0.0
        %977 = vmatpush1.msra.mxu0 %v641
        %978 = vmatprep.subr.mxu0 0.0
        %979 = vmatpush1.msra.mxu0 %v640
        %980 = vmatprep.subr.mxu0 0.0
        %981 = vmatpush1.msra.mxu0 %v639
        %982 = vmatprep.subr.mxu0 0.0
        %983 = vmatpush1.msra.mxu0 %v638
        %984 = vmatprep.subr.mxu0 0.0
        %985 = vmatpush1.msra.mxu0 %v637
        %986 = vmatprep.subr.mxu0 0.0
        %987 = vmatpush1.msra.mxu0 %v636
        %988 = vmatprep.subr.mxu0 0.0
        %989 = vmatpush1.msra.mxu0 %v635
        %990 = vmatprep.subr.mxu0 0.0
        %991 = vmatpush1.msra.mxu0 %v634
        %992 = vmatprep.subr.mxu0 0.0
        %993 = vmatpush1.msra.mxu0 %v633
        %994 = vmatprep.subr.mxu0 0.0
        %995 = vmatpush1.msra.mxu0 %v632
        %996 = vmatprep.subr.mxu0 0.0
        %997 = vmatpush2.msra.mxu0 %v663
        %998 = vmatprep.subr.mxu0 0.0
        %999 = vmatpush2.msra.mxu0 %v662
        %1000 = vmatprep.subr.mxu0 0.0
        %1001 = vmatpush2.msra.mxu0 %v661
        %1002 = vmatprep.subr.mxu0 0.0
        %1003 = vmatpush2.msra.mxu0 %v660
        %1004 = vmatprep.subr.mxu0 0.0
        %1005 = vmatpush2.msra.mxu0 %v659
        %1006 = vmatprep.subr.mxu0 0.0
        %1007 = vmatpush2.msra.mxu0 %v658
        %1008 = vmatprep.subr.mxu0 0.0
        %1009 = vmatpush2.msra.mxu0 %v657
        %1010 = vmatprep.subr.mxu0 0.0
        %1011 = vmatpush2.msra.mxu0 %v656
        %1012 = vmatprep.subr.mxu0 0.0
        %1013 = vmatpush2.msra.mxu0 %v655
        %1014 = vmatprep.subr.mxu0 0.0
        %1015 = vmatpush2.msra.mxu0 %v654
        %1016 = vmatprep.subr.mxu0 0.0
        %1017 = vmatpush2.msra.mxu0 %v653
        %1018 = vmatprep.subr.mxu0 0.0
        %1019 = vmatpush2.msra.mxu0 %v652
        %1020 = vmatprep.subr.mxu0 0.0
        %1021 = vmatpush2.msra.mxu0 %v651
        %1022 = vmatprep.subr.mxu0 0.0
        %1023 = vmatpush2.msra.mxu0 %v650
        %1024 = vmatprep.subr.mxu0 0.0
        %1025 = vmatpush2.msra.mxu0 %v649
        %1026 = vmatprep.subr.mxu0 0.0
        %1027 = vmatpush2.msra.mxu0 %v648
        %1028 = vmatprep.mubr.f32.mxu0 %v497
        %1029 = vmatmul.mubr.f32.gmra.mxu0 %v490
        %v1030 = vpop.f32.mrf.mxu0
        %v1031 = vadd.f32 %v961, %v1030
        %v1032 = vpop.f32.mrf.mxu0
        %1033 = vdwg.mxu0
        %1034 = vmatprep.subr.mxu0 0.0
        %1035 = vmatpush1.msra.mxu0 %v679
        %1036 = vmatprep.subr.mxu0 0.0
        %1037 = vmatpush1.msra.mxu0 %v678
        %1038 = vmatprep.subr.mxu0 0.0
        %1039 = vmatpush1.msra.mxu0 %v677
        %1040 = vmatprep.subr.mxu0 0.0
        %1041 = vmatpush1.msra.mxu0 %v676
        %1042 = vmatprep.subr.mxu0 0.0
        %1043 = vmatpush1.msra.mxu0 %v675
        %1044 = vmatprep.subr.mxu0 0.0
        %1045 = vmatpush1.msra.mxu0 %v674
        %1046 = vmatprep.subr.mxu0 0.0
        %1047 = vmatpush1.msra.mxu0 %v673
        %1048 = vmatprep.subr.mxu0 0.0
        %1049 = vmatpush1.msra.mxu0 %v672
        %1050 = vmatprep.subr.mxu0 0.0
        %1051 = vmatpush1.msra.mxu0 %v671
        %1052 = vmatprep.subr.mxu0 0.0
        %1053 = vmatpush1.msra.mxu0 %v670
        %1054 = vmatprep.subr.mxu0 0.0
        %1055 = vmatpush1.msra.mxu0 %v669
        %1056 = vmatprep.subr.mxu0 0.0
        %1057 = vmatpush1.msra.mxu0 %v668
        %1058 = vmatprep.subr.mxu0 0.0
        %1059 = vmatpush1.msra.mxu0 %v667
        %1060 = vmatprep.subr.mxu0 0.0
        %1061 = vmatpush1.msra.mxu0 %v666
        %1062 = vmatprep.subr.mxu0 0.0
        %1063 = vmatpush1.msra.mxu0 %v665
        %1064 = vmatprep.subr.mxu0 0.0
        %1065 = vmatpush1.msra.mxu0 %v664
        %1066 = vmatprep.subr.mxu0 0.0
        %1067 = vmatpush2.msra.mxu0 %v695
        %1068 = vmatprep.subr.mxu0 0.0
        %1069 = vmatpush2.msra.mxu0 %v694
        %1070 = vmatprep.subr.mxu0 0.0
        %1071 = vmatpush2.msra.mxu0 %v693
        %1072 = vmatprep.subr.mxu0 0.0
        %1073 = vmatpush2.msra.mxu0 %v692
        %1074 = vmatprep.subr.mxu0 0.0
        %1075 = vmatpush2.msra.mxu0 %v691
        %1076 = vmatprep.subr.mxu0 0.0
        %1077 = vmatpush2.msra.mxu0 %v690
        %1078 = vmatprep.subr.mxu0 0.0
        %1079 = vmatpush2.msra.mxu0 %v689
        %1080 = vmatprep.subr.mxu0 0.0
        %1081 = vmatpush2.msra.mxu0 %v688
        %1082 = vmatprep.subr.mxu0 0.0
        %1083 = vmatpush2.msra.mxu0 %v687
        %1084 = vmatprep.subr.mxu0 0.0
        %1085 = vmatpush2.msra.mxu0 %v686
        %1086 = vmatprep.subr.mxu0 0.0
        %1087 = vmatpush2.msra.mxu0 %v685
        %1088 = vmatprep.subr.mxu0 0.0
        %1089 = vmatpush2.msra.mxu0 %v684
        %1090 = vmatprep.subr.mxu0 0.0
        %1091 = vmatpush2.msra.mxu0 %v683
        %1092 = vmatprep.subr.mxu0 0.0
        %1093 = vmatpush2.msra.mxu0 %v682
        %1094 = vmatprep.subr.mxu0 0.0
        %1095 = vmatpush2.msra.mxu0 %v681
        %1096 = vmatprep.subr.mxu0 0.0
        %1097 = vmatpush2.msra.mxu0 %v680
        %1098 = vmatprep.mubr.f32.mxu0 %v511
        %1099 = vmatmul.mubr.f32.gmra.mxu0 %v504
        %v1100 = vpop.f32.mrf.mxu0
        %v1101 = vadd.f32 %v1031, %v1100
        %v1102 = vpop.f32.mrf.mxu0
        %1103 = vdwg.mxu0
        %1104 = vmatprep.subr.mxu0 0.0
        %1105 = vmatpush1.msra.mxu0 %v711
        %1106 = vmatprep.subr.mxu0 0.0
        %1107 = vmatpush1.msra.mxu0 %v710
        %1108 = vmatprep.subr.mxu0 0.0
        %1109 = vmatpush1.msra.mxu0 %v709
        %1110 = vmatprep.subr.mxu0 0.0
        %1111 = vmatpush1.msra.mxu0 %v708
        %1112 = vmatprep.subr.mxu0 0.0
        %1113 = vmatpush1.msra.mxu0 %v707
        %1114 = vmatprep.subr.mxu0 0.0
        %1115 = vmatpush1.msra.mxu0 %v706
        %1116 = vmatprep.subr.mxu0 0.0
        %1117 = vmatpush1.msra.mxu0 %v705
        %1118 = vmatprep.subr.mxu0 0.0
        %1119 = vmatpush1.msra.mxu0 %v704
        %1120 = vmatprep.subr.mxu0 0.0
        %1121 = vmatpush1.msra.mxu0 %v703
        %1122 = vmatprep.subr.mxu0 0.0
        %1123 = vmatpush1.msra.mxu0 %v702
        %1124 = vmatprep.subr.mxu0 0.0
        %1125 = vmatpush1.msra.mxu0 %v701
        %1126 = vmatprep.subr.mxu0 0.0
        %1127 = vmatpush1.msra.mxu0 %v700
        %1128 = vmatprep.subr.mxu0 0.0
        %1129 = vmatpush1.msra.mxu0 %v699
        %1130 = vmatprep.subr.mxu0 0.0
        %1131 = vmatpush1.msra.mxu0 %v698
        %1132 = vmatprep.subr.mxu0 0.0
        %1133 = vmatpush1.msra.mxu0 %v697
        %1134 = vmatprep.subr.mxu0 0.0
        %1135 = vmatpush1.msra.mxu0 %v696
        %1136 = vmatprep.subr.mxu0 0.0
        %1137 = vmatpush2.msra.mxu0 %v727
        %1138 = vmatprep.subr.mxu0 0.0
        %1139 = vmatpush2.msra.mxu0 %v726
        %1140 = vmatprep.subr.mxu0 0.0
        %1141 = vmatpush2.msra.mxu0 %v725
        %1142 = vmatprep.subr.mxu0 0.0
        %1143 = vmatpush2.msra.mxu0 %v724
        %1144 = vmatprep.subr.mxu0 0.0
        %1145 = vmatpush2.msra.mxu0 %v723
        %1146 = vmatprep.subr.mxu0 0.0
        %1147 = vmatpush2.msra.mxu0 %v722
        %1148 = vmatprep.subr.mxu0 0.0
        %1149 = vmatpush2.msra.mxu0 %v721
        %1150 = vmatprep.subr.mxu0 0.0
        %1151 = vmatpush2.msra.mxu0 %v720
        %1152 = vmatprep.subr.mxu0 0.0
        %1153 = vmatpush2.msra.mxu0 %v719
        %1154 = vmatprep.subr.mxu0 0.0
        %1155 = vmatpush2.msra.mxu0 %v718
        %1156 = vmatprep.subr.mxu0 0.0
        %1157 = vmatpush2.msra.mxu0 %v717
        %1158 = vmatprep.subr.mxu0 0.0
        %1159 = vmatpush2.msra.mxu0 %v716
        %1160 = vmatprep.subr.mxu0 0.0
        %1161 = vmatpush2.msra.mxu0 %v715
        %1162 = vmatprep.subr.mxu0 0.0
        %1163 = vmatpush2.msra.mxu0 %v714
        %1164 = vmatprep.subr.mxu0 0.0
        %1165 = vmatpush2.msra.mxu0 %v713
        %1166 = vmatprep.subr.mxu0 0.0
        %1167 = vmatpush2.msra.mxu0 %v712
        %1168 = vmatprep.mubr.f32.mxu0 %v525
        %1169 = vmatmul.mubr.f32.gmra.mxu0 %v518
        %v1170 = vpop.f32.mrf.mxu0
        %v1171 = vadd.f32 %v1101, %v1170
        %v1172 = vpop.f32.mrf.mxu0
        %1173 = vdwg.mxu0
        %1174 = vmatprep.subr.mxu0 0.0
        %1175 = vmatpush1.msra.mxu0 %v743
        %1176 = vmatprep.subr.mxu0 0.0
        %1177 = vmatpush1.msra.mxu0 %v742
        %1178 = vmatprep.subr.mxu0 0.0
        %1179 = vmatpush1.msra.mxu0 %v741
        %1180 = vmatprep.subr.mxu0 0.0
        %1181 = vmatpush1.msra.mxu0 %v740
        %1182 = vmatprep.subr.mxu0 0.0
        %1183 = vmatpush1.msra.mxu0 %v739
        %1184 = vmatprep.subr.mxu0 0.0
        %1185 = vmatpush1.msra.mxu0 %v738
        %1186 = vmatprep.subr.mxu0 0.0
        %1187 = vmatpush1.msra.mxu0 %v737
        %1188 = vmatprep.subr.mxu0 0.0
        %1189 = vmatpush1.msra.mxu0 %v736
        %1190 = vmatprep.subr.mxu0 0.0
        %1191 = vmatpush1.msra.mxu0 %v735
        %1192 = vmatprep.subr.mxu0 0.0
        %1193 = vmatpush1.msra.mxu0 %v734
        %1194 = vmatprep.subr.mxu0 0.0
        %1195 = vmatpush1.msra.mxu0 %v733
        %1196 = vmatprep.subr.mxu0 0.0
        %1197 = vmatpush1.msra.mxu0 %v732
        %1198 = vmatprep.subr.mxu0 0.0
        %1199 = vmatpush1.msra.mxu0 %v731
        %1200 = vmatprep.subr.mxu0 0.0
        %1201 = vmatpush1.msra.mxu0 %v730
        %1202 = vmatprep.subr.mxu0 0.0
        %1203 = vmatpush1.msra.mxu0 %v729
        %1204 = vmatprep.subr.mxu0 0.0
        %1205 = vmatpush1.msra.mxu0 %v728
        %1206 = vmatprep.subr.mxu0 0.0
        %1207 = vmatpush2.msra.mxu0 %v759
        %1208 = vmatprep.subr.mxu0 0.0
        %1209 = vmatpush2.msra.mxu0 %v758
        %1210 = vmatprep.subr.mxu0 0.0
        %1211 = vmatpush2.msra.mxu0 %v757
        %1212 = vmatprep.subr.mxu0 0.0
        %1213 = vmatpush2.msra.mxu0 %v756
        %1214 = vmatprep.subr.mxu0 0.0
        %1215 = vmatpush2.msra.mxu0 %v755
        %1216 = vmatprep.subr.mxu0 0.0
        %1217 = vmatpush2.msra.mxu0 %v754
        %1218 = vmatprep.subr.mxu0 0.0
        %1219 = vmatpush2.msra.mxu0 %v753
        %1220 = vmatprep.subr.mxu0 0.0
        %1221 = vmatpush2.msra.mxu0 %v752
        %1222 = vmatprep.subr.mxu0 0.0
        %1223 = vmatpush2.msra.mxu0 %v751
        %1224 = vmatprep.subr.mxu0 0.0
        %1225 = vmatpush2.msra.mxu0 %v750
        %1226 = vmatprep.subr.mxu0 0.0
        %1227 = vmatpush2.msra.mxu0 %v749
        %1228 = vmatprep.subr.mxu0 0.0
        %1229 = vmatpush2.msra.mxu0 %v748
        %1230 = vmatprep.subr.mxu0 0.0
        %1231 = vmatpush2.msra.mxu0 %v747
        %1232 = vmatprep.subr.mxu0 0.0
        %1233 = vmatpush2.msra.mxu0 %v746
        %1234 = vmatprep.subr.mxu0 0.0
        %1235 = vmatpush2.msra.mxu0 %v745
        %1236 = vmatprep.subr.mxu0 0.0
        %1237 = vmatpush2.msra.mxu0 %v744
        %1238 = vmatprep.mubr.f32.mxu0 %v539
        %1239 = vmatmul.mubr.f32.gmra.mxu0 %v532
        %v1240 = vpop.f32.mrf.mxu0
        %v1241 = vadd.f32 %v1171, %v1240
        %v1242 = vpop.f32.mrf.mxu0
        %1243 = vdwg.mxu0
        %1244 = vmatprep.subr.mxu0 0.0
        %1245 = vmatpush1.msra.mxu0 %v775
        %1246 = vmatprep.subr.mxu0 0.0
        %1247 = vmatpush1.msra.mxu0 %v774
        %1248 = vmatprep.subr.mxu0 0.0
        %1249 = vmatpush1.msra.mxu0 %v773
        %1250 = vmatprep.subr.mxu0 0.0
        %1251 = vmatpush1.msra.mxu0 %v772
        %1252 = vmatprep.subr.mxu0 0.0
        %1253 = vmatpush1.msra.mxu0 %v771
        %1254 = vmatprep.subr.mxu0 0.0
        %1255 = vmatpush1.msra.mxu0 %v770
        %1256 = vmatprep.subr.mxu0 0.0
        %1257 = vmatpush1.msra.mxu0 %v769
        %1258 = vmatprep.subr.mxu0 0.0
        %1259 = vmatpush1.msra.mxu0 %v768
        %1260 = vmatprep.subr.mxu0 0.0
        %1261 = vmatpush1.msra.mxu0 %v767
        %1262 = vmatprep.subr.mxu0 0.0
        %1263 = vmatpush1.msra.mxu0 %v766
        %1264 = vmatprep.subr.mxu0 0.0
        %1265 = vmatpush1.msra.mxu0 %v765
        %1266 = vmatprep.subr.mxu0 0.0
        %1267 = vmatpush1.msra.mxu0 %v764
        %1268 = vmatprep.subr.mxu0 0.0
        %1269 = vmatpush1.msra.mxu0 %v763
        %1270 = vmatprep.subr.mxu0 0.0
        %1271 = vmatpush1.msra.mxu0 %v762
        %1272 = vmatprep.subr.mxu0 0.0
        %1273 = vmatpush1.msra.mxu0 %v761
        %1274 = vmatprep.subr.mxu0 0.0
        %1275 = vmatpush1.msra.mxu0 %v760
        %1276 = vmatprep.subr.mxu0 0.0
        %1277 = vmatpush2.msra.mxu0 %v791
        %1278 = vmatprep.subr.mxu0 0.0
        %1279 = vmatpush2.msra.mxu0 %v790
        %1280 = vmatprep.subr.mxu0 0.0
        %1281 = vmatpush2.msra.mxu0 %v789
        %1282 = vmatprep.subr.mxu0 0.0
        %1283 = vmatpush2.msra.mxu0 %v788
        %1284 = vmatprep.subr.mxu0 0.0
        %1285 = vmatpush2.msra.mxu0 %v787
        %1286 = vmatprep.subr.mxu0 0.0
        %1287 = vmatpush2.msra.mxu0 %v786
        %1288 = vmatprep.subr.mxu0 0.0
        %1289 = vmatpush2.msra.mxu0 %v785
        %1290 = vmatprep.subr.mxu0 0.0
        %1291 = vmatpush2.msra.mxu0 %v784
        %1292 = vmatprep.subr.mxu0 0.0
        %1293 = vmatpush2.msra.mxu0 %v783
        %1294 = vmatprep.subr.mxu0 0.0
        %1295 = vmatpush2.msra.mxu0 %v782
        %1296 = vmatprep.subr.mxu0 0.0
        %1297 = vmatpush2.msra.mxu0 %v781
        %1298 = vmatprep.subr.mxu0 0.0
        %1299 = vmatpush2.msra.mxu0 %v780
        %1300 = vmatprep.subr.mxu0 0.0
        %1301 = vmatpush2.msra.mxu0 %v779
        %1302 = vmatprep.subr.mxu0 0.0
        %1303 = vmatpush2.msra.mxu0 %v778
        %1304 = vmatprep.subr.mxu0 0.0
        %1305 = vmatpush2.msra.mxu0 %v777
        %1306 = vmatprep.subr.mxu0 0.0
        %1307 = vmatpush2.msra.mxu0 %v776
        %1308 = vmatprep.mubr.f32.mxu0 %v553
        %1309 = vmatmul.mubr.f32.gmra.mxu0 %v546
        %v1310 = vpop.f32.mrf.mxu0
        %v1311 = vadd.f32 %v1241, %v1310
        %v1312 = vpop.f32.mrf.mxu0
        %1313 = vdwg.mxu0
        %1314 = vmatprep.subr.mxu0 0.0
        %1315 = vmatpush1.msra.mxu0 %v807
        %1316 = vmatprep.subr.mxu0 0.0
        %1317 = vmatpush1.msra.mxu0 %v806
        %1318 = vmatprep.subr.mxu0 0.0
        %1319 = vmatpush1.msra.mxu0 %v805
        %1320 = vmatprep.subr.mxu0 0.0
        %1321 = vmatpush1.msra.mxu0 %v804
        %1322 = vmatprep.subr.mxu0 0.0
        %1323 = vmatpush1.msra.mxu0 %v803
        %1324 = vmatprep.subr.mxu0 0.0
        %1325 = vmatpush1.msra.mxu0 %v802
        %1326 = vmatprep.subr.mxu0 0.0
        %1327 = vmatpush1.msra.mxu0 %v801
        %1328 = vmatprep.subr.mxu0 0.0
        %1329 = vmatpush1.msra.mxu0 %v800
        %1330 = vmatprep.subr.mxu0 0.0
        %1331 = vmatpush1.msra.mxu0 %v799
        %1332 = vmatprep.subr.mxu0 0.0
        %1333 = vmatpush1.msra.mxu0 %v798
        %1334 = vmatprep.subr.mxu0 0.0
        %1335 = vmatpush1.msra.mxu0 %v797
        %1336 = vmatprep.subr.mxu0 0.0
        %1337 = vmatpush1.msra.mxu0 %v796
        %1338 = vmatprep.subr.mxu0 0.0
        %1339 = vmatpush1.msra.mxu0 %v795
        %1340 = vmatprep.subr.mxu0 0.0
        %1341 = vmatpush1.msra.mxu0 %v794
        %1342 = vmatprep.subr.mxu0 0.0
        %1343 = vmatpush1.msra.mxu0 %v793
        %1344 = vmatprep.subr.mxu0 0.0
        %1345 = vmatpush1.msra.mxu0 %v792
        %1346 = vmatprep.subr.mxu0 0.0
        %1347 = vmatpush2.msra.mxu0 %v823
        %1348 = vmatprep.subr.mxu0 0.0
        %1349 = vmatpush2.msra.mxu0 %v822
        %1350 = vmatprep.subr.mxu0 0.0
        %1351 = vmatpush2.msra.mxu0 %v821
        %1352 = vmatprep.subr.mxu0 0.0
        %1353 = vmatpush2.msra.mxu0 %v820
        %1354 = vmatprep.subr.mxu0 0.0
        %1355 = vmatpush2.msra.mxu0 %v819
        %1356 = vmatprep.subr.mxu0 0.0
        %1357 = vmatpush2.msra.mxu0 %v818
        %1358 = vmatprep.subr.mxu0 0.0
        %1359 = vmatpush2.msra.mxu0 %v817
        %1360 = vmatprep.subr.mxu0 0.0
        %1361 = vmatpush2.msra.mxu0 %v816
        %1362 = vmatprep.subr.mxu0 0.0
        %1363 = vmatpush2.msra.mxu0 %v815
        %1364 = vmatprep.subr.mxu0 0.0
        %1365 = vmatpush2.msra.mxu0 %v814
        %1366 = vmatprep.subr.mxu0 0.0
        %1367 = vmatpush2.msra.mxu0 %v813
        %1368 = vmatprep.subr.mxu0 0.0
        %1369 = vmatpush2.msra.mxu0 %v812
        %1370 = vmatprep.subr.mxu0 0.0
        %1371 = vmatpush2.msra.mxu0 %v811
        %1372 = vmatprep.subr.mxu0 0.0
        %1373 = vmatpush2.msra.mxu0 %v810
        %1374 = vmatprep.subr.mxu0 0.0
        %1375 = vmatpush2.msra.mxu0 %v809
        %1376 = vmatprep.subr.mxu0 0.0
        %1377 = vmatpush2.msra.mxu0 %v808
        %1378 = vmatprep.mubr.f32.mxu0 %v567
        %1379 = vmatmul.mubr.f32.gmra.mxu0 %v560
        %v1380 = vpop.f32.mrf.mxu0
        %v1381 = vadd.f32 %v1311, %v1380
        %v1382 = vpop.f32.mrf.mxu0
        %1383 = vdwg.mxu0
        %v1384 = vld [vmem:[#allocation10] sm:$0xff]
        %v1385 = vld [vmem:[#allocation10 + $0x8] sm:$0xff]
        %v1386 = vld [vmem:[#allocation10 + $0x10] sm:$0xff]
        %v1387 = vld [vmem:[#allocation10 + $0x18] sm:$0xff]
        %v1388 = vld [vmem:[#allocation10 + $0x20] sm:$0xff]
        %v1389 = vld [vmem:[#allocation10 + $0x28] sm:$0xff]
        %v1390 = vld [vmem:[#allocation10 + $0x30] sm:$0xff]
        %v1391 = vld [vmem:[#allocation10 + $0x38] sm:$0xff]
        %v1392 = vld [vmem:[#allocation10 + $0x40] sm:$0xff]
        %v1393 = vld [vmem:[#allocation10 + $0x48] sm:$0xff]
        %v1394 = vld [vmem:[#allocation10 + $0x50] sm:$0xff]
        %v1395 = vld [vmem:[#allocation10 + $0x58] sm:$0xff]
        %v1396 = vld [vmem:[#allocation10 + $0x60] sm:$0xff]
        %v1397 = vld [vmem:[#allocation10 + $0x68] sm:$0xff]
        %v1398 = vld [vmem:[#allocation10 + $0x70] sm:$0xff]
        %v1399 = vld [vmem:[#allocation10 + $0x78] sm:$0xff]
        %v1400 = vld [vmem:[#allocation10 + $0x80] sm:$0xff]
        %v1401 = vld [vmem:[#allocation10 + $0x88] sm:$0xff]
        %v1402 = vld [vmem:[#allocation10 + $0x90] sm:$0xff]
        %v1403 = vld [vmem:[#allocation10 + $0x98] sm:$0xff]
        %v1404 = vld [vmem:[#allocation10 + $0xa0] sm:$0xff]
        %v1405 = vld [vmem:[#allocation10 + $0xa8] sm:$0xff]
        %v1406 = vld [vmem:[#allocation10 + $0xb0] sm:$0xff]
        %v1407 = vld [vmem:[#allocation10 + $0xb8] sm:$0xff]
        %v1408 = vld [vmem:[#allocation10 + $0xc0] sm:$0xff]
        %v1409 = vld [vmem:[#allocation10 + $0xc8] sm:$0xff]
        %v1410 = vld [vmem:[#allocation10 + $0xd0] sm:$0xff]
        %v1411 = vld [vmem:[#allocation10 + $0xd8] sm:$0xff]
        %v1412 = vld [vmem:[#allocation10 + $0xe0] sm:$0xff]
        %v1413 = vld [vmem:[#allocation10 + $0xe8] sm:$0xff]
        %v1414 = vld [vmem:[#allocation10 + $0xf0] sm:$0xff]
        %v1415 = vld [vmem:[#allocation10 + $0xf8] sm:$0xff]
        %v1416 = vld [vmem:[#allocation10 + $0x100] sm:$0xff]
        %v1417 = vld [vmem:[#allocation10 + $0x108] sm:$0xff]
        %v1418 = vld [vmem:[#allocation10 + $0x110] sm:$0xff]
        %v1419 = vld [vmem:[#allocation10 + $0x118] sm:$0xff]
        %v1420 = vld [vmem:[#allocation10 + $0x120] sm:$0xff]
        %v1421 = vld [vmem:[#allocation10 + $0x128] sm:$0xff]
        %v1422 = vld [vmem:[#allocation10 + $0x130] sm:$0xff]
        %v1423 = vld [vmem:[#allocation10 + $0x138] sm:$0xff]
        %v1424 = vld [vmem:[#allocation10 + $0x140] sm:$0xff]
        %v1425 = vld [vmem:[#allocation10 + $0x148] sm:$0xff]
        %v1426 = vld [vmem:[#allocation10 + $0x150] sm:$0xff]
        %v1427 = vld [vmem:[#allocation10 + $0x158] sm:$0xff]
        %v1428 = vld [vmem:[#allocation10 + $0x160] sm:$0xff]
        %v1429 = vld [vmem:[#allocation10 + $0x168] sm:$0xff]
        %v1430 = vld [vmem:[#allocation10 + $0x170] sm:$0xff]
        %v1431 = vld [vmem:[#allocation10 + $0x178] sm:$0xff]
        %v1432 = vld [vmem:[#allocation10 + $0x180] sm:$0xff]
        %v1433 = vld [vmem:[#allocation10 + $0x188] sm:$0xff]
        %v1434 = vld [vmem:[#allocation10 + $0x190] sm:$0xff]
        %v1435 = vld [vmem:[#allocation10 + $0x198] sm:$0xff]
        %v1436 = vld [vmem:[#allocation10 + $0x1a0] sm:$0xff]
        %v1437 = vld [vmem:[#allocation10 + $0x1a8] sm:$0xff]
        %v1438 = vld [vmem:[#allocation10 + $0x1b0] sm:$0xff]
        %v1439 = vld [vmem:[#allocation10 + $0x1b8] sm:$0xff]
        %v1440 = vld [vmem:[#allocation10 + $0x1c0] sm:$0xff]
        %v1441 = vld [vmem:[#allocation10 + $0x1c8] sm:$0xff]
        %v1442 = vld [vmem:[#allocation10 + $0x1d0] sm:$0xff]
        %v1443 = vld [vmem:[#allocation10 + $0x1d8] sm:$0xff]
        %v1444 = vld [vmem:[#allocation10 + $0x1e0] sm:$0xff]
        %v1445 = vld [vmem:[#allocation10 + $0x1e8] sm:$0xff]
        %v1446 = vld [vmem:[#allocation10 + $0x1f0] sm:$0xff]
        %v1447 = vld [vmem:[#allocation10 + $0x1f8] sm:$0xff]
        %v1448 = vld [vmem:[#allocation10 + $0x200] sm:$0xff]
        %v1449 = vld [vmem:[#allocation10 + $0x208] sm:$0xff]
        %v1450 = vld [vmem:[#allocation10 + $0x210] sm:$0xff]
        %v1451 = vld [vmem:[#allocation10 + $0x218] sm:$0xff]
        %v1452 = vld [vmem:[#allocation10 + $0x220] sm:$0xff]
        %v1453 = vld [vmem:[#allocation10 + $0x228] sm:$0xff]
        %v1454 = vld [vmem:[#allocation10 + $0x230] sm:$0xff]
        %v1455 = vld [vmem:[#allocation10 + $0x238] sm:$0xff]
        %v1456 = vld [vmem:[#allocation10 + $0x240] sm:$0xff]
        %v1457 = vld [vmem:[#allocation10 + $0x248] sm:$0xff]
        %v1458 = vld [vmem:[#allocation10 + $0x250] sm:$0xff]
        %v1459 = vld [vmem:[#allocation10 + $0x258] sm:$0xff]
        %v1460 = vld [vmem:[#allocation10 + $0x260] sm:$0xff]
        %v1461 = vld [vmem:[#allocation10 + $0x268] sm:$0xff]
        %v1462 = vld [vmem:[#allocation10 + $0x270] sm:$0xff]
        %v1463 = vld [vmem:[#allocation10 + $0x278] sm:$0xff]
        %v1464 = vld [vmem:[#allocation10 + $0x280] sm:$0xff]
        %v1465 = vld [vmem:[#allocation10 + $0x288] sm:$0xff]
        %v1466 = vld [vmem:[#allocation10 + $0x290] sm:$0xff]
        %v1467 = vld [vmem:[#allocation10 + $0x298] sm:$0xff]
        %v1468 = vld [vmem:[#allocation10 + $0x2a0] sm:$0xff]
        %v1469 = vld [vmem:[#allocation10 + $0x2a8] sm:$0xff]
        %v1470 = vld [vmem:[#allocation10 + $0x2b0] sm:$0xff]
        %v1471 = vld [vmem:[#allocation10 + $0x2b8] sm:$0xff]
        %v1472 = vld [vmem:[#allocation10 + $0x2c0] sm:$0xff]
        %v1473 = vld [vmem:[#allocation10 + $0x2c8] sm:$0xff]
        %v1474 = vld [vmem:[#allocation10 + $0x2d0] sm:$0xff]
        %v1475 = vld [vmem:[#allocation10 + $0x2d8] sm:$0xff]
        %v1476 = vld [vmem:[#allocation10 + $0x2e0] sm:$0xff]
        %v1477 = vld [vmem:[#allocation10 + $0x2e8] sm:$0xff]
        %v1478 = vld [vmem:[#allocation10 + $0x2f0] sm:$0xff]
        %v1479 = vld [vmem:[#allocation10 + $0x2f8] sm:$0xff]
        %v1480 = vld [vmem:[#allocation10 + $0x300] sm:$0xff]
        %v1481 = vld [vmem:[#allocation10 + $0x308] sm:$0xff]
        %v1482 = vld [vmem:[#allocation10 + $0x310] sm:$0xff]
        %v1483 = vld [vmem:[#allocation10 + $0x318] sm:$0xff]
        %v1484 = vld [vmem:[#allocation10 + $0x320] sm:$0xff]
        %v1485 = vld [vmem:[#allocation10 + $0x328] sm:$0xff]
        %v1486 = vld [vmem:[#allocation10 + $0x330] sm:$0xff]
        %v1487 = vld [vmem:[#allocation10 + $0x338] sm:$0xff]
        %v1488 = vld [vmem:[#allocation10 + $0x340] sm:$0xff]
        %v1489 = vld [vmem:[#allocation10 + $0x348] sm:$0xff]
        %v1490 = vld [vmem:[#allocation10 + $0x350] sm:$0xff]
        %v1491 = vld [vmem:[#allocation10 + $0x358] sm:$0xff]
        %v1492 = vld [vmem:[#allocation10 + $0x360] sm:$0xff]
        %v1493 = vld [vmem:[#allocation10 + $0x368] sm:$0xff]
        %v1494 = vld [vmem:[#allocation10 + $0x370] sm:$0xff]
        %v1495 = vld [vmem:[#allocation10 + $0x378] sm:$0xff]
        %v1496 = vld [vmem:[#allocation10 + $0x380] sm:$0xff]
        %v1497 = vld [vmem:[#allocation10 + $0x388] sm:$0xff]
        %v1498 = vld [vmem:[#allocation10 + $0x390] sm:$0xff]
        %v1499 = vld [vmem:[#allocation10 + $0x398] sm:$0xff]
        %v1500 = vld [vmem:[#allocation10 + $0x3a0] sm:$0xff]
        %v1501 = vld [vmem:[#allocation10 + $0x3a8] sm:$0xff]
        %v1502 = vld [vmem:[#allocation10 + $0x3b0] sm:$0xff]
        %v1503 = vld [vmem:[#allocation10 + $0x3b8] sm:$0xff]
        %v1504 = vld [vmem:[#allocation10 + $0x3c0] sm:$0xff]
        %v1505 = vld [vmem:[#allocation10 + $0x3c8] sm:$0xff]
        %v1506 = vld [vmem:[#allocation10 + $0x3d0] sm:$0xff]
        %v1507 = vld [vmem:[#allocation10 + $0x3d8] sm:$0xff]
        %v1508 = vld [vmem:[#allocation10 + $0x3e0] sm:$0xff]
        %v1509 = vld [vmem:[#allocation10 + $0x3e8] sm:$0xff]
        %v1510 = vld [vmem:[#allocation10 + $0x3f0] sm:$0xff]
        %v1511 = vld [vmem:[#allocation10 + $0x3f8] sm:$0xff]
        %v1512 = vld [vmem:[#allocation10 + $0x400] sm:$0xff]
        %v1513 = vld [vmem:[#allocation10 + $0x408] sm:$0xff]
        %v1514 = vld [vmem:[#allocation10 + $0x410] sm:$0xff]
        %v1515 = vld [vmem:[#allocation10 + $0x418] sm:$0xff]
        %v1516 = vld [vmem:[#allocation10 + $0x420] sm:$0xff]
        %v1517 = vld [vmem:[#allocation10 + $0x428] sm:$0xff]
        %v1518 = vld [vmem:[#allocation10 + $0x430] sm:$0xff]
        %v1519 = vld [vmem:[#allocation10 + $0x438] sm:$0xff]
        %v1520 = vld [vmem:[#allocation10 + $0x440] sm:$0xff]
        %v1521 = vld [vmem:[#allocation10 + $0x448] sm:$0xff]
        %v1522 = vld [vmem:[#allocation10 + $0x450] sm:$0xff]
        %v1523 = vld [vmem:[#allocation10 + $0x458] sm:$0xff]
        %v1524 = vld [vmem:[#allocation10 + $0x460] sm:$0xff]
        %v1525 = vld [vmem:[#allocation10 + $0x468] sm:$0xff]
        %v1526 = vld [vmem:[#allocation10 + $0x470] sm:$0xff]
        %v1527 = vld [vmem:[#allocation10 + $0x478] sm:$0xff]
        %v1528 = vld [vmem:[#allocation10 + $0x480] sm:$0xff]
        %v1529 = vld [vmem:[#allocation10 + $0x488] sm:$0xff]
        %v1530 = vld [vmem:[#allocation10 + $0x490] sm:$0xff]
        %v1531 = vld [vmem:[#allocation10 + $0x498] sm:$0xff]
        %v1532 = vld [vmem:[#allocation10 + $0x4a0] sm:$0xff]
        %v1533 = vld [vmem:[#allocation10 + $0x4a8] sm:$0xff]
        %v1534 = vld [vmem:[#allocation10 + $0x4b0] sm:$0xff]
        %v1535 = vld [vmem:[#allocation10 + $0x4b8] sm:$0xff]
        %v1536 = vld [vmem:[#allocation10 + $0x4c0] sm:$0xff]
        %v1537 = vld [vmem:[#allocation10 + $0x4c8] sm:$0xff]
        %v1538 = vld [vmem:[#allocation10 + $0x4d0] sm:$0xff]
        %v1539 = vld [vmem:[#allocation10 + $0x4d8] sm:$0xff]
        %v1540 = vld [vmem:[#allocation10 + $0x4e0] sm:$0xff]
        %v1541 = vld [vmem:[#allocation10 + $0x4e8] sm:$0xff]
        %v1542 = vld [vmem:[#allocation10 + $0x4f0] sm:$0xff]
        %v1543 = vld [vmem:[#allocation10 + $0x4f8] sm:$0xff]
        %v1544 = vld [vmem:[#allocation10 + $0x500] sm:$0xff]
        %v1545 = vld [vmem:[#allocation10 + $0x508] sm:$0xff]
        %v1546 = vld [vmem:[#allocation10 + $0x510] sm:$0xff]
        %v1547 = vld [vmem:[#allocation10 + $0x518] sm:$0xff]
        %v1548 = vld [vmem:[#allocation10 + $0x520] sm:$0xff]
        %v1549 = vld [vmem:[#allocation10 + $0x528] sm:$0xff]
        %v1550 = vld [vmem:[#allocation10 + $0x530] sm:$0xff]
        %v1551 = vld [vmem:[#allocation10 + $0x538] sm:$0xff]
        %v1552 = vld [vmem:[#allocation10 + $0x540] sm:$0xff]
        %v1553 = vld [vmem:[#allocation10 + $0x548] sm:$0xff]
        %v1554 = vld [vmem:[#allocation10 + $0x550] sm:$0xff]
        %v1555 = vld [vmem:[#allocation10 + $0x558] sm:$0xff]
        %v1556 = vld [vmem:[#allocation10 + $0x560] sm:$0xff]
        %v1557 = vld [vmem:[#allocation10 + $0x568] sm:$0xff]
        %v1558 = vld [vmem:[#allocation10 + $0x570] sm:$0xff]
        %v1559 = vld [vmem:[#allocation10 + $0x578] sm:$0xff]
        %v1560 = vld [vmem:[#allocation10 + $0x580] sm:$0xff]
        %v1561 = vld [vmem:[#allocation10 + $0x588] sm:$0xff]
        %v1562 = vld [vmem:[#allocation10 + $0x590] sm:$0xff]
        %v1563 = vld [vmem:[#allocation10 + $0x598] sm:$0xff]
        %v1564 = vld [vmem:[#allocation10 + $0x5a0] sm:$0xff]
        %v1565 = vld [vmem:[#allocation10 + $0x5a8] sm:$0xff]
        %v1566 = vld [vmem:[#allocation10 + $0x5b0] sm:$0xff]
        %v1567 = vld [vmem:[#allocation10 + $0x5b8] sm:$0xff]
        %v1568 = vld [vmem:[#allocation10 + $0x5c0] sm:$0xff]
        %v1569 = vld [vmem:[#allocation10 + $0x5c8] sm:$0xff]
        %v1570 = vld [vmem:[#allocation10 + $0x5d0] sm:$0xff]
        %v1571 = vld [vmem:[#allocation10 + $0x5d8] sm:$0xff]
        %v1572 = vld [vmem:[#allocation10 + $0x5e0] sm:$0xff]
        %v1573 = vld [vmem:[#allocation10 + $0x5e8] sm:$0xff]
        %v1574 = vld [vmem:[#allocation10 + $0x5f0] sm:$0xff]
        %v1575 = vld [vmem:[#allocation10 + $0x5f8] sm:$0xff]
        %v1576 = vld [vmem:[#allocation10 + $0x600] sm:$0xff]
        %v1577 = vld [vmem:[#allocation10 + $0x608] sm:$0xff]
        %v1578 = vld [vmem:[#allocation10 + $0x610] sm:$0xff]
        %v1579 = vld [vmem:[#allocation10 + $0x618] sm:$0xff]
        %v1580 = vld [vmem:[#allocation10 + $0x620] sm:$0xff]
        %v1581 = vld [vmem:[#allocation10 + $0x628] sm:$0xff]
        %v1582 = vld [vmem:[#allocation10 + $0x630] sm:$0xff]
        %v1583 = vld [vmem:[#allocation10 + $0x638] sm:$0xff]
        %v1584 = vld [vmem:[#allocation10 + $0x640] sm:$0xff]
        %v1585 = vld [vmem:[#allocation10 + $0x648] sm:$0xff]
        %v1586 = vld [vmem:[#allocation10 + $0x650] sm:$0xff]
        %v1587 = vld [vmem:[#allocation10 + $0x658] sm:$0xff]
        %v1588 = vld [vmem:[#allocation10 + $0x660] sm:$0xff]
        %v1589 = vld [vmem:[#allocation10 + $0x668] sm:$0xff]
        %v1590 = vld [vmem:[#allocation10 + $0x670] sm:$0xff]
        %v1591 = vld [vmem:[#allocation10 + $0x678] sm:$0xff]
        %v1592 = vld [vmem:[#allocation10 + $0x680] sm:$0xff]
        %v1593 = vld [vmem:[#allocation10 + $0x688] sm:$0xff]
        %v1594 = vld [vmem:[#allocation10 + $0x690] sm:$0xff]
        %v1595 = vld [vmem:[#allocation10 + $0x698] sm:$0xff]
        %v1596 = vld [vmem:[#allocation10 + $0x6a0] sm:$0xff]
        %v1597 = vld [vmem:[#allocation10 + $0x6a8] sm:$0xff]
        %v1598 = vld [vmem:[#allocation10 + $0x6b0] sm:$0xff]
        %v1599 = vld [vmem:[#allocation10 + $0x6b8] sm:$0xff]
        %v1600 = vld [vmem:[#allocation10 + $0x6c0] sm:$0xff]
        %v1601 = vld [vmem:[#allocation10 + $0x6c8] sm:$0xff]
        %v1602 = vld [vmem:[#allocation10 + $0x6d0] sm:$0xff]
        %v1603 = vld [vmem:[#allocation10 + $0x6d8] sm:$0xff]
        %v1604 = vld [vmem:[#allocation10 + $0x6e0] sm:$0xff]
        %v1605 = vld [vmem:[#allocation10 + $0x6e8] sm:$0xff]
        %v1606 = vld [vmem:[#allocation10 + $0x6f0] sm:$0xff]
        %v1607 = vld [vmem:[#allocation10 + $0x6f8] sm:$0xff]
        %v1608 = vld [vmem:[#allocation10 + $0x700] sm:$0xff]
        %v1609 = vld [vmem:[#allocation10 + $0x708] sm:$0xff]
        %v1610 = vld [vmem:[#allocation10 + $0x710] sm:$0xff]
        %v1611 = vld [vmem:[#allocation10 + $0x718] sm:$0xff]
        %v1612 = vld [vmem:[#allocation10 + $0x720] sm:$0xff]
        %v1613 = vld [vmem:[#allocation10 + $0x728] sm:$0xff]
        %v1614 = vld [vmem:[#allocation10 + $0x730] sm:$0xff]
        %v1615 = vld [vmem:[#allocation10 + $0x738] sm:$0xff]
        %v1616 = vld [vmem:[#allocation10 + $0x740] sm:$0xff]
        %v1617 = vld [vmem:[#allocation10 + $0x748] sm:$0xff]
        %v1618 = vld [vmem:[#allocation10 + $0x750] sm:$0xff]
        %v1619 = vld [vmem:[#allocation10 + $0x758] sm:$0xff]
        %v1620 = vld [vmem:[#allocation10 + $0x760] sm:$0xff]
        %v1621 = vld [vmem:[#allocation10 + $0x768] sm:$0xff]
        %v1622 = vld [vmem:[#allocation10 + $0x770] sm:$0xff]
        %v1623 = vld [vmem:[#allocation10 + $0x778] sm:$0xff]
        %v1624 = vld [vmem:[#allocation10 + $0x780] sm:$0xff]
        %v1625 = vld [vmem:[#allocation10 + $0x788] sm:$0xff]
        %v1626 = vld [vmem:[#allocation10 + $0x790] sm:$0xff]
        %v1627 = vld [vmem:[#allocation10 + $0x798] sm:$0xff]
        %v1628 = vld [vmem:[#allocation10 + $0x7a0] sm:$0xff]
        %v1629 = vld [vmem:[#allocation10 + $0x7a8] sm:$0xff]
        %v1630 = vld [vmem:[#allocation10 + $0x7b0] sm:$0xff]
        %v1631 = vld [vmem:[#allocation10 + $0x7b8] sm:$0xff]
        %v1632 = vld [vmem:[#allocation10 + $0x7c0] sm:$0xff]
        %v1633 = vld [vmem:[#allocation10 + $0x7c8] sm:$0xff]
        %v1634 = vld [vmem:[#allocation10 + $0x7d0] sm:$0xff]
        %v1635 = vld [vmem:[#allocation10 + $0x7d8] sm:$0xff]
        %v1636 = vld [vmem:[#allocation10 + $0x7e0] sm:$0xff]
        %v1637 = vld [vmem:[#allocation10 + $0x7e8] sm:$0xff]
        %v1638 = vld [vmem:[#allocation10 + $0x7f0] sm:$0xff]
        %v1639 = vld [vmem:[#allocation10 + $0x7f8] sm:$0xff]
        %1640 = vmatprep.subr.mxu0 %v1625
        %1641 = vmatpush1.msra.mxu0 %v1624
        %1642 = vmatprep.subr.mxu0 %v1609
        %1643 = vmatpush1.msra.mxu0 %v1608
        %1644 = vmatprep.subr.mxu0 %v1593
        %1645 = vmatpush1.msra.mxu0 %v1592
        %1646 = vmatprep.subr.mxu0 %v1577
        %1647 = vmatpush1.msra.mxu0 %v1576
        %1648 = vmatprep.subr.mxu0 %v1561
        %1649 = vmatpush1.msra.mxu0 %v1560
        %1650 = vmatprep.subr.mxu0 %v1545
        %1651 = vmatpush1.msra.mxu0 %v1544
        %1652 = vmatprep.subr.mxu0 %v1529
        %1653 = vmatpush1.msra.mxu0 %v1528
        %1654 = vmatprep.subr.mxu0 %v1513
        %1655 = vmatpush1.msra.mxu0 %v1512
        %1656 = vmatprep.subr.mxu0 %v1497
        %1657 = vmatpush1.msra.mxu0 %v1496
        %1658 = vmatprep.subr.mxu0 %v1481
        %1659 = vmatpush1.msra.mxu0 %v1480
        %1660 = vmatprep.subr.mxu0 %v1465
        %1661 = vmatpush1.msra.mxu0 %v1464
        %1662 = vmatprep.subr.mxu0 %v1449
        %1663 = vmatpush1.msra.mxu0 %v1448
        %1664 = vmatprep.subr.mxu0 %v1433
        %1665 = vmatpush1.msra.mxu0 %v1432
        %1666 = vmatprep.subr.mxu0 %v1417
        %1667 = vmatpush1.msra.mxu0 %v1416
        %1668 = vmatprep.subr.mxu0 %v1401
        %1669 = vmatpush1.msra.mxu0 %v1400
        %1670 = vmatprep.subr.mxu0 %v1385
        %1671 = vmatpush1.msra.mxu0 %v1384
        %1672 = vmatprep.subr.mxu0 0.0
        %1673 = vmatpush2.msra.mxu0 0.0
        %1674 = vmatprep.subr.mxu0 0.0
        %1675 = vmatpush2.msra.mxu0 0.0
        %1676 = vmatprep.subr.mxu0 0.0
        %1677 = vmatpush2.msra.mxu0 0.0
        %1678 = vmatprep.subr.mxu0 0.0
        %1679 = vmatpush2.msra.mxu0 0.0
        %1680 = vmatprep.subr.mxu0 0.0
        %1681 = vmatpush2.msra.mxu0 0.0
        %1682 = vmatprep.subr.mxu0 0.0
        %1683 = vmatpush2.msra.mxu0 0.0
        %1684 = vmatprep.subr.mxu0 0.0
        %1685 = vmatpush2.msra.mxu0 0.0
        %1686 = vmatprep.subr.mxu0 0.0
        %1687 = vmatpush2.msra.mxu0 0.0
        %1688 = vmatprep.subr.mxu0 0.0
        %1689 = vmatpush2.msra.mxu0 0.0
        %1690 = vmatprep.subr.mxu0 0.0
        %1691 = vmatpush2.msra.mxu0 0.0
        %1692 = vmatprep.subr.mxu0 0.0
        %1693 = vmatpush2.msra.mxu0 0.0
        %1694 = vmatprep.subr.mxu0 0.0
        %1695 = vmatpush2.msra.mxu0 0.0
        %1696 = vmatprep.subr.mxu0 0.0
        %1697 = vmatpush2.msra.mxu0 0.0
        %1698 = vmatprep.subr.mxu0 0.0
        %1699 = vmatpush2.msra.mxu0 0.0
        %1700 = vmatprep.subr.mxu0 0.0
        %1701 = vmatpush2.msra.mxu0 0.0
        %1702 = vmatprep.subr.mxu0 0.0
        %1703 = vmatpush2.msra.mxu0 0.0
        %1704 = vmatprep.mubr.f32.mxu0 0.0
        %1705 = vmatmul.mubr.f32.gmra.mxu0 %v1381
        %v1706 = vpop.f32.mrf.mxu0
        %v1707 = vadd.f32 0.0, %v1706
        %v1708 = vpop.f32.mrf.mxu0
        %v1709 = vadd.f32 0.0, %v1708
        %1710 = vdwg.mxu0
        %1711 = vmatprep.subr.mxu0 %v1627
        %1712 = vmatpush1.msra.mxu0 %v1626
        %1713 = vmatprep.subr.mxu0 %v1611
        %1714 = vmatpush1.msra.mxu0 %v1610
        %1715 = vmatprep.subr.mxu0 %v1595
        %1716 = vmatpush1.msra.mxu0 %v1594
        %1717 = vmatprep.subr.mxu0 %v1579
        %1718 = vmatpush1.msra.mxu0 %v1578
        %1719 = vmatprep.subr.mxu0 %v1563
        %1720 = vmatpush1.msra.mxu0 %v1562
        %1721 = vmatprep.subr.mxu0 %v1547
        %1722 = vmatpush1.msra.mxu0 %v1546
        %1723 = vmatprep.subr.mxu0 %v1531
        %1724 = vmatpush1.msra.mxu0 %v1530
        %1725 = vmatprep.subr.mxu0 %v1515
        %1726 = vmatpush1.msra.mxu0 %v1514
        %1727 = vmatprep.subr.mxu0 %v1499
        %1728 = vmatpush1.msra.mxu0 %v1498
        %1729 = vmatprep.subr.mxu0 %v1483
        %1730 = vmatpush1.msra.mxu0 %v1482
        %1731 = vmatprep.subr.mxu0 %v1467
        %1732 = vmatpush1.msra.mxu0 %v1466
        %1733 = vmatprep.subr.mxu0 %v1451
        %1734 = vmatpush1.msra.mxu0 %v1450
        %1735 = vmatprep.subr.mxu0 %v1435
        %1736 = vmatpush1.msra.mxu0 %v1434
        %1737 = vmatprep.subr.mxu0 %v1419
        %1738 = vmatpush1.msra.mxu0 %v1418
        %1739 = vmatprep.subr.mxu0 %v1403
        %1740 = vmatpush1.msra.mxu0 %v1402
        %1741 = vmatprep.subr.mxu0 %v1387
        %1742 = vmatpush1.msra.mxu0 %v1386
        %1743 = vmatprep.subr.mxu0 0.0
        %1744 = vmatpush2.msra.mxu0 0.0
        %1745 = vmatprep.subr.mxu0 0.0
        %1746 = vmatpush2.msra.mxu0 0.0
        %1747 = vmatprep.subr.mxu0 0.0
        %1748 = vmatpush2.msra.mxu0 0.0
        %1749 = vmatprep.subr.mxu0 0.0
        %1750 = vmatpush2.msra.mxu0 0.0
        %1751 = vmatprep.subr.mxu0 0.0
        %1752 = vmatpush2.msra.mxu0 0.0
        %1753 = vmatprep.subr.mxu0 0.0
        %1754 = vmatpush2.msra.mxu0 0.0
        %1755 = vmatprep.subr.mxu0 0.0
        %1756 = vmatpush2.msra.mxu0 0.0
        %1757 = vmatprep.subr.mxu0 0.0
        %1758 = vmatpush2.msra.mxu0 0.0
        %1759 = vmatprep.subr.mxu0 0.0
        %1760 = vmatpush2.msra.mxu0 0.0
        %1761 = vmatprep.subr.mxu0 0.0
        %1762 = vmatpush2.msra.mxu0 0.0
        %1763 = vmatprep.subr.mxu0 0.0
        %1764 = vmatpush2.msra.mxu0 0.0
        %1765 = vmatprep.subr.mxu0 0.0
        %1766 = vmatpush2.msra.mxu0 0.0
        %1767 = vmatprep.subr.mxu0 0.0
        %1768 = vmatpush2.msra.mxu0 0.0
        %1769 = vmatprep.subr.mxu0 0.0
        %1770 = vmatpush2.msra.mxu0 0.0
        %1771 = vmatprep.subr.mxu0 0.0
        %1772 = vmatpush2.msra.mxu0 0.0
        %1773 = vmatprep.subr.mxu0 0.0
        %1774 = vmatpush2.msra.mxu0 0.0
        %1775 = vmatprep.mubr.f32.mxu0 0.0
        %1776 = vmatmul.mubr.f32.gmra.mxu0 %v1381
        %v1777 = vpop.f32.mrf.mxu0
        %v1778 = vadd.f32 0.0, %v1777
        %v1779 = vpop.f32.mrf.mxu0
        %v1780 = vadd.f32 0.0, %v1779
        %1781 = vdwg.mxu0
        %1782 = vmatprep.subr.mxu0 %v1629
        %1783 = vmatpush1.msra.mxu0 %v1628
        %1784 = vmatprep.subr.mxu0 %v1613
        %1785 = vmatpush1.msra.mxu0 %v1612
        %1786 = vmatprep.subr.mxu0 %v1597
        %1787 = vmatpush1.msra.mxu0 %v1596
        %1788 = vmatprep.subr.mxu0 %v1581
        %1789 = vmatpush1.msra.mxu0 %v1580
        %1790 = vmatprep.subr.mxu0 %v1565
        %1791 = vmatpush1.msra.mxu0 %v1564
        %1792 = vmatprep.subr.mxu0 %v1549
        %1793 = vmatpush1.msra.mxu0 %v1548
        %1794 = vmatprep.subr.mxu0 %v1533
        %1795 = vmatpush1.msra.mxu0 %v1532
        %1796 = vmatprep.subr.mxu0 %v1517
        %1797 = vmatpush1.msra.mxu0 %v1516
        %1798 = vmatprep.subr.mxu0 %v1501
        %1799 = vmatpush1.msra.mxu0 %v1500
        %1800 = vmatprep.subr.mxu0 %v1485
        %1801 = vmatpush1.msra.mxu0 %v1484
        %1802 = vmatprep.subr.mxu0 %v1469
        %1803 = vmatpush1.msra.mxu0 %v1468
        %1804 = vmatprep.subr.mxu0 %v1453
        %1805 = vmatpush1.msra.mxu0 %v1452
        %1806 = vmatprep.subr.mxu0 %v1437
        %1807 = vmatpush1.msra.mxu0 %v1436
        %1808 = vmatprep.subr.mxu0 %v1421
        %1809 = vmatpush1.msra.mxu0 %v1420
        %1810 = vmatprep.subr.mxu0 %v1405
        %1811 = vmatpush1.msra.mxu0 %v1404
        %1812 = vmatprep.subr.mxu0 %v1389
        %1813 = vmatpush1.msra.mxu0 %v1388
        %1814 = vmatprep.subr.mxu0 0.0
        %1815 = vmatpush2.msra.mxu0 0.0
        %1816 = vmatprep.subr.mxu0 0.0
        %1817 = vmatpush2.msra.mxu0 0.0
        %1818 = vmatprep.subr.mxu0 0.0
        %1819 = vmatpush2.msra.mxu0 0.0
        %1820 = vmatprep.subr.mxu0 0.0
        %1821 = vmatpush2.msra.mxu0 0.0
        %1822 = vmatprep.subr.mxu0 0.0
        %1823 = vmatpush2.msra.mxu0 0.0
        %1824 = vmatprep.subr.mxu0 0.0
        %1825 = vmatpush2.msra.mxu0 0.0
        %1826 = vmatprep.subr.mxu0 0.0
        %1827 = vmatpush2.msra.mxu0 0.0
        %1828 = vmatprep.subr.mxu0 0.0
        %1829 = vmatpush2.msra.mxu0 0.0
        %1830 = vmatprep.subr.mxu0 0.0
        %1831 = vmatpush2.msra.mxu0 0.0
        %1832 = vmatprep.subr.mxu0 0.0
        %1833 = vmatpush2.msra.mxu0 0.0
        %1834 = vmatprep.subr.mxu0 0.0
        %1835 = vmatpush2.msra.mxu0 0.0
        %1836 = vmatprep.subr.mxu0 0.0
        %1837 = vmatpush2.msra.mxu0 0.0
        %1838 = vmatprep.subr.mxu0 0.0
        %1839 = vmatpush2.msra.mxu0 0.0
        %1840 = vmatprep.subr.mxu0 0.0
        %1841 = vmatpush2.msra.mxu0 0.0
        %1842 = vmatprep.subr.mxu0 0.0
        %1843 = vmatpush2.msra.mxu0 0.0
        %1844 = vmatprep.subr.mxu0 0.0
        %1845 = vmatpush2.msra.mxu0 0.0
        %1846 = vmatprep.mubr.f32.mxu0 0.0
        %1847 = vmatmul.mubr.f32.gmra.mxu0 %v1381
        %v1848 = vpop.f32.mrf.mxu0
        %v1849 = vadd.f32 0.0, %v1848
        %v1850 = vpop.f32.mrf.mxu0
        %v1851 = vadd.f32 0.0, %v1850
        %1852 = vdwg.mxu0
        %1853 = vmatprep.subr.mxu0 %v1631
        %1854 = vmatpush1.msra.mxu0 %v1630
        %1855 = vmatprep.subr.mxu0 %v1615
        %1856 = vmatpush1.msra.mxu0 %v1614
        %1857 = vmatprep.subr.mxu0 %v1599
        %1858 = vmatpush1.msra.mxu0 %v1598
        %1859 = vmatprep.subr.mxu0 %v1583
        %1860 = vmatpush1.msra.mxu0 %v1582
        %1861 = vmatprep.subr.mxu0 %v1567
        %1862 = vmatpush1.msra.mxu0 %v1566
        %1863 = vmatprep.subr.mxu0 %v1551
        %1864 = vmatpush1.msra.mxu0 %v1550
        %1865 = vmatprep.subr.mxu0 %v1535
        %1866 = vmatpush1.msra.mxu0 %v1534
        %1867 = vmatprep.subr.mxu0 %v1519
        %1868 = vmatpush1.msra.mxu0 %v1518
        %1869 = vmatprep.subr.mxu0 %v1503
        %1870 = vmatpush1.msra.mxu0 %v1502
        %1871 = vmatprep.subr.mxu0 %v1487
        %1872 = vmatpush1.msra.mxu0 %v1486
        %1873 = vmatprep.subr.mxu0 %v1471
        %1874 = vmatpush1.msra.mxu0 %v1470
        %1875 = vmatprep.subr.mxu0 %v1455
        %1876 = vmatpush1.msra.mxu0 %v1454
        %1877 = vmatprep.subr.mxu0 %v1439
        %1878 = vmatpush1.msra.mxu0 %v1438
        %1879 = vmatprep.subr.mxu0 %v1423
        %1880 = vmatpush1.msra.mxu0 %v1422
        %1881 = vmatprep.subr.mxu0 %v1407
        %1882 = vmatpush1.msra.mxu0 %v1406
        %1883 = vmatprep.subr.mxu0 %v1391
        %1884 = vmatpush1.msra.mxu0 %v1390
        %1885 = vmatprep.subr.mxu0 0.0
        %1886 = vmatpush2.msra.mxu0 0.0
        %1887 = vmatprep.subr.mxu0 0.0
        %1888 = vmatpush2.msra.mxu0 0.0
        %1889 = vmatprep.subr.mxu0 0.0
        %1890 = vmatpush2.msra.mxu0 0.0
        %1891 = vmatprep.subr.mxu0 0.0
        %1892 = vmatpush2.msra.mxu0 0.0
        %1893 = vmatprep.subr.mxu0 0.0
        %1894 = vmatpush2.msra.mxu0 0.0
        %1895 = vmatprep.subr.mxu0 0.0
        %1896 = vmatpush2.msra.mxu0 0.0
        %1897 = vmatprep.subr.mxu0 0.0
        %1898 = vmatpush2.msra.mxu0 0.0
        %1899 = vmatprep.subr.mxu0 0.0
        %1900 = vmatpush2.msra.mxu0 0.0
        %1901 = vmatprep.subr.mxu0 0.0
        %1902 = vmatpush2.msra.mxu0 0.0
        %1903 = vmatprep.subr.mxu0 0.0
        %1904 = vmatpush2.msra.mxu0 0.0
        %1905 = vmatprep.subr.mxu0 0.0
        %1906 = vmatpush2.msra.mxu0 0.0
        %1907 = vmatprep.subr.mxu0 0.0
        %1908 = vmatpush2.msra.mxu0 0.0
        %1909 = vmatprep.subr.mxu0 0.0
        %1910 = vmatpush2.msra.mxu0 0.0
        %1911 = vmatprep.subr.mxu0 0.0
        %1912 = vmatpush2.msra.mxu0 0.0
        %1913 = vmatprep.subr.mxu0 0.0
        %1914 = vmatpush2.msra.mxu0 0.0
        %1915 = vmatprep.subr.mxu0 0.0
        %1916 = vmatpush2.msra.mxu0 0.0
        %1917 = vmatprep.mubr.f32.mxu0 0.0
        %1918 = vmatmul.mubr.f32.gmra.mxu0 %v1381
        %v1919 = vpop.f32.mrf.mxu0
        %v1920 = vadd.f32 0.0, %v1919
        %v1921 = vpop.f32.mrf.mxu0
        %v1922 = vadd.f32 0.0, %v1921
        %1923 = vdwg.mxu0
        %1924 = vmatprep.subr.mxu0 %v1633
        %1925 = vmatpush1.msra.mxu0 %v1632
        %1926 = vmatprep.subr.mxu0 %v1617
        %1927 = vmatpush1.msra.mxu0 %v1616
        %1928 = vmatprep.subr.mxu0 %v1601
        %1929 = vmatpush1.msra.mxu0 %v1600
        %1930 = vmatprep.subr.mxu0 %v1585
        %1931 = vmatpush1.msra.mxu0 %v1584
        %1932 = vmatprep.subr.mxu0 %v1569
        %1933 = vmatpush1.msra.mxu0 %v1568
        %1934 = vmatprep.subr.mxu0 %v1553
        %1935 = vmatpush1.msra.mxu0 %v1552
        %1936 = vmatprep.subr.mxu0 %v1537
        %1937 = vmatpush1.msra.mxu0 %v1536
        %1938 = vmatprep.subr.mxu0 %v1521
        %1939 = vmatpush1.msra.mxu0 %v1520
        %1940 = vmatprep.subr.mxu0 %v1505
        %1941 = vmatpush1.msra.mxu0 %v1504
        %1942 = vmatprep.subr.mxu0 %v1489
        %1943 = vmatpush1.msra.mxu0 %v1488
        %1944 = vmatprep.subr.mxu0 %v1473
        %1945 = vmatpush1.msra.mxu0 %v1472
        %1946 = vmatprep.subr.mxu0 %v1457
        %1947 = vmatpush1.msra.mxu0 %v1456
        %1948 = vmatprep.subr.mxu0 %v1441
        %1949 = vmatpush1.msra.mxu0 %v1440
        %1950 = vmatprep.subr.mxu0 %v1425
        %1951 = vmatpush1.msra.mxu0 %v1424
        %1952 = vmatprep.subr.mxu0 %v1409
        %1953 = vmatpush1.msra.mxu0 %v1408
        %1954 = vmatprep.subr.mxu0 %v1393
        %1955 = vmatpush1.msra.mxu0 %v1392
        %1956 = vmatprep.subr.mxu0 0.0
        %1957 = vmatpush2.msra.mxu0 0.0
        %1958 = vmatprep.subr.mxu0 0.0
        %1959 = vmatpush2.msra.mxu0 0.0
        %1960 = vmatprep.subr.mxu0 0.0
        %1961 = vmatpush2.msra.mxu0 0.0
        %1962 = vmatprep.subr.mxu0 0.0
        %1963 = vmatpush2.msra.mxu0 0.0
        %1964 = vmatprep.subr.mxu0 0.0
        %1965 = vmatpush2.msra.mxu0 0.0
        %1966 = vmatprep.subr.mxu0 0.0
        %1967 = vmatpush2.msra.mxu0 0.0
        %1968 = vmatprep.subr.mxu0 0.0
        %1969 = vmatpush2.msra.mxu0 0.0
        %1970 = vmatprep.subr.mxu0 0.0
        %1971 = vmatpush2.msra.mxu0 0.0
        %1972 = vmatprep.subr.mxu0 0.0
        %1973 = vmatpush2.msra.mxu0 0.0
        %1974 = vmatprep.subr.mxu0 0.0
        %1975 = vmatpush2.msra.mxu0 0.0
        %1976 = vmatprep.subr.mxu0 0.0
        %1977 = vmatpush2.msra.mxu0 0.0
        %1978 = vmatprep.subr.mxu0 0.0
        %1979 = vmatpush2.msra.mxu0 0.0
        %1980 = vmatprep.subr.mxu0 0.0
        %1981 = vmatpush2.msra.mxu0 0.0
        %1982 = vmatprep.subr.mxu0 0.0
        %1983 = vmatpush2.msra.mxu0 0.0
        %1984 = vmatprep.subr.mxu0 0.0
        %1985 = vmatpush2.msra.mxu0 0.0
        %1986 = vmatprep.subr.mxu0 0.0
        %1987 = vmatpush2.msra.mxu0 0.0
        %1988 = vmatprep.mubr.f32.mxu0 0.0
        %1989 = vmatmul.mubr.f32.gmra.mxu0 %v1381
        %v1990 = vpop.f32.mrf.mxu0
        %v1991 = vadd.f32 0.0, %v1990
        %v1992 = vpop.f32.mrf.mxu0
        %v1993 = vadd.f32 0.0, %v1992
        %1994 = vdwg.mxu0
        %1995 = vmatprep.subr.mxu0 %v1635
        %1996 = vmatpush1.msra.mxu0 %v1634
        %1997 = vmatprep.subr.mxu0 %v1619
        %1998 = vmatpush1.msra.mxu0 %v1618
        %1999 = vmatprep.subr.mxu0 %v1603
        %2000 = vmatpush1.msra.mxu0 %v1602
        %2001 = vmatprep.subr.mxu0 %v1587
        %2002 = vmatpush1.msra.mxu0 %v1586
        %2003 = vmatprep.subr.mxu0 %v1571
        %2004 = vmatpush1.msra.mxu0 %v1570
        %2005 = vmatprep.subr.mxu0 %v1555
        %2006 = vmatpush1.msra.mxu0 %v1554
        %2007 = vmatprep.subr.mxu0 %v1539
        %2008 = vmatpush1.msra.mxu0 %v1538
        %2009 = vmatprep.subr.mxu0 %v1523
        %2010 = vmatpush1.msra.mxu0 %v1522
        %2011 = vmatprep.subr.mxu0 %v1507
        %2012 = vmatpush1.msra.mxu0 %v1506
        %2013 = vmatprep.subr.mxu0 %v1491
        %2014 = vmatpush1.msra.mxu0 %v1490
        %2015 = vmatprep.subr.mxu0 %v1475
        %2016 = vmatpush1.msra.mxu0 %v1474
        %2017 = vmatprep.subr.mxu0 %v1459
        %2018 = vmatpush1.msra.mxu0 %v1458
        %2019 = vmatprep.subr.mxu0 %v1443
        %2020 = vmatpush1.msra.mxu0 %v1442
        %2021 = vmatprep.subr.mxu0 %v1427
        %2022 = vmatpush1.msra.mxu0 %v1426
        %2023 = vmatprep.subr.mxu0 %v1411
        %2024 = vmatpush1.msra.mxu0 %v1410
        %2025 = vmatprep.subr.mxu0 %v1395
        %2026 = vmatpush1.msra.mxu0 %v1394
        %2027 = vmatprep.subr.mxu0 0.0
        %2028 = vmatpush2.msra.mxu0 0.0
        %2029 = vmatprep.subr.mxu0 0.0
        %2030 = vmatpush2.msra.mxu0 0.0
        %2031 = vmatprep.subr.mxu0 0.0
        %2032 = vmatpush2.msra.mxu0 0.0
        %2033 = vmatprep.subr.mxu0 0.0
        %2034 = vmatpush2.msra.mxu0 0.0
        %2035 = vmatprep.subr.mxu0 0.0
        %2036 = vmatpush2.msra.mxu0 0.0
        %2037 = vmatprep.subr.mxu0 0.0
        %2038 = vmatpush2.msra.mxu0 0.0
        %2039 = vmatprep.subr.mxu0 0.0
        %2040 = vmatpush2.msra.mxu0 0.0
        %2041 = vmatprep.subr.mxu0 0.0
        %2042 = vmatpush2.msra.mxu0 0.0
        %2043 = vmatprep.subr.mxu0 0.0
        %2044 = vmatpush2.msra.mxu0 0.0
        %2045 = vmatprep.subr.mxu0 0.0
        %2046 = vmatpush2.msra.mxu0 0.0
        %2047 = vmatprep.subr.mxu0 0.0
        %2048 = vmatpush2.msra.mxu0 0.0
        %2049 = vmatprep.subr.mxu0 0.0
        %2050 = vmatpush2.msra.mxu0 0.0
        %2051 = vmatprep.subr.mxu0 0.0
        %2052 = vmatpush2.msra.mxu0 0.0
        %2053 = vmatprep.subr.mxu0 0.0
        %2054 = vmatpush2.msra.mxu0 0.0
        %2055 = vmatprep.subr.mxu0 0.0
        %2056 = vmatpush2.msra.mxu0 0.0
        %2057 = vmatprep.subr.mxu0 0.0
        %2058 = vmatpush2.msra.mxu0 0.0
        %2059 = vmatprep.mubr.f32.mxu0 0.0
        %2060 = vmatmul.mubr.f32.gmra.mxu0 %v1381
        %v2061 = vpop.f32.mrf.mxu0
        %v2062 = vadd.f32 0.0, %v2061
        %v2063 = vpop.f32.mrf.mxu0
        %v2064 = vadd.f32 0.0, %v2063
        %2065 = vdwg.mxu0
        %2066 = vmatprep.subr.mxu0 %v1637
        %2067 = vmatpush1.msra.mxu0 %v1636
        %2068 = vmatprep.subr.mxu0 %v1621
        %2069 = vmatpush1.msra.mxu0 %v1620
        %2070 = vmatprep.subr.mxu0 %v1605
        %2071 = vmatpush1.msra.mxu0 %v1604
        %2072 = vmatprep.subr.mxu0 %v1589
        %2073 = vmatpush1.msra.mxu0 %v1588
        %2074 = vmatprep.subr.mxu0 %v1573
        %2075 = vmatpush1.msra.mxu0 %v1572
        %2076 = vmatprep.subr.mxu0 %v1557
        %2077 = vmatpush1.msra.mxu0 %v1556
        %2078 = vmatprep.subr.mxu0 %v1541
        %2079 = vmatpush1.msra.mxu0 %v1540
        %2080 = vmatprep.subr.mxu0 %v1525
        %2081 = vmatpush1.msra.mxu0 %v1524
        %2082 = vmatprep.subr.mxu0 %v1509
        %2083 = vmatpush1.msra.mxu0 %v1508
        %2084 = vmatprep.subr.mxu0 %v1493
        %2085 = vmatpush1.msra.mxu0 %v1492
        %2086 = vmatprep.subr.mxu0 %v1477
        %2087 = vmatpush1.msra.mxu0 %v1476
        %2088 = vmatprep.subr.mxu0 %v1461
        %2089 = vmatpush1.msra.mxu0 %v1460
        %2090 = vmatprep.subr.mxu0 %v1445
        %2091 = vmatpush1.msra.mxu0 %v1444
        %2092 = vmatprep.subr.mxu0 %v1429
        %2093 = vmatpush1.msra.mxu0 %v1428
        %2094 = vmatprep.subr.mxu0 %v1413
        %2095 = vmatpush1.msra.mxu0 %v1412
        %2096 = vmatprep.subr.mxu0 %v1397
        %2097 = vmatpush1.msra.mxu0 %v1396
        %2098 = vmatprep.subr.mxu0 0.0
        %2099 = vmatpush2.msra.mxu0 0.0
        %2100 = vmatprep.subr.mxu0 0.0
        %2101 = vmatpush2.msra.mxu0 0.0
        %2102 = vmatprep.subr.mxu0 0.0
        %2103 = vmatpush2.msra.mxu0 0.0
        %2104 = vmatprep.subr.mxu0 0.0
        %2105 = vmatpush2.msra.mxu0 0.0
        %2106 = vmatprep.subr.mxu0 0.0
        %2107 = vmatpush2.msra.mxu0 0.0
        %2108 = vmatprep.subr.mxu0 0.0
        %2109 = vmatpush2.msra.mxu0 0.0
        %2110 = vmatprep.subr.mxu0 0.0
        %2111 = vmatpush2.msra.mxu0 0.0
        %2112 = vmatprep.subr.mxu0 0.0
        %2113 = vmatpush2.msra.mxu0 0.0
        %2114 = vmatprep.subr.mxu0 0.0
        %2115 = vmatpush2.msra.mxu0 0.0
        %2116 = vmatprep.subr.mxu0 0.0
        %2117 = vmatpush2.msra.mxu0 0.0
        %2118 = vmatprep.subr.mxu0 0.0
        %2119 = vmatpush2.msra.mxu0 0.0
        %2120 = vmatprep.subr.mxu0 0.0
        %2121 = vmatpush2.msra.mxu0 0.0
        %2122 = vmatprep.subr.mxu0 0.0
        %2123 = vmatpush2.msra.mxu0 0.0
        %2124 = vmatprep.subr.mxu0 0.0
        %2125 = vmatpush2.msra.mxu0 0.0
        %2126 = vmatprep.subr.mxu0 0.0
        %2127 = vmatpush2.msra.mxu0 0.0
        %2128 = vmatprep.subr.mxu0 0.0
        %2129 = vmatpush2.msra.mxu0 0.0
        %2130 = vmatprep.mubr.f32.mxu0 0.0
        %2131 = vmatmul.mubr.f32.gmra.mxu0 %v1381
        %v2132 = vpop.f32.mrf.mxu0
        %v2133 = vadd.f32 0.0, %v2132
        %v2134 = vpop.f32.mrf.mxu0
        %v2135 = vadd.f32 0.0, %v2134
        %2136 = vdwg.mxu0
        %2137 = vmatprep.subr.mxu0 %v1639
        %2138 = vmatpush1.msra.mxu0 %v1638
        %2139 = vmatprep.subr.mxu0 %v1623
        %2140 = vmatpush1.msra.mxu0 %v1622
        %2141 = vmatprep.subr.mxu0 %v1607
        %2142 = vmatpush1.msra.mxu0 %v1606
        %2143 = vmatprep.subr.mxu0 %v1591
        %2144 = vmatpush1.msra.mxu0 %v1590
        %2145 = vmatprep.subr.mxu0 %v1575
        %2146 = vmatpush1.msra.mxu0 %v1574
        %2147 = vmatprep.subr.mxu0 %v1559
        %2148 = vmatpush1.msra.mxu0 %v1558
        %2149 = vmatprep.subr.mxu0 %v1543
        %2150 = vmatpush1.msra.mxu0 %v1542
        %2151 = vmatprep.subr.mxu0 %v1527
        %2152 = vmatpush1.msra.mxu0 %v1526
        %2153 = vmatprep.subr.mxu0 %v1511
        %2154 = vmatpush1.msra.mxu0 %v1510
        %2155 = vmatprep.subr.mxu0 %v1495
        %2156 = vmatpush1.msra.mxu0 %v1494
        %2157 = vmatprep.subr.mxu0 %v1479
        %2158 = vmatpush1.msra.mxu0 %v1478
        %2159 = vmatprep.subr.mxu0 %v1463
        %2160 = vmatpush1.msra.mxu0 %v1462
        %2161 = vmatprep.subr.mxu0 %v1447
        %2162 = vmatpush1.msra.mxu0 %v1446
        %2163 = vmatprep.subr.mxu0 %v1431
        %2164 = vmatpush1.msra.mxu0 %v1430
        %2165 = vmatprep.subr.mxu0 %v1415
        %2166 = vmatpush1.msra.mxu0 %v1414
        %2167 = vmatprep.subr.mxu0 %v1399
        %2168 = vmatpush1.msra.mxu0 %v1398
        %2169 = vmatprep.subr.mxu0 0.0
        %2170 = vmatpush2.msra.mxu0 0.0
        %2171 = vmatprep.subr.mxu0 0.0
        %2172 = vmatpush2.msra.mxu0 0.0
        %2173 = vmatprep.subr.mxu0 0.0
        %2174 = vmatpush2.msra.mxu0 0.0
        %2175 = vmatprep.subr.mxu0 0.0
        %2176 = vmatpush2.msra.mxu0 0.0
        %2177 = vmatprep.subr.mxu0 0.0
        %2178 = vmatpush2.msra.mxu0 0.0
        %2179 = vmatprep.subr.mxu0 0.0
        %2180 = vmatpush2.msra.mxu0 0.0
        %2181 = vmatprep.subr.mxu0 0.0
        %2182 = vmatpush2.msra.mxu0 0.0
        %2183 = vmatprep.subr.mxu0 0.0
        %2184 = vmatpush2.msra.mxu0 0.0
        %2185 = vmatprep.subr.mxu0 0.0
        %2186 = vmatpush2.msra.mxu0 0.0
        %2187 = vmatprep.subr.mxu0 0.0
        %2188 = vmatpush2.msra.mxu0 0.0
        %2189 = vmatprep.subr.mxu0 0.0
        %2190 = vmatpush2.msra.mxu0 0.0
        %2191 = vmatprep.subr.mxu0 0.0
        %2192 = vmatpush2.msra.mxu0 0.0
        %2193 = vmatprep.subr.mxu0 0.0
        %2194 = vmatpush2.msra.mxu0 0.0
        %2195 = vmatprep.subr.mxu0 0.0
        %2196 = vmatpush2.msra.mxu0 0.0
        %2197 = vmatprep.subr.mxu0 0.0
        %2198 = vmatpush2.msra.mxu0 0.0
        %2199 = vmatprep.subr.mxu0 0.0
        %2200 = vmatpush2.msra.mxu0 0.0
        %2201 = vmatprep.mubr.f32.mxu0 0.0
        %2202 = vmatmul.mubr.f32.gmra.mxu0 %v1381
        %v2203 = vpop.f32.mrf.mxu0
        %v2204 = vadd.f32 0.0, %v2203
        %v2205 = vpop.f32.mrf.mxu0
        %v2206 = vadd.f32 0.0, %v2205
        %2207 = vdwg.mxu0
        %v2208 = vlaneseq
        %v2209 = vshrl.u32 %v2208, 7
        %v2210 = vsub.s32 0, %v2209
        %v2211 = vrot.slane %v1707, %v2210
        %v2212 = vlaneseq
        %v2213 = vshrl.u32 %v2212, 7
        %v2214 = vsub.s32 0, %v2213
        %v2215 = vrot.slane %v1709, %v2214
        %v2216 = vlaneseq
        %v2217 = vshrl.u32 %v2216, 7
        %v2218 = vsub.s32 0, %v2217
        %v2219 = vrot.slane %v1778, %v2218
        %v2220 = vlaneseq
        %v2221 = vshrl.u32 %v2220, 7
        %v2222 = vsub.s32 0, %v2221
        %v2223 = vrot.slane %v1780, %v2222
        %v2224 = vlaneseq
        %v2225 = vshrl.u32 %v2224, 7
        %v2226 = vsub.s32 0, %v2225
        %v2227 = vrot.slane %v1849, %v2226
        %v2228 = vlaneseq
        %v2229 = vshrl.u32 %v2228, 7
        %v2230 = vsub.s32 0, %v2229
        %v2231 = vrot.slane %v1851, %v2230
        %v2232 = vlaneseq
        %v2233 = vshrl.u32 %v2232, 7
        %v2234 = vsub.s32 0, %v2233
        %v2235 = vrot.slane %v1920, %v2234
        %v2236 = vlaneseq
        %v2237 = vshrl.u32 %v2236, 7
        %v2238 = vsub.s32 0, %v2237
        %v2239 = vrot.slane %v1922, %v2238
        %v2240 = vlaneseq
        %v2241 = vshrl.u32 %v2240, 7
        %v2242 = vsub.s32 0, %v2241
        %v2243 = vrot.slane %v1991, %v2242
        %v2244 = vlaneseq
        %v2245 = vshrl.u32 %v2244, 7
        %v2246 = vsub.s32 0, %v2245
        %v2247 = vrot.slane %v1993, %v2246
        %v2248 = vlaneseq
        %v2249 = vshrl.u32 %v2248, 7
        %v2250 = vsub.s32 0, %v2249
        %v2251 = vrot.slane %v2062, %v2250
        %v2252 = vlaneseq
        %v2253 = vshrl.u32 %v2252, 7
        %v2254 = vsub.s32 0, %v2253
        %v2255 = vrot.slane %v2064, %v2254
        %v2256 = vlaneseq
        %v2257 = vshrl.u32 %v2256, 7
        %v2258 = vsub.s32 0, %v2257
        %v2259 = vrot.slane %v2133, %v2258
        %v2260 = vlaneseq
        %v2261 = vshrl.u32 %v2260, 7
        %v2262 = vsub.s32 0, %v2261
        %v2263 = vrot.slane %v2135, %v2262
        %v2264 = vlaneseq
        %v2265 = vshrl.u32 %v2264, 7
        %v2266 = vsub.s32 0, %v2265
        %v2267 = vrot.slane %v2204, %v2266
        %v2268 = vlaneseq
        %v2269 = vshrl.u32 %v2268, 7
        %v2270 = vsub.s32 0, %v2269
        %v2271 = vrot.slane %v2206, %v2270
        %v2272 = vsub.f32 %v424, %v2211
        %v2273 = vsub.f32 %v425, %v2215
        %v2274 = vsub.f32 %v426, %v2219
        %v2275 = vsub.f32 %v427, %v2223
        %v2276 = vsub.f32 %v428, %v2227
        %v2277 = vsub.f32 %v429, %v2231
        %v2278 = vsub.f32 %v430, %v2235
        %v2279 = vsub.f32 %v431, %v2239
        %v2280 = vsub.f32 %v432, %v2243
        %v2281 = vsub.f32 %v433, %v2247
        %v2282 = vsub.f32 %v434, %v2251
        %v2283 = vsub.f32 %v435, %v2255
        %v2284 = vsub.f32 %v436, %v2259
        %v2285 = vsub.f32 %v437, %v2263
        %v2286 = vsub.f32 %v438, %v2267
        %v2287 = vsub.f32 %v439, %v2271
        %v2288 = vsub.f32 %v440, %v2211
        %v2289 = vsub.f32 %v441, %v2215
        %v2290 = vsub.f32 %v442, %v2219
        %v2291 = vsub.f32 %v443, %v2223
        %v2292 = vsub.f32 %v444, %v2227
        %v2293 = vsub.f32 %v445, %v2231
        %v2294 = vsub.f32 %v446, %v2235
        %v2295 = vsub.f32 %v447, %v2239
        %v2296 = vsub.f32 %v448, %v2243
        %v2297 = vsub.f32 %v449, %v2247
        %v2298 = vsub.f32 %v450, %v2251
        %v2299 = vsub.f32 %v451, %v2255
        %v2300 = vsub.f32 %v452, %v2259
        %v2301 = vsub.f32 %v453, %v2263
        %v2302 = vsub.f32 %v454, %v2267
        %v2303 = vsub.f32 %v455, %v2271
        %v2304 = vmul.f32 %v2272, %v2272
        %v2305 = vmul.f32 %v2273, %v2273
        %v2306 = vmul.f32 %v2274, %v2274
        %v2307 = vmul.f32 %v2275, %v2275
        %v2308 = vmul.f32 %v2276, %v2276
        %v2309 = vmul.f32 %v2277, %v2277
        %v2310 = vmul.f32 %v2278, %v2278
        %v2311 = vmul.f32 %v2279, %v2279
        %v2312 = vmul.f32 %v2280, %v2280
        %v2313 = vmul.f32 %v2281, %v2281
        %v2314 = vmul.f32 %v2282, %v2282
        %v2315 = vmul.f32 %v2283, %v2283
        %v2316 = vmul.f32 %v2284, %v2284
        %v2317 = vmul.f32 %v2285, %v2285
        %v2318 = vmul.f32 %v2286, %v2286
        %v2319 = vmul.f32 %v2287, %v2287
        %v2320 = vmul.f32 %v2288, %v2288
        %v2321 = vmul.f32 %v2289, %v2289
        %v2322 = vmul.f32 %v2290, %v2290
        %v2323 = vmul.f32 %v2291, %v2291
        %v2324 = vmul.f32 %v2292, %v2292
        %v2325 = vmul.f32 %v2293, %v2293
        %v2326 = vmul.f32 %v2294, %v2294
        %v2327 = vmul.f32 %v2295, %v2295
        %v2328 = vmul.f32 %v2296, %v2296
        %v2329 = vmul.f32 %v2297, %v2297
        %v2330 = vmul.f32 %v2298, %v2298
        %v2331 = vmul.f32 %v2299, %v2299
        %v2332 = vmul.f32 %v2300, %v2300
        %v2333 = vmul.f32 %v2301, %v2301
        %v2334 = vmul.f32 %v2302, %v2302
        %v2335 = vmul.f32 %v2303, %v2303
        %v2336 = vadd.f32 %v2304, %v2320
        %v2337 = vrot.slane %v2336, 4
        %v2338 = vadd.f32 %v2336, %v2337
        %v2339 = vrot.slane %v2338, 2
        %v2340 = vadd.f32 %v2338, %v2339
        %v2341 = vrot.slane %v2340, 1
        %v2342 = vadd.f32 %v2340, %v2341
        %v2343 = vadd.f32 %v2305, %v2321
        %v2344 = vrot.slane %v2343, 4
        %v2345 = vadd.f32 %v2343, %v2344
        %v2346 = vrot.slane %v2345, 2
        %v2347 = vadd.f32 %v2345, %v2346
        %v2348 = vrot.slane %v2347, 1
        %v2349 = vadd.f32 %v2347, %v2348
        %v2350 = vadd.f32 %v2306, %v2322
        %v2351 = vrot.slane %v2350, 4
        %v2352 = vadd.f32 %v2350, %v2351
        %v2353 = vrot.slane %v2352, 2
        %v2354 = vadd.f32 %v2352, %v2353
        %v2355 = vrot.slane %v2354, 1
        %v2356 = vadd.f32 %v2354, %v2355
        %v2357 = vadd.f32 %v2307, %v2323
        %v2358 = vrot.slane %v2357, 4
        %v2359 = vadd.f32 %v2357, %v2358
        %v2360 = vrot.slane %v2359, 2
        %v2361 = vadd.f32 %v2359, %v2360
        %v2362 = vrot.slane %v2361, 1
        %v2363 = vadd.f32 %v2361, %v2362
        %v2364 = vadd.f32 %v2308, %v2324
        %v2365 = vrot.slane %v2364, 4
        %v2366 = vadd.f32 %v2364, %v2365
        %v2367 = vrot.slane %v2366, 2
        %v2368 = vadd.f32 %v2366, %v2367
        %v2369 = vrot.slane %v2368, 1
        %v2370 = vadd.f32 %v2368, %v2369
        %v2371 = vadd.f32 %v2309, %v2325
        %v2372 = vrot.slane %v2371, 4
        %v2373 = vadd.f32 %v2371, %v2372
        %v2374 = vrot.slane %v2373, 2
        %v2375 = vadd.f32 %v2373, %v2374
        %v2376 = vrot.slane %v2375, 1
        %v2377 = vadd.f32 %v2375, %v2376
        %v2378 = vadd.f32 %v2310, %v2326
        %v2379 = vrot.slane %v2378, 4
        %v2380 = vadd.f32 %v2378, %v2379
        %v2381 = vrot.slane %v2380, 2
        %v2382 = vadd.f32 %v2380, %v2381
        %v2383 = vrot.slane %v2382, 1
        %v2384 = vadd.f32 %v2382, %v2383
        %v2385 = vadd.f32 %v2311, %v2327
        %v2386 = vrot.slane %v2385, 4
        %v2387 = vadd.f32 %v2385, %v2386
        %v2388 = vrot.slane %v2387, 2
        %v2389 = vadd.f32 %v2387, %v2388
        %v2390 = vrot.slane %v2389, 1
        %v2391 = vadd.f32 %v2389, %v2390
        %v2392 = vadd.f32 %v2312, %v2328
        %v2393 = vrot.slane %v2392, 4
        %v2394 = vadd.f32 %v2392, %v2393
        %v2395 = vrot.slane %v2394, 2
        %v2396 = vadd.f32 %v2394, %v2395
        %v2397 = vrot.slane %v2396, 1
        %v2398 = vadd.f32 %v2396, %v2397
        %v2399 = vadd.f32 %v2313, %v2329
        %v2400 = vrot.slane %v2399, 4
        %v2401 = vadd.f32 %v2399, %v2400
        %v2402 = vrot.slane %v2401, 2
        %v2403 = vadd.f32 %v2401, %v2402
        %v2404 = vrot.slane %v2403, 1
        %v2405 = vadd.f32 %v2403, %v2404
        %v2406 = vadd.f32 %v2314, %v2330
        %v2407 = vrot.slane %v2406, 4
        %v2408 = vadd.f32 %v2406, %v2407
        %v2409 = vrot.slane %v2408, 2
        %v2410 = vadd.f32 %v2408, %v2409
        %v2411 = vrot.slane %v2410, 1
        %v2412 = vadd.f32 %v2410, %v2411
        %v2413 = vadd.f32 %v2315, %v2331
        %v2414 = vrot.slane %v2413, 4
        %v2415 = vadd.f32 %v2413, %v2414
        %v2416 = vrot.slane %v2415, 2
        %v2417 = vadd.f32 %v2415, %v2416
        %v2418 = vrot.slane %v2417, 1
        %v2419 = vadd.f32 %v2417, %v2418
        %v2420 = vadd.f32 %v2316, %v2332
        %v2421 = vrot.slane %v2420, 4
        %v2422 = vadd.f32 %v2420, %v2421
        %v2423 = vrot.slane %v2422, 2
        %v2424 = vadd.f32 %v2422, %v2423
        %v2425 = vrot.slane %v2424, 1
        %v2426 = vadd.f32 %v2424, %v2425
        %v2427 = vadd.f32 %v2317, %v2333
        %v2428 = vrot.slane %v2427, 4
        %v2429 = vadd.f32 %v2427, %v2428
        %v2430 = vrot.slane %v2429, 2
        %v2431 = vadd.f32 %v2429, %v2430
        %v2432 = vrot.slane %v2431, 1
        %v2433 = vadd.f32 %v2431, %v2432
        %v2434 = vadd.f32 %v2318, %v2334
        %v2435 = vrot.slane %v2434, 4
        %v2436 = vadd.f32 %v2434, %v2435
        %v2437 = vrot.slane %v2436, 2
        %v2438 = vadd.f32 %v2436, %v2437
        %v2439 = vrot.slane %v2438, 1
        %v2440 = vadd.f32 %v2438, %v2439
        %v2441 = vadd.f32 %v2319, %v2335
        %v2442 = vrot.slane %v2441, 4
        %v2443 = vadd.f32 %v2441, %v2442
        %v2444 = vrot.slane %v2443, 2
        %v2445 = vadd.f32 %v2443, %v2444
        %v2446 = vrot.slane %v2445, 1
        %v2447 = vadd.f32 %v2445, %v2446
        %2448 = vmatprep.subr.mxu0 0.0
        %2449 = vmatpush1.msra.mxu0 %v583
        %2450 = vmatprep.subr.mxu0 0.0
        %2451 = vmatpush1.msra.mxu0 %v582
        %2452 = vmatprep.subr.mxu0 0.0
        %2453 = vmatpush1.msra.mxu0 %v581
        %2454 = vmatprep.subr.mxu0 0.0
        %2455 = vmatpush1.msra.mxu0 %v580
        %2456 = vmatprep.subr.mxu0 0.0
        %2457 = vmatpush1.msra.mxu0 %v579
        %2458 = vmatprep.subr.mxu0 0.0
        %2459 = vmatpush1.msra.mxu0 %v578
        %2460 = vmatprep.subr.mxu0 0.0
        %2461 = vmatpush1.msra.mxu0 %v577
        %2462 = vmatprep.subr.mxu0 0.0
        %2463 = vmatpush1.msra.mxu0 %v576
        %2464 = vmatprep.subr.mxu0 0.0
        %2465 = vmatpush1.msra.mxu0 %v575
        %2466 = vmatprep.subr.mxu0 0.0
        %2467 = vmatpush1.msra.mxu0 %v574
        %2468 = vmatprep.subr.mxu0 0.0
        %2469 = vmatpush1.msra.mxu0 %v573
        %2470 = vmatprep.subr.mxu0 0.0
        %2471 = vmatpush1.msra.mxu0 %v572
        %2472 = vmatprep.subr.mxu0 0.0
        %2473 = vmatpush1.msra.mxu0 %v571
        %2474 = vmatprep.subr.mxu0 0.0
        %2475 = vmatpush1.msra.mxu0 %v570
        %2476 = vmatprep.subr.mxu0 0.0
        %2477 = vmatpush1.msra.mxu0 %v569
        %2478 = vmatprep.subr.mxu0 0.0
        %2479 = vmatpush1.msra.mxu0 %v568
        %2480 = vmatprep.subr.mxu0 0.0
        %2481 = vmatpush2.msra.mxu0 %v599
        %2482 = vmatprep.subr.mxu0 0.0
        %2483 = vmatpush2.msra.mxu0 %v598
        %2484 = vmatprep.subr.mxu0 0.0
        %2485 = vmatpush2.msra.mxu0 %v597
        %2486 = vmatprep.subr.mxu0 0.0
        %2487 = vmatpush2.msra.mxu0 %v596
        %2488 = vmatprep.subr.mxu0 0.0
        %2489 = vmatpush2.msra.mxu0 %v595
        %2490 = vmatprep.subr.mxu0 0.0
        %2491 = vmatpush2.msra.mxu0 %v594
        %2492 = vmatprep.subr.mxu0 0.0
        %2493 = vmatpush2.msra.mxu0 %v593
        %2494 = vmatprep.subr.mxu0 0.0
        %2495 = vmatpush2.msra.mxu0 %v592
        %2496 = vmatprep.subr.mxu0 0.0
        %2497 = vmatpush2.msra.mxu0 %v591
        %2498 = vmatprep.subr.mxu0 0.0
        %2499 = vmatpush2.msra.mxu0 %v590
        %2500 = vmatprep.subr.mxu0 0.0
        %2501 = vmatpush2.msra.mxu0 %v589
        %2502 = vmatprep.subr.mxu0 0.0
        %2503 = vmatpush2.msra.mxu0 %v588
        %2504 = vmatprep.subr.mxu0 0.0
        %2505 = vmatpush2.msra.mxu0 %v587
        %2506 = vmatprep.subr.mxu0 0.0
        %2507 = vmatpush2.msra.mxu0 %v586
        %2508 = vmatprep.subr.mxu0 0.0
        %2509 = vmatpush2.msra.mxu0 %v585
        %2510 = vmatprep.subr.mxu0 0.0
        %2511 = vmatpush2.msra.mxu0 %v584
        %2512 = vmatprep.mubr.f32.mxu0 %v2349
        %2513 = vmatmul.mubr.f32.gmra.mxu0 %v2342
        %v2514 = vpop.f32.mrf.mxu0
        %v2515 = vadd.f32 1e-05, %v2514
        %v2516 = vpop.f32.mrf.mxu0
        %2517 = vdwg.mxu0
        %2518 = vmatprep.subr.mxu0 0.0
        %2519 = vmatpush1.msra.mxu0 %v615
        %2520 = vmatprep.subr.mxu0 0.0
        %2521 = vmatpush1.msra.mxu0 %v614
        %2522 = vmatprep.subr.mxu0 0.0
        %2523 = vmatpush1.msra.mxu0 %v613
        %2524 = vmatprep.subr.mxu0 0.0
        %2525 = vmatpush1.msra.mxu0 %v612
        %2526 = vmatprep.subr.mxu0 0.0
        %2527 = vmatpush1.msra.mxu0 %v611
        %2528 = vmatprep.subr.mxu0 0.0
        %2529 = vmatpush1.msra.mxu0 %v610
        %2530 = vmatprep.subr.mxu0 0.0
        %2531 = vmatpush1.msra.mxu0 %v609
        %2532 = vmatprep.subr.mxu0 0.0
        %2533 = vmatpush1.msra.mxu0 %v608
        %2534 = vmatprep.subr.mxu0 0.0
        %2535 = vmatpush1.msra.mxu0 %v607
        %2536 = vmatprep.subr.mxu0 0.0
        %2537 = vmatpush1.msra.mxu0 %v606
        %2538 = vmatprep.subr.mxu0 0.0
        %2539 = vmatpush1.msra.mxu0 %v605
        %2540 = vmatprep.subr.mxu0 0.0
        %2541 = vmatpush1.msra.mxu0 %v604
        %2542 = vmatprep.subr.mxu0 0.0
        %2543 = vmatpush1.msra.mxu0 %v603
        %2544 = vmatprep.subr.mxu0 0.0
        %2545 = vmatpush1.msra.mxu0 %v602
        %2546 = vmatprep.subr.mxu0 0.0
        %2547 = vmatpush1.msra.mxu0 %v601
        %2548 = vmatprep.subr.mxu0 0.0
        %2549 = vmatpush1.msra.mxu0 %v600
        %2550 = vmatprep.subr.mxu0 0.0
        %2551 = vmatpush2.msra.mxu0 %v631
        %2552 = vmatprep.subr.mxu0 0.0
        %2553 = vmatpush2.msra.mxu0 %v630
        %2554 = vmatprep.subr.mxu0 0.0
        %2555 = vmatpush2.msra.mxu0 %v629
        %2556 = vmatprep.subr.mxu0 0.0
        %2557 = vmatpush2.msra.mxu0 %v628
        %2558 = vmatprep.subr.mxu0 0.0
        %2559 = vmatpush2.msra.mxu0 %v627
        %2560 = vmatprep.subr.mxu0 0.0
        %2561 = vmatpush2.msra.mxu0 %v626
        %2562 = vmatprep.subr.mxu0 0.0
        %2563 = vmatpush2.msra.mxu0 %v625
        %2564 = vmatprep.subr.mxu0 0.0
        %2565 = vmatpush2.msra.mxu0 %v624
        %2566 = vmatprep.subr.mxu0 0.0
        %2567 = vmatpush2.msra.mxu0 %v623
        %2568 = vmatprep.subr.mxu0 0.0
        %2569 = vmatpush2.msra.mxu0 %v622
        %2570 = vmatprep.subr.mxu0 0.0
        %2571 = vmatpush2.msra.mxu0 %v621
        %2572 = vmatprep.subr.mxu0 0.0
        %2573 = vmatpush2.msra.mxu0 %v620
        %2574 = vmatprep.subr.mxu0 0.0
        %2575 = vmatpush2.msra.mxu0 %v619
        %2576 = vmatprep.subr.mxu0 0.0
        %2577 = vmatpush2.msra.mxu0 %v618
        %2578 = vmatprep.subr.mxu0 0.0
        %2579 = vmatpush2.msra.mxu0 %v617
        %2580 = vmatprep.subr.mxu0 0.0
        %2581 = vmatpush2.msra.mxu0 %v616
        %2582 = vmatprep.mubr.f32.mxu0 %v2363
        %2583 = vmatmul.mubr.f32.gmra.mxu0 %v2356
        %v2584 = vpop.f32.mrf.mxu0
        %v2585 = vadd.f32 %v2515, %v2584
        %v2586 = vpop.f32.mrf.mxu0
        %2587 = vdwg.mxu0
        %2588 = vmatprep.subr.mxu0 0.0
        %2589 = vmatpush1.msra.mxu0 %v647
        %2590 = vmatprep.subr.mxu0 0.0
        %2591 = vmatpush1.msra.mxu0 %v646
        %2592 = vmatprep.subr.mxu0 0.0
        %2593 = vmatpush1.msra.mxu0 %v645
        %2594 = vmatprep.subr.mxu0 0.0
        %2595 = vmatpush1.msra.mxu0 %v644
        %2596 = vmatprep.subr.mxu0 0.0
        %2597 = vmatpush1.msra.mxu0 %v643
        %2598 = vmatprep.subr.mxu0 0.0
        %2599 = vmatpush1.msra.mxu0 %v642
        %2600 = vmatprep.subr.mxu0 0.0
        %2601 = vmatpush1.msra.mxu0 %v641
        %2602 = vmatprep.subr.mxu0 0.0
        %2603 = vmatpush1.msra.mxu0 %v640
        %2604 = vmatprep.subr.mxu0 0.0
        %2605 = vmatpush1.msra.mxu0 %v639
        %2606 = vmatprep.subr.mxu0 0.0
        %2607 = vmatpush1.msra.mxu0 %v638
        %2608 = vmatprep.subr.mxu0 0.0
        %2609 = vmatpush1.msra.mxu0 %v637
        %2610 = vmatprep.subr.mxu0 0.0
        %2611 = vmatpush1.msra.mxu0 %v636
        %2612 = vmatprep.subr.mxu0 0.0
        %2613 = vmatpush1.msra.mxu0 %v635
        %2614 = vmatprep.subr.mxu0 0.0
        %2615 = vmatpush1.msra.mxu0 %v634
        %2616 = vmatprep.subr.mxu0 0.0
        %2617 = vmatpush1.msra.mxu0 %v633
        %2618 = vmatprep.subr.mxu0 0.0
        %2619 = vmatpush1.msra.mxu0 %v632
        %2620 = vmatprep.subr.mxu0 0.0
        %2621 = vmatpush2.msra.mxu0 %v663
        %2622 = vmatprep.subr.mxu0 0.0
        %2623 = vmatpush2.msra.mxu0 %v662
        %2624 = vmatprep.subr.mxu0 0.0
        %2625 = vmatpush2.msra.mxu0 %v661
        %2626 = vmatprep.subr.mxu0 0.0
        %2627 = vmatpush2.msra.mxu0 %v660
        %2628 = vmatprep.subr.mxu0 0.0
        %2629 = vmatpush2.msra.mxu0 %v659
        %2630 = vmatprep.subr.mxu0 0.0
        %2631 = vmatpush2.msra.mxu0 %v658
        %2632 = vmatprep.subr.mxu0 0.0
        %2633 = vmatpush2.msra.mxu0 %v657
        %2634 = vmatprep.subr.mxu0 0.0
        %2635 = vmatpush2.msra.mxu0 %v656
        %2636 = vmatprep.subr.mxu0 0.0
        %2637 = vmatpush2.msra.mxu0 %v655
        %2638 = vmatprep.subr.mxu0 0.0
        %2639 = vmatpush2.msra.mxu0 %v654
        %2640 = vmatprep.subr.mxu0 0.0
        %2641 = vmatpush2.msra.mxu0 %v653
        %2642 = vmatprep.subr.mxu0 0.0
        %2643 = vmatpush2.msra.mxu0 %v652
        %2644 = vmatprep.subr.mxu0 0.0
        %2645 = vmatpush2.msra.mxu0 %v651
        %2646 = vmatprep.subr.mxu0 0.0
        %2647 = vmatpush2.msra.mxu0 %v650
        %2648 = vmatprep.subr.mxu0 0.0
        %2649 = vmatpush2.msra.mxu0 %v649
        %2650 = vmatprep.subr.mxu0 0.0
        %2651 = vmatpush2.msra.mxu0 %v648
        %2652 = vmatprep.mubr.f32.mxu0 %v2377
        %2653 = vmatmul.mubr.f32.gmra.mxu0 %v2370
        %v2654 = vpop.f32.mrf.mxu0
        %v2655 = vadd.f32 %v2585, %v2654
        %v2656 = vpop.f32.mrf.mxu0
        %2657 = vdwg.mxu0
        %2658 = vmatprep.subr.mxu0 0.0
        %2659 = vmatpush1.msra.mxu0 %v679
        %2660 = vmatprep.subr.mxu0 0.0
        %2661 = vmatpush1.msra.mxu0 %v678
        %2662 = vmatprep.subr.mxu0 0.0
        %2663 = vmatpush1.msra.mxu0 %v677
        %2664 = vmatprep.subr.mxu0 0.0
        %2665 = vmatpush1.msra.mxu0 %v676
        %2666 = vmatprep.subr.mxu0 0.0
        %2667 = vmatpush1.msra.mxu0 %v675
        %2668 = vmatprep.subr.mxu0 0.0
        %2669 = vmatpush1.msra.mxu0 %v674
        %2670 = vmatprep.subr.mxu0 0.0
        %2671 = vmatpush1.msra.mxu0 %v673
        %2672 = vmatprep.subr.mxu0 0.0
        %2673 = vmatpush1.msra.mxu0 %v672
        %2674 = vmatprep.subr.mxu0 0.0
        %2675 = vmatpush1.msra.mxu0 %v671
        %2676 = vmatprep.subr.mxu0 0.0
        %2677 = vmatpush1.msra.mxu0 %v670
        %2678 = vmatprep.subr.mxu0 0.0
        %2679 = vmatpush1.msra.mxu0 %v669
        %2680 = vmatprep.subr.mxu0 0.0
        %2681 = vmatpush1.msra.mxu0 %v668
        %2682 = vmatprep.subr.mxu0 0.0
        %2683 = vmatpush1.msra.mxu0 %v667
        %2684 = vmatprep.subr.mxu0 0.0
        %2685 = vmatpush1.msra.mxu0 %v666
        %2686 = vmatprep.subr.mxu0 0.0
        %2687 = vmatpush1.msra.mxu0 %v665
        %2688 = vmatprep.subr.mxu0 0.0
        %2689 = vmatpush1.msra.mxu0 %v664
        %2690 = vmatprep.subr.mxu0 0.0
        %2691 = vmatpush2.msra.mxu0 %v695
        %2692 = vmatprep.subr.mxu0 0.0
        %2693 = vmatpush2.msra.mxu0 %v694
        %2694 = vmatprep.subr.mxu0 0.0
        %2695 = vmatpush2.msra.mxu0 %v693
        %2696 = vmatprep.subr.mxu0 0.0
        %2697 = vmatpush2.msra.mxu0 %v692
        %2698 = vmatprep.subr.mxu0 0.0
        %2699 = vmatpush2.msra.mxu0 %v691
        %2700 = vmatprep.subr.mxu0 0.0
        %2701 = vmatpush2.msra.mxu0 %v690
        %2702 = vmatprep.subr.mxu0 0.0
        %2703 = vmatpush2.msra.mxu0 %v689
        %2704 = vmatprep.subr.mxu0 0.0
        %2705 = vmatpush2.msra.mxu0 %v688
        %2706 = vmatprep.subr.mxu0 0.0
        %2707 = vmatpush2.msra.mxu0 %v687
        %2708 = vmatprep.subr.mxu0 0.0
        %2709 = vmatpush2.msra.mxu0 %v686
        %2710 = vmatprep.subr.mxu0 0.0
        %2711 = vmatpush2.msra.mxu0 %v685
        %2712 = vmatprep.subr.mxu0 0.0
        %2713 = vmatpush2.msra.mxu0 %v684
        %2714 = vmatprep.subr.mxu0 0.0
        %2715 = vmatpush2.msra.mxu0 %v683
        %2716 = vmatprep.subr.mxu0 0.0
        %2717 = vmatpush2.msra.mxu0 %v682
        %2718 = vmatprep.subr.mxu0 0.0
        %2719 = vmatpush2.msra.mxu0 %v681
        %2720 = vmatprep.subr.mxu0 0.0
        %2721 = vmatpush2.msra.mxu0 %v680
        %2722 = vmatprep.mubr.f32.mxu0 %v2391
        %2723 = vmatmul.mubr.f32.gmra.mxu0 %v2384
        %v2724 = vpop.f32.mrf.mxu0
        %v2725 = vadd.f32 %v2655, %v2724
        %v2726 = vpop.f32.mrf.mxu0
        %2727 = vdwg.mxu0
        %2728 = vmatprep.subr.mxu0 0.0
        %2729 = vmatpush1.msra.mxu0 %v711
        %2730 = vmatprep.subr.mxu0 0.0
        %2731 = vmatpush1.msra.mxu0 %v710
        %2732 = vmatprep.subr.mxu0 0.0
        %2733 = vmatpush1.msra.mxu0 %v709
        %2734 = vmatprep.subr.mxu0 0.0
        %2735 = vmatpush1.msra.mxu0 %v708
        %2736 = vmatprep.subr.mxu0 0.0
        %2737 = vmatpush1.msra.mxu0 %v707
        %2738 = vmatprep.subr.mxu0 0.0
        %2739 = vmatpush1.msra.mxu0 %v706
        %2740 = vmatprep.subr.mxu0 0.0
        %2741 = vmatpush1.msra.mxu0 %v705
        %2742 = vmatprep.subr.mxu0 0.0
        %2743 = vmatpush1.msra.mxu0 %v704
        %2744 = vmatprep.subr.mxu0 0.0
        %2745 = vmatpush1.msra.mxu0 %v703
        %2746 = vmatprep.subr.mxu0 0.0
        %2747 = vmatpush1.msra.mxu0 %v702
        %2748 = vmatprep.subr.mxu0 0.0
        %2749 = vmatpush1.msra.mxu0 %v701
        %2750 = vmatprep.subr.mxu0 0.0
        %2751 = vmatpush1.msra.mxu0 %v700
        %2752 = vmatprep.subr.mxu0 0.0
        %2753 = vmatpush1.msra.mxu0 %v699
        %2754 = vmatprep.subr.mxu0 0.0
        %2755 = vmatpush1.msra.mxu0 %v698
        %2756 = vmatprep.subr.mxu0 0.0
        %2757 = vmatpush1.msra.mxu0 %v697
        %2758 = vmatprep.subr.mxu0 0.0
        %2759 = vmatpush1.msra.mxu0 %v696
        %2760 = vmatprep.subr.mxu0 0.0
        %2761 = vmatpush2.msra.mxu0 %v727
        %2762 = vmatprep.subr.mxu0 0.0
        %2763 = vmatpush2.msra.mxu0 %v726
        %2764 = vmatprep.subr.mxu0 0.0
        %2765 = vmatpush2.msra.mxu0 %v725
        %2766 = vmatprep.subr.mxu0 0.0
        %2767 = vmatpush2.msra.mxu0 %v724
        %2768 = vmatprep.subr.mxu0 0.0
        %2769 = vmatpush2.msra.mxu0 %v723
        %2770 = vmatprep.subr.mxu0 0.0
        %2771 = vmatpush2.msra.mxu0 %v722
        %2772 = vmatprep.subr.mxu0 0.0
        %2773 = vmatpush2.msra.mxu0 %v721
        %2774 = vmatprep.subr.mxu0 0.0
        %2775 = vmatpush2.msra.mxu0 %v720
        %2776 = vmatprep.subr.mxu0 0.0
        %2777 = vmatpush2.msra.mxu0 %v719
        %2778 = vmatprep.subr.mxu0 0.0
        %2779 = vmatpush2.msra.mxu0 %v718
        %2780 = vmatprep.subr.mxu0 0.0
        %2781 = vmatpush2.msra.mxu0 %v717
        %2782 = vmatprep.subr.mxu0 0.0
        %2783 = vmatpush2.msra.mxu0 %v716
        %2784 = vmatprep.subr.mxu0 0.0
        %2785 = vmatpush2.msra.mxu0 %v715
        %2786 = vmatprep.subr.mxu0 0.0
        %2787 = vmatpush2.msra.mxu0 %v714
        %2788 = vmatprep.subr.mxu0 0.0
        %2789 = vmatpush2.msra.mxu0 %v713
        %2790 = vmatprep.subr.mxu0 0.0
        %2791 = vmatpush2.msra.mxu0 %v712
        %2792 = vmatprep.mubr.f32.mxu0 %v2405
        %2793 = vmatmul.mubr.f32.gmra.mxu0 %v2398
        %v2794 = vpop.f32.mrf.mxu0
        %v2795 = vadd.f32 %v2725, %v2794
        %v2796 = vpop.f32.mrf.mxu0
        %2797 = vdwg.mxu0
        %2798 = vmatprep.subr.mxu0 0.0
        %2799 = vmatpush1.msra.mxu0 %v743
        %2800 = vmatprep.subr.mxu0 0.0
        %2801 = vmatpush1.msra.mxu0 %v742
        %2802 = vmatprep.subr.mxu0 0.0
        %2803 = vmatpush1.msra.mxu0 %v741
        %2804 = vmatprep.subr.mxu0 0.0
        %2805 = vmatpush1.msra.mxu0 %v740
        %2806 = vmatprep.subr.mxu0 0.0
        %2807 = vmatpush1.msra.mxu0 %v739
        %2808 = vmatprep.subr.mxu0 0.0
        %2809 = vmatpush1.msra.mxu0 %v738
        %2810 = vmatprep.subr.mxu0 0.0
        %2811 = vmatpush1.msra.mxu0 %v737
        %2812 = vmatprep.subr.mxu0 0.0
        %2813 = vmatpush1.msra.mxu0 %v736
        %2814 = vmatprep.subr.mxu0 0.0
        %2815 = vmatpush1.msra.mxu0 %v735
        %2816 = vmatprep.subr.mxu0 0.0
        %2817 = vmatpush1.msra.mxu0 %v734
        %2818 = vmatprep.subr.mxu0 0.0
        %2819 = vmatpush1.msra.mxu0 %v733
        %2820 = vmatprep.subr.mxu0 0.0
        %2821 = vmatpush1.msra.mxu0 %v732
        %2822 = vmatprep.subr.mxu0 0.0
        %2823 = vmatpush1.msra.mxu0 %v731
        %2824 = vmatprep.subr.mxu0 0.0
        %2825 = vmatpush1.msra.mxu0 %v730
        %2826 = vmatprep.subr.mxu0 0.0
        %2827 = vmatpush1.msra.mxu0 %v729
        %2828 = vmatprep.subr.mxu0 0.0
        %2829 = vmatpush1.msra.mxu0 %v728
        %2830 = vmatprep.subr.mxu0 0.0
        %2831 = vmatpush2.msra.mxu0 %v759
        %2832 = vmatprep.subr.mxu0 0.0
        %2833 = vmatpush2.msra.mxu0 %v758
        %2834 = vmatprep.subr.mxu0 0.0
        %2835 = vmatpush2.msra.mxu0 %v757
        %2836 = vmatprep.subr.mxu0 0.0
        %2837 = vmatpush2.msra.mxu0 %v756
        %2838 = vmatprep.subr.mxu0 0.0
        %2839 = vmatpush2.msra.mxu0 %v755
        %2840 = vmatprep.subr.mxu0 0.0
        %2841 = vmatpush2.msra.mxu0 %v754
        %2842 = vmatprep.subr.mxu0 0.0
        %2843 = vmatpush2.msra.mxu0 %v753
        %2844 = vmatprep.subr.mxu0 0.0
        %2845 = vmatpush2.msra.mxu0 %v752
        %2846 = vmatprep.subr.mxu0 0.0
        %2847 = vmatpush2.msra.mxu0 %v751
        %2848 = vmatprep.subr.mxu0 0.0
        %2849 = vmatpush2.msra.mxu0 %v750
        %2850 = vmatprep.subr.mxu0 0.0
        %2851 = vmatpush2.msra.mxu0 %v749
        %2852 = vmatprep.subr.mxu0 0.0
        %2853 = vmatpush2.msra.mxu0 %v748
        %2854 = vmatprep.subr.mxu0 0.0
        %2855 = vmatpush2.msra.mxu0 %v747
        %2856 = vmatprep.subr.mxu0 0.0
        %2857 = vmatpush2.msra.mxu0 %v746
        %2858 = vmatprep.subr.mxu0 0.0
        %2859 = vmatpush2.msra.mxu0 %v745
        %2860 = vmatprep.subr.mxu0 0.0
        %2861 = vmatpush2.msra.mxu0 %v744
        %2862 = vmatprep.mubr.f32.mxu0 %v2419
        %2863 = vmatmul.mubr.f32.gmra.mxu0 %v2412
        %v2864 = vpop.f32.mrf.mxu0
        %v2865 = vadd.f32 %v2795, %v2864
        %v2866 = vpop.f32.mrf.mxu0
        %2867 = vdwg.mxu0
        %2868 = vmatprep.subr.mxu0 0.0
        %2869 = vmatpush1.msra.mxu0 %v775
        %2870 = vmatprep.subr.mxu0 0.0
        %2871 = vmatpush1.msra.mxu0 %v774
        %2872 = vmatprep.subr.mxu0 0.0
        %2873 = vmatpush1.msra.mxu0 %v773
        %2874 = vmatprep.subr.mxu0 0.0
        %2875 = vmatpush1.msra.mxu0 %v772
        %2876 = vmatprep.subr.mxu0 0.0
        %2877 = vmatpush1.msra.mxu0 %v771
        %2878 = vmatprep.subr.mxu0 0.0
        %2879 = vmatpush1.msra.mxu0 %v770
        %2880 = vmatprep.subr.mxu0 0.0
        %2881 = vmatpush1.msra.mxu0 %v769
        %2882 = vmatprep.subr.mxu0 0.0
        %2883 = vmatpush1.msra.mxu0 %v768
        %2884 = vmatprep.subr.mxu0 0.0
        %2885 = vmatpush1.msra.mxu0 %v767
        %2886 = vmatprep.subr.mxu0 0.0
        %2887 = vmatpush1.msra.mxu0 %v766
        %2888 = vmatprep.subr.mxu0 0.0
        %2889 = vmatpush1.msra.mxu0 %v765
        %2890 = vmatprep.subr.mxu0 0.0
        %2891 = vmatpush1.msra.mxu0 %v764
        %2892 = vmatprep.subr.mxu0 0.0
        %2893 = vmatpush1.msra.mxu0 %v763
        %2894 = vmatprep.subr.mxu0 0.0
        %2895 = vmatpush1.msra.mxu0 %v762
        %2896 = vmatprep.subr.mxu0 0.0
        %2897 = vmatpush1.msra.mxu0 %v761
        %2898 = vmatprep.subr.mxu0 0.0
        %2899 = vmatpush1.msra.mxu0 %v760
        %2900 = vmatprep.subr.mxu0 0.0
        %2901 = vmatpush2.msra.mxu0 %v791
        %2902 = vmatprep.subr.mxu0 0.0
        %2903 = vmatpush2.msra.mxu0 %v790
        %2904 = vmatprep.subr.mxu0 0.0
        %2905 = vmatpush2.msra.mxu0 %v789
        %2906 = vmatprep.subr.mxu0 0.0
        %2907 = vmatpush2.msra.mxu0 %v788
        %2908 = vmatprep.subr.mxu0 0.0
        %2909 = vmatpush2.msra.mxu0 %v787
        %2910 = vmatprep.subr.mxu0 0.0
        %2911 = vmatpush2.msra.mxu0 %v786
        %2912 = vmatprep.subr.mxu0 0.0
        %2913 = vmatpush2.msra.mxu0 %v785
        %2914 = vmatprep.subr.mxu0 0.0
        %2915 = vmatpush2.msra.mxu0 %v784
        %2916 = vmatprep.subr.mxu0 0.0
        %2917 = vmatpush2.msra.mxu0 %v783
        %2918 = vmatprep.subr.mxu0 0.0
        %2919 = vmatpush2.msra.mxu0 %v782
        %2920 = vmatprep.subr.mxu0 0.0
        %2921 = vmatpush2.msra.mxu0 %v781
        %2922 = vmatprep.subr.mxu0 0.0
        %2923 = vmatpush2.msra.mxu0 %v780
        %2924 = vmatprep.subr.mxu0 0.0
        %2925 = vmatpush2.msra.mxu0 %v779
        %2926 = vmatprep.subr.mxu0 0.0
        %2927 = vmatpush2.msra.mxu0 %v778
        %2928 = vmatprep.subr.mxu0 0.0
        %2929 = vmatpush2.msra.mxu0 %v777
        %2930 = vmatprep.subr.mxu0 0.0
        %2931 = vmatpush2.msra.mxu0 %v776
        %2932 = vmatprep.mubr.f32.mxu0 %v2433
        %2933 = vmatmul.mubr.f32.gmra.mxu0 %v2426
        %v2934 = vpop.f32.mrf.mxu0
        %v2935 = vadd.f32 %v2865, %v2934
        %v2936 = vpop.f32.mrf.mxu0
        %2937 = vdwg.mxu0
        %2938 = vmatprep.subr.mxu0 0.0
        %2939 = vmatpush1.msra.mxu0 %v807
        %2940 = vmatprep.subr.mxu0 0.0
        %2941 = vmatpush1.msra.mxu0 %v806
        %2942 = vmatprep.subr.mxu0 0.0
        %2943 = vmatpush1.msra.mxu0 %v805
        %2944 = vmatprep.subr.mxu0 0.0
        %2945 = vmatpush1.msra.mxu0 %v804
        %2946 = vmatprep.subr.mxu0 0.0
        %2947 = vmatpush1.msra.mxu0 %v803
        %2948 = vmatprep.subr.mxu0 0.0
        %2949 = vmatpush1.msra.mxu0 %v802
        %2950 = vmatprep.subr.mxu0 0.0
        %2951 = vmatpush1.msra.mxu0 %v801
        %2952 = vmatprep.subr.mxu0 0.0
        %2953 = vmatpush1.msra.mxu0 %v800
        %2954 = vmatprep.subr.mxu0 0.0
        %2955 = vmatpush1.msra.mxu0 %v799
        %2956 = vmatprep.subr.mxu0 0.0
        %2957 = vmatpush1.msra.mxu0 %v798
        %2958 = vmatprep.subr.mxu0 0.0
        %2959 = vmatpush1.msra.mxu0 %v797
        %2960 = vmatprep.subr.mxu0 0.0
        %2961 = vmatpush1.msra.mxu0 %v796
        %2962 = vmatprep.subr.mxu0 0.0
        %2963 = vmatpush1.msra.mxu0 %v795
        %2964 = vmatprep.subr.mxu0 0.0
        %2965 = vmatpush1.msra.mxu0 %v794
        %2966 = vmatprep.subr.mxu0 0.0
        %2967 = vmatpush1.msra.mxu0 %v793
        %2968 = vmatprep.subr.mxu0 0.0
        %2969 = vmatpush1.msra.mxu0 %v792
        %2970 = vmatprep.subr.mxu0 0.0
        %2971 = vmatpush2.msra.mxu0 %v823
        %2972 = vmatprep.subr.mxu0 0.0
        %2973 = vmatpush2.msra.mxu0 %v822
        %2974 = vmatprep.subr.mxu0 0.0
        %2975 = vmatpush2.msra.mxu0 %v821
        %2976 = vmatprep.subr.mxu0 0.0
        %2977 = vmatpush2.msra.mxu0 %v820
        %2978 = vmatprep.subr.mxu0 0.0
        %2979 = vmatpush2.msra.mxu0 %v819
        %2980 = vmatprep.subr.mxu0 0.0
        %2981 = vmatpush2.msra.mxu0 %v818
        %2982 = vmatprep.subr.mxu0 0.0
        %2983 = vmatpush2.msra.mxu0 %v817
        %2984 = vmatprep.subr.mxu0 0.0
        %2985 = vmatpush2.msra.mxu0 %v816
        %2986 = vmatprep.subr.mxu0 0.0
        %2987 = vmatpush2.msra.mxu0 %v815
        %2988 = vmatprep.subr.mxu0 0.0
        %2989 = vmatpush2.msra.mxu0 %v814
        %2990 = vmatprep.subr.mxu0 0.0
        %2991 = vmatpush2.msra.mxu0 %v813
        %2992 = vmatprep.subr.mxu0 0.0
        %2993 = vmatpush2.msra.mxu0 %v812
        %2994 = vmatprep.subr.mxu0 0.0
        %2995 = vmatpush2.msra.mxu0 %v811
        %2996 = vmatprep.subr.mxu0 0.0
        %2997 = vmatpush2.msra.mxu0 %v810
        %2998 = vmatprep.subr.mxu0 0.0
        %2999 = vmatpush2.msra.mxu0 %v809
        %3000 = vmatprep.subr.mxu0 0.0
        %3001 = vmatpush2.msra.mxu0 %v808
        %3002 = vmatprep.mubr.f32.mxu0 %v2447
        %3003 = vmatmul.mubr.f32.gmra.mxu0 %v2440
        %v3004 = vpop.f32.mrf.mxu0
        %v3005 = vadd.f32 %v2935, %v3004
        %v3006 = vpop.f32.mrf.mxu0
        %3007 = vdwg.mxu0
        %v3008 = vrsqrt.pop %v3005
        %3009 = vmatprep.subr.mxu0 %v1625
        %3010 = vmatpush1.msra.mxu0 %v1624
        %3011 = vmatprep.subr.mxu0 %v1609
        %3012 = vmatpush1.msra.mxu0 %v1608
        %3013 = vmatprep.subr.mxu0 %v1593
        %3014 = vmatpush1.msra.mxu0 %v1592
        %3015 = vmatprep.subr.mxu0 %v1577
        %3016 = vmatpush1.msra.mxu0 %v1576
        %3017 = vmatprep.subr.mxu0 %v1561
        %3018 = vmatpush1.msra.mxu0 %v1560
        %3019 = vmatprep.subr.mxu0 %v1545
        %3020 = vmatpush1.msra.mxu0 %v1544
        %3021 = vmatprep.subr.mxu0 %v1529
        %3022 = vmatpush1.msra.mxu0 %v1528
        %3023 = vmatprep.subr.mxu0 %v1513
        %3024 = vmatpush1.msra.mxu0 %v1512
        %3025 = vmatprep.subr.mxu0 %v1497
        %3026 = vmatpush1.msra.mxu0 %v1496
        %3027 = vmatprep.subr.mxu0 %v1481
        %3028 = vmatpush1.msra.mxu0 %v1480
        %3029 = vmatprep.subr.mxu0 %v1465
        %3030 = vmatpush1.msra.mxu0 %v1464
        %3031 = vmatprep.subr.mxu0 %v1449
        %3032 = vmatpush1.msra.mxu0 %v1448
        %3033 = vmatprep.subr.mxu0 %v1433
        %3034 = vmatpush1.msra.mxu0 %v1432
        %3035 = vmatprep.subr.mxu0 %v1417
        %3036 = vmatpush1.msra.mxu0 %v1416
        %3037 = vmatprep.subr.mxu0 %v1401
        %3038 = vmatpush1.msra.mxu0 %v1400
        %3039 = vmatprep.subr.mxu0 %v1385
        %3040 = vmatpush1.msra.mxu0 %v1384
        %3041 = vmatprep.subr.mxu0 0.0
        %3042 = vmatpush2.msra.mxu0 0.0
        %3043 = vmatprep.subr.mxu0 0.0
        %3044 = vmatpush2.msra.mxu0 0.0
        %3045 = vmatprep.subr.mxu0 0.0
        %3046 = vmatpush2.msra.mxu0 0.0
        %3047 = vmatprep.subr.mxu0 0.0
        %3048 = vmatpush2.msra.mxu0 0.0
        %3049 = vmatprep.subr.mxu0 0.0
        %3050 = vmatpush2.msra.mxu0 0.0
        %3051 = vmatprep.subr.mxu0 0.0
        %3052 = vmatpush2.msra.mxu0 0.0
        %3053 = vmatprep.subr.mxu0 0.0
        %3054 = vmatpush2.msra.mxu0 0.0
        %3055 = vmatprep.subr.mxu0 0.0
        %3056 = vmatpush2.msra.mxu0 0.0
        %3057 = vmatprep.subr.mxu0 0.0
        %3058 = vmatpush2.msra.mxu0 0.0
        %3059 = vmatprep.subr.mxu0 0.0
        %3060 = vmatpush2.msra.mxu0 0.0
        %3061 = vmatprep.subr.mxu0 0.0
        %3062 = vmatpush2.msra.mxu0 0.0
        %3063 = vmatprep.subr.mxu0 0.0
        %3064 = vmatpush2.msra.mxu0 0.0
        %3065 = vmatprep.subr.mxu0 0.0
        %3066 = vmatpush2.msra.mxu0 0.0
        %3067 = vmatprep.subr.mxu0 0.0
        %3068 = vmatpush2.msra.mxu0 0.0
        %3069 = vmatprep.subr.mxu0 0.0
        %3070 = vmatpush2.msra.mxu0 0.0
        %3071 = vmatprep.subr.mxu0 0.0
        %3072 = vmatpush2.msra.mxu0 0.0
        %3073 = vmatprep.mubr.f32.mxu0 0.0
        %3074 = vmatmul.mubr.f32.gmra.mxu0 %v3008
        %v3075 = vpop.f32.mrf.mxu0
        %v3076 = vadd.f32 0.0, %v3075
        %v3077 = vpop.f32.mrf.mxu0
        %v3078 = vadd.f32 0.0, %v3077
        %3079 = vdwg.mxu0
        %3080 = vmatprep.subr.mxu0 %v1627
        %3081 = vmatpush1.msra.mxu0 %v1626
        %3082 = vmatprep.subr.mxu0 %v1611
        %3083 = vmatpush1.msra.mxu0 %v1610
        %3084 = vmatprep.subr.mxu0 %v1595
        %3085 = vmatpush1.msra.mxu0 %v1594
        %3086 = vmatprep.subr.mxu0 %v1579
        %3087 = vmatpush1.msra.mxu0 %v1578
        %3088 = vmatprep.subr.mxu0 %v1563
        %3089 = vmatpush1.msra.mxu0 %v1562
        %3090 = vmatprep.subr.mxu0 %v1547
        %3091 = vmatpush1.msra.mxu0 %v1546
        %3092 = vmatprep.subr.mxu0 %v1531
        %3093 = vmatpush1.msra.mxu0 %v1530
        %3094 = vmatprep.subr.mxu0 %v1515
        %3095 = vmatpush1.msra.mxu0 %v1514
        %3096 = vmatprep.subr.mxu0 %v1499
        %3097 = vmatpush1.msra.mxu0 %v1498
        %3098 = vmatprep.subr.mxu0 %v1483
        %3099 = vmatpush1.msra.mxu0 %v1482
        %3100 = vmatprep.subr.mxu0 %v1467
        %3101 = vmatpush1.msra.mxu0 %v1466
        %3102 = vmatprep.subr.mxu0 %v1451
        %3103 = vmatpush1.msra.mxu0 %v1450
        %3104 = vmatprep.subr.mxu0 %v1435
        %3105 = vmatpush1.msra.mxu0 %v1434
        %3106 = vmatprep.subr.mxu0 %v1419
        %3107 = vmatpush1.msra.mxu0 %v1418
        %3108 = vmatprep.subr.mxu0 %v1403
        %3109 = vmatpush1.msra.mxu0 %v1402
        %3110 = vmatprep.subr.mxu0 %v1387
        %3111 = vmatpush1.msra.mxu0 %v1386
        %3112 = vmatprep.subr.mxu0 0.0
        %3113 = vmatpush2.msra.mxu0 0.0
        %3114 = vmatprep.subr.mxu0 0.0
        %3115 = vmatpush2.msra.mxu0 0.0
        %3116 = vmatprep.subr.mxu0 0.0
        %3117 = vmatpush2.msra.mxu0 0.0
        %3118 = vmatprep.subr.mxu0 0.0
        %3119 = vmatpush2.msra.mxu0 0.0
        %3120 = vmatprep.subr.mxu0 0.0
        %3121 = vmatpush2.msra.mxu0 0.0
        %3122 = vmatprep.subr.mxu0 0.0
        %3123 = vmatpush2.msra.mxu0 0.0
        %3124 = vmatprep.subr.mxu0 0.0
        %3125 = vmatpush2.msra.mxu0 0.0
        %3126 = vmatprep.subr.mxu0 0.0
        %3127 = vmatpush2.msra.mxu0 0.0
        %3128 = vmatprep.subr.mxu0 0.0
        %3129 = vmatpush2.msra.mxu0 0.0
        %3130 = vmatprep.subr.mxu0 0.0
        %3131 = vmatpush2.msra.mxu0 0.0
        %3132 = vmatprep.subr.mxu0 0.0
        %3133 = vmatpush2.msra.mxu0 0.0
        %3134 = vmatprep.subr.mxu0 0.0
        %3135 = vmatpush2.msra.mxu0 0.0
        %3136 = vmatprep.subr.mxu0 0.0
        %3137 = vmatpush2.msra.mxu0 0.0
        %3138 = vmatprep.subr.mxu0 0.0
        %3139 = vmatpush2.msra.mxu0 0.0
        %3140 = vmatprep.subr.mxu0 0.0
        %3141 = vmatpush2.msra.mxu0 0.0
        %3142 = vmatprep.subr.mxu0 0.0
        %3143 = vmatpush2.msra.mxu0 0.0
        %3144 = vmatprep.mubr.f32.mxu0 0.0
        %3145 = vmatmul.mubr.f32.gmra.mxu0 %v3008
        %v3146 = vpop.f32.mrf.mxu0
        %v3147 = vadd.f32 0.0, %v3146
        %v3148 = vpop.f32.mrf.mxu0
        %v3149 = vadd.f32 0.0, %v3148
        %3150 = vdwg.mxu0
        %3151 = vmatprep.subr.mxu0 %v1629
        %3152 = vmatpush1.msra.mxu0 %v1628
        %3153 = vmatprep.subr.mxu0 %v1613
        %3154 = vmatpush1.msra.mxu0 %v1612
        %3155 = vmatprep.subr.mxu0 %v1597
        %3156 = vmatpush1.msra.mxu0 %v1596
        %3157 = vmatprep.subr.mxu0 %v1581
        %3158 = vmatpush1.msra.mxu0 %v1580
        %3159 = vmatprep.subr.mxu0 %v1565
        %3160 = vmatpush1.msra.mxu0 %v1564
        %3161 = vmatprep.subr.mxu0 %v1549
        %3162 = vmatpush1.msra.mxu0 %v1548
        %3163 = vmatprep.subr.mxu0 %v1533
        %3164 = vmatpush1.msra.mxu0 %v1532
        %3165 = vmatprep.subr.mxu0 %v1517
        %3166 = vmatpush1.msra.mxu0 %v1516
        %3167 = vmatprep.subr.mxu0 %v1501
        %3168 = vmatpush1.msra.mxu0 %v1500
        %3169 = vmatprep.subr.mxu0 %v1485
        %3170 = vmatpush1.msra.mxu0 %v1484
        %3171 = vmatprep.subr.mxu0 %v1469
        %3172 = vmatpush1.msra.mxu0 %v1468
        %3173 = vmatprep.subr.mxu0 %v1453
        %3174 = vmatpush1.msra.mxu0 %v1452
        %3175 = vmatprep.subr.mxu0 %v1437
        %3176 = vmatpush1.msra.mxu0 %v1436
        %3177 = vmatprep.subr.mxu0 %v1421
        %3178 = vmatpush1.msra.mxu0 %v1420
        %3179 = vmatprep.subr.mxu0 %v1405
        %3180 = vmatpush1.msra.mxu0 %v1404
        %3181 = vmatprep.subr.mxu0 %v1389
        %3182 = vmatpush1.msra.mxu0 %v1388
        %3183 = vmatprep.subr.mxu0 0.0
        %3184 = vmatpush2.msra.mxu0 0.0
        %3185 = vmatprep.subr.mxu0 0.0
        %3186 = vmatpush2.msra.mxu0 0.0
        %3187 = vmatprep.subr.mxu0 0.0
        %3188 = vmatpush2.msra.mxu0 0.0
        %3189 = vmatprep.subr.mxu0 0.0
        %3190 = vmatpush2.msra.mxu0 0.0
        %3191 = vmatprep.subr.mxu0 0.0
        %3192 = vmatpush2.msra.mxu0 0.0
        %3193 = vmatprep.subr.mxu0 0.0
        %3194 = vmatpush2.msra.mxu0 0.0
        %3195 = vmatprep.subr.mxu0 0.0
        %3196 = vmatpush2.msra.mxu0 0.0
        %3197 = vmatprep.subr.mxu0 0.0
        %3198 = vmatpush2.msra.mxu0 0.0
        %3199 = vmatprep.subr.mxu0 0.0
        %3200 = vmatpush2.msra.mxu0 0.0
        %3201 = vmatprep.subr.mxu0 0.0
        %3202 = vmatpush2.msra.mxu0 0.0
        %3203 = vmatprep.subr.mxu0 0.0
        %3204 = vmatpush2.msra.mxu0 0.0
        %3205 = vmatprep.subr.mxu0 0.0
        %3206 = vmatpush2.msra.mxu0 0.0
        %3207 = vmatprep.subr.mxu0 0.0
        %3208 = vmatpush2.msra.mxu0 0.0
        %3209 = vmatprep.subr.mxu0 0.0
        %3210 = vmatpush2.msra.mxu0 0.0
        %3211 = vmatprep.subr.mxu0 0.0
        %3212 = vmatpush2.msra.mxu0 0.0
        %3213 = vmatprep.subr.mxu0 0.0
        %3214 = vmatpush2.msra.mxu0 0.0
        %3215 = vmatprep.mubr.f32.mxu0 0.0
        %3216 = vmatmul.mubr.f32.gmra.mxu0 %v3008
        %v3217 = vpop.f32.mrf.mxu0
        %v3218 = vadd.f32 0.0, %v3217
        %v3219 = vpop.f32.mrf.mxu0
        %v3220 = vadd.f32 0.0, %v3219
        %3221 = vdwg.mxu0
        %3222 = vmatprep.subr.mxu0 %v1631
        %3223 = vmatpush1.msra.mxu0 %v1630
        %3224 = vmatprep.subr.mxu0 %v1615
        %3225 = vmatpush1.msra.mxu0 %v1614
        %3226 = vmatprep.subr.mxu0 %v1599
        %3227 = vmatpush1.msra.mxu0 %v1598
        %3228 = vmatprep.subr.mxu0 %v1583
        %3229 = vmatpush1.msra.mxu0 %v1582
        %3230 = vmatprep.subr.mxu0 %v1567
        %3231 = vmatpush1.msra.mxu0 %v1566
        %3232 = vmatprep.subr.mxu0 %v1551
        %3233 = vmatpush1.msra.mxu0 %v1550
        %3234 = vmatprep.subr.mxu0 %v1535
        %3235 = vmatpush1.msra.mxu0 %v1534
        %3236 = vmatprep.subr.mxu0 %v1519
        %3237 = vmatpush1.msra.mxu0 %v1518
        %3238 = vmatprep.subr.mxu0 %v1503
        %3239 = vmatpush1.msra.mxu0 %v1502
        %3240 = vmatprep.subr.mxu0 %v1487
        %3241 = vmatpush1.msra.mxu0 %v1486
        %3242 = vmatprep.subr.mxu0 %v1471
        %3243 = vmatpush1.msra.mxu0 %v1470
        %3244 = vmatprep.subr.mxu0 %v1455
        %3245 = vmatpush1.msra.mxu0 %v1454
        %3246 = vmatprep.subr.mxu0 %v1439
        %3247 = vmatpush1.msra.mxu0 %v1438
        %3248 = vmatprep.subr.mxu0 %v1423
        %3249 = vmatpush1.msra.mxu0 %v1422
        %3250 = vmatprep.subr.mxu0 %v1407
        %3251 = vmatpush1.msra.mxu0 %v1406
        %3252 = vmatprep.subr.mxu0 %v1391
        %3253 = vmatpush1.msra.mxu0 %v1390
        %3254 = vmatprep.subr.mxu0 0.0
        %3255 = vmatpush2.msra.mxu0 0.0
        %3256 = vmatprep.subr.mxu0 0.0
        %3257 = vmatpush2.msra.mxu0 0.0
        %3258 = vmatprep.subr.mxu0 0.0
        %3259 = vmatpush2.msra.mxu0 0.0
        %3260 = vmatprep.subr.mxu0 0.0
        %3261 = vmatpush2.msra.mxu0 0.0
        %3262 = vmatprep.subr.mxu0 0.0
        %3263 = vmatpush2.msra.mxu0 0.0
        %3264 = vmatprep.subr.mxu0 0.0
        %3265 = vmatpush2.msra.mxu0 0.0
        %3266 = vmatprep.subr.mxu0 0.0
        %3267 = vmatpush2.msra.mxu0 0.0
        %3268 = vmatprep.subr.mxu0 0.0
        %3269 = vmatpush2.msra.mxu0 0.0
        %3270 = vmatprep.subr.mxu0 0.0
        %3271 = vmatpush2.msra.mxu0 0.0
        %3272 = vmatprep.subr.mxu0 0.0
        %3273 = vmatpush2.msra.mxu0 0.0
        %3274 = vmatprep.subr.mxu0 0.0
        %3275 = vmatpush2.msra.mxu0 0.0
        %3276 = vmatprep.subr.mxu0 0.0
        %3277 = vmatpush2.msra.mxu0 0.0
        %3278 = vmatprep.subr.mxu0 0.0
        %3279 = vmatpush2.msra.mxu0 0.0
        %3280 = vmatprep.subr.mxu0 0.0
        %3281 = vmatpush2.msra.mxu0 0.0
        %3282 = vmatprep.subr.mxu0 0.0
        %3283 = vmatpush2.msra.mxu0 0.0
        %3284 = vmatprep.subr.mxu0 0.0
        %3285 = vmatpush2.msra.mxu0 0.0
        %3286 = vmatprep.mubr.f32.mxu0 0.0
        %3287 = vmatmul.mubr.f32.gmra.mxu0 %v3008
        %v3288 = vpop.f32.mrf.mxu0
        %v3289 = vadd.f32 0.0, %v3288
        %v3290 = vpop.f32.mrf.mxu0
        %v3291 = vadd.f32 0.0, %v3290
        %3292 = vdwg.mxu0
        %3293 = vmatprep.subr.mxu0 %v1633
        %3294 = vmatpush1.msra.mxu0 %v1632
        %3295 = vmatprep.subr.mxu0 %v1617
        %3296 = vmatpush1.msra.mxu0 %v1616
        %3297 = vmatprep.subr.mxu0 %v1601
        %3298 = vmatpush1.msra.mxu0 %v1600
        %3299 = vmatprep.subr.mxu0 %v1585
        %3300 = vmatpush1.msra.mxu0 %v1584
        %3301 = vmatprep.subr.mxu0 %v1569
        %3302 = vmatpush1.msra.mxu0 %v1568
        %3303 = vmatprep.subr.mxu0 %v1553
        %3304 = vmatpush1.msra.mxu0 %v1552
        %3305 = vmatprep.subr.mxu0 %v1537
        %3306 = vmatpush1.msra.mxu0 %v1536
        %3307 = vmatprep.subr.mxu0 %v1521
        %3308 = vmatpush1.msra.mxu0 %v1520
        %3309 = vmatprep.subr.mxu0 %v1505
        %3310 = vmatpush1.msra.mxu0 %v1504
        %3311 = vmatprep.subr.mxu0 %v1489
        %3312 = vmatpush1.msra.mxu0 %v1488
        %3313 = vmatprep.subr.mxu0 %v1473
        %3314 = vmatpush1.msra.mxu0 %v1472
        %3315 = vmatprep.subr.mxu0 %v1457
        %3316 = vmatpush1.msra.mxu0 %v1456
        %3317 = vmatprep.subr.mxu0 %v1441
        %3318 = vmatpush1.msra.mxu0 %v1440
        %3319 = vmatprep.subr.mxu0 %v1425
        %3320 = vmatpush1.msra.mxu0 %v1424
        %3321 = vmatprep.subr.mxu0 %v1409
        %3322 = vmatpush1.msra.mxu0 %v1408
        %3323 = vmatprep.subr.mxu0 %v1393
        %3324 = vmatpush1.msra.mxu0 %v1392
        %3325 = vmatprep.subr.mxu0 0.0
        %3326 = vmatpush2.msra.mxu0 0.0
        %3327 = vmatprep.subr.mxu0 0.0
        %3328 = vmatpush2.msra.mxu0 0.0
        %3329 = vmatprep.subr.mxu0 0.0
        %3330 = vmatpush2.msra.mxu0 0.0
        %3331 = vmatprep.subr.mxu0 0.0
        %3332 = vmatpush2.msra.mxu0 0.0
        %3333 = vmatprep.subr.mxu0 0.0
        %3334 = vmatpush2.msra.mxu0 0.0
        %3335 = vmatprep.subr.mxu0 0.0
        %3336 = vmatpush2.msra.mxu0 0.0
        %3337 = vmatprep.subr.mxu0 0.0
        %3338 = vmatpush2.msra.mxu0 0.0
        %3339 = vmatprep.subr.mxu0 0.0
        %3340 = vmatpush2.msra.mxu0 0.0
        %3341 = vmatprep.subr.mxu0 0.0
        %3342 = vmatpush2.msra.mxu0 0.0
        %3343 = vmatprep.subr.mxu0 0.0
        %3344 = vmatpush2.msra.mxu0 0.0
        %3345 = vmatprep.subr.mxu0 0.0
        %3346 = vmatpush2.msra.mxu0 0.0
        %3347 = vmatprep.subr.mxu0 0.0
        %3348 = vmatpush2.msra.mxu0 0.0
        %3349 = vmatprep.subr.mxu0 0.0
        %3350 = vmatpush2.msra.mxu0 0.0
        %3351 = vmatprep.subr.mxu0 0.0
        %3352 = vmatpush2.msra.mxu0 0.0
        %3353 = vmatprep.subr.mxu0 0.0
        %3354 = vmatpush2.msra.mxu0 0.0
        %3355 = vmatprep.subr.mxu0 0.0
        %3356 = vmatpush2.msra.mxu0 0.0
        %3357 = vmatprep.mubr.f32.mxu0 0.0
        %3358 = vmatmul.mubr.f32.gmra.mxu0 %v3008
        %v3359 = vpop.f32.mrf.mxu0
        %v3360 = vadd.f32 0.0, %v3359
        %v3361 = vpop.f32.mrf.mxu0
        %v3362 = vadd.f32 0.0, %v3361
        %3363 = vdwg.mxu0
        %3364 = vmatprep.subr.mxu0 %v1635
        %3365 = vmatpush1.msra.mxu0 %v1634
        %3366 = vmatprep.subr.mxu0 %v1619
        %3367 = vmatpush1.msra.mxu0 %v1618
        %3368 = vmatprep.subr.mxu0 %v1603
        %3369 = vmatpush1.msra.mxu0 %v1602
        %3370 = vmatprep.subr.mxu0 %v1587
        %3371 = vmatpush1.msra.mxu0 %v1586
        %3372 = vmatprep.subr.mxu0 %v1571
        %3373 = vmatpush1.msra.mxu0 %v1570
        %3374 = vmatprep.subr.mxu0 %v1555
        %3375 = vmatpush1.msra.mxu0 %v1554
        %3376 = vmatprep.subr.mxu0 %v1539
        %3377 = vmatpush1.msra.mxu0 %v1538
        %3378 = vmatprep.subr.mxu0 %v1523
        %3379 = vmatpush1.msra.mxu0 %v1522
        %3380 = vmatprep.subr.mxu0 %v1507
        %3381 = vmatpush1.msra.mxu0 %v1506
        %3382 = vmatprep.subr.mxu0 %v1491
        %3383 = vmatpush1.msra.mxu0 %v1490
        %3384 = vmatprep.subr.mxu0 %v1475
        %3385 = vmatpush1.msra.mxu0 %v1474
        %3386 = vmatprep.subr.mxu0 %v1459
        %3387 = vmatpush1.msra.mxu0 %v1458
        %3388 = vmatprep.subr.mxu0 %v1443
        %3389 = vmatpush1.msra.mxu0 %v1442
        %3390 = vmatprep.subr.mxu0 %v1427
        %3391 = vmatpush1.msra.mxu0 %v1426
        %3392 = vmatprep.subr.mxu0 %v1411
        %3393 = vmatpush1.msra.mxu0 %v1410
        %3394 = vmatprep.subr.mxu0 %v1395
        %3395 = vmatpush1.msra.mxu0 %v1394
        %3396 = vmatprep.subr.mxu0 0.0
        %3397 = vmatpush2.msra.mxu0 0.0
        %3398 = vmatprep.subr.mxu0 0.0
        %3399 = vmatpush2.msra.mxu0 0.0
        %3400 = vmatprep.subr.mxu0 0.0
        %3401 = vmatpush2.msra.mxu0 0.0
        %3402 = vmatprep.subr.mxu0 0.0
        %3403 = vmatpush2.msra.mxu0 0.0
        %3404 = vmatprep.subr.mxu0 0.0
        %3405 = vmatpush2.msra.mxu0 0.0
        %3406 = vmatprep.subr.mxu0 0.0
        %3407 = vmatpush2.msra.mxu0 0.0
        %3408 = vmatprep.subr.mxu0 0.0
        %3409 = vmatpush2.msra.mxu0 0.0
        %3410 = vmatprep.subr.mxu0 0.0
        %3411 = vmatpush2.msra.mxu0 0.0
        %3412 = vmatprep.subr.mxu0 0.0
        %3413 = vmatpush2.msra.mxu0 0.0
        %3414 = vmatprep.subr.mxu0 0.0
        %3415 = vmatpush2.msra.mxu0 0.0
        %3416 = vmatprep.subr.mxu0 0.0
        %3417 = vmatpush2.msra.mxu0 0.0
        %3418 = vmatprep.subr.mxu0 0.0
        %3419 = vmatpush2.msra.mxu0 0.0
        %3420 = vmatprep.subr.mxu0 0.0
        %3421 = vmatpush2.msra.mxu0 0.0
        %3422 = vmatprep.subr.mxu0 0.0
        %3423 = vmatpush2.msra.mxu0 0.0
        %3424 = vmatprep.subr.mxu0 0.0
        %3425 = vmatpush2.msra.mxu0 0.0
        %3426 = vmatprep.subr.mxu0 0.0
        %3427 = vmatpush2.msra.mxu0 0.0
        %3428 = vmatprep.mubr.f32.mxu0 0.0
        %3429 = vmatmul.mubr.f32.gmra.mxu0 %v3008
        %v3430 = vpop.f32.mrf.mxu0
        %v3431 = vadd.f32 0.0, %v3430
        %v3432 = vpop.f32.mrf.mxu0
        %v3433 = vadd.f32 0.0, %v3432
        %3434 = vdwg.mxu0
        %3435 = vmatprep.subr.mxu0 %v1637
        %3436 = vmatpush1.msra.mxu0 %v1636
        %3437 = vmatprep.subr.mxu0 %v1621
        %3438 = vmatpush1.msra.mxu0 %v1620
        %3439 = vmatprep.subr.mxu0 %v1605
        %3440 = vmatpush1.msra.mxu0 %v1604
        %3441 = vmatprep.subr.mxu0 %v1589
        %3442 = vmatpush1.msra.mxu0 %v1588
        %3443 = vmatprep.subr.mxu0 %v1573
        %3444 = vmatpush1.msra.mxu0 %v1572
        %3445 = vmatprep.subr.mxu0 %v1557
        %3446 = vmatpush1.msra.mxu0 %v1556
        %3447 = vmatprep.subr.mxu0 %v1541
        %3448 = vmatpush1.msra.mxu0 %v1540
        %3449 = vmatprep.subr.mxu0 %v1525
        %3450 = vmatpush1.msra.mxu0 %v1524
        %3451 = vmatprep.subr.mxu0 %v1509
        %3452 = vmatpush1.msra.mxu0 %v1508
        %3453 = vmatprep.subr.mxu0 %v1493
        %3454 = vmatpush1.msra.mxu0 %v1492
        %3455 = vmatprep.subr.mxu0 %v1477
        %3456 = vmatpush1.msra.mxu0 %v1476
        %3457 = vmatprep.subr.mxu0 %v1461
        %3458 = vmatpush1.msra.mxu0 %v1460
        %3459 = vmatprep.subr.mxu0 %v1445
        %3460 = vmatpush1.msra.mxu0 %v1444
        %3461 = vmatprep.subr.mxu0 %v1429
        %3462 = vmatpush1.msra.mxu0 %v1428
        %3463 = vmatprep.subr.mxu0 %v1413
        %3464 = vmatpush1.msra.mxu0 %v1412
        %3465 = vmatprep.subr.mxu0 %v1397
        %3466 = vmatpush1.msra.mxu0 %v1396
        %3467 = vmatprep.subr.mxu0 0.0
        %3468 = vmatpush2.msra.mxu0 0.0
        %3469 = vmatprep.subr.mxu0 0.0
        %3470 = vmatpush2.msra.mxu0 0.0
        %3471 = vmatprep.subr.mxu0 0.0
        %3472 = vmatpush2.msra.mxu0 0.0
        %3473 = vmatprep.subr.mxu0 0.0
        %3474 = vmatpush2.msra.mxu0 0.0
        %3475 = vmatprep.subr.mxu0 0.0
        %3476 = vmatpush2.msra.mxu0 0.0
        %3477 = vmatprep.subr.mxu0 0.0
        %3478 = vmatpush2.msra.mxu0 0.0
        %3479 = vmatprep.subr.mxu0 0.0
        %3480 = vmatpush2.msra.mxu0 0.0
        %3481 = vmatprep.subr.mxu0 0.0
        %3482 = vmatpush2.msra.mxu0 0.0
        %3483 = vmatprep.subr.mxu0 0.0
        %3484 = vmatpush2.msra.mxu0 0.0
        %3485 = vmatprep.subr.mxu0 0.0
        %3486 = vmatpush2.msra.mxu0 0.0
        %3487 = vmatprep.subr.mxu0 0.0
        %3488 = vmatpush2.msra.mxu0 0.0
        %3489 = vmatprep.subr.mxu0 0.0
        %3490 = vmatpush2.msra.mxu0 0.0
        %3491 = vmatprep.subr.mxu0 0.0
        %3492 = vmatpush2.msra.mxu0 0.0
        %3493 = vmatprep.subr.mxu0 0.0
        %3494 = vmatpush2.msra.mxu0 0.0
        %3495 = vmatprep.subr.mxu0 0.0
        %3496 = vmatpush2.msra.mxu0 0.0
        %3497 = vmatprep.subr.mxu0 0.0
        %3498 = vmatpush2.msra.mxu0 0.0
        %3499 = vmatprep.mubr.f32.mxu0 0.0
        %3500 = vmatmul.mubr.f32.gmra.mxu0 %v3008
        %v3501 = vpop.f32.mrf.mxu0
        %v3502 = vadd.f32 0.0, %v3501
        %v3503 = vpop.f32.mrf.mxu0
        %v3504 = vadd.f32 0.0, %v3503
        %3505 = vdwg.mxu0
        %3506 = vmatprep.subr.mxu0 %v1639
        %3507 = vmatpush1.msra.mxu0 %v1638
        %3508 = vmatprep.subr.mxu0 %v1623
        %3509 = vmatpush1.msra.mxu0 %v1622
        %3510 = vmatprep.subr.mxu0 %v1607
        %3511 = vmatpush1.msra.mxu0 %v1606
        %3512 = vmatprep.subr.mxu0 %v1591
        %3513 = vmatpush1.msra.mxu0 %v1590
        %3514 = vmatprep.subr.mxu0 %v1575
        %3515 = vmatpush1.msra.mxu0 %v1574
        %3516 = vmatprep.subr.mxu0 %v1559
        %3517 = vmatpush1.msra.mxu0 %v1558
        %3518 = vmatprep.subr.mxu0 %v1543
        %3519 = vmatpush1.msra.mxu0 %v1542
        %3520 = vmatprep.subr.mxu0 %v1527
        %3521 = vmatpush1.msra.mxu0 %v1526
        %3522 = vmatprep.subr.mxu0 %v1511
        %3523 = vmatpush1.msra.mxu0 %v1510
        %3524 = vmatprep.subr.mxu0 %v1495
        %3525 = vmatpush1.msra.mxu0 %v1494
        %3526 = vmatprep.subr.mxu0 %v1479
        %3527 = vmatpush1.msra.mxu0 %v1478
        %3528 = vmatprep.subr.mxu0 %v1463
        %3529 = vmatpush1.msra.mxu0 %v1462
        %3530 = vmatprep.subr.mxu0 %v1447
        %3531 = vmatpush1.msra.mxu0 %v1446
        %3532 = vmatprep.subr.mxu0 %v1431
        %3533 = vmatpush1.msra.mxu0 %v1430
        %3534 = vmatprep.subr.mxu0 %v1415
        %3535 = vmatpush1.msra.mxu0 %v1414
        %3536 = vmatprep.subr.mxu0 %v1399
        %3537 = vmatpush1.msra.mxu0 %v1398
        %3538 = vmatprep.subr.mxu0 0.0
        %3539 = vmatpush2.msra.mxu0 0.0
        %3540 = vmatprep.subr.mxu0 0.0
        %3541 = vmatpush2.msra.mxu0 0.0
        %3542 = vmatprep.subr.mxu0 0.0
        %3543 = vmatpush2.msra.mxu0 0.0
        %3544 = vmatprep.subr.mxu0 0.0
        %3545 = vmatpush2.msra.mxu0 0.0
        %3546 = vmatprep.subr.mxu0 0.0
        %3547 = vmatpush2.msra.mxu0 0.0
        %3548 = vmatprep.subr.mxu0 0.0
        %3549 = vmatpush2.msra.mxu0 0.0
        %3550 = vmatprep.subr.mxu0 0.0
        %3551 = vmatpush2.msra.mxu0 0.0
        %3552 = vmatprep.subr.mxu0 0.0
        %3553 = vmatpush2.msra.mxu0 0.0
        %3554 = vmatprep.subr.mxu0 0.0
        %3555 = vmatpush2.msra.mxu0 0.0
        %3556 = vmatprep.subr.mxu0 0.0
        %3557 = vmatpush2.msra.mxu0 0.0
        %3558 = vmatprep.subr.mxu0 0.0
        %3559 = vmatpush2.msra.mxu0 0.0
        %3560 = vmatprep.subr.mxu0 0.0
        %3561 = vmatpush2.msra.mxu0 0.0
        %3562 = vmatprep.subr.mxu0 0.0
        %3563 = vmatpush2.msra.mxu0 0.0
        %3564 = vmatprep.subr.mxu0 0.0
        %3565 = vmatpush2.msra.mxu0 0.0
        %3566 = vmatprep.subr.mxu0 0.0
        %3567 = vmatpush2.msra.mxu0 0.0
        %3568 = vmatprep.subr.mxu0 0.0
        %3569 = vmatpush2.msra.mxu0 0.0
        %3570 = vmatprep.mubr.f32.mxu0 0.0
        %3571 = vmatmul.mubr.f32.gmra.mxu0 %v3008
        %v3572 = vpop.f32.mrf.mxu0
        %v3573 = vadd.f32 0.0, %v3572
        %v3574 = vpop.f32.mrf.mxu0
        %v3575 = vadd.f32 0.0, %v3574
        %3576 = vdwg.mxu0
        %v3577 = vlaneseq
        %v3578 = vshrl.u32 %v3577, 7
        %v3579 = vsub.s32 0, %v3578
        %v3580 = vrot.slane %v3076, %v3579
        %v3581 = vlaneseq
        %v3582 = vshrl.u32 %v3581, 7
        %v3583 = vsub.s32 0, %v3582
        %v3584 = vrot.slane %v3078, %v3583
        %v3585 = vlaneseq
        %v3586 = vshrl.u32 %v3585, 7
        %v3587 = vsub.s32 0, %v3586
        %v3588 = vrot.slane %v3147, %v3587
        %v3589 = vlaneseq
        %v3590 = vshrl.u32 %v3589, 7
        %v3591 = vsub.s32 0, %v3590
        %v3592 = vrot.slane %v3149, %v3591
        %v3593 = vlaneseq
        %v3594 = vshrl.u32 %v3593, 7
        %v3595 = vsub.s32 0, %v3594
        %v3596 = vrot.slane %v3218, %v3595
        %v3597 = vlaneseq
        %v3598 = vshrl.u32 %v3597, 7
        %v3599 = vsub.s32 0, %v3598
        %v3600 = vrot.slane %v3220, %v3599
        %v3601 = vlaneseq
        %v3602 = vshrl.u32 %v3601, 7
        %v3603 = vsub.s32 0, %v3602
        %v3604 = vrot.slane %v3289, %v3603
        %v3605 = vlaneseq
        %v3606 = vshrl.u32 %v3605, 7
        %v3607 = vsub.s32 0, %v3606
        %v3608 = vrot.slane %v3291, %v3607
        %v3609 = vlaneseq
        %v3610 = vshrl.u32 %v3609, 7
        %v3611 = vsub.s32 0, %v3610
        %v3612 = vrot.slane %v3360, %v3611
        %v3613 = vlaneseq
        %v3614 = vshrl.u32 %v3613, 7
        %v3615 = vsub.s32 0, %v3614
        %v3616 = vrot.slane %v3362, %v3615
        %v3617 = vlaneseq
        %v3618 = vshrl.u32 %v3617, 7
        %v3619 = vsub.s32 0, %v3618
        %v3620 = vrot.slane %v3431, %v3619
        %v3621 = vlaneseq
        %v3622 = vshrl.u32 %v3621, 7
        %v3623 = vsub.s32 0, %v3622
        %v3624 = vrot.slane %v3433, %v3623
        %v3625 = vlaneseq
        %v3626 = vshrl.u32 %v3625, 7
        %v3627 = vsub.s32 0, %v3626
        %v3628 = vrot.slane %v3502, %v3627
        %v3629 = vlaneseq
        %v3630 = vshrl.u32 %v3629, 7
        %v3631 = vsub.s32 0, %v3630
        %v3632 = vrot.slane %v3504, %v3631
        %v3633 = vlaneseq
        %v3634 = vshrl.u32 %v3633, 7
        %v3635 = vsub.s32 0, %v3634
        %v3636 = vrot.slane %v3573, %v3635
        %v3637 = vlaneseq
        %v3638 = vshrl.u32 %v3637, 7
        %v3639 = vsub.s32 0, %v3638
        %v3640 = vrot.slane %v3575, %v3639
        %v3641 = vmul.f32 %v2272, %v3580
        %v3642 = vmul.f32 %v2273, %v3584
        %v3643 = vmul.f32 %v2274, %v3588
        %v3644 = vmul.f32 %v2275, %v3592
        %v3645 = vmul.f32 %v2276, %v3596
        %v3646 = vmul.f32 %v2277, %v3600
        %v3647 = vmul.f32 %v2278, %v3604
        %v3648 = vmul.f32 %v2279, %v3608
        %v3649 = vmul.f32 %v2280, %v3612
        %v3650 = vmul.f32 %v2281, %v3616
        %v3651 = vmul.f32 %v2282, %v3620
        %v3652 = vmul.f32 %v2283, %v3624
        %v3653 = vmul.f32 %v2284, %v3628
        %v3654 = vmul.f32 %v2285, %v3632
        %v3655 = vmul.f32 %v2286, %v3636
        %v3656 = vmul.f32 %v2287, %v3640
        %v3657 = vmul.f32 %v2288, %v3580
        %v3658 = vmul.f32 %v2289, %v3584
        %v3659 = vmul.f32 %v2290, %v3588
        %v3660 = vmul.f32 %v2291, %v3592
        %v3661 = vmul.f32 %v2292, %v3596
        %v3662 = vmul.f32 %v2293, %v3600
        %v3663 = vmul.f32 %v2294, %v3604
        %v3664 = vmul.f32 %v2295, %v3608
        %v3665 = vmul.f32 %v2296, %v3612
        %v3666 = vmul.f32 %v2297, %v3616
        %v3667 = vmul.f32 %v2298, %v3620
        %v3668 = vmul.f32 %v2299, %v3624
        %v3669 = vmul.f32 %v2300, %v3628
        %v3670 = vmul.f32 %v2301, %v3632
        %v3671 = vmul.f32 %v2302, %v3636
        %v3672 = vmul.f32 %v2303, %v3640
        %v3673 = vld [vmem:[#allocation5] sm:$0xff]
        %v3674 = vld [vmem:[#allocation5 + $0x8] sm:$0xff]
        %v3675 = vld [vmem:[#allocation5 + $0x10] sm:$0xff]
        %v3676 = vld [vmem:[#allocation5 + $0x18] sm:$0xff]
        %v3677 = vld [vmem:[#allocation5 + $0x20] sm:$0xff]
        %v3678 = vld [vmem:[#allocation5 + $0x28] sm:$0xff]
        %v3679 = vld [vmem:[#allocation5 + $0x30] sm:$0xff]
        %v3680 = vld [vmem:[#allocation5 + $0x38] sm:$0xff]
        %v3681 = vld [vmem:[#allocation5 + $0x40] sm:$0xff]
        %v3682 = vld [vmem:[#allocation5 + $0x48] sm:$0xff]
        %v3683 = vld [vmem:[#allocation5 + $0x50] sm:$0xff]
        %v3684 = vld [vmem:[#allocation5 + $0x58] sm:$0xff]
        %v3685 = vld [vmem:[#allocation5 + $0x60] sm:$0xff]
        %v3686 = vld [vmem:[#allocation5 + $0x68] sm:$0xff]
        %v3687 = vld [vmem:[#allocation5 + $0x70] sm:$0xff]
        %v3688 = vld [vmem:[#allocation5 + $0x78] sm:$0xff]
        %v3689 = vld [vmem:[#allocation5 + $0x80] sm:$0xff]
        %v3690 = vld [vmem:[#allocation5 + $0x88] sm:$0xff]
        %v3691 = vld [vmem:[#allocation5 + $0x90] sm:$0xff]
        %v3692 = vld [vmem:[#allocation5 + $0x98] sm:$0xff]
        %v3693 = vld [vmem:[#allocation5 + $0xa0] sm:$0xff]
        %v3694 = vld [vmem:[#allocation5 + $0xa8] sm:$0xff]
        %v3695 = vld [vmem:[#allocation5 + $0xb0] sm:$0xff]
        %v3696 = vld [vmem:[#allocation5 + $0xb8] sm:$0xff]
        %v3697 = vld [vmem:[#allocation5 + $0xc0] sm:$0xff]
        %v3698 = vld [vmem:[#allocation5 + $0xc8] sm:$0xff]
        %v3699 = vld [vmem:[#allocation5 + $0xd0] sm:$0xff]
        %v3700 = vld [vmem:[#allocation5 + $0xd8] sm:$0xff]
        %v3701 = vld [vmem:[#allocation5 + $0xe0] sm:$0xff]
        %v3702 = vld [vmem:[#allocation5 + $0xe8] sm:$0xff]
        %v3703 = vld [vmem:[#allocation5 + $0xf0] sm:$0xff]
        %v3704 = vld [vmem:[#allocation5 + $0xf8] sm:$0xff]
        %v3705 = vmul.f32 %v3641, %v3673
        %v3706 = vmul.f32 %v3642, %v3674
        %v3707 = vmul.f32 %v3643, %v3675
        %v3708 = vmul.f32 %v3644, %v3676
        %v3709 = vmul.f32 %v3645, %v3677
        %v3710 = vmul.f32 %v3646, %v3678
        %v3711 = vmul.f32 %v3647, %v3679
        %v3712 = vmul.f32 %v3648, %v3680
        %v3713 = vmul.f32 %v3649, %v3681
        %v3714 = vmul.f32 %v3650, %v3682
        %v3715 = vmul.f32 %v3651, %v3683
        %v3716 = vmul.f32 %v3652, %v3684
        %v3717 = vmul.f32 %v3653, %v3685
        %v3718 = vmul.f32 %v3654, %v3686
        %v3719 = vmul.f32 %v3655, %v3687
        %v3720 = vmul.f32 %v3656, %v3688
        %v3721 = vmul.f32 %v3657, %v3689
        %v3722 = vmul.f32 %v3658, %v3690
        %v3723 = vmul.f32 %v3659, %v3691
        %v3724 = vmul.f32 %v3660, %v3692
        %v3725 = vmul.f32 %v3661, %v3693
        %v3726 = vmul.f32 %v3662, %v3694
        %v3727 = vmul.f32 %v3663, %v3695
        %v3728 = vmul.f32 %v3664, %v3696
        %v3729 = vmul.f32 %v3665, %v3697
        %v3730 = vmul.f32 %v3666, %v3698
        %v3731 = vmul.f32 %v3667, %v3699
        %v3732 = vmul.f32 %v3668, %v3700
        %v3733 = vmul.f32 %v3669, %v3701
        %v3734 = vmul.f32 %v3670, %v3702
        %v3735 = vmul.f32 %v3671, %v3703
        %v3736 = vmul.f32 %v3672, %v3704
        %v3737 = vld [vmem:[#allocation7] sm:$0xff]
        %v3738 = vld [vmem:[#allocation7 + $0x8] sm:$0xff]
        %v3739 = vld [vmem:[#allocation7 + $0x10] sm:$0xff]
        %v3740 = vld [vmem:[#allocation7 + $0x18] sm:$0xff]
        %v3741 = vld [vmem:[#allocation7 + $0x20] sm:$0xff]
        %v3742 = vld [vmem:[#allocation7 + $0x28] sm:$0xff]
        %v3743 = vld [vmem:[#allocation7 + $0x30] sm:$0xff]
        %v3744 = vld [vmem:[#allocation7 + $0x38] sm:$0xff]
        %v3745 = vld [vmem:[#allocation7 + $0x40] sm:$0xff]
        %v3746 = vld [vmem:[#allocation7 + $0x48] sm:$0xff]
        %v3747 = vld [vmem:[#allocation7 + $0x50] sm:$0xff]
        %v3748 = vld [vmem:[#allocation7 + $0x58] sm:$0xff]
        %v3749 = vld [vmem:[#allocation7 + $0x60] sm:$0xff]
        %v3750 = vld [vmem:[#allocation7 + $0x68] sm:$0xff]
        %v3751 = vld [vmem:[#allocation7 + $0x70] sm:$0xff]
        %v3752 = vld [vmem:[#allocation7 + $0x78] sm:$0xff]
        %v3753 = vld [vmem:[#allocation7 + $0x80] sm:$0xff]
        %v3754 = vld [vmem:[#allocation7 + $0x88] sm:$0xff]
        %v3755 = vld [vmem:[#allocation7 + $0x90] sm:$0xff]
        %v3756 = vld [vmem:[#allocation7 + $0x98] sm:$0xff]
        %v3757 = vld [vmem:[#allocation7 + $0xa0] sm:$0xff]
        %v3758 = vld [vmem:[#allocation7 + $0xa8] sm:$0xff]
        %v3759 = vld [vmem:[#allocation7 + $0xb0] sm:$0xff]
        %v3760 = vld [vmem:[#allocation7 + $0xb8] sm:$0xff]
        %v3761 = vld [vmem:[#allocation7 + $0xc0] sm:$0xff]
        %v3762 = vld [vmem:[#allocation7 + $0xc8] sm:$0xff]
        %v3763 = vld [vmem:[#allocation7 + $0xd0] sm:$0xff]
        %v3764 = vld [vmem:[#allocation7 + $0xd8] sm:$0xff]
        %v3765 = vld [vmem:[#allocation7 + $0xe0] sm:$0xff]
        %v3766 = vld [vmem:[#allocation7 + $0xe8] sm:$0xff]
        %v3767 = vld [vmem:[#allocation7 + $0xf0] sm:$0xff]
        %v3768 = vld [vmem:[#allocation7 + $0xf8] sm:$0xff]
        %v3769 = vadd.f32 %v3705, %v3737
        %v3770 = vadd.f32 %v3706, %v3738
        %v3771 = vadd.f32 %v3707, %v3739
        %v3772 = vadd.f32 %v3708, %v3740
        %v3773 = vadd.f32 %v3709, %v3741
        %v3774 = vadd.f32 %v3710, %v3742
        %v3775 = vadd.f32 %v3711, %v3743
        %v3776 = vadd.f32 %v3712, %v3744
        %v3777 = vadd.f32 %v3713, %v3745
        %v3778 = vadd.f32 %v3714, %v3746
        %v3779 = vadd.f32 %v3715, %v3747
        %v3780 = vadd.f32 %v3716, %v3748
        %v3781 = vadd.f32 %v3717, %v3749
        %v3782 = vadd.f32 %v3718, %v3750
        %v3783 = vadd.f32 %v3719, %v3751
        %v3784 = vadd.f32 %v3720, %v3752
        %v3785 = vadd.f32 %v3721, %v3753
        %v3786 = vadd.f32 %v3722, %v3754
        %v3787 = vadd.f32 %v3723, %v3755
        %v3788 = vadd.f32 %v3724, %v3756
        %v3789 = vadd.f32 %v3725, %v3757
        %v3790 = vadd.f32 %v3726, %v3758
        %v3791 = vadd.f32 %v3727, %v3759
        %v3792 = vadd.f32 %v3728, %v3760
        %v3793 = vadd.f32 %v3729, %v3761
        %v3794 = vadd.f32 %v3730, %v3762
        %v3795 = vadd.f32 %v3731, %v3763
        %v3796 = vadd.f32 %v3732, %v3764
        %v3797 = vadd.f32 %v3733, %v3765
        %v3798 = vadd.f32 %v3734, %v3766
        %v3799 = vadd.f32 %v3735, %v3767
        %v3800 = vadd.f32 %v3736, %v3768
        %v3801 = vld [vmem:[%s3] sm:$0xff]
        %v3802 = vld [vmem:[%s3 + $0x8] sm:$0xff]
        %v3803 = vld [vmem:[%s3 + $0x10] sm:$0xff]
        %v3804 = vld [vmem:[%s3 + $0x18] sm:$0xff]
        %v3805 = vld [vmem:[%s3 + $0x20] sm:$0xff]
        %v3806 = vld [vmem:[%s3 + $0x28] sm:$0xff]
        %vm3807 = vcmask 130048
        %v3809 = vsel %vm3807, %v3801, 0
        %v3812 = vsel %vm3807, %v3802, 0
        %v3815 = vsel %vm3807, %v3803, 0
        %v3818 = vsel %vm3807, %v3804, 0
        %v3821 = vsel %vm3807, %v3805, 0
        %v3824 = vsel %vm3807, %v3806, 0
        %3826 = vmatprep.subr.mxu0 0.0
        %3827 = vmatpush1.msra.mxu0 0.0
        %3828 = vmatprep.subr.mxu0 0.0
        %3829 = vmatpush1.msra.mxu0 0.0
        %3830 = vmatprep.subr.mxu0 0.0
        %3831 = vmatpush1.msra.mxu0 0.0
        %3832 = vmatprep.subr.mxu0 0.0
        %3833 = vmatpush1.msra.mxu0 0.0
        %3834 = vmatprep.subr.mxu0 0.0
        %3835 = vmatpush1.msra.mxu0 0.0
        %3836 = vmatprep.subr.mxu0 0.0
        %3837 = vmatpush1.msra.mxu0 0.0
        %3838 = vmatprep.subr.mxu0 0.0
        %3839 = vmatpush1.msra.mxu0 0.0
        %3840 = vmatprep.subr.mxu0 0.0
        %3841 = vmatpush1.msra.mxu0 0.0
        %3842 = vmatprep.subr.mxu0 0.0
        %3843 = vmatpush1.msra.mxu0 0.0
        %3844 = vmatprep.subr.mxu0 0.0
        %3845 = vmatpush1.msra.mxu0 0.0
        %3846 = vmatprep.subr.mxu0 0.0
        %3847 = vmatpush1.msra.mxu0 0.0
        %3848 = vmatprep.subr.mxu0 0.0
        %3849 = vmatpush1.msra.mxu0 0.0
        %3850 = vmatprep.subr.mxu0 0.0
        %3851 = vmatpush1.msra.mxu0 0.0
        %3852 = vmatprep.subr.mxu0 0.0
        %3853 = vmatpush1.msra.mxu0 0.0
        %3854 = vmatprep.subr.mxu0 %v3786
        %3855 = vmatpush1.msra.mxu0 %v3785
        %3856 = vmatprep.subr.mxu0 %v3770
        %3857 = vmatpush1.msra.mxu0 %v3769
        %3858 = vmatprep.subr.mxu0 0.0
        %3859 = vmatpush2.msra.mxu0 0.0
        %3860 = vmatprep.subr.mxu0 0.0
        %3861 = vmatpush2.msra.mxu0 0.0
        %3862 = vmatprep.subr.mxu0 0.0
        %3863 = vmatpush2.msra.mxu0 0.0
        %3864 = vmatprep.subr.mxu0 0.0
        %3865 = vmatpush2.msra.mxu0 0.0
        %3866 = vmatprep.subr.mxu0 0.0
        %3867 = vmatpush2.msra.mxu0 0.0
        %3868 = vmatprep.subr.mxu0 0.0
        %3869 = vmatpush2.msra.mxu0 0.0
        %3870 = vmatprep.subr.mxu0 0.0
        %3871 = vmatpush2.msra.mxu0 0.0
        %3872 = vmatprep.subr.mxu0 0.0
        %3873 = vmatpush2.msra.mxu0 0.0
        %3874 = vmatprep.subr.mxu0 0.0
        %3875 = vmatpush2.msra.mxu0 0.0
        %3876 = vmatprep.subr.mxu0 0.0
        %3877 = vmatpush2.msra.mxu0 0.0
        %3878 = vmatprep.subr.mxu0 0.0
        %3879 = vmatpush2.msra.mxu0 0.0
        %3880 = vmatprep.subr.mxu0 0.0
        %3881 = vmatpush2.msra.mxu0 0.0
        %3882 = vmatprep.subr.mxu0 0.0
        %3883 = vmatpush2.msra.mxu0 0.0
        %3884 = vmatprep.subr.mxu0 0.0
        %3885 = vmatpush2.msra.mxu0 0.0
        %3886 = vmatprep.subr.mxu0 0.0
        %3887 = vmatpush2.msra.mxu0 0.0
        %3888 = vmatprep.subr.mxu0 0.0
        %3889 = vmatpush2.msra.mxu0 0.0
        %3890 = vmatprep.mubr.f32.mxu0 0.0
        %3891 = vmatmul.mubr.f32.gmra.mxu0 %v3809
        %v3892 = vpop.f32.mrf.mxu0
        %v3893 = vadd.f32 0.0, %v3892
        %v3894 = vpop.f32.mrf.mxu0
        %v3895 = vadd.f32 0.0, %v3894
        %3896 = vmatprep.mubr.f32.mxu0 0.0
        %3897 = vmatmul.mubr.f32.gmra.mxu0 %v3812
        %v3898 = vpop.f32.mrf.mxu0
        %v3899 = vadd.f32 0.0, %v3898
        %v3900 = vpop.f32.mrf.mxu0
        %v3901 = vadd.f32 0.0, %v3900
        %3902 = vmatprep.mubr.f32.mxu0 0.0
        %3903 = vmatmul.mubr.f32.gmra.mxu0 %v3815
        %v3904 = vpop.f32.mrf.mxu0
        %v3905 = vadd.f32 0.0, %v3904
        %v3906 = vpop.f32.mrf.mxu0
        %v3907 = vadd.f32 0.0, %v3906
        %3908 = vmatprep.mubr.f32.mxu0 0.0
        %3909 = vmatmul.mubr.f32.gmra.mxu0 %v3818
        %v3910 = vpop.f32.mrf.mxu0
        %v3911 = vadd.f32 0.0, %v3910
        %v3912 = vpop.f32.mrf.mxu0
        %v3913 = vadd.f32 0.0, %v3912
        %3914 = vmatprep.mubr.f32.mxu0 0.0
        %3915 = vmatmul.mubr.f32.gmra.mxu0 %v3821
        %v3916 = vpop.f32.mrf.mxu0
        %v3917 = vadd.f32 0.0, %v3916
        %v3918 = vpop.f32.mrf.mxu0
        %v3919 = vadd.f32 0.0, %v3918
        %3920 = vmatprep.mubr.f32.mxu0 0.0
        %3921 = vmatmul.mubr.f32.gmra.mxu0 %v3824
        %v3922 = vpop.f32.mrf.mxu0
        %v3923 = vadd.f32 0.0, %v3922
        %v3924 = vpop.f32.mrf.mxu0
        %v3925 = vadd.f32 0.0, %v3924
        %3926 = vdwg.mxu0
        %3927 = vmatprep.subr.mxu0 0.0
        %3928 = vmatpush1.msra.mxu0 0.0
        %3929 = vmatprep.subr.mxu0 0.0
        %3930 = vmatpush1.msra.mxu0 0.0
        %3931 = vmatprep.subr.mxu0 0.0
        %3932 = vmatpush1.msra.mxu0 0.0
        %3933 = vmatprep.subr.mxu0 0.0
        %3934 = vmatpush1.msra.mxu0 0.0
        %3935 = vmatprep.subr.mxu0 0.0
        %3936 = vmatpush1.msra.mxu0 0.0
        %3937 = vmatprep.subr.mxu0 0.0
        %3938 = vmatpush1.msra.mxu0 0.0
        %3939 = vmatprep.subr.mxu0 0.0
        %3940 = vmatpush1.msra.mxu0 0.0
        %3941 = vmatprep.subr.mxu0 0.0
        %3942 = vmatpush1.msra.mxu0 0.0
        %3943 = vmatprep.subr.mxu0 0.0
        %3944 = vmatpush1.msra.mxu0 0.0
        %3945 = vmatprep.subr.mxu0 0.0
        %3946 = vmatpush1.msra.mxu0 0.0
        %3947 = vmatprep.subr.mxu0 0.0
        %3948 = vmatpush1.msra.mxu0 0.0
        %3949 = vmatprep.subr.mxu0 0.0
        %3950 = vmatpush1.msra.mxu0 0.0
        %3951 = vmatprep.subr.mxu0 0.0
        %3952 = vmatpush1.msra.mxu0 0.0
        %3953 = vmatprep.subr.mxu0 0.0
        %3954 = vmatpush1.msra.mxu0 0.0
        %3955 = vmatprep.subr.mxu0 %v3788
        %3956 = vmatpush1.msra.mxu0 %v3787
        %3957 = vmatprep.subr.mxu0 %v3772
        %3958 = vmatpush1.msra.mxu0 %v3771
        %3959 = vmatprep.subr.mxu0 0.0
        %3960 = vmatpush2.msra.mxu0 0.0
        %3961 = vmatprep.subr.mxu0 0.0
        %3962 = vmatpush2.msra.mxu0 0.0
        %3963 = vmatprep.subr.mxu0 0.0
        %3964 = vmatpush2.msra.mxu0 0.0
        %3965 = vmatprep.subr.mxu0 0.0
        %3966 = vmatpush2.msra.mxu0 0.0
        %3967 = vmatprep.subr.mxu0 0.0
        %3968 = vmatpush2.msra.mxu0 0.0
        %3969 = vmatprep.subr.mxu0 0.0
        %3970 = vmatpush2.msra.mxu0 0.0
        %3971 = vmatprep.subr.mxu0 0.0
        %3972 = vmatpush2.msra.mxu0 0.0
        %3973 = vmatprep.subr.mxu0 0.0
        %3974 = vmatpush2.msra.mxu0 0.0
        %3975 = vmatprep.subr.mxu0 0.0
        %3976 = vmatpush2.msra.mxu0 0.0
        %3977 = vmatprep.subr.mxu0 0.0
        %3978 = vmatpush2.msra.mxu0 0.0
        %3979 = vmatprep.subr.mxu0 0.0
        %3980 = vmatpush2.msra.mxu0 0.0
        %3981 = vmatprep.subr.mxu0 0.0
        %3982 = vmatpush2.msra.mxu0 0.0
        %3983 = vmatprep.subr.mxu0 0.0
        %3984 = vmatpush2.msra.mxu0 0.0
        %3985 = vmatprep.subr.mxu0 0.0
        %3986 = vmatpush2.msra.mxu0 0.0
        %3987 = vmatprep.subr.mxu0 0.0
        %3988 = vmatpush2.msra.mxu0 0.0
        %3989 = vmatprep.subr.mxu0 0.0
        %3990 = vmatpush2.msra.mxu0 0.0
        %3991 = vmatprep.mubr.f32.mxu0 0.0
        %3992 = vmatmul.mubr.f32.gmra.mxu0 %v3809
        %v3993 = vpop.f32.mrf.mxu0
        %v3994 = vadd.f32 0.0, %v3993
        %v3995 = vpop.f32.mrf.mxu0
        %v3996 = vadd.f32 0.0, %v3995
        %3997 = vmatprep.mubr.f32.mxu0 0.0
        %3998 = vmatmul.mubr.f32.gmra.mxu0 %v3812
        %v3999 = vpop.f32.mrf.mxu0
        %v4000 = vadd.f32 0.0, %v3999
        %v4001 = vpop.f32.mrf.mxu0
        %v4002 = vadd.f32 0.0, %v4001
        %4003 = vmatprep.mubr.f32.mxu0 0.0
        %4004 = vmatmul.mubr.f32.gmra.mxu0 %v3815
        %v4005 = vpop.f32.mrf.mxu0
        %v4006 = vadd.f32 0.0, %v4005
        %v4007 = vpop.f32.mrf.mxu0
        %v4008 = vadd.f32 0.0, %v4007
        %4009 = vmatprep.mubr.f32.mxu0 0.0
        %4010 = vmatmul.mubr.f32.gmra.mxu0 %v3818
        %v4011 = vpop.f32.mrf.mxu0
        %v4012 = vadd.f32 0.0, %v4011
        %v4013 = vpop.f32.mrf.mxu0
        %v4014 = vadd.f32 0.0, %v4013
        %4015 = vmatprep.mubr.f32.mxu0 0.0
        %4016 = vmatmul.mubr.f32.gmra.mxu0 %v3821
        %v4017 = vpop.f32.mrf.mxu0
        %v4018 = vadd.f32 0.0, %v4017
        %v4019 = vpop.f32.mrf.mxu0
        %v4020 = vadd.f32 0.0, %v4019
        %4021 = vmatprep.mubr.f32.mxu0 0.0
        %4022 = vmatmul.mubr.f32.gmra.mxu0 %v3824
        %v4023 = vpop.f32.mrf.mxu0
        %v4024 = vadd.f32 0.0, %v4023
        %v4025 = vpop.f32.mrf.mxu0
        %v4026 = vadd.f32 0.0, %v4025
        %4027 = vdwg.mxu0
        %4028 = vmatprep.subr.mxu0 0.0
        %4029 = vmatpush1.msra.mxu0 0.0
        %4030 = vmatprep.subr.mxu0 0.0
        %4031 = vmatpush1.msra.mxu0 0.0
        %4032 = vmatprep.subr.mxu0 0.0
        %4033 = vmatpush1.msra.mxu0 0.0
        %4034 = vmatprep.subr.mxu0 0.0
        %4035 = vmatpush1.msra.mxu0 0.0
        %4036 = vmatprep.subr.mxu0 0.0
        %4037 = vmatpush1.msra.mxu0 0.0
        %4038 = vmatprep.subr.mxu0 0.0
        %4039 = vmatpush1.msra.mxu0 0.0
        %4040 = vmatprep.subr.mxu0 0.0
        %4041 = vmatpush1.msra.mxu0 0.0
        %4042 = vmatprep.subr.mxu0 0.0
        %4043 = vmatpush1.msra.mxu0 0.0
        %4044 = vmatprep.subr.mxu0 0.0
        %4045 = vmatpush1.msra.mxu0 0.0
        %4046 = vmatprep.subr.mxu0 0.0
        %4047 = vmatpush1.msra.mxu0 0.0
        %4048 = vmatprep.subr.mxu0 0.0
        %4049 = vmatpush1.msra.mxu0 0.0
        %4050 = vmatprep.subr.mxu0 0.0
        %4051 = vmatpush1.msra.mxu0 0.0
        %4052 = vmatprep.subr.mxu0 0.0
        %4053 = vmatpush1.msra.mxu0 0.0
        %4054 = vmatprep.subr.mxu0 0.0
        %4055 = vmatpush1.msra.mxu0 0.0
        %4056 = vmatprep.subr.mxu0 %v3790
        %4057 = vmatpush1.msra.mxu0 %v3789
        %4058 = vmatprep.subr.mxu0 %v3774
        %4059 = vmatpush1.msra.mxu0 %v3773
        %4060 = vmatprep.subr.mxu0 0.0
        %4061 = vmatpush2.msra.mxu0 0.0
        %4062 = vmatprep.subr.mxu0 0.0
        %4063 = vmatpush2.msra.mxu0 0.0
        %4064 = vmatprep.subr.mxu0 0.0
        %4065 = vmatpush2.msra.mxu0 0.0
        %4066 = vmatprep.subr.mxu0 0.0
        %4067 = vmatpush2.msra.mxu0 0.0
        %4068 = vmatprep.subr.mxu0 0.0
        %4069 = vmatpush2.msra.mxu0 0.0
        %4070 = vmatprep.subr.mxu0 0.0
        %4071 = vmatpush2.msra.mxu0 0.0
        %4072 = vmatprep.subr.mxu0 0.0
        %4073 = vmatpush2.msra.mxu0 0.0
        %4074 = vmatprep.subr.mxu0 0.0
        %4075 = vmatpush2.msra.mxu0 0.0
        %4076 = vmatprep.subr.mxu0 0.0
        %4077 = vmatpush2.msra.mxu0 0.0
        %4078 = vmatprep.subr.mxu0 0.0
        %4079 = vmatpush2.msra.mxu0 0.0
        %4080 = vmatprep.subr.mxu0 0.0
        %4081 = vmatpush2.msra.mxu0 0.0
        %4082 = vmatprep.subr.mxu0 0.0
        %4083 = vmatpush2.msra.mxu0 0.0
        %4084 = vmatprep.subr.mxu0 0.0
        %4085 = vmatpush2.msra.mxu0 0.0
        %4086 = vmatprep.subr.mxu0 0.0
        %4087 = vmatpush2.msra.mxu0 0.0
        %4088 = vmatprep.subr.mxu0 0.0
        %4089 = vmatpush2.msra.mxu0 0.0
        %4090 = vmatprep.subr.mxu0 0.0
        %4091 = vmatpush2.msra.mxu0 0.0
        %4092 = vmatprep.mubr.f32.mxu0 0.0
        %4093 = vmatmul.mubr.f32.gmra.mxu0 %v3809
        %v4094 = vpop.f32.mrf.mxu0
        %v4095 = vadd.f32 0.0, %v4094
        %v4096 = vpop.f32.mrf.mxu0
        %v4097 = vadd.f32 0.0, %v4096
        %4098 = vmatprep.mubr.f32.mxu0 0.0
        %4099 = vmatmul.mubr.f32.gmra.mxu0 %v3812
        %v4100 = vpop.f32.mrf.mxu0
        %v4101 = vadd.f32 0.0, %v4100
        %v4102 = vpop.f32.mrf.mxu0
        %v4103 = vadd.f32 0.0, %v4102
        %4104 = vmatprep.mubr.f32.mxu0 0.0
        %4105 = vmatmul.mubr.f32.gmra.mxu0 %v3815
        %v4106 = vpop.f32.mrf.mxu0
        %v4107 = vadd.f32 0.0, %v4106
        %v4108 = vpop.f32.mrf.mxu0
        %v4109 = vadd.f32 0.0, %v4108
        %4110 = vmatprep.mubr.f32.mxu0 0.0
        %4111 = vmatmul.mubr.f32.gmra.mxu0 %v3818
        %v4112 = vpop.f32.mrf.mxu0
        %v4113 = vadd.f32 0.0, %v4112
        %v4114 = vpop.f32.mrf.mxu0
        %v4115 = vadd.f32 0.0, %v4114
        %4116 = vmatprep.mubr.f32.mxu0 0.0
        %4117 = vmatmul.mubr.f32.gmra.mxu0 %v3821
        %v4118 = vpop.f32.mrf.mxu0
        %v4119 = vadd.f32 0.0, %v4118
        %v4120 = vpop.f32.mrf.mxu0
        %v4121 = vadd.f32 0.0, %v4120
        %4122 = vmatprep.mubr.f32.mxu0 0.0
        %4123 = vmatmul.mubr.f32.gmra.mxu0 %v3824
        %v4124 = vpop.f32.mrf.mxu0
        %v4125 = vadd.f32 0.0, %v4124
        %v4126 = vpop.f32.mrf.mxu0
        %v4127 = vadd.f32 0.0, %v4126
        %4128 = vdwg.mxu0
        %4129 = vmatprep.subr.mxu0 0.0
        %4130 = vmatpush1.msra.mxu0 0.0
        %4131 = vmatprep.subr.mxu0 0.0
        %4132 = vmatpush1.msra.mxu0 0.0
        %4133 = vmatprep.subr.mxu0 0.0
        %4134 = vmatpush1.msra.mxu0 0.0
        %4135 = vmatprep.subr.mxu0 0.0
        %4136 = vmatpush1.msra.mxu0 0.0
        %4137 = vmatprep.subr.mxu0 0.0
        %4138 = vmatpush1.msra.mxu0 0.0
        %4139 = vmatprep.subr.mxu0 0.0
        %4140 = vmatpush1.msra.mxu0 0.0
        %4141 = vmatprep.subr.mxu0 0.0
        %4142 = vmatpush1.msra.mxu0 0.0
        %4143 = vmatprep.subr.mxu0 0.0
        %4144 = vmatpush1.msra.mxu0 0.0
        %4145 = vmatprep.subr.mxu0 0.0
        %4146 = vmatpush1.msra.mxu0 0.0
        %4147 = vmatprep.subr.mxu0 0.0
        %4148 = vmatpush1.msra.mxu0 0.0
        %4149 = vmatprep.subr.mxu0 0.0
        %4150 = vmatpush1.msra.mxu0 0.0
        %4151 = vmatprep.subr.mxu0 0.0
        %4152 = vmatpush1.msra.mxu0 0.0
        %4153 = vmatprep.subr.mxu0 0.0
        %4154 = vmatpush1.msra.mxu0 0.0
        %4155 = vmatprep.subr.mxu0 0.0
        %4156 = vmatpush1.msra.mxu0 0.0
        %4157 = vmatprep.subr.mxu0 %v3792
        %4158 = vmatpush1.msra.mxu0 %v3791
        %4159 = vmatprep.subr.mxu0 %v3776
        %4160 = vmatpush1.msra.mxu0 %v3775
        %4161 = vmatprep.subr.mxu0 0.0
        %4162 = vmatpush2.msra.mxu0 0.0
        %4163 = vmatprep.subr.mxu0 0.0
        %4164 = vmatpush2.msra.mxu0 0.0
        %4165 = vmatprep.subr.mxu0 0.0
        %4166 = vmatpush2.msra.mxu0 0.0
        %4167 = vmatprep.subr.mxu0 0.0
        %4168 = vmatpush2.msra.mxu0 0.0
        %4169 = vmatprep.subr.mxu0 0.0
        %4170 = vmatpush2.msra.mxu0 0.0
        %4171 = vmatprep.subr.mxu0 0.0
        %4172 = vmatpush2.msra.mxu0 0.0
        %4173 = vmatprep.subr.mxu0 0.0
        %4174 = vmatpush2.msra.mxu0 0.0
        %4175 = vmatprep.subr.mxu0 0.0
        %4176 = vmatpush2.msra.mxu0 0.0
        %4177 = vmatprep.subr.mxu0 0.0
        %4178 = vmatpush2.msra.mxu0 0.0
        %4179 = vmatprep.subr.mxu0 0.0
        %4180 = vmatpush2.msra.mxu0 0.0
        %4181 = vmatprep.subr.mxu0 0.0
        %4182 = vmatpush2.msra.mxu0 0.0
        %4183 = vmatprep.subr.mxu0 0.0
        %4184 = vmatpush2.msra.mxu0 0.0
        %4185 = vmatprep.subr.mxu0 0.0
        %4186 = vmatpush2.msra.mxu0 0.0
        %4187 = vmatprep.subr.mxu0 0.0
        %4188 = vmatpush2.msra.mxu0 0.0
        %4189 = vmatprep.subr.mxu0 0.0
        %4190 = vmatpush2.msra.mxu0 0.0
        %4191 = vmatprep.subr.mxu0 0.0
        %4192 = vmatpush2.msra.mxu0 0.0
        %4193 = vmatprep.mubr.f32.mxu0 0.0
        %4194 = vmatmul.mubr.f32.gmra.mxu0 %v3809
        %v4195 = vpop.f32.mrf.mxu0
        %v4196 = vadd.f32 0.0, %v4195
        %v4197 = vpop.f32.mrf.mxu0
        %v4198 = vadd.f32 0.0, %v4197
        %4199 = vmatprep.mubr.f32.mxu0 0.0
        %4200 = vmatmul.mubr.f32.gmra.mxu0 %v3812
        %v4201 = vpop.f32.mrf.mxu0
        %v4202 = vadd.f32 0.0, %v4201
        %v4203 = vpop.f32.mrf.mxu0
        %v4204 = vadd.f32 0.0, %v4203
        %4205 = vmatprep.mubr.f32.mxu0 0.0
        %4206 = vmatmul.mubr.f32.gmra.mxu0 %v3815
        %v4207 = vpop.f32.mrf.mxu0
        %v4208 = vadd.f32 0.0, %v4207
        %v4209 = vpop.f32.mrf.mxu0
        %v4210 = vadd.f32 0.0, %v4209
        %4211 = vmatprep.mubr.f32.mxu0 0.0
        %4212 = vmatmul.mubr.f32.gmra.mxu0 %v3818
        %v4213 = vpop.f32.mrf.mxu0
        %v4214 = vadd.f32 0.0, %v4213
        %v4215 = vpop.f32.mrf.mxu0
        %v4216 = vadd.f32 0.0, %v4215
        %4217 = vmatprep.mubr.f32.mxu0 0.0
        %4218 = vmatmul.mubr.f32.gmra.mxu0 %v3821
        %v4219 = vpop.f32.mrf.mxu0
        %v4220 = vadd.f32 0.0, %v4219
        %v4221 = vpop.f32.mrf.mxu0
        %v4222 = vadd.f32 0.0, %v4221
        %4223 = vmatprep.mubr.f32.mxu0 0.0
        %4224 = vmatmul.mubr.f32.gmra.mxu0 %v3824
        %v4225 = vpop.f32.mrf.mxu0
        %v4226 = vadd.f32 0.0, %v4225
        %v4227 = vpop.f32.mrf.mxu0
        %v4228 = vadd.f32 0.0, %v4227
        %4229 = vdwg.mxu0
        %4230 = vmatprep.subr.mxu0 0.0
        %4231 = vmatpush1.msra.mxu0 0.0
        %4232 = vmatprep.subr.mxu0 0.0
        %4233 = vmatpush1.msra.mxu0 0.0
        %4234 = vmatprep.subr.mxu0 0.0
        %4235 = vmatpush1.msra.mxu0 0.0
        %4236 = vmatprep.subr.mxu0 0.0
        %4237 = vmatpush1.msra.mxu0 0.0
        %4238 = vmatprep.subr.mxu0 0.0
        %4239 = vmatpush1.msra.mxu0 0.0
        %4240 = vmatprep.subr.mxu0 0.0
        %4241 = vmatpush1.msra.mxu0 0.0
        %4242 = vmatprep.subr.mxu0 0.0
        %4243 = vmatpush1.msra.mxu0 0.0
        %4244 = vmatprep.subr.mxu0 0.0
        %4245 = vmatpush1.msra.mxu0 0.0
        %4246 = vmatprep.subr.mxu0 0.0
        %4247 = vmatpush1.msra.mxu0 0.0
        %4248 = vmatprep.subr.mxu0 0.0
        %4249 = vmatpush1.msra.mxu0 0.0
        %4250 = vmatprep.subr.mxu0 0.0
        %4251 = vmatpush1.msra.mxu0 0.0
        %4252 = vmatprep.subr.mxu0 0.0
        %4253 = vmatpush1.msra.mxu0 0.0
        %4254 = vmatprep.subr.mxu0 0.0
        %4255 = vmatpush1.msra.mxu0 0.0
        %4256 = vmatprep.subr.mxu0 0.0
        %4257 = vmatpush1.msra.mxu0 0.0
        %4258 = vmatprep.subr.mxu0 %v3794
        %4259 = vmatpush1.msra.mxu0 %v3793
        %4260 = vmatprep.subr.mxu0 %v3778
        %4261 = vmatpush1.msra.mxu0 %v3777
        %4262 = vmatprep.subr.mxu0 0.0
        %4263 = vmatpush2.msra.mxu0 0.0
        %4264 = vmatprep.subr.mxu0 0.0
        %4265 = vmatpush2.msra.mxu0 0.0
        %4266 = vmatprep.subr.mxu0 0.0
        %4267 = vmatpush2.msra.mxu0 0.0
        %4268 = vmatprep.subr.mxu0 0.0
        %4269 = vmatpush2.msra.mxu0 0.0
        %4270 = vmatprep.subr.mxu0 0.0
        %4271 = vmatpush2.msra.mxu0 0.0
        %4272 = vmatprep.subr.mxu0 0.0
        %4273 = vmatpush2.msra.mxu0 0.0
        %4274 = vmatprep.subr.mxu0 0.0
        %4275 = vmatpush2.msra.mxu0 0.0
        %4276 = vmatprep.subr.mxu0 0.0
        %4277 = vmatpush2.msra.mxu0 0.0
        %4278 = vmatprep.subr.mxu0 0.0
        %4279 = vmatpush2.msra.mxu0 0.0
        %4280 = vmatprep.subr.mxu0 0.0
        %4281 = vmatpush2.msra.mxu0 0.0
        %4282 = vmatprep.subr.mxu0 0.0
        %4283 = vmatpush2.msra.mxu0 0.0
        %4284 = vmatprep.subr.mxu0 0.0
        %4285 = vmatpush2.msra.mxu0 0.0
        %4286 = vmatprep.subr.mxu0 0.0
        %4287 = vmatpush2.msra.mxu0 0.0
        %4288 = vmatprep.subr.mxu0 0.0
        %4289 = vmatpush2.msra.mxu0 0.0
        %4290 = vmatprep.subr.mxu0 0.0
        %4291 = vmatpush2.msra.mxu0 0.0
        %4292 = vmatprep.subr.mxu0 0.0
        %4293 = vmatpush2.msra.mxu0 0.0
        %4294 = vmatprep.mubr.f32.mxu0 0.0
        %4295 = vmatmul.mubr.f32.gmra.mxu0 %v3809
        %v4296 = vpop.f32.mrf.mxu0
        %v4297 = vadd.f32 0.0, %v4296
        %v4298 = vpop.f32.mrf.mxu0
        %v4299 = vadd.f32 0.0, %v4298
        %4300 = vmatprep.mubr.f32.mxu0 0.0
        %4301 = vmatmul.mubr.f32.gmra.mxu0 %v3812
        %v4302 = vpop.f32.mrf.mxu0
        %v4303 = vadd.f32 0.0, %v4302
        %v4304 = vpop.f32.mrf.mxu0
        %v4305 = vadd.f32 0.0, %v4304
        %4306 = vmatprep.mubr.f32.mxu0 0.0
        %4307 = vmatmul.mubr.f32.gmra.mxu0 %v3815
        %v4308 = vpop.f32.mrf.mxu0
        %v4309 = vadd.f32 0.0, %v4308
        %v4310 = vpop.f32.mrf.mxu0
        %v4311 = vadd.f32 0.0, %v4310
        %4312 = vmatprep.mubr.f32.mxu0 0.0
        %4313 = vmatmul.mubr.f32.gmra.mxu0 %v3818
        %v4314 = vpop.f32.mrf.mxu0
        %v4315 = vadd.f32 0.0, %v4314
        %v4316 = vpop.f32.mrf.mxu0
        %v4317 = vadd.f32 0.0, %v4316
        %4318 = vmatprep.mubr.f32.mxu0 0.0
        %4319 = vmatmul.mubr.f32.gmra.mxu0 %v3821
        %v4320 = vpop.f32.mrf.mxu0
        %v4321 = vadd.f32 0.0, %v4320
        %v4322 = vpop.f32.mrf.mxu0
        %v4323 = vadd.f32 0.0, %v4322
        %4324 = vmatprep.mubr.f32.mxu0 0.0
        %4325 = vmatmul.mubr.f32.gmra.mxu0 %v3824
        %v4326 = vpop.f32.mrf.mxu0
        %v4327 = vadd.f32 0.0, %v4326
        %v4328 = vpop.f32.mrf.mxu0
        %v4329 = vadd.f32 0.0, %v4328
        %4330 = vdwg.mxu0
        %4331 = vmatprep.subr.mxu0 0.0
        %4332 = vmatpush1.msra.mxu0 0.0
        %4333 = vmatprep.subr.mxu0 0.0
        %4334 = vmatpush1.msra.mxu0 0.0
        %4335 = vmatprep.subr.mxu0 0.0
        %4336 = vmatpush1.msra.mxu0 0.0
        %4337 = vmatprep.subr.mxu0 0.0
        %4338 = vmatpush1.msra.mxu0 0.0
        %4339 = vmatprep.subr.mxu0 0.0
        %4340 = vmatpush1.msra.mxu0 0.0
        %4341 = vmatprep.subr.mxu0 0.0
        %4342 = vmatpush1.msra.mxu0 0.0
        %4343 = vmatprep.subr.mxu0 0.0
        %4344 = vmatpush1.msra.mxu0 0.0
        %4345 = vmatprep.subr.mxu0 0.0
        %4346 = vmatpush1.msra.mxu0 0.0
        %4347 = vmatprep.subr.mxu0 0.0
        %4348 = vmatpush1.msra.mxu0 0.0
        %4349 = vmatprep.subr.mxu0 0.0
        %4350 = vmatpush1.msra.mxu0 0.0
        %4351 = vmatprep.subr.mxu0 0.0
        %4352 = vmatpush1.msra.mxu0 0.0
        %4353 = vmatprep.subr.mxu0 0.0
        %4354 = vmatpush1.msra.mxu0 0.0
        %4355 = vmatprep.subr.mxu0 0.0
        %4356 = vmatpush1.msra.mxu0 0.0
        %4357 = vmatprep.subr.mxu0 0.0
        %4358 = vmatpush1.msra.mxu0 0.0
        %4359 = vmatprep.subr.mxu0 %v3796
        %4360 = vmatpush1.msra.mxu0 %v3795
        %4361 = vmatprep.subr.mxu0 %v3780
        %4362 = vmatpush1.msra.mxu0 %v3779
        %4363 = vmatprep.subr.mxu0 0.0
        %4364 = vmatpush2.msra.mxu0 0.0
        %4365 = vmatprep.subr.mxu0 0.0
        %4366 = vmatpush2.msra.mxu0 0.0
        %4367 = vmatprep.subr.mxu0 0.0
        %4368 = vmatpush2.msra.mxu0 0.0
        %4369 = vmatprep.subr.mxu0 0.0
        %4370 = vmatpush2.msra.mxu0 0.0
        %4371 = vmatprep.subr.mxu0 0.0
        %4372 = vmatpush2.msra.mxu0 0.0
        %4373 = vmatprep.subr.mxu0 0.0
        %4374 = vmatpush2.msra.mxu0 0.0
        %4375 = vmatprep.subr.mxu0 0.0
        %4376 = vmatpush2.msra.mxu0 0.0
        %4377 = vmatprep.subr.mxu0 0.0
        %4378 = vmatpush2.msra.mxu0 0.0
        %4379 = vmatprep.subr.mxu0 0.0
        %4380 = vmatpush2.msra.mxu0 0.0
        %4381 = vmatprep.subr.mxu0 0.0
        %4382 = vmatpush2.msra.mxu0 0.0
        %4383 = vmatprep.subr.mxu0 0.0
        %4384 = vmatpush2.msra.mxu0 0.0
        %4385 = vmatprep.subr.mxu0 0.0
        %4386 = vmatpush2.msra.mxu0 0.0
        %4387 = vmatprep.subr.mxu0 0.0
        %4388 = vmatpush2.msra.mxu0 0.0
        %4389 = vmatprep.subr.mxu0 0.0
        %4390 = vmatpush2.msra.mxu0 0.0
        %4391 = vmatprep.subr.mxu0 0.0
        %4392 = vmatpush2.msra.mxu0 0.0
        %4393 = vmatprep.subr.mxu0 0.0
        %4394 = vmatpush2.msra.mxu0 0.0
        %4395 = vmatprep.mubr.f32.mxu0 0.0
        %4396 = vmatmul.mubr.f32.gmra.mxu0 %v3809
        %v4397 = vpop.f32.mrf.mxu0
        %v4398 = vadd.f32 0.0, %v4397
        %v4399 = vpop.f32.mrf.mxu0
        %v4400 = vadd.f32 0.0, %v4399
        %4401 = vmatprep.mubr.f32.mxu0 0.0
        %4402 = vmatmul.mubr.f32.gmra.mxu0 %v3812
        %v4403 = vpop.f32.mrf.mxu0
        %v4404 = vadd.f32 0.0, %v4403
        %v4405 = vpop.f32.mrf.mxu0
        %v4406 = vadd.f32 0.0, %v4405
        %4407 = vmatprep.mubr.f32.mxu0 0.0
        %4408 = vmatmul.mubr.f32.gmra.mxu0 %v3815
        %v4409 = vpop.f32.mrf.mxu0
        %v4410 = vadd.f32 0.0, %v4409
        %v4411 = vpop.f32.mrf.mxu0
        %v4412 = vadd.f32 0.0, %v4411
        %4413 = vmatprep.mubr.f32.mxu0 0.0
        %4414 = vmatmul.mubr.f32.gmra.mxu0 %v3818
        %v4415 = vpop.f32.mrf.mxu0
        %v4416 = vadd.f32 0.0, %v4415
        %v4417 = vpop.f32.mrf.mxu0
        %v4418 = vadd.f32 0.0, %v4417
        %4419 = vmatprep.mubr.f32.mxu0 0.0
        %4420 = vmatmul.mubr.f32.gmra.mxu0 %v3821
        %v4421 = vpop.f32.mrf.mxu0
        %v4422 = vadd.f32 0.0, %v4421
        %v4423 = vpop.f32.mrf.mxu0
        %v4424 = vadd.f32 0.0, %v4423
        %4425 = vmatprep.mubr.f32.mxu0 0.0
        %4426 = vmatmul.mubr.f32.gmra.mxu0 %v3824
        %v4427 = vpop.f32.mrf.mxu0
        %v4428 = vadd.f32 0.0, %v4427
        %v4429 = vpop.f32.mrf.mxu0
        %v4430 = vadd.f32 0.0, %v4429
        %4431 = vdwg.mxu0
        %4432 = vmatprep.subr.mxu0 0.0
        %4433 = vmatpush1.msra.mxu0 0.0
        %4434 = vmatprep.subr.mxu0 0.0
        %4435 = vmatpush1.msra.mxu0 0.0
        %4436 = vmatprep.subr.mxu0 0.0
        %4437 = vmatpush1.msra.mxu0 0.0
        %4438 = vmatprep.subr.mxu0 0.0
        %4439 = vmatpush1.msra.mxu0 0.0
        %4440 = vmatprep.subr.mxu0 0.0
        %4441 = vmatpush1.msra.mxu0 0.0
        %4442 = vmatprep.subr.mxu0 0.0
        %4443 = vmatpush1.msra.mxu0 0.0
        %4444 = vmatprep.subr.mxu0 0.0
        %4445 = vmatpush1.msra.mxu0 0.0
        %4446 = vmatprep.subr.mxu0 0.0
        %4447 = vmatpush1.msra.mxu0 0.0
        %4448 = vmatprep.subr.mxu0 0.0
        %4449 = vmatpush1.msra.mxu0 0.0
        %4450 = vmatprep.subr.mxu0 0.0
        %4451 = vmatpush1.msra.mxu0 0.0
        %4452 = vmatprep.subr.mxu0 0.0
        %4453 = vmatpush1.msra.mxu0 0.0
        %4454 = vmatprep.subr.mxu0 0.0
        %4455 = vmatpush1.msra.mxu0 0.0
        %4456 = vmatprep.subr.mxu0 0.0
        %4457 = vmatpush1.msra.mxu0 0.0
        %4458 = vmatprep.subr.mxu0 0.0
        %4459 = vmatpush1.msra.mxu0 0.0
        %4460 = vmatprep.subr.mxu0 %v3798
        %4461 = vmatpush1.msra.mxu0 %v3797
        %4462 = vmatprep.subr.mxu0 %v3782
        %4463 = vmatpush1.msra.mxu0 %v3781
        %4464 = vmatprep.subr.mxu0 0.0
        %4465 = vmatpush2.msra.mxu0 0.0
        %4466 = vmatprep.subr.mxu0 0.0
        %4467 = vmatpush2.msra.mxu0 0.0
        %4468 = vmatprep.subr.mxu0 0.0
        %4469 = vmatpush2.msra.mxu0 0.0
        %4470 = vmatprep.subr.mxu0 0.0
        %4471 = vmatpush2.msra.mxu0 0.0
        %4472 = vmatprep.subr.mxu0 0.0
        %4473 = vmatpush2.msra.mxu0 0.0
        %4474 = vmatprep.subr.mxu0 0.0
        %4475 = vmatpush2.msra.mxu0 0.0
        %4476 = vmatprep.subr.mxu0 0.0
        %4477 = vmatpush2.msra.mxu0 0.0
        %4478 = vmatprep.subr.mxu0 0.0
        %4479 = vmatpush2.msra.mxu0 0.0
        %4480 = vmatprep.subr.mxu0 0.0
        %4481 = vmatpush2.msra.mxu0 0.0
        %4482 = vmatprep.subr.mxu0 0.0
        %4483 = vmatpush2.msra.mxu0 0.0
        %4484 = vmatprep.subr.mxu0 0.0
        %4485 = vmatpush2.msra.mxu0 0.0
        %4486 = vmatprep.subr.mxu0 0.0
        %4487 = vmatpush2.msra.mxu0 0.0
        %4488 = vmatprep.subr.mxu0 0.0
        %4489 = vmatpush2.msra.mxu0 0.0
        %4490 = vmatprep.subr.mxu0 0.0
        %4491 = vmatpush2.msra.mxu0 0.0
        %4492 = vmatprep.subr.mxu0 0.0
        %4493 = vmatpush2.msra.mxu0 0.0
        %4494 = vmatprep.subr.mxu0 0.0
        %4495 = vmatpush2.msra.mxu0 0.0
        %4496 = vmatprep.mubr.f32.mxu0 0.0
        %4497 = vmatmul.mubr.f32.gmra.mxu0 %v3809
        %v4498 = vpop.f32.mrf.mxu0
        %v4499 = vadd.f32 0.0, %v4498
        %v4500 = vpop.f32.mrf.mxu0
        %v4501 = vadd.f32 0.0, %v4500
        %4502 = vmatprep.mubr.f32.mxu0 0.0
        %4503 = vmatmul.mubr.f32.gmra.mxu0 %v3812
        %v4504 = vpop.f32.mrf.mxu0
        %v4505 = vadd.f32 0.0, %v4504
        %v4506 = vpop.f32.mrf.mxu0
        %v4507 = vadd.f32 0.0, %v4506
        %4508 = vmatprep.mubr.f32.mxu0 0.0
        %4509 = vmatmul.mubr.f32.gmra.mxu0 %v3815
        %v4510 = vpop.f32.mrf.mxu0
        %v4511 = vadd.f32 0.0, %v4510
        %v4512 = vpop.f32.mrf.mxu0
        %v4513 = vadd.f32 0.0, %v4512
        %4514 = vmatprep.mubr.f32.mxu0 0.0
        %4515 = vmatmul.mubr.f32.gmra.mxu0 %v3818
        %v4516 = vpop.f32.mrf.mxu0
        %v4517 = vadd.f32 0.0, %v4516
        %v4518 = vpop.f32.mrf.mxu0
        %v4519 = vadd.f32 0.0, %v4518
        %4520 = vmatprep.mubr.f32.mxu0 0.0
        %4521 = vmatmul.mubr.f32.gmra.mxu0 %v3821
        %v4522 = vpop.f32.mrf.mxu0
        %v4523 = vadd.f32 0.0, %v4522
        %v4524 = vpop.f32.mrf.mxu0
        %v4525 = vadd.f32 0.0, %v4524
        %4526 = vmatprep.mubr.f32.mxu0 0.0
        %4527 = vmatmul.mubr.f32.gmra.mxu0 %v3824
        %v4528 = vpop.f32.mrf.mxu0
        %v4529 = vadd.f32 0.0, %v4528
        %v4530 = vpop.f32.mrf.mxu0
        %v4531 = vadd.f32 0.0, %v4530
        %4532 = vdwg.mxu0
        %4533 = vmatprep.subr.mxu0 0.0
        %4534 = vmatpush1.msra.mxu0 0.0
        %4535 = vmatprep.subr.mxu0 0.0
        %4536 = vmatpush1.msra.mxu0 0.0
        %4537 = vmatprep.subr.mxu0 0.0
        %4538 = vmatpush1.msra.mxu0 0.0
        %4539 = vmatprep.subr.mxu0 0.0
        %4540 = vmatpush1.msra.mxu0 0.0
        %4541 = vmatprep.subr.mxu0 0.0
        %4542 = vmatpush1.msra.mxu0 0.0
        %4543 = vmatprep.subr.mxu0 0.0
        %4544 = vmatpush1.msra.mxu0 0.0
        %4545 = vmatprep.subr.mxu0 0.0
        %4546 = vmatpush1.msra.mxu0 0.0
        %4547 = vmatprep.subr.mxu0 0.0
        %4548 = vmatpush1.msra.mxu0 0.0
        %4549 = vmatprep.subr.mxu0 0.0
        %4550 = vmatpush1.msra.mxu0 0.0
        %4551 = vmatprep.subr.mxu0 0.0
        %4552 = vmatpush1.msra.mxu0 0.0
        %4553 = vmatprep.subr.mxu0 0.0
        %4554 = vmatpush1.msra.mxu0 0.0
        %4555 = vmatprep.subr.mxu0 0.0
        %4556 = vmatpush1.msra.mxu0 0.0
        %4557 = vmatprep.subr.mxu0 0.0
        %4558 = vmatpush1.msra.mxu0 0.0
        %4559 = vmatprep.subr.mxu0 0.0
        %4560 = vmatpush1.msra.mxu0 0.0
        %4561 = vmatprep.subr.mxu0 %v3800
        %4562 = vmatpush1.msra.mxu0 %v3799
        %4563 = vmatprep.subr.mxu0 %v3784
        %4564 = vmatpush1.msra.mxu0 %v3783
        %4565 = vmatprep.subr.mxu0 0.0
        %4566 = vmatpush2.msra.mxu0 0.0
        %4567 = vmatprep.subr.mxu0 0.0
        %4568 = vmatpush2.msra.mxu0 0.0
        %4569 = vmatprep.subr.mxu0 0.0
        %4570 = vmatpush2.msra.mxu0 0.0
        %4571 = vmatprep.subr.mxu0 0.0
        %4572 = vmatpush2.msra.mxu0 0.0
        %4573 = vmatprep.subr.mxu0 0.0
        %4574 = vmatpush2.msra.mxu0 0.0
        %4575 = vmatprep.subr.mxu0 0.0
        %4576 = vmatpush2.msra.mxu0 0.0
        %4577 = vmatprep.subr.mxu0 0.0
        %4578 = vmatpush2.msra.mxu0 0.0
        %4579 = vmatprep.subr.mxu0 0.0
        %4580 = vmatpush2.msra.mxu0 0.0
        %4581 = vmatprep.subr.mxu0 0.0
        %4582 = vmatpush2.msra.mxu0 0.0
        %4583 = vmatprep.subr.mxu0 0.0
        %4584 = vmatpush2.msra.mxu0 0.0
        %4585 = vmatprep.subr.mxu0 0.0
        %4586 = vmatpush2.msra.mxu0 0.0
        %4587 = vmatprep.subr.mxu0 0.0
        %4588 = vmatpush2.msra.mxu0 0.0
        %4589 = vmatprep.subr.mxu0 0.0
        %4590 = vmatpush2.msra.mxu0 0.0
        %4591 = vmatprep.subr.mxu0 0.0
        %4592 = vmatpush2.msra.mxu0 0.0
        %4593 = vmatprep.subr.mxu0 0.0
        %4594 = vmatpush2.msra.mxu0 0.0
        %4595 = vmatprep.subr.mxu0 0.0
        %4596 = vmatpush2.msra.mxu0 0.0
        %4597 = vmatprep.mubr.f32.mxu0 0.0
        %4598 = vmatmul.mubr.f32.gmra.mxu0 %v3809
        %v4599 = vpop.f32.mrf.mxu0
        %v4600 = vadd.f32 0.0, %v4599
        %v4601 = vpop.f32.mrf.mxu0
        %v4602 = vadd.f32 0.0, %v4601
        %4603 = vmatprep.mubr.f32.mxu0 0.0
        %4604 = vmatmul.mubr.f32.gmra.mxu0 %v3812
        %v4605 = vpop.f32.mrf.mxu0
        %v4606 = vadd.f32 0.0, %v4605
        %v4607 = vpop.f32.mrf.mxu0
        %v4608 = vadd.f32 0.0, %v4607
        %4609 = vmatprep.mubr.f32.mxu0 0.0
        %4610 = vmatmul.mubr.f32.gmra.mxu0 %v3815
        %v4611 = vpop.f32.mrf.mxu0
        %v4612 = vadd.f32 0.0, %v4611
        %v4613 = vpop.f32.mrf.mxu0
        %v4614 = vadd.f32 0.0, %v4613
        %4615 = vmatprep.mubr.f32.mxu0 0.0
        %4616 = vmatmul.mubr.f32.gmra.mxu0 %v3818
        %v4617 = vpop.f32.mrf.mxu0
        %v4618 = vadd.f32 0.0, %v4617
        %v4619 = vpop.f32.mrf.mxu0
        %v4620 = vadd.f32 0.0, %v4619
        %4621 = vmatprep.mubr.f32.mxu0 0.0
        %4622 = vmatmul.mubr.f32.gmra.mxu0 %v3821
        %v4623 = vpop.f32.mrf.mxu0
        %v4624 = vadd.f32 0.0, %v4623
        %v4625 = vpop.f32.mrf.mxu0
        %v4626 = vadd.f32 0.0, %v4625
        %4627 = vmatprep.mubr.f32.mxu0 0.0
        %4628 = vmatmul.mubr.f32.gmra.mxu0 %v3824
        %v4629 = vpop.f32.mrf.mxu0
        %v4630 = vadd.f32 0.0, %v4629
        %v4631 = vpop.f32.mrf.mxu0
        %v4632 = vadd.f32 0.0, %v4631
        %4633 = vdwg.mxu0
        %v4634 = vxor.u32 %v3893, 2147483648
        %v4635 = vxor.u32 %v3895, 2147483648
        %v4636 = vxor.u32 %v3994, 2147483648
        %v4637 = vxor.u32 %v3996, 2147483648
        %v4638 = vxor.u32 %v4095, 2147483648
        %v4639 = vxor.u32 %v4097, 2147483648
        %v4640 = vxor.u32 %v4196, 2147483648
        %v4641 = vxor.u32 %v4198, 2147483648
        %v4642 = vxor.u32 %v4297, 2147483648
        %v4643 = vxor.u32 %v4299, 2147483648
        %v4644 = vxor.u32 %v4398, 2147483648
        %v4645 = vxor.u32 %v4400, 2147483648
        %v4646 = vxor.u32 %v4499, 2147483648
        %v4647 = vxor.u32 %v4501, 2147483648
        %v4648 = vxor.u32 %v4600, 2147483648
        %v4649 = vxor.u32 %v4602, 2147483648
        %v4650 = vxor.u32 %v3899, 2147483648
        %v4651 = vxor.u32 %v3901, 2147483648
        %v4652 = vxor.u32 %v4000, 2147483648
        %v4653 = vxor.u32 %v4002, 2147483648
        %v4654 = vxor.u32 %v4101, 2147483648
        %v4655 = vxor.u32 %v4103, 2147483648
        %v4656 = vxor.u32 %v4202, 2147483648
        %v4657 = vxor.u32 %v4204, 2147483648
        %v4658 = vxor.u32 %v4303, 2147483648
        %v4659 = vxor.u32 %v4305, 2147483648
        %v4660 = vxor.u32 %v4404, 2147483648
        %v4661 = vxor.u32 %v4406, 2147483648
        %v4662 = vxor.u32 %v4505, 2147483648
        %v4663 = vxor.u32 %v4507, 2147483648
        %v4664 = vxor.u32 %v4606, 2147483648
        %v4665 = vxor.u32 %v4608, 2147483648
        %v4666 = vxor.u32 %v3905, 2147483648
        %v4667 = vxor.u32 %v3907, 2147483648
        %v4668 = vxor.u32 %v4006, 2147483648
        %v4669 = vxor.u32 %v4008, 2147483648
        %v4670 = vxor.u32 %v4107, 2147483648
        %v4671 = vxor.u32 %v4109, 2147483648
        %v4672 = vxor.u32 %v4208, 2147483648
        %v4673 = vxor.u32 %v4210, 2147483648
        %v4674 = vxor.u32 %v4309, 2147483648
        %v4675 = vxor.u32 %v4311, 2147483648
        %v4676 = vxor.u32 %v4410, 2147483648
        %v4677 = vxor.u32 %v4412, 2147483648
        %v4678 = vxor.u32 %v4511, 2147483648
        %v4679 = vxor.u32 %v4513, 2147483648
        %v4680 = vxor.u32 %v4612, 2147483648
        %v4681 = vxor.u32 %v4614, 2147483648
        %v4682 = vxor.u32 %v3911, 2147483648
        %v4683 = vxor.u32 %v3913, 2147483648
        %v4684 = vxor.u32 %v4012, 2147483648
        %v4685 = vxor.u32 %v4014, 2147483648
        %v4686 = vxor.u32 %v4113, 2147483648
        %v4687 = vxor.u32 %v4115, 2147483648
        %v4688 = vxor.u32 %v4214, 2147483648
        %v4689 = vxor.u32 %v4216, 2147483648
        %v4690 = vxor.u32 %v4315, 2147483648
        %v4691 = vxor.u32 %v4317, 2147483648
        %v4692 = vxor.u32 %v4416, 2147483648
        %v4693 = vxor.u32 %v4418, 2147483648
        %v4694 = vxor.u32 %v4517, 2147483648
        %v4695 = vxor.u32 %v4519, 2147483648
        %v4696 = vxor.u32 %v4618, 2147483648
        %v4697 = vxor.u32 %v4620, 2147483648
        %v4698 = vxor.u32 %v3917, 2147483648
        %v4699 = vxor.u32 %v3919, 2147483648
        %v4700 = vxor.u32 %v4018, 2147483648
        %v4701 = vxor.u32 %v4020, 2147483648
        %v4702 = vxor.u32 %v4119, 2147483648
        %v4703 = vxor.u32 %v4121, 2147483648
        %v4704 = vxor.u32 %v4220, 2147483648
        %v4705 = vxor.u32 %v4222, 2147483648
        %v4706 = vxor.u32 %v4321, 2147483648
        %v4707 = vxor.u32 %v4323, 2147483648
        %v4708 = vxor.u32 %v4422, 2147483648
        %v4709 = vxor.u32 %v4424, 2147483648
        %v4710 = vxor.u32 %v4523, 2147483648
        %v4711 = vxor.u32 %v4525, 2147483648
        %v4712 = vxor.u32 %v4624, 2147483648
        %v4713 = vxor.u32 %v4626, 2147483648
        %v4714 = vxor.u32 %v3923, 2147483648
        %v4715 = vxor.u32 %v3925, 2147483648
        %v4716 = vxor.u32 %v4024, 2147483648
        %v4717 = vxor.u32 %v4026, 2147483648
        %v4718 = vxor.u32 %v4125, 2147483648
        %v4719 = vxor.u32 %v4127, 2147483648
        %v4720 = vxor.u32 %v4226, 2147483648
        %v4721 = vxor.u32 %v4228, 2147483648
        %v4722 = vxor.u32 %v4327, 2147483648
        %v4723 = vxor.u32 %v4329, 2147483648
        %v4724 = vxor.u32 %v4428, 2147483648
        %v4725 = vxor.u32 %v4430, 2147483648
        %v4726 = vxor.u32 %v4529, 2147483648
        %v4727 = vxor.u32 %v4531, 2147483648
        %v4728 = vxor.u32 %v4630, 2147483648
        %v4729 = vxor.u32 %v4632, 2147483648
        %v4730 = vmul.f32 %v4634, 1.442695
        %v4731 = vpow.pop %v4730
        %v4732 = vmul.f32 %v4635, 1.442695
        %v4733 = vpow.pop %v4732
        %v4734 = vmul.f32 %v4636, 1.442695
        %v4735 = vpow.pop %v4734
        %v4736 = vmul.f32 %v4637, 1.442695
        %v4737 = vpow.pop %v4736
        %v4738 = vmul.f32 %v4638, 1.442695
        %v4739 = vpow.pop %v4738
        %v4740 = vmul.f32 %v4639, 1.442695
        %v4741 = vpow.pop %v4740
        %v4742 = vmul.f32 %v4640, 1.442695
        %v4743 = vpow.pop %v4742
        %v4744 = vmul.f32 %v4641, 1.442695
        %v4745 = vpow.pop %v4744
        %v4746 = vmul.f32 %v4642, 1.442695
        %v4747 = vpow.pop %v4746
        %v4748 = vmul.f32 %v4643, 1.442695
        %v4749 = vpow.pop %v4748
        %v4750 = vmul.f32 %v4644, 1.442695
        %v4751 = vpow.pop %v4750
        %v4752 = vmul.f32 %v4645, 1.442695
        %v4753 = vpow.pop %v4752
        %v4754 = vmul.f32 %v4646, 1.442695
        %v4755 = vpow.pop %v4754
        %v4756 = vmul.f32 %v4647, 1.442695
        %v4757 = vpow.pop %v4756
        %v4758 = vmul.f32 %v4648, 1.442695
        %v4759 = vpow.pop %v4758
        %v4760 = vmul.f32 %v4649, 1.442695
        %v4761 = vpow.pop %v4760
        %v4762 = vmul.f32 %v4650, 1.442695
        %v4763 = vpow.pop %v4762
        %v4764 = vmul.f32 %v4651, 1.442695
        %v4765 = vpow.pop %v4764
        %v4766 = vmul.f32 %v4652, 1.442695
        %v4767 = vpow.pop %v4766
        %v4768 = vmul.f32 %v4653, 1.442695
        %v4769 = vpow.pop %v4768
        %v4770 = vmul.f32 %v4654, 1.442695
        %v4771 = vpow.pop %v4770
        %v4772 = vmul.f32 %v4655, 1.442695
        %v4773 = vpow.pop %v4772
        %v4774 = vmul.f32 %v4656, 1.442695
        %v4775 = vpow.pop %v4774
        %v4776 = vmul.f32 %v4657, 1.442695
        %v4777 = vpow.pop %v4776
        %v4778 = vmul.f32 %v4658, 1.442695
        %v4779 = vpow.pop %v4778
        %v4780 = vmul.f32 %v4659, 1.442695
        %v4781 = vpow.pop %v4780
        %v4782 = vmul.f32 %v4660, 1.442695
        %v4783 = vpow.pop %v4782
        %v4784 = vmul.f32 %v4661, 1.442695
        %v4785 = vpow.pop %v4784
        %v4786 = vmul.f32 %v4662, 1.442695
        %v4787 = vpow.pop %v4786
        %v4788 = vmul.f32 %v4663, 1.442695
        %v4789 = vpow.pop %v4788
        %v4790 = vmul.f32 %v4664, 1.442695
        %v4791 = vpow.pop %v4790
        %v4792 = vmul.f32 %v4665, 1.442695
        %v4793 = vpow.pop %v4792
        %v4794 = vmul.f32 %v4666, 1.442695
        %v4795 = vpow.pop %v4794
        %v4796 = vmul.f32 %v4667, 1.442695
        %v4797 = vpow.pop %v4796
        %v4798 = vmul.f32 %v4668, 1.442695
        %v4799 = vpow.pop %v4798
        %v4800 = vmul.f32 %v4669, 1.442695
        %v4801 = vpow.pop %v4800
        %v4802 = vmul.f32 %v4670, 1.442695
        %v4803 = vpow.pop %v4802
        %v4804 = vmul.f32 %v4671, 1.442695
        %v4805 = vpow.pop %v4804
        %v4806 = vmul.f32 %v4672, 1.442695
        %v4807 = vpow.pop %v4806
        %v4808 = vmul.f32 %v4673, 1.442695
        %v4809 = vpow.pop %v4808
        %v4810 = vmul.f32 %v4674, 1.442695
        %v4811 = vpow.pop %v4810
        %v4812 = vmul.f32 %v4675, 1.442695
        %v4813 = vpow.pop %v4812
        %v4814 = vmul.f32 %v4676, 1.442695
        %v4815 = vpow.pop %v4814
        %v4816 = vmul.f32 %v4677, 1.442695
        %v4817 = vpow.pop %v4816
        %v4818 = vmul.f32 %v4678, 1.442695
        %v4819 = vpow.pop %v4818
        %v4820 = vmul.f32 %v4679, 1.442695
        %v4821 = vpow.pop %v4820
        %v4822 = vmul.f32 %v4680, 1.442695
        %v4823 = vpow.pop %v4822
        %v4824 = vmul.f32 %v4681, 1.442695
        %v4825 = vpow.pop %v4824
        %v4826 = vmul.f32 %v4682, 1.442695
        %v4827 = vpow.pop %v4826
        %v4828 = vmul.f32 %v4683, 1.442695
        %v4829 = vpow.pop %v4828
        %v4830 = vmul.f32 %v4684, 1.442695
        %v4831 = vpow.pop %v4830
        %v4832 = vmul.f32 %v4685, 1.442695
        %v4833 = vpow.pop %v4832
        %v4834 = vmul.f32 %v4686, 1.442695
        %v4835 = vpow.pop %v4834
        %v4836 = vmul.f32 %v4687, 1.442695
        %v4837 = vpow.pop %v4836
        %v4838 = vmul.f32 %v4688, 1.442695
        %v4839 = vpow.pop %v4838
        %v4840 = vmul.f32 %v4689, 1.442695
        %v4841 = vpow.pop %v4840
        %v4842 = vmul.f32 %v4690, 1.442695
        %v4843 = vpow.pop %v4842
        %v4844 = vmul.f32 %v4691, 1.442695
        %v4845 = vpow.pop %v4844
        %v4846 = vmul.f32 %v4692, 1.442695
        %v4847 = vpow.pop %v4846
        %v4848 = vmul.f32 %v4693, 1.442695
        %v4849 = vpow.pop %v4848
        %v4850 = vmul.f32 %v4694, 1.442695
        %v4851 = vpow.pop %v4850
        %v4852 = vmul.f32 %v4695, 1.442695
        %v4853 = vpow.pop %v4852
        %v4854 = vmul.f32 %v4696, 1.442695
        %v4855 = vpow.pop %v4854
        %v4856 = vmul.f32 %v4697, 1.442695
        %v4857 = vpow.pop %v4856
        %v4858 = vmul.f32 %v4698, 1.442695
        %v4859 = vpow.pop %v4858
        %v4860 = vmul.f32 %v4699, 1.442695
        %v4861 = vpow.pop %v4860
        %v4862 = vmul.f32 %v4700, 1.442695
        %v4863 = vpow.pop %v4862
        %v4864 = vmul.f32 %v4701, 1.442695
        %v4865 = vpow.pop %v4864
        %v4866 = vmul.f32 %v4702, 1.442695
        %v4867 = vpow.pop %v4866
        %v4868 = vmul.f32 %v4703, 1.442695
        %v4869 = vpow.pop %v4868
        %v4870 = vmul.f32 %v4704, 1.442695
        %v4871 = vpow.pop %v4870
        %v4872 = vmul.f32 %v4705, 1.442695
        %v4873 = vpow.pop %v4872
        %v4874 = vmul.f32 %v4706, 1.442695
        %v4875 = vpow.pop %v4874
        %v4876 = vmul.f32 %v4707, 1.442695
        %v4877 = vpow.pop %v4876
        %v4878 = vmul.f32 %v4708, 1.442695
        %v4879 = vpow.pop %v4878
        %v4880 = vmul.f32 %v4709, 1.442695
        %v4881 = vpow.pop %v4880
        %v4882 = vmul.f32 %v4710, 1.442695
        %v4883 = vpow.pop %v4882
        %v4884 = vmul.f32 %v4711, 1.442695
        %v4885 = vpow.pop %v4884
        %v4886 = vmul.f32 %v4712, 1.442695
        %v4887 = vpow.pop %v4886
        %v4888 = vmul.f32 %v4713, 1.442695
        %v4889 = vpow.pop %v4888
        %v4890 = vmul.f32 %v4714, 1.442695
        %v4891 = vpow.pop %v4890
        %v4892 = vmul.f32 %v4715, 1.442695
        %v4893 = vpow.pop %v4892
        %v4894 = vmul.f32 %v4716, 1.442695
        %v4895 = vpow.pop %v4894
        %v4896 = vmul.f32 %v4717, 1.442695
        %v4897 = vpow.pop %v4896
        %v4898 = vmul.f32 %v4718, 1.442695
        %v4899 = vpow.pop %v4898
        %v4900 = vmul.f32 %v4719, 1.442695
        %v4901 = vpow.pop %v4900
        %v4902 = vmul.f32 %v4720, 1.442695
        %v4903 = vpow.pop %v4902
        %v4904 = vmul.f32 %v4721, 1.442695
        %v4905 = vpow.pop %v4904
        %v4906 = vmul.f32 %v4722, 1.442695
        %v4907 = vpow.pop %v4906
        %v4908 = vmul.f32 %v4723, 1.442695
        %v4909 = vpow.pop %v4908
        %v4910 = vmul.f32 %v4724, 1.442695
        %v4911 = vpow.pop %v4910
        %v4912 = vmul.f32 %v4725, 1.442695
        %v4913 = vpow.pop %v4912
        %v4914 = vmul.f32 %v4726, 1.442695
        %v4915 = vpow.pop %v4914
        %v4916 = vmul.f32 %v4727, 1.442695
        %v4917 = vpow.pop %v4916
        %v4918 = vmul.f32 %v4728, 1.442695
        %v4919 = vpow.pop %v4918
        %v4920 = vmul.f32 %v4729, 1.442695
        %v4921 = vpow.pop %v4920
        %v4922 = vadd.f32 %v4731, 1.0
        %v4923 = vadd.f32 %v4733, 1.0
        %v4924 = vadd.f32 %v4735, 1.0
        %v4925 = vadd.f32 %v4737, 1.0
        %v4926 = vadd.f32 %v4739, 1.0
        %v4927 = vadd.f32 %v4741, 1.0
        %v4928 = vadd.f32 %v4743, 1.0
        %v4929 = vadd.f32 %v4745, 1.0
        %v4930 = vadd.f32 %v4747, 1.0
        %v4931 = vadd.f32 %v4749, 1.0
        %v4932 = vadd.f32 %v4751, 1.0
        %v4933 = vadd.f32 %v4753, 1.0
        %v4934 = vadd.f32 %v4755, 1.0
        %v4935 = vadd.f32 %v4757, 1.0
        %v4936 = vadd.f32 %v4759, 1.0
        %v4937 = vadd.f32 %v4761, 1.0
        %v4938 = vadd.f32 %v4763, 1.0
        %v4939 = vadd.f32 %v4765, 1.0
        %v4940 = vadd.f32 %v4767, 1.0
        %v4941 = vadd.f32 %v4769, 1.0
        %v4942 = vadd.f32 %v4771, 1.0
        %v4943 = vadd.f32 %v4773, 1.0
        %v4944 = vadd.f32 %v4775, 1.0
        %v4945 = vadd.f32 %v4777, 1.0
        %v4946 = vadd.f32 %v4779, 1.0
        %v4947 = vadd.f32 %v4781, 1.0
        %v4948 = vadd.f32 %v4783, 1.0
        %v4949 = vadd.f32 %v4785, 1.0
        %v4950 = vadd.f32 %v4787, 1.0
        %v4951 = vadd.f32 %v4789, 1.0
        %v4952 = vadd.f32 %v4791, 1.0
        %v4953 = vadd.f32 %v4793, 1.0
        %v4954 = vadd.f32 %v4795, 1.0
        %v4955 = vadd.f32 %v4797, 1.0
        %v4956 = vadd.f32 %v4799, 1.0
        %v4957 = vadd.f32 %v4801, 1.0
        %v4958 = vadd.f32 %v4803, 1.0
        %v4959 = vadd.f32 %v4805, 1.0
        %v4960 = vadd.f32 %v4807, 1.0
        %v4961 = vadd.f32 %v4809, 1.0
        %v4962 = vadd.f32 %v4811, 1.0
        %v4963 = vadd.f32 %v4813, 1.0
        %v4964 = vadd.f32 %v4815, 1.0
        %v4965 = vadd.f32 %v4817, 1.0
        %v4966 = vadd.f32 %v4819, 1.0
        %v4967 = vadd.f32 %v4821, 1.0
        %v4968 = vadd.f32 %v4823, 1.0
        %v4969 = vadd.f32 %v4825, 1.0
        %v4970 = vadd.f32 %v4827, 1.0
        %v4971 = vadd.f32 %v4829, 1.0
        %v4972 = vadd.f32 %v4831, 1.0
        %v4973 = vadd.f32 %v4833, 1.0
        %v4974 = vadd.f32 %v4835, 1.0
        %v4975 = vadd.f32 %v4837, 1.0
        %v4976 = vadd.f32 %v4839, 1.0
        %v4977 = vadd.f32 %v4841, 1.0
        %v4978 = vadd.f32 %v4843, 1.0
        %v4979 = vadd.f32 %v4845, 1.0
        %v4980 = vadd.f32 %v4847, 1.0
        %v4981 = vadd.f32 %v4849, 1.0
        %v4982 = vadd.f32 %v4851, 1.0
        %v4983 = vadd.f32 %v4853, 1.0
        %v4984 = vadd.f32 %v4855, 1.0
        %v4985 = vadd.f32 %v4857, 1.0
        %v4986 = vadd.f32 %v4859, 1.0
        %v4987 = vadd.f32 %v4861, 1.0
        %v4988 = vadd.f32 %v4863, 1.0
        %v4989 = vadd.f32 %v4865, 1.0
        %v4990 = vadd.f32 %v4867, 1.0
        %v4991 = vadd.f32 %v4869, 1.0
        %v4992 = vadd.f32 %v4871, 1.0
        %v4993 = vadd.f32 %v4873, 1.0
        %v4994 = vadd.f32 %v4875, 1.0
        %v4995 = vadd.f32 %v4877, 1.0
        %v4996 = vadd.f32 %v4879, 1.0
        %v4997 = vadd.f32 %v4881, 1.0
        %v4998 = vadd.f32 %v4883, 1.0
        %v4999 = vadd.f32 %v4885, 1.0
        %v5000 = vadd.f32 %v4887, 1.0
        %v5001 = vadd.f32 %v4889, 1.0
        %v5002 = vadd.f32 %v4891, 1.0
        %v5003 = vadd.f32 %v4893, 1.0
        %v5004 = vadd.f32 %v4895, 1.0
        %v5005 = vadd.f32 %v4897, 1.0
        %v5006 = vadd.f32 %v4899, 1.0
        %v5007 = vadd.f32 %v4901, 1.0
        %v5008 = vadd.f32 %v4903, 1.0
        %v5009 = vadd.f32 %v4905, 1.0
        %v5010 = vadd.f32 %v4907, 1.0
        %v5011 = vadd.f32 %v4909, 1.0
        %v5012 = vadd.f32 %v4911, 1.0
        %v5013 = vadd.f32 %v4913, 1.0
        %v5014 = vadd.f32 %v4915, 1.0
        %v5015 = vadd.f32 %v4917, 1.0
        %v5016 = vadd.f32 %v4919, 1.0
        %v5017 = vadd.f32 %v4921, 1.0
        %v5018 = vrcp.pop %v4922
        %v5019 = vmul.f32 1.0, %v5018
        %v5020 = vrcp.pop %v4923
        %v5021 = vmul.f32 1.0, %v5020
        %v5022 = vrcp.pop %v4924
        %v5023 = vmul.f32 1.0, %v5022
        %v5024 = vrcp.pop %v4925
        %v5025 = vmul.f32 1.0, %v5024
        %v5026 = vrcp.pop %v4926
        %v5027 = vmul.f32 1.0, %v5026
        %v5028 = vrcp.pop %v4927
        %v5029 = vmul.f32 1.0, %v5028
        %v5030 = vrcp.pop %v4928
        %v5031 = vmul.f32 1.0, %v5030
        %v5032 = vrcp.pop %v4929
        %v5033 = vmul.f32 1.0, %v5032
        %v5034 = vrcp.pop %v4930
        %v5035 = vmul.f32 1.0, %v5034
        %v5036 = vrcp.pop %v4931
        %v5037 = vmul.f32 1.0, %v5036
        %v5038 = vrcp.pop %v4932
        %v5039 = vmul.f32 1.0, %v5038
        %v5040 = vrcp.pop %v4933
        %v5041 = vmul.f32 1.0, %v5040
        %v5042 = vrcp.pop %v4934
        %v5043 = vmul.f32 1.0, %v5042
        %v5044 = vrcp.pop %v4935
        %v5045 = vmul.f32 1.0, %v5044
        %v5046 = vrcp.pop %v4936
        %v5047 = vmul.f32 1.0, %v5046
        %v5048 = vrcp.pop %v4937
        %v5049 = vmul.f32 1.0, %v5048
        %v5050 = vrcp.pop %v4938
        %v5051 = vmul.f32 1.0, %v5050
        %v5052 = vrcp.pop %v4939
        %v5053 = vmul.f32 1.0, %v5052
        %v5054 = vrcp.pop %v4940
        %v5055 = vmul.f32 1.0, %v5054
        %v5056 = vrcp.pop %v4941
        %v5057 = vmul.f32 1.0, %v5056
        %v5058 = vrcp.pop %v4942
        %v5059 = vmul.f32 1.0, %v5058
        %v5060 = vrcp.pop %v4943
        %v5061 = vmul.f32 1.0, %v5060
        %v5062 = vrcp.pop %v4944
        %v5063 = vmul.f32 1.0, %v5062
        %v5064 = vrcp.pop %v4945
        %v5065 = vmul.f32 1.0, %v5064
        %v5066 = vrcp.pop %v4946
        %v5067 = vmul.f32 1.0, %v5066
        %v5068 = vrcp.pop %v4947
        %v5069 = vmul.f32 1.0, %v5068
        %v5070 = vrcp.pop %v4948
        %v5071 = vmul.f32 1.0, %v5070
        %v5072 = vrcp.pop %v4949
        %v5073 = vmul.f32 1.0, %v5072
        %v5074 = vrcp.pop %v4950
        %v5075 = vmul.f32 1.0, %v5074
        %v5076 = vrcp.pop %v4951
        %v5077 = vmul.f32 1.0, %v5076
        %v5078 = vrcp.pop %v4952
        %v5079 = vmul.f32 1.0, %v5078
        %v5080 = vrcp.pop %v4953
        %v5081 = vmul.f32 1.0, %v5080
        %v5082 = vrcp.pop %v4954
        %v5083 = vmul.f32 1.0, %v5082
        %v5084 = vrcp.pop %v4955
        %v5085 = vmul.f32 1.0, %v5084
        %v5086 = vrcp.pop %v4956
        %v5087 = vmul.f32 1.0, %v5086
        %v5088 = vrcp.pop %v4957
        %v5089 = vmul.f32 1.0, %v5088
        %v5090 = vrcp.pop %v4958
        %v5091 = vmul.f32 1.0, %v5090
        %v5092 = vrcp.pop %v4959
        %v5093 = vmul.f32 1.0, %v5092
        %v5094 = vrcp.pop %v4960
        %v5095 = vmul.f32 1.0, %v5094
        %v5096 = vrcp.pop %v4961
        %v5097 = vmul.f32 1.0, %v5096
        %v5098 = vrcp.pop %v4962
        %v5099 = vmul.f32 1.0, %v5098
        %v5100 = vrcp.pop %v4963
        %v5101 = vmul.f32 1.0, %v5100
        %v5102 = vrcp.pop %v4964
        %v5103 = vmul.f32 1.0, %v5102
        %v5104 = vrcp.pop %v4965
        %v5105 = vmul.f32 1.0, %v5104
        %v5106 = vrcp.pop %v4966
        %v5107 = vmul.f32 1.0, %v5106
        %v5108 = vrcp.pop %v4967
        %v5109 = vmul.f32 1.0, %v5108
        %v5110 = vrcp.pop %v4968
        %v5111 = vmul.f32 1.0, %v5110
        %v5112 = vrcp.pop %v4969
        %v5113 = vmul.f32 1.0, %v5112
        %v5114 = vrcp.pop %v4970
        %v5115 = vmul.f32 1.0, %v5114
        %v5116 = vrcp.pop %v4971
        %v5117 = vmul.f32 1.0, %v5116
        %v5118 = vrcp.pop %v4972
        %v5119 = vmul.f32 1.0, %v5118
        %v5120 = vrcp.pop %v4973
        %v5121 = vmul.f32 1.0, %v5120
        %v5122 = vrcp.pop %v4974
        %v5123 = vmul.f32 1.0, %v5122
        %v5124 = vrcp.pop %v4975
        %v5125 = vmul.f32 1.0, %v5124
        %v5126 = vrcp.pop %v4976
        %v5127 = vmul.f32 1.0, %v5126
        %v5128 = vrcp.pop %v4977
        %v5129 = vmul.f32 1.0, %v5128
        %v5130 = vrcp.pop %v4978
        %v5131 = vmul.f32 1.0, %v5130
        %v5132 = vrcp.pop %v4979
        %v5133 = vmul.f32 1.0, %v5132
        %v5134 = vrcp.pop %v4980
        %v5135 = vmul.f32 1.0, %v5134
        %v5136 = vrcp.pop %v4981
        %v5137 = vmul.f32 1.0, %v5136
        %v5138 = vrcp.pop %v4982
        %v5139 = vmul.f32 1.0, %v5138
        %v5140 = vrcp.pop %v4983
        %v5141 = vmul.f32 1.0, %v5140
        %v5142 = vrcp.pop %v4984
        %v5143 = vmul.f32 1.0, %v5142
        %v5144 = vrcp.pop %v4985
        %v5145 = vmul.f32 1.0, %v5144
        %v5146 = vrcp.pop %v4986
        %v5147 = vmul.f32 1.0, %v5146
        %v5148 = vrcp.pop %v4987
        %v5149 = vmul.f32 1.0, %v5148
        %v5150 = vrcp.pop %v4988
        %v5151 = vmul.f32 1.0, %v5150
        %v5152 = vrcp.pop %v4989
        %v5153 = vmul.f32 1.0, %v5152
        %v5154 = vrcp.pop %v4990
        %v5155 = vmul.f32 1.0, %v5154
        %v5156 = vrcp.pop %v4991
        %v5157 = vmul.f32 1.0, %v5156
        %v5158 = vrcp.pop %v4992
        %v5159 = vmul.f32 1.0, %v5158
        %v5160 = vrcp.pop %v4993
        %v5161 = vmul.f32 1.0, %v5160
        %v5162 = vrcp.pop %v4994
        %v5163 = vmul.f32 1.0, %v5162
        %v5164 = vrcp.pop %v4995
        %v5165 = vmul.f32 1.0, %v5164
        %v5166 = vrcp.pop %v4996
        %v5167 = vmul.f32 1.0, %v5166
        %v5168 = vrcp.pop %v4997
        %v5169 = vmul.f32 1.0, %v5168
        %v5170 = vrcp.pop %v4998
        %v5171 = vmul.f32 1.0, %v5170
        %v5172 = vrcp.pop %v4999
        %v5173 = vmul.f32 1.0, %v5172
        %v5174 = vrcp.pop %v5000
        %v5175 = vmul.f32 1.0, %v5174
        %v5176 = vrcp.pop %v5001
        %v5177 = vmul.f32 1.0, %v5176
        %v5178 = vrcp.pop %v5002
        %v5179 = vmul.f32 1.0, %v5178
        %v5180 = vrcp.pop %v5003
        %v5181 = vmul.f32 1.0, %v5180
        %v5182 = vrcp.pop %v5004
        %v5183 = vmul.f32 1.0, %v5182
        %v5184 = vrcp.pop %v5005
        %v5185 = vmul.f32 1.0, %v5184
        %v5186 = vrcp.pop %v5006
        %v5187 = vmul.f32 1.0, %v5186
        %v5188 = vrcp.pop %v5007
        %v5189 = vmul.f32 1.0, %v5188
        %v5190 = vrcp.pop %v5008
        %v5191 = vmul.f32 1.0, %v5190
        %v5192 = vrcp.pop %v5009
        %v5193 = vmul.f32 1.0, %v5192
        %v5194 = vrcp.pop %v5010
        %v5195 = vmul.f32 1.0, %v5194
        %v5196 = vrcp.pop %v5011
        %v5197 = vmul.f32 1.0, %v5196
        %v5198 = vrcp.pop %v5012
        %v5199 = vmul.f32 1.0, %v5198
        %v5200 = vrcp.pop %v5013
        %v5201 = vmul.f32 1.0, %v5200
        %v5202 = vrcp.pop %v5014
        %v5203 = vmul.f32 1.0, %v5202
        %v5204 = vrcp.pop %v5015
        %v5205 = vmul.f32 1.0, %v5204
        %v5206 = vrcp.pop %v5016
        %v5207 = vmul.f32 1.0, %v5206
        %v5208 = vrcp.pop %v5017
        %v5209 = vmul.f32 1.0, %v5208
        %v5210 = vmul.f32 %v5019, %v5147
        %v5211 = vmul.f32 %v5021, %v5149
        %v5212 = vmul.f32 %v5023, %v5151
        %v5213 = vmul.f32 %v5025, %v5153
        %v5214 = vmul.f32 %v5027, %v5155
        %v5215 = vmul.f32 %v5029, %v5157
        %v5216 = vmul.f32 %v5031, %v5159
        %v5217 = vmul.f32 %v5033, %v5161
        %v5218 = vmul.f32 %v5035, %v5163
        %v5219 = vmul.f32 %v5037, %v5165
        %v5220 = vmul.f32 %v5039, %v5167
        %v5221 = vmul.f32 %v5041, %v5169
        %v5222 = vmul.f32 %v5043, %v5171
        %v5223 = vmul.f32 %v5045, %v5173
        %v5224 = vmul.f32 %v5047, %v5175
        %v5225 = vmul.f32 %v5049, %v5177
        %v5226 = vmul.f32 %v5051, %v5179
        %v5227 = vmul.f32 %v5053, %v5181
        %v5228 = vmul.f32 %v5055, %v5183
        %v5229 = vmul.f32 %v5057, %v5185
        %v5230 = vmul.f32 %v5059, %v5187
        %v5231 = vmul.f32 %v5061, %v5189
        %v5232 = vmul.f32 %v5063, %v5191
        %v5233 = vmul.f32 %v5065, %v5193
        %v5234 = vmul.f32 %v5067, %v5195
        %v5235 = vmul.f32 %v5069, %v5197
        %v5236 = vmul.f32 %v5071, %v5199
        %v5237 = vmul.f32 %v5073, %v5201
        %v5238 = vmul.f32 %v5075, %v5203
        %v5239 = vmul.f32 %v5077, %v5205
        %v5240 = vmul.f32 %v5079, %v5207
        %v5241 = vmul.f32 %v5081, %v5209
        %v5242 = vtanh.pop %v5210
        %v5243 = vtanh.pop %v5211
        %v5244 = vtanh.pop %v5212
        %v5245 = vtanh.pop %v5213
        %v5246 = vtanh.pop %v5214
        %v5247 = vtanh.pop %v5215
        %v5248 = vtanh.pop %v5216
        %v5249 = vtanh.pop %v5217
        %v5250 = vtanh.pop %v5218
        %v5251 = vtanh.pop %v5219
        %v5252 = vtanh.pop %v5220
        %v5253 = vtanh.pop %v5221
        %v5254 = vtanh.pop %v5222
        %v5255 = vtanh.pop %v5223
        %v5256 = vtanh.pop %v5224
        %v5257 = vtanh.pop %v5225
        %v5258 = vtanh.pop %v5226
        %v5259 = vtanh.pop %v5227
        %v5260 = vtanh.pop %v5228
        %v5261 = vtanh.pop %v5229
        %v5262 = vtanh.pop %v5230
        %v5263 = vtanh.pop %v5231
        %v5264 = vtanh.pop %v5232
        %v5265 = vtanh.pop %v5233
        %v5266 = vtanh.pop %v5234
        %v5267 = vtanh.pop %v5235
        %v5268 = vtanh.pop %v5236
        %v5269 = vtanh.pop %v5237
        %v5270 = vtanh.pop %v5238
        %v5271 = vtanh.pop %v5239
        %v5272 = vtanh.pop %v5240
        %v5273 = vtanh.pop %v5241
        %v5274 = vmul.f32 %v5083, %v5242
        %v5275 = vmul.f32 %v5085, %v5243
        %v5276 = vmul.f32 %v5087, %v5244
        %v5277 = vmul.f32 %v5089, %v5245
        %v5278 = vmul.f32 %v5091, %v5246
        %v5279 = vmul.f32 %v5093, %v5247
        %v5280 = vmul.f32 %v5095, %v5248
        %v5281 = vmul.f32 %v5097, %v5249
        %v5282 = vmul.f32 %v5099, %v5250
        %v5283 = vmul.f32 %v5101, %v5251
        %v5284 = vmul.f32 %v5103, %v5252
        %v5285 = vmul.f32 %v5105, %v5253
        %v5286 = vmul.f32 %v5107, %v5254
        %v5287 = vmul.f32 %v5109, %v5255
        %v5288 = vmul.f32 %v5111, %v5256
        %v5289 = vmul.f32 %v5113, %v5257
        %v5290 = vmul.f32 %v5115, %v5258
        %v5291 = vmul.f32 %v5117, %v5259
        %v5292 = vmul.f32 %v5119, %v5260
        %v5293 = vmul.f32 %v5121, %v5261
        %v5294 = vmul.f32 %v5123, %v5262
        %v5295 = vmul.f32 %v5125, %v5263
        %v5296 = vmul.f32 %v5127, %v5264
        %v5297 = vmul.f32 %v5129, %v5265
        %v5298 = vmul.f32 %v5131, %v5266
        %v5299 = vmul.f32 %v5133, %v5267
        %v5300 = vmul.f32 %v5135, %v5268
        %v5301 = vmul.f32 %v5137, %v5269
        %v5302 = vmul.f32 %v5139, %v5270
        %v5303 = vmul.f32 %v5141, %v5271
        %v5304 = vmul.f32 %v5143, %v5272
        %v5305 = vmul.f32 %v5145, %v5273
        %v5306 = vld [vmem:[%s4] sm:$0xff]
        %v5307 = vld [vmem:[%s4 + $0x8] sm:$0xff]
        %v5308 = vld [vmem:[%s4 + $0x10] sm:$0xff]
        %v5309 = vld [vmem:[%s4 + $0x18] sm:$0xff]
        %v5310 = vld [vmem:[%s4 + $0x20] sm:$0xff]
        %v5311 = vld [vmem:[%s4 + $0x28] sm:$0xff]
        %v5312 = vld [vmem:[%s4 + $0x30] sm:$0xff]
        %v5313 = vld [vmem:[%s4 + $0x38] sm:$0xff]
        %v5315 = vsel %vm3807, %v5306, 0
        %v5318 = vsel %vm3807, %v5307, 0
        %v5321 = vsel %vm3807, %v5308, 0
        %v5324 = vsel %vm3807, %v5309, 0
        %v5327 = vsel %vm3807, %v5310, 0
        %v5330 = vsel %vm3807, %v5311, 0
        %v5333 = vsel %vm3807, %v5312, 0
        %v5336 = vsel %vm3807, %v5313, 0
        %5338 = vmatprep.subr.mxu0 0.0
        %5339 = vmatpush1.msra.mxu0 0.0
        %5340 = vmatprep.subr.mxu0 0.0
        %5341 = vmatpush1.msra.mxu0 0.0
        %5342 = vmatprep.subr.mxu0 0.0
        %5343 = vmatpush1.msra.mxu0 0.0
        %5344 = vmatprep.subr.mxu0 0.0
        %5345 = vmatpush1.msra.mxu0 0.0
        %5346 = vmatprep.subr.mxu0 0.0
        %5347 = vmatpush1.msra.mxu0 0.0
        %5348 = vmatprep.subr.mxu0 0.0
        %5349 = vmatpush1.msra.mxu0 0.0
        %5350 = vmatprep.subr.mxu0 0.0
        %5351 = vmatpush1.msra.mxu0 0.0
        %5352 = vmatprep.subr.mxu0 0.0
        %5353 = vmatpush1.msra.mxu0 0.0
        %5354 = vmatprep.subr.mxu0 0.0
        %5355 = vmatpush1.msra.mxu0 0.0
        %5356 = vmatprep.subr.mxu0 0.0
        %5357 = vmatpush1.msra.mxu0 0.0
        %5358 = vmatprep.subr.mxu0 0.0
        %5359 = vmatpush1.msra.mxu0 0.0
        %5360 = vmatprep.subr.mxu0 0.0
        %5361 = vmatpush1.msra.mxu0 0.0
        %5362 = vmatprep.subr.mxu0 0.0
        %5363 = vmatpush1.msra.mxu0 0.0
        %5364 = vmatprep.subr.mxu0 0.0
        %5365 = vmatpush1.msra.mxu0 0.0
        %5366 = vmatprep.subr.mxu0 %v5291
        %5367 = vmatpush1.msra.mxu0 %v5290
        %5368 = vmatprep.subr.mxu0 %v5275
        %5369 = vmatpush1.msra.mxu0 %v5274
        %5370 = vmatprep.subr.mxu0 0.0
        %5371 = vmatpush2.msra.mxu0 0.0
        %5372 = vmatprep.subr.mxu0 0.0
        %5373 = vmatpush2.msra.mxu0 0.0
        %5374 = vmatprep.subr.mxu0 0.0
        %5375 = vmatpush2.msra.mxu0 0.0
        %5376 = vmatprep.subr.mxu0 0.0
        %5377 = vmatpush2.msra.mxu0 0.0
        %5378 = vmatprep.subr.mxu0 0.0
        %5379 = vmatpush2.msra.mxu0 0.0
        %5380 = vmatprep.subr.mxu0 0.0
        %5381 = vmatpush2.msra.mxu0 0.0
        %5382 = vmatprep.subr.mxu0 0.0
        %5383 = vmatpush2.msra.mxu0 0.0
        %5384 = vmatprep.subr.mxu0 0.0
        %5385 = vmatpush2.msra.mxu0 0.0
        %5386 = vmatprep.subr.mxu0 0.0
        %5387 = vmatpush2.msra.mxu0 0.0
        %5388 = vmatprep.subr.mxu0 0.0
        %5389 = vmatpush2.msra.mxu0 0.0
        %5390 = vmatprep.subr.mxu0 0.0
        %5391 = vmatpush2.msra.mxu0 0.0
        %5392 = vmatprep.subr.mxu0 0.0
        %5393 = vmatpush2.msra.mxu0 0.0
        %5394 = vmatprep.subr.mxu0 0.0
        %5395 = vmatpush2.msra.mxu0 0.0
        %5396 = vmatprep.subr.mxu0 0.0
        %5397 = vmatpush2.msra.mxu0 0.0
        %5398 = vmatprep.subr.mxu0 0.0
        %5399 = vmatpush2.msra.mxu0 0.0
        %5400 = vmatprep.subr.mxu0 0.0
        %5401 = vmatpush2.msra.mxu0 0.0
        %5402 = vmatprep.mubr.f32.mxu0 0.0
        %5403 = vmatmul.mubr.f32.gmra.mxu0 %v5315
        %v5404 = vpop.f32.mrf.mxu0
        %v5405 = vadd.f32 0.0, %v5404
        %v5406 = vpop.f32.mrf.mxu0
        %v5407 = vadd.f32 0.0, %v5406
        %5408 = vmatprep.mubr.f32.mxu0 0.0
        %5409 = vmatmul.mubr.f32.gmra.mxu0 %v5318
        %v5410 = vpop.f32.mrf.mxu0
        %v5411 = vadd.f32 0.0, %v5410
        %v5412 = vpop.f32.mrf.mxu0
        %v5413 = vadd.f32 0.0, %v5412
        %5414 = vmatprep.mubr.f32.mxu0 0.0
        %5415 = vmatmul.mubr.f32.gmra.mxu0 %v5321
        %v5416 = vpop.f32.mrf.mxu0
        %v5417 = vadd.f32 0.0, %v5416
        %v5418 = vpop.f32.mrf.mxu0
        %v5419 = vadd.f32 0.0, %v5418
        %5420 = vmatprep.mubr.f32.mxu0 0.0
        %5421 = vmatmul.mubr.f32.gmra.mxu0 %v5324
        %v5422 = vpop.f32.mrf.mxu0
        %v5423 = vadd.f32 0.0, %v5422
        %v5424 = vpop.f32.mrf.mxu0
        %v5425 = vadd.f32 0.0, %v5424
        %5426 = vmatprep.mubr.f32.mxu0 0.0
        %5427 = vmatmul.mubr.f32.gmra.mxu0 %v5327
        %v5428 = vpop.f32.mrf.mxu0
        %v5429 = vadd.f32 0.0, %v5428
        %v5430 = vpop.f32.mrf.mxu0
        %v5431 = vadd.f32 0.0, %v5430
        %5432 = vmatprep.mubr.f32.mxu0 0.0
        %5433 = vmatmul.mubr.f32.gmra.mxu0 %v5330
        %v5434 = vpop.f32.mrf.mxu0
        %v5435 = vadd.f32 0.0, %v5434
        %v5436 = vpop.f32.mrf.mxu0
        %v5437 = vadd.f32 0.0, %v5436
        %5438 = vmatprep.mubr.f32.mxu0 0.0
        %5439 = vmatmul.mubr.f32.gmra.mxu0 %v5333
        %v5440 = vpop.f32.mrf.mxu0
        %v5441 = vadd.f32 0.0, %v5440
        %v5442 = vpop.f32.mrf.mxu0
        %v5443 = vadd.f32 0.0, %v5442
        %5444 = vmatprep.mubr.f32.mxu0 0.0
        %5445 = vmatmul.mubr.f32.gmra.mxu0 %v5336
        %v5446 = vpop.f32.mrf.mxu0
        %v5447 = vadd.f32 0.0, %v5446
        %v5448 = vpop.f32.mrf.mxu0
        %v5449 = vadd.f32 0.0, %v5448
        %5450 = vdwg.mxu0
        %5451 = vmatprep.subr.mxu0 0.0
        %5452 = vmatpush1.msra.mxu0 0.0
        %5453 = vmatprep.subr.mxu0 0.0
        %5454 = vmatpush1.msra.mxu0 0.0
        %5455 = vmatprep.subr.mxu0 0.0
        %5456 = vmatpush1.msra.mxu0 0.0
        %5457 = vmatprep.subr.mxu0 0.0
        %5458 = vmatpush1.msra.mxu0 0.0
        %5459 = vmatprep.subr.mxu0 0.0
        %5460 = vmatpush1.msra.mxu0 0.0
        %5461 = vmatprep.subr.mxu0 0.0
        %5462 = vmatpush1.msra.mxu0 0.0
        %5463 = vmatprep.subr.mxu0 0.0
        %5464 = vmatpush1.msra.mxu0 0.0
        %5465 = vmatprep.subr.mxu0 0.0
        %5466 = vmatpush1.msra.mxu0 0.0
        %5467 = vmatprep.subr.mxu0 0.0
        %5468 = vmatpush1.msra.mxu0 0.0
        %5469 = vmatprep.subr.mxu0 0.0
        %5470 = vmatpush1.msra.mxu0 0.0
        %5471 = vmatprep.subr.mxu0 0.0
        %5472 = vmatpush1.msra.mxu0 0.0
        %5473 = vmatprep.subr.mxu0 0.0
        %5474 = vmatpush1.msra.mxu0 0.0
        %5475 = vmatprep.subr.mxu0 0.0
        %5476 = vmatpush1.msra.mxu0 0.0
        %5477 = vmatprep.subr.mxu0 0.0
        %5478 = vmatpush1.msra.mxu0 0.0
        %5479 = vmatprep.subr.mxu0 %v5293
        %5480 = vmatpush1.msra.mxu0 %v5292
        %5481 = vmatprep.subr.mxu0 %v5277
        %5482 = vmatpush1.msra.mxu0 %v5276
        %5483 = vmatprep.subr.mxu0 0.0
        %5484 = vmatpush2.msra.mxu0 0.0
        %5485 = vmatprep.subr.mxu0 0.0
        %5486 = vmatpush2.msra.mxu0 0.0
        %5487 = vmatprep.subr.mxu0 0.0
        %5488 = vmatpush2.msra.mxu0 0.0
        %5489 = vmatprep.subr.mxu0 0.0
        %5490 = vmatpush2.msra.mxu0 0.0
        %5491 = vmatprep.subr.mxu0 0.0
        %5492 = vmatpush2.msra.mxu0 0.0
        %5493 = vmatprep.subr.mxu0 0.0
        %5494 = vmatpush2.msra.mxu0 0.0
        %5495 = vmatprep.subr.mxu0 0.0
        %5496 = vmatpush2.msra.mxu0 0.0
        %5497 = vmatprep.subr.mxu0 0.0
        %5498 = vmatpush2.msra.mxu0 0.0
        %5499 = vmatprep.subr.mxu0 0.0
        %5500 = vmatpush2.msra.mxu0 0.0
        %5501 = vmatprep.subr.mxu0 0.0
        %5502 = vmatpush2.msra.mxu0 0.0
        %5503 = vmatprep.subr.mxu0 0.0
        %5504 = vmatpush2.msra.mxu0 0.0
        %5505 = vmatprep.subr.mxu0 0.0
        %5506 = vmatpush2.msra.mxu0 0.0
        %5507 = vmatprep.subr.mxu0 0.0
        %5508 = vmatpush2.msra.mxu0 0.0
        %5509 = vmatprep.subr.mxu0 0.0
        %5510 = vmatpush2.msra.mxu0 0.0
        %5511 = vmatprep.subr.mxu0 0.0
        %5512 = vmatpush2.msra.mxu0 0.0
        %5513 = vmatprep.subr.mxu0 0.0
        %5514 = vmatpush2.msra.mxu0 0.0
        %5515 = vmatprep.mubr.f32.mxu0 0.0
        %5516 = vmatmul.mubr.f32.gmra.mxu0 %v5315
        %v5517 = vpop.f32.mrf.mxu0
        %v5518 = vadd.f32 0.0, %v5517
        %v5519 = vpop.f32.mrf.mxu0
        %v5520 = vadd.f32 0.0, %v5519
        %5521 = vmatprep.mubr.f32.mxu0 0.0
        %5522 = vmatmul.mubr.f32.gmra.mxu0 %v5318
        %v5523 = vpop.f32.mrf.mxu0
        %v5524 = vadd.f32 0.0, %v5523
        %v5525 = vpop.f32.mrf.mxu0
        %v5526 = vadd.f32 0.0, %v5525
        %5527 = vmatprep.mubr.f32.mxu0 0.0
        %5528 = vmatmul.mubr.f32.gmra.mxu0 %v5321
        %v5529 = vpop.f32.mrf.mxu0
        %v5530 = vadd.f32 0.0, %v5529
        %v5531 = vpop.f32.mrf.mxu0
        %v5532 = vadd.f32 0.0, %v5531
        %5533 = vmatprep.mubr.f32.mxu0 0.0
        %5534 = vmatmul.mubr.f32.gmra.mxu0 %v5324
        %v5535 = vpop.f32.mrf.mxu0
        %v5536 = vadd.f32 0.0, %v5535
        %v5537 = vpop.f32.mrf.mxu0
        %v5538 = vadd.f32 0.0, %v5537
        %5539 = vmatprep.mubr.f32.mxu0 0.0
        %5540 = vmatmul.mubr.f32.gmra.mxu0 %v5327
        %v5541 = vpop.f32.mrf.mxu0
        %v5542 = vadd.f32 0.0, %v5541
        %v5543 = vpop.f32.mrf.mxu0
        %v5544 = vadd.f32 0.0, %v5543
        %5545 = vmatprep.mubr.f32.mxu0 0.0
        %5546 = vmatmul.mubr.f32.gmra.mxu0 %v5330
        %v5547 = vpop.f32.mrf.mxu0
        %v5548 = vadd.f32 0.0, %v5547
        %v5549 = vpop.f32.mrf.mxu0
        %v5550 = vadd.f32 0.0, %v5549
        %5551 = vmatprep.mubr.f32.mxu0 0.0
        %5552 = vmatmul.mubr.f32.gmra.mxu0 %v5333
        %v5553 = vpop.f32.mrf.mxu0
        %v5554 = vadd.f32 0.0, %v5553
        %v5555 = vpop.f32.mrf.mxu0
        %v5556 = vadd.f32 0.0, %v5555
        %5557 = vmatprep.mubr.f32.mxu0 0.0
        %5558 = vmatmul.mubr.f32.gmra.mxu0 %v5336
        %v5559 = vpop.f32.mrf.mxu0
        %v5560 = vadd.f32 0.0, %v5559
        %v5561 = vpop.f32.mrf.mxu0
        %v5562 = vadd.f32 0.0, %v5561
        %5563 = vdwg.mxu0
        %5564 = vmatprep.subr.mxu0 0.0
        %5565 = vmatpush1.msra.mxu0 0.0
        %5566 = vmatprep.subr.mxu0 0.0
        %5567 = vmatpush1.msra.mxu0 0.0
        %5568 = vmatprep.subr.mxu0 0.0
        %5569 = vmatpush1.msra.mxu0 0.0
        %5570 = vmatprep.subr.mxu0 0.0
        %5571 = vmatpush1.msra.mxu0 0.0
        %5572 = vmatprep.subr.mxu0 0.0
        %5573 = vmatpush1.msra.mxu0 0.0
        %5574 = vmatprep.subr.mxu0 0.0
        %5575 = vmatpush1.msra.mxu0 0.0
        %5576 = vmatprep.subr.mxu0 0.0
        %5577 = vmatpush1.msra.mxu0 0.0
        %5578 = vmatprep.subr.mxu0 0.0
        %5579 = vmatpush1.msra.mxu0 0.0
        %5580 = vmatprep.subr.mxu0 0.0
        %5581 = vmatpush1.msra.mxu0 0.0
        %5582 = vmatprep.subr.mxu0 0.0
        %5583 = vmatpush1.msra.mxu0 0.0
        %5584 = vmatprep.subr.mxu0 0.0
        %5585 = vmatpush1.msra.mxu0 0.0
        %5586 = vmatprep.subr.mxu0 0.0
        %5587 = vmatpush1.msra.mxu0 0.0
        %5588 = vmatprep.subr.mxu0 0.0
        %5589 = vmatpush1.msra.mxu0 0.0
        %5590 = vmatprep.subr.mxu0 0.0
        %5591 = vmatpush1.msra.mxu0 0.0
        %5592 = vmatprep.subr.mxu0 %v5295
        %5593 = vmatpush1.msra.mxu0 %v5294
        %5594 = vmatprep.subr.mxu0 %v5279
        %5595 = vmatpush1.msra.mxu0 %v5278
        %5596 = vmatprep.subr.mxu0 0.0
        %5597 = vmatpush2.msra.mxu0 0.0
        %5598 = vmatprep.subr.mxu0 0.0
        %5599 = vmatpush2.msra.mxu0 0.0
        %5600 = vmatprep.subr.mxu0 0.0
        %5601 = vmatpush2.msra.mxu0 0.0
        %5602 = vmatprep.subr.mxu0 0.0
        %5603 = vmatpush2.msra.mxu0 0.0
        %5604 = vmatprep.subr.mxu0 0.0
        %5605 = vmatpush2.msra.mxu0 0.0
        %5606 = vmatprep.subr.mxu0 0.0
        %5607 = vmatpush2.msra.mxu0 0.0
        %5608 = vmatprep.subr.mxu0 0.0
        %5609 = vmatpush2.msra.mxu0 0.0
        %5610 = vmatprep.subr.mxu0 0.0
        %5611 = vmatpush2.msra.mxu0 0.0
        %5612 = vmatprep.subr.mxu0 0.0
        %5613 = vmatpush2.msra.mxu0 0.0
        %5614 = vmatprep.subr.mxu0 0.0
        %5615 = vmatpush2.msra.mxu0 0.0
        %5616 = vmatprep.subr.mxu0 0.0
        %5617 = vmatpush2.msra.mxu0 0.0
        %5618 = vmatprep.subr.mxu0 0.0
        %5619 = vmatpush2.msra.mxu0 0.0
        %5620 = vmatprep.subr.mxu0 0.0
        %5621 = vmatpush2.msra.mxu0 0.0
        %5622 = vmatprep.subr.mxu0 0.0
        %5623 = vmatpush2.msra.mxu0 0.0
        %5624 = vmatprep.subr.mxu0 0.0
        %5625 = vmatpush2.msra.mxu0 0.0
        %5626 = vmatprep.subr.mxu0 0.0
        %5627 = vmatpush2.msra.mxu0 0.0
        %5628 = vmatprep.mubr.f32.mxu0 0.0
        %5629 = vmatmul.mubr.f32.gmra.mxu0 %v5315
        %v5630 = vpop.f32.mrf.mxu0
        %v5631 = vadd.f32 0.0, %v5630
        %v5632 = vpop.f32.mrf.mxu0
        %v5633 = vadd.f32 0.0, %v5632
        %5634 = vmatprep.mubr.f32.mxu0 0.0
        %5635 = vmatmul.mubr.f32.gmra.mxu0 %v5318
        %v5636 = vpop.f32.mrf.mxu0
        %v5637 = vadd.f32 0.0, %v5636
        %v5638 = vpop.f32.mrf.mxu0
        %v5639 = vadd.f32 0.0, %v5638
        %5640 = vmatprep.mubr.f32.mxu0 0.0
        %5641 = vmatmul.mubr.f32.gmra.mxu0 %v5321
        %v5642 = vpop.f32.mrf.mxu0
        %v5643 = vadd.f32 0.0, %v5642
        %v5644 = vpop.f32.mrf.mxu0
        %v5645 = vadd.f32 0.0, %v5644
        %5646 = vmatprep.mubr.f32.mxu0 0.0
        %5647 = vmatmul.mubr.f32.gmra.mxu0 %v5324
        %v5648 = vpop.f32.mrf.mxu0
        %v5649 = vadd.f32 0.0, %v5648
        %v5650 = vpop.f32.mrf.mxu0
        %v5651 = vadd.f32 0.0, %v5650
        %5652 = vmatprep.mubr.f32.mxu0 0.0
        %5653 = vmatmul.mubr.f32.gmra.mxu0 %v5327
        %v5654 = vpop.f32.mrf.mxu0
        %v5655 = vadd.f32 0.0, %v5654
        %v5656 = vpop.f32.mrf.mxu0
        %v5657 = vadd.f32 0.0, %v5656
        %5658 = vmatprep.mubr.f32.mxu0 0.0
        %5659 = vmatmul.mubr.f32.gmra.mxu0 %v5330
        %v5660 = vpop.f32.mrf.mxu0
        %v5661 = vadd.f32 0.0, %v5660
        %v5662 = vpop.f32.mrf.mxu0
        %v5663 = vadd.f32 0.0, %v5662
        %5664 = vmatprep.mubr.f32.mxu0 0.0
        %5665 = vmatmul.mubr.f32.gmra.mxu0 %v5333
        %v5666 = vpop.f32.mrf.mxu0
        %v5667 = vadd.f32 0.0, %v5666
        %v5668 = vpop.f32.mrf.mxu0
        %v5669 = vadd.f32 0.0, %v5668
        %5670 = vmatprep.mubr.f32.mxu0 0.0
        %5671 = vmatmul.mubr.f32.gmra.mxu0 %v5336
        %v5672 = vpop.f32.mrf.mxu0
        %v5673 = vadd.f32 0.0, %v5672
        %v5674 = vpop.f32.mrf.mxu0
        %v5675 = vadd.f32 0.0, %v5674
        %5676 = vdwg.mxu0
        %5677 = vmatprep.subr.mxu0 0.0
        %5678 = vmatpush1.msra.mxu0 0.0
        %5679 = vmatprep.subr.mxu0 0.0
        %5680 = vmatpush1.msra.mxu0 0.0
        %5681 = vmatprep.subr.mxu0 0.0
        %5682 = vmatpush1.msra.mxu0 0.0
        %5683 = vmatprep.subr.mxu0 0.0
        %5684 = vmatpush1.msra.mxu0 0.0
        %5685 = vmatprep.subr.mxu0 0.0
        %5686 = vmatpush1.msra.mxu0 0.0
        %5687 = vmatprep.subr.mxu0 0.0
        %5688 = vmatpush1.msra.mxu0 0.0
        %5689 = vmatprep.subr.mxu0 0.0
        %5690 = vmatpush1.msra.mxu0 0.0
        %5691 = vmatprep.subr.mxu0 0.0
        %5692 = vmatpush1.msra.mxu0 0.0
        %5693 = vmatprep.subr.mxu0 0.0
        %5694 = vmatpush1.msra.mxu0 0.0
        %5695 = vmatprep.subr.mxu0 0.0
        %5696 = vmatpush1.msra.mxu0 0.0
        %5697 = vmatprep.subr.mxu0 0.0
        %5698 = vmatpush1.msra.mxu0 0.0
        %5699 = vmatprep.subr.mxu0 0.0
        %5700 = vmatpush1.msra.mxu0 0.0
        %5701 = vmatprep.subr.mxu0 0.0
        %5702 = vmatpush1.msra.mxu0 0.0
        %5703 = vmatprep.subr.mxu0 0.0
        %5704 = vmatpush1.msra.mxu0 0.0
        %5705 = vmatprep.subr.mxu0 %v5297
        %5706 = vmatpush1.msra.mxu0 %v5296
        %5707 = vmatprep.subr.mxu0 %v5281
        %5708 = vmatpush1.msra.mxu0 %v5280
        %5709 = vmatprep.subr.mxu0 0.0
        %5710 = vmatpush2.msra.mxu0 0.0
        %5711 = vmatprep.subr.mxu0 0.0
        %5712 = vmatpush2.msra.mxu0 0.0
        %5713 = vmatprep.subr.mxu0 0.0
        %5714 = vmatpush2.msra.mxu0 0.0
        %5715 = vmatprep.subr.mxu0 0.0
        %5716 = vmatpush2.msra.mxu0 0.0
        %5717 = vmatprep.subr.mxu0 0.0
        %5718 = vmatpush2.msra.mxu0 0.0
        %5719 = vmatprep.subr.mxu0 0.0
        %5720 = vmatpush2.msra.mxu0 0.0
        %5721 = vmatprep.subr.mxu0 0.0
        %5722 = vmatpush2.msra.mxu0 0.0
        %5723 = vmatprep.subr.mxu0 0.0
        %5724 = vmatpush2.msra.mxu0 0.0
        %5725 = vmatprep.subr.mxu0 0.0
        %5726 = vmatpush2.msra.mxu0 0.0
        %5727 = vmatprep.subr.mxu0 0.0
        %5728 = vmatpush2.msra.mxu0 0.0
        %5729 = vmatprep.subr.mxu0 0.0
        %5730 = vmatpush2.msra.mxu0 0.0
        %5731 = vmatprep.subr.mxu0 0.0
        %5732 = vmatpush2.msra.mxu0 0.0
        %5733 = vmatprep.subr.mxu0 0.0
        %5734 = vmatpush2.msra.mxu0 0.0
        %5735 = vmatprep.subr.mxu0 0.0
        %5736 = vmatpush2.msra.mxu0 0.0
        %5737 = vmatprep.subr.mxu0 0.0
        %5738 = vmatpush2.msra.mxu0 0.0
        %5739 = vmatprep.subr.mxu0 0.0
        %5740 = vmatpush2.msra.mxu0 0.0
        %5741 = vmatprep.mubr.f32.mxu0 0.0
        %5742 = vmatmul.mubr.f32.gmra.mxu0 %v5315
        %v5743 = vpop.f32.mrf.mxu0
        %v5744 = vadd.f32 0.0, %v5743
        %v5745 = vpop.f32.mrf.mxu0
        %v5746 = vadd.f32 0.0, %v5745
        %5747 = vmatprep.mubr.f32.mxu0 0.0
        %5748 = vmatmul.mubr.f32.gmra.mxu0 %v5318
        %v5749 = vpop.f32.mrf.mxu0
        %v5750 = vadd.f32 0.0, %v5749
        %v5751 = vpop.f32.mrf.mxu0
        %v5752 = vadd.f32 0.0, %v5751
        %5753 = vmatprep.mubr.f32.mxu0 0.0
        %5754 = vmatmul.mubr.f32.gmra.mxu0 %v5321
        %v5755 = vpop.f32.mrf.mxu0
        %v5756 = vadd.f32 0.0, %v5755
        %v5757 = vpop.f32.mrf.mxu0
        %v5758 = vadd.f32 0.0, %v5757
        %5759 = vmatprep.mubr.f32.mxu0 0.0
        %5760 = vmatmul.mubr.f32.gmra.mxu0 %v5324
        %v5761 = vpop.f32.mrf.mxu0
        %v5762 = vadd.f32 0.0, %v5761
        %v5763 = vpop.f32.mrf.mxu0
        %v5764 = vadd.f32 0.0, %v5763
        %5765 = vmatprep.mubr.f32.mxu0 0.0
        %5766 = vmatmul.mubr.f32.gmra.mxu0 %v5327
        %v5767 = vpop.f32.mrf.mxu0
        %v5768 = vadd.f32 0.0, %v5767
        %v5769 = vpop.f32.mrf.mxu0
        %v5770 = vadd.f32 0.0, %v5769
        %5771 = vmatprep.mubr.f32.mxu0 0.0
        %5772 = vmatmul.mubr.f32.gmra.mxu0 %v5330
        %v5773 = vpop.f32.mrf.mxu0
        %v5774 = vadd.f32 0.0, %v5773
        %v5775 = vpop.f32.mrf.mxu0
        %v5776 = vadd.f32 0.0, %v5775
        %5777 = vmatprep.mubr.f32.mxu0 0.0
        %5778 = vmatmul.mubr.f32.gmra.mxu0 %v5333
        %v5779 = vpop.f32.mrf.mxu0
        %v5780 = vadd.f32 0.0, %v5779
        %v5781 = vpop.f32.mrf.mxu0
        %v5782 = vadd.f32 0.0, %v5781
        %5783 = vmatprep.mubr.f32.mxu0 0.0
        %5784 = vmatmul.mubr.f32.gmra.mxu0 %v5336
        %v5785 = vpop.f32.mrf.mxu0
        %v5786 = vadd.f32 0.0, %v5785
        %v5787 = vpop.f32.mrf.mxu0
        %v5788 = vadd.f32 0.0, %v5787
        %5789 = vdwg.mxu0
        %5790 = vmatprep.subr.mxu0 0.0
        %5791 = vmatpush1.msra.mxu0 0.0
        %5792 = vmatprep.subr.mxu0 0.0
        %5793 = vmatpush1.msra.mxu0 0.0
        %5794 = vmatprep.subr.mxu0 0.0
        %5795 = vmatpush1.msra.mxu0 0.0
        %5796 = vmatprep.subr.mxu0 0.0
        %5797 = vmatpush1.msra.mxu0 0.0
        %5798 = vmatprep.subr.mxu0 0.0
        %5799 = vmatpush1.msra.mxu0 0.0
        %5800 = vmatprep.subr.mxu0 0.0
        %5801 = vmatpush1.msra.mxu0 0.0
        %5802 = vmatprep.subr.mxu0 0.0
        %5803 = vmatpush1.msra.mxu0 0.0
        %5804 = vmatprep.subr.mxu0 0.0
        %5805 = vmatpush1.msra.mxu0 0.0
        %5806 = vmatprep.subr.mxu0 0.0
        %5807 = vmatpush1.msra.mxu0 0.0
        %5808 = vmatprep.subr.mxu0 0.0
        %5809 = vmatpush1.msra.mxu0 0.0
        %5810 = vmatprep.subr.mxu0 0.0
        %5811 = vmatpush1.msra.mxu0 0.0
        %5812 = vmatprep.subr.mxu0 0.0
        %5813 = vmatpush1.msra.mxu0 0.0
        %5814 = vmatprep.subr.mxu0 0.0
        %5815 = vmatpush1.msra.mxu0 0.0
        %5816 = vmatprep.subr.mxu0 0.0
        %5817 = vmatpush1.msra.mxu0 0.0
        %5818 = vmatprep.subr.mxu0 %v5299
        %5819 = vmatpush1.msra.mxu0 %v5298
        %5820 = vmatprep.subr.mxu0 %v5283
        %5821 = vmatpush1.msra.mxu0 %v5282
        %5822 = vmatprep.subr.mxu0 0.0
        %5823 = vmatpush2.msra.mxu0 0.0
        %5824 = vmatprep.subr.mxu0 0.0
        %5825 = vmatpush2.msra.mxu0 0.0
        %5826 = vmatprep.subr.mxu0 0.0
        %5827 = vmatpush2.msra.mxu0 0.0
        %5828 = vmatprep.subr.mxu0 0.0
        %5829 = vmatpush2.msra.mxu0 0.0
        %5830 = vmatprep.subr.mxu0 0.0
        %5831 = vmatpush2.msra.mxu0 0.0
        %5832 = vmatprep.subr.mxu0 0.0
        %5833 = vmatpush2.msra.mxu0 0.0
        %5834 = vmatprep.subr.mxu0 0.0
        %5835 = vmatpush2.msra.mxu0 0.0
        %5836 = vmatprep.subr.mxu0 0.0
        %5837 = vmatpush2.msra.mxu0 0.0
        %5838 = vmatprep.subr.mxu0 0.0
        %5839 = vmatpush2.msra.mxu0 0.0
        %5840 = vmatprep.subr.mxu0 0.0
        %5841 = vmatpush2.msra.mxu0 0.0
        %5842 = vmatprep.subr.mxu0 0.0
        %5843 = vmatpush2.msra.mxu0 0.0
        %5844 = vmatprep.subr.mxu0 0.0
        %5845 = vmatpush2.msra.mxu0 0.0
        %5846 = vmatprep.subr.mxu0 0.0
        %5847 = vmatpush2.msra.mxu0 0.0
        %5848 = vmatprep.subr.mxu0 0.0
        %5849 = vmatpush2.msra.mxu0 0.0
        %5850 = vmatprep.subr.mxu0 0.0
        %5851 = vmatpush2.msra.mxu0 0.0
        %5852 = vmatprep.subr.mxu0 0.0
        %5853 = vmatpush2.msra.mxu0 0.0
        %5854 = vmatprep.mubr.f32.mxu0 0.0
        %5855 = vmatmul.mubr.f32.gmra.mxu0 %v5315
        %v5856 = vpop.f32.mrf.mxu0
        %v5857 = vadd.f32 0.0, %v5856
        %v5858 = vpop.f32.mrf.mxu0
        %v5859 = vadd.f32 0.0, %v5858
        %5860 = vmatprep.mubr.f32.mxu0 0.0
        %5861 = vmatmul.mubr.f32.gmra.mxu0 %v5318
        %v5862 = vpop.f32.mrf.mxu0
        %v5863 = vadd.f32 0.0, %v5862
        %v5864 = vpop.f32.mrf.mxu0
        %v5865 = vadd.f32 0.0, %v5864
        %5866 = vmatprep.mubr.f32.mxu0 0.0
        %5867 = vmatmul.mubr.f32.gmra.mxu0 %v5321
        %v5868 = vpop.f32.mrf.mxu0
        %v5869 = vadd.f32 0.0, %v5868
        %v5870 = vpop.f32.mrf.mxu0
        %v5871 = vadd.f32 0.0, %v5870
        %5872 = vmatprep.mubr.f32.mxu0 0.0
        %5873 = vmatmul.mubr.f32.gmra.mxu0 %v5324
        %v5874 = vpop.f32.mrf.mxu0
        %v5875 = vadd.f32 0.0, %v5874
        %v5876 = vpop.f32.mrf.mxu0
        %v5877 = vadd.f32 0.0, %v5876
        %5878 = vmatprep.mubr.f32.mxu0 0.0
        %5879 = vmatmul.mubr.f32.gmra.mxu0 %v5327
        %v5880 = vpop.f32.mrf.mxu0
        %v5881 = vadd.f32 0.0, %v5880
        %v5882 = vpop.f32.mrf.mxu0
        %v5883 = vadd.f32 0.0, %v5882
        %5884 = vmatprep.mubr.f32.mxu0 0.0
        %5885 = vmatmul.mubr.f32.gmra.mxu0 %v5330
        %v5886 = vpop.f32.mrf.mxu0
        %v5887 = vadd.f32 0.0, %v5886
        %v5888 = vpop.f32.mrf.mxu0
        %v5889 = vadd.f32 0.0, %v5888
        %5890 = vmatprep.mubr.f32.mxu0 0.0
        %5891 = vmatmul.mubr.f32.gmra.mxu0 %v5333
        %v5892 = vpop.f32.mrf.mxu0
        %v5893 = vadd.f32 0.0, %v5892
        %v5894 = vpop.f32.mrf.mxu0
        %v5895 = vadd.f32 0.0, %v5894
        %5896 = vmatprep.mubr.f32.mxu0 0.0
        %5897 = vmatmul.mubr.f32.gmra.mxu0 %v5336
        %v5898 = vpop.f32.mrf.mxu0
        %v5899 = vadd.f32 0.0, %v5898
        %v5900 = vpop.f32.mrf.mxu0
        %v5901 = vadd.f32 0.0, %v5900
        %5902 = vdwg.mxu0
        %5903 = vmatprep.subr.mxu0 0.0
        %5904 = vmatpush1.msra.mxu0 0.0
        %5905 = vmatprep.subr.mxu0 0.0
        %5906 = vmatpush1.msra.mxu0 0.0
        %5907 = vmatprep.subr.mxu0 0.0
        %5908 = vmatpush1.msra.mxu0 0.0
        %5909 = vmatprep.subr.mxu0 0.0
        %5910 = vmatpush1.msra.mxu0 0.0
        %5911 = vmatprep.subr.mxu0 0.0
        %5912 = vmatpush1.msra.mxu0 0.0
        %5913 = vmatprep.subr.mxu0 0.0
        %5914 = vmatpush1.msra.mxu0 0.0
        %5915 = vmatprep.subr.mxu0 0.0
        %5916 = vmatpush1.msra.mxu0 0.0
        %5917 = vmatprep.subr.mxu0 0.0
        %5918 = vmatpush1.msra.mxu0 0.0
        %5919 = vmatprep.subr.mxu0 0.0
        %5920 = vmatpush1.msra.mxu0 0.0
        %5921 = vmatprep.subr.mxu0 0.0
        %5922 = vmatpush1.msra.mxu0 0.0
        %5923 = vmatprep.subr.mxu0 0.0
        %5924 = vmatpush1.msra.mxu0 0.0
        %5925 = vmatprep.subr.mxu0 0.0
        %5926 = vmatpush1.msra.mxu0 0.0
        %5927 = vmatprep.subr.mxu0 0.0
        %5928 = vmatpush1.msra.mxu0 0.0
        %5929 = vmatprep.subr.mxu0 0.0
        %5930 = vmatpush1.msra.mxu0 0.0
        %5931 = vmatprep.subr.mxu0 %v5301
        %5932 = vmatpush1.msra.mxu0 %v5300
        %5933 = vmatprep.subr.mxu0 %v5285
        %5934 = vmatpush1.msra.mxu0 %v5284
        %5935 = vmatprep.subr.mxu0 0.0
        %5936 = vmatpush2.msra.mxu0 0.0
        %5937 = vmatprep.subr.mxu0 0.0
        %5938 = vmatpush2.msra.mxu0 0.0
        %5939 = vmatprep.subr.mxu0 0.0
        %5940 = vmatpush2.msra.mxu0 0.0
        %5941 = vmatprep.subr.mxu0 0.0
        %5942 = vmatpush2.msra.mxu0 0.0
        %5943 = vmatprep.subr.mxu0 0.0
        %5944 = vmatpush2.msra.mxu0 0.0
        %5945 = vmatprep.subr.mxu0 0.0
        %5946 = vmatpush2.msra.mxu0 0.0
        %5947 = vmatprep.subr.mxu0 0.0
        %5948 = vmatpush2.msra.mxu0 0.0
        %5949 = vmatprep.subr.mxu0 0.0
        %5950 = vmatpush2.msra.mxu0 0.0
        %5951 = vmatprep.subr.mxu0 0.0
        %5952 = vmatpush2.msra.mxu0 0.0
        %5953 = vmatprep.subr.mxu0 0.0
        %5954 = vmatpush2.msra.mxu0 0.0
        %5955 = vmatprep.subr.mxu0 0.0
        %5956 = vmatpush2.msra.mxu0 0.0
        %5957 = vmatprep.subr.mxu0 0.0
        %5958 = vmatpush2.msra.mxu0 0.0
        %5959 = vmatprep.subr.mxu0 0.0
        %5960 = vmatpush2.msra.mxu0 0.0
        %5961 = vmatprep.subr.mxu0 0.0
        %5962 = vmatpush2.msra.mxu0 0.0
        %5963 = vmatprep.subr.mxu0 0.0
        %5964 = vmatpush2.msra.mxu0 0.0
        %5965 = vmatprep.subr.mxu0 0.0
        %5966 = vmatpush2.msra.mxu0 0.0
        %5967 = vmatprep.mubr.f32.mxu0 0.0
        %5968 = vmatmul.mubr.f32.gmra.mxu0 %v5315
        %v5969 = vpop.f32.mrf.mxu0
        %v5970 = vadd.f32 0.0, %v5969
        %v5971 = vpop.f32.mrf.mxu0
        %v5972 = vadd.f32 0.0, %v5971
        %5973 = vmatprep.mubr.f32.mxu0 0.0
        %5974 = vmatmul.mubr.f32.gmra.mxu0 %v5318
        %v5975 = vpop.f32.mrf.mxu0
        %v5976 = vadd.f32 0.0, %v5975
        %v5977 = vpop.f32.mrf.mxu0
        %v5978 = vadd.f32 0.0, %v5977
        %5979 = vmatprep.mubr.f32.mxu0 0.0
        %5980 = vmatmul.mubr.f32.gmra.mxu0 %v5321
        %v5981 = vpop.f32.mrf.mxu0
        %v5982 = vadd.f32 0.0, %v5981
        %v5983 = vpop.f32.mrf.mxu0
        %v5984 = vadd.f32 0.0, %v5983
        %5985 = vmatprep.mubr.f32.mxu0 0.0
        %5986 = vmatmul.mubr.f32.gmra.mxu0 %v5324
        %v5987 = vpop.f32.mrf.mxu0
        %v5988 = vadd.f32 0.0, %v5987
        %v5989 = vpop.f32.mrf.mxu0
        %v5990 = vadd.f32 0.0, %v5989
        %5991 = vmatprep.mubr.f32.mxu0 0.0
        %5992 = vmatmul.mubr.f32.gmra.mxu0 %v5327
        %v5993 = vpop.f32.mrf.mxu0
        %v5994 = vadd.f32 0.0, %v5993
        %v5995 = vpop.f32.mrf.mxu0
        %v5996 = vadd.f32 0.0, %v5995
        %5997 = vmatprep.mubr.f32.mxu0 0.0
        %5998 = vmatmul.mubr.f32.gmra.mxu0 %v5330
        %v5999 = vpop.f32.mrf.mxu0
        %v6000 = vadd.f32 0.0, %v5999
        %v6001 = vpop.f32.mrf.mxu0
        %v6002 = vadd.f32 0.0, %v6001
        %6003 = vmatprep.mubr.f32.mxu0 0.0
        %6004 = vmatmul.mubr.f32.gmra.mxu0 %v5333
        %v6005 = vpop.f32.mrf.mxu0
        %v6006 = vadd.f32 0.0, %v6005
        %v6007 = vpop.f32.mrf.mxu0
        %v6008 = vadd.f32 0.0, %v6007
        %6009 = vmatprep.mubr.f32.mxu0 0.0
        %6010 = vmatmul.mubr.f32.gmra.mxu0 %v5336
        %v6011 = vpop.f32.mrf.mxu0
        %v6012 = vadd.f32 0.0, %v6011
        %v6013 = vpop.f32.mrf.mxu0
        %v6014 = vadd.f32 0.0, %v6013
        %6015 = vdwg.mxu0
        %6016 = vmatprep.subr.mxu0 0.0
        %6017 = vmatpush1.msra.mxu0 0.0
        %6018 = vmatprep.subr.mxu0 0.0
        %6019 = vmatpush1.msra.mxu0 0.0
        %6020 = vmatprep.subr.mxu0 0.0
        %6021 = vmatpush1.msra.mxu0 0.0
        %6022 = vmatprep.subr.mxu0 0.0
        %6023 = vmatpush1.msra.mxu0 0.0
        %6024 = vmatprep.subr.mxu0 0.0
        %6025 = vmatpush1.msra.mxu0 0.0
        %6026 = vmatprep.subr.mxu0 0.0
        %6027 = vmatpush1.msra.mxu0 0.0
        %6028 = vmatprep.subr.mxu0 0.0
        %6029 = vmatpush1.msra.mxu0 0.0
        %6030 = vmatprep.subr.mxu0 0.0
        %6031 = vmatpush1.msra.mxu0 0.0
        %6032 = vmatprep.subr.mxu0 0.0
        %6033 = vmatpush1.msra.mxu0 0.0
        %6034 = vmatprep.subr.mxu0 0.0
        %6035 = vmatpush1.msra.mxu0 0.0
        %6036 = vmatprep.subr.mxu0 0.0
        %6037 = vmatpush1.msra.mxu0 0.0
        %6038 = vmatprep.subr.mxu0 0.0
        %6039 = vmatpush1.msra.mxu0 0.0
        %6040 = vmatprep.subr.mxu0 0.0
        %6041 = vmatpush1.msra.mxu0 0.0
        %6042 = vmatprep.subr.mxu0 0.0
        %6043 = vmatpush1.msra.mxu0 0.0
        %6044 = vmatprep.subr.mxu0 %v5303
        %6045 = vmatpush1.msra.mxu0 %v5302
        %6046 = vmatprep.subr.mxu0 %v5287
        %6047 = vmatpush1.msra.mxu0 %v5286
        %6048 = vmatprep.subr.mxu0 0.0
        %6049 = vmatpush2.msra.mxu0 0.0
        %6050 = vmatprep.subr.mxu0 0.0
        %6051 = vmatpush2.msra.mxu0 0.0
        %6052 = vmatprep.subr.mxu0 0.0
        %6053 = vmatpush2.msra.mxu0 0.0
        %6054 = vmatprep.subr.mxu0 0.0
        %6055 = vmatpush2.msra.mxu0 0.0
        %6056 = vmatprep.subr.mxu0 0.0
        %6057 = vmatpush2.msra.mxu0 0.0
        %6058 = vmatprep.subr.mxu0 0.0
        %6059 = vmatpush2.msra.mxu0 0.0
        %6060 = vmatprep.subr.mxu0 0.0
        %6061 = vmatpush2.msra.mxu0 0.0
        %6062 = vmatprep.subr.mxu0 0.0
        %6063 = vmatpush2.msra.mxu0 0.0
        %6064 = vmatprep.subr.mxu0 0.0
        %6065 = vmatpush2.msra.mxu0 0.0
        %6066 = vmatprep.subr.mxu0 0.0
        %6067 = vmatpush2.msra.mxu0 0.0
        %6068 = vmatprep.subr.mxu0 0.0
        %6069 = vmatpush2.msra.mxu0 0.0
        %6070 = vmatprep.subr.mxu0 0.0
        %6071 = vmatpush2.msra.mxu0 0.0
        %6072 = vmatprep.subr.mxu0 0.0
        %6073 = vmatpush2.msra.mxu0 0.0
        %6074 = vmatprep.subr.mxu0 0.0
        %6075 = vmatpush2.msra.mxu0 0.0
        %6076 = vmatprep.subr.mxu0 0.0
        %6077 = vmatpush2.msra.mxu0 0.0
        %6078 = vmatprep.subr.mxu0 0.0
        %6079 = vmatpush2.msra.mxu0 0.0
        %6080 = vmatprep.mubr.f32.mxu0 0.0
        %6081 = vmatmul.mubr.f32.gmra.mxu0 %v5315
        %v6082 = vpop.f32.mrf.mxu0
        %v6083 = vadd.f32 0.0, %v6082
        %v6084 = vpop.f32.mrf.mxu0
        %v6085 = vadd.f32 0.0, %v6084
        %6086 = vmatprep.mubr.f32.mxu0 0.0
        %6087 = vmatmul.mubr.f32.gmra.mxu0 %v5318
        %v6088 = vpop.f32.mrf.mxu0
        %v6089 = vadd.f32 0.0, %v6088
        %v6090 = vpop.f32.mrf.mxu0
        %v6091 = vadd.f32 0.0, %v6090
        %6092 = vmatprep.mubr.f32.mxu0 0.0
        %6093 = vmatmul.mubr.f32.gmra.mxu0 %v5321
        %v6094 = vpop.f32.mrf.mxu0
        %v6095 = vadd.f32 0.0, %v6094
        %v6096 = vpop.f32.mrf.mxu0
        %v6097 = vadd.f32 0.0, %v6096
        %6098 = vmatprep.mubr.f32.mxu0 0.0
        %6099 = vmatmul.mubr.f32.gmra.mxu0 %v5324
        %v6100 = vpop.f32.mrf.mxu0
        %v6101 = vadd.f32 0.0, %v6100
        %v6102 = vpop.f32.mrf.mxu0
        %v6103 = vadd.f32 0.0, %v6102
        %6104 = vmatprep.mubr.f32.mxu0 0.0
        %6105 = vmatmul.mubr.f32.gmra.mxu0 %v5327
        %v6106 = vpop.f32.mrf.mxu0
        %v6107 = vadd.f32 0.0, %v6106
        %v6108 = vpop.f32.mrf.mxu0
        %v6109 = vadd.f32 0.0, %v6108
        %6110 = vmatprep.mubr.f32.mxu0 0.0
        %6111 = vmatmul.mubr.f32.gmra.mxu0 %v5330
        %v6112 = vpop.f32.mrf.mxu0
        %v6113 = vadd.f32 0.0, %v6112
        %v6114 = vpop.f32.mrf.mxu0
        %v6115 = vadd.f32 0.0, %v6114
        %6116 = vmatprep.mubr.f32.mxu0 0.0
        %6117 = vmatmul.mubr.f32.gmra.mxu0 %v5333
        %v6118 = vpop.f32.mrf.mxu0
        %v6119 = vadd.f32 0.0, %v6118
        %v6120 = vpop.f32.mrf.mxu0
        %v6121 = vadd.f32 0.0, %v6120
        %6122 = vmatprep.mubr.f32.mxu0 0.0
        %6123 = vmatmul.mubr.f32.gmra.mxu0 %v5336
        %v6124 = vpop.f32.mrf.mxu0
        %v6125 = vadd.f32 0.0, %v6124
        %v6126 = vpop.f32.mrf.mxu0
        %v6127 = vadd.f32 0.0, %v6126
        %6128 = vdwg.mxu0
        %6129 = vmatprep.subr.mxu0 0.0
        %6130 = vmatpush1.msra.mxu0 0.0
        %6131 = vmatprep.subr.mxu0 0.0
        %6132 = vmatpush1.msra.mxu0 0.0
        %6133 = vmatprep.subr.mxu0 0.0
        %6134 = vmatpush1.msra.mxu0 0.0
        %6135 = vmatprep.subr.mxu0 0.0
        %6136 = vmatpush1.msra.mxu0 0.0
        %6137 = vmatprep.subr.mxu0 0.0
        %6138 = vmatpush1.msra.mxu0 0.0
        %6139 = vmatprep.subr.mxu0 0.0
        %6140 = vmatpush1.msra.mxu0 0.0
        %6141 = vmatprep.subr.mxu0 0.0
        %6142 = vmatpush1.msra.mxu0 0.0
        %6143 = vmatprep.subr.mxu0 0.0
        %6144 = vmatpush1.msra.mxu0 0.0
        %6145 = vmatprep.subr.mxu0 0.0
        %6146 = vmatpush1.msra.mxu0 0.0
        %6147 = vmatprep.subr.mxu0 0.0
        %6148 = vmatpush1.msra.mxu0 0.0
        %6149 = vmatprep.subr.mxu0 0.0
        %6150 = vmatpush1.msra.mxu0 0.0
        %6151 = vmatprep.subr.mxu0 0.0
        %6152 = vmatpush1.msra.mxu0 0.0
        %6153 = vmatprep.subr.mxu0 0.0
        %6154 = vmatpush1.msra.mxu0 0.0
        %6155 = vmatprep.subr.mxu0 0.0
        %6156 = vmatpush1.msra.mxu0 0.0
        %6157 = vmatprep.subr.mxu0 %v5305
        %6158 = vmatpush1.msra.mxu0 %v5304
        %6159 = vmatprep.subr.mxu0 %v5289
        %6160 = vmatpush1.msra.mxu0 %v5288
        %6161 = vmatprep.subr.mxu0 0.0
        %6162 = vmatpush2.msra.mxu0 0.0
        %6163 = vmatprep.subr.mxu0 0.0
        %6164 = vmatpush2.msra.mxu0 0.0
        %6165 = vmatprep.subr.mxu0 0.0
        %6166 = vmatpush2.msra.mxu0 0.0
        %6167 = vmatprep.subr.mxu0 0.0
        %6168 = vmatpush2.msra.mxu0 0.0
        %6169 = vmatprep.subr.mxu0 0.0
        %6170 = vmatpush2.msra.mxu0 0.0
        %6171 = vmatprep.subr.mxu0 0.0
        %6172 = vmatpush2.msra.mxu0 0.0
        %6173 = vmatprep.subr.mxu0 0.0
        %6174 = vmatpush2.msra.mxu0 0.0
        %6175 = vmatprep.subr.mxu0 0.0
        %6176 = vmatpush2.msra.mxu0 0.0
        %6177 = vmatprep.subr.mxu0 0.0
        %6178 = vmatpush2.msra.mxu0 0.0
        %6179 = vmatprep.subr.mxu0 0.0
        %6180 = vmatpush2.msra.mxu0 0.0
        %6181 = vmatprep.subr.mxu0 0.0
        %6182 = vmatpush2.msra.mxu0 0.0
        %6183 = vmatprep.subr.mxu0 0.0
        %6184 = vmatpush2.msra.mxu0 0.0
        %6185 = vmatprep.subr.mxu0 0.0
        %6186 = vmatpush2.msra.mxu0 0.0
        %6187 = vmatprep.subr.mxu0 0.0
        %6188 = vmatpush2.msra.mxu0 0.0
        %6189 = vmatprep.subr.mxu0 0.0
        %6190 = vmatpush2.msra.mxu0 0.0
        %6191 = vmatprep.subr.mxu0 0.0
        %6192 = vmatpush2.msra.mxu0 0.0
        %6193 = vmatprep.mubr.f32.mxu0 0.0
        %6194 = vmatmul.mubr.f32.gmra.mxu0 %v5315
        %v6195 = vpop.f32.mrf.mxu0
        %v6196 = vadd.f32 0.0, %v6195
        %v6197 = vpop.f32.mrf.mxu0
        %v6198 = vadd.f32 0.0, %v6197
        %6199 = vmatprep.mubr.f32.mxu0 0.0
        %6200 = vmatmul.mubr.f32.gmra.mxu0 %v5318
        %v6201 = vpop.f32.mrf.mxu0
        %v6202 = vadd.f32 0.0, %v6201
        %v6203 = vpop.f32.mrf.mxu0
        %v6204 = vadd.f32 0.0, %v6203
        %6205 = vmatprep.mubr.f32.mxu0 0.0
        %6206 = vmatmul.mubr.f32.gmra.mxu0 %v5321
        %v6207 = vpop.f32.mrf.mxu0
        %v6208 = vadd.f32 0.0, %v6207
        %v6209 = vpop.f32.mrf.mxu0
        %v6210 = vadd.f32 0.0, %v6209
        %6211 = vmatprep.mubr.f32.mxu0 0.0
        %6212 = vmatmul.mubr.f32.gmra.mxu0 %v5324
        %v6213 = vpop.f32.mrf.mxu0
        %v6214 = vadd.f32 0.0, %v6213
        %v6215 = vpop.f32.mrf.mxu0
        %v6216 = vadd.f32 0.0, %v6215
        %6217 = vmatprep.mubr.f32.mxu0 0.0
        %6218 = vmatmul.mubr.f32.gmra.mxu0 %v5327
        %v6219 = vpop.f32.mrf.mxu0
        %v6220 = vadd.f32 0.0, %v6219
        %v6221 = vpop.f32.mrf.mxu0
        %v6222 = vadd.f32 0.0, %v6221
        %6223 = vmatprep.mubr.f32.mxu0 0.0
        %6224 = vmatmul.mubr.f32.gmra.mxu0 %v5330
        %v6225 = vpop.f32.mrf.mxu0
        %v6226 = vadd.f32 0.0, %v6225
        %v6227 = vpop.f32.mrf.mxu0
        %v6228 = vadd.f32 0.0, %v6227
        %6229 = vmatprep.mubr.f32.mxu0 0.0
        %6230 = vmatmul.mubr.f32.gmra.mxu0 %v5333
        %v6231 = vpop.f32.mrf.mxu0
        %v6232 = vadd.f32 0.0, %v6231
        %v6233 = vpop.f32.mrf.mxu0
        %v6234 = vadd.f32 0.0, %v6233
        %6235 = vmatprep.mubr.f32.mxu0 0.0
        %6236 = vmatmul.mubr.f32.gmra.mxu0 %v5336
        %v6237 = vpop.f32.mrf.mxu0
        %v6238 = vadd.f32 0.0, %v6237
        %v6239 = vpop.f32.mrf.mxu0
        %v6240 = vadd.f32 0.0, %v6239
        %6241 = vdwg.mxu0
        %v6242 = vxor.u32 %v5405, 2147483648
        %v6243 = vxor.u32 %v5407, 2147483648
        %v6244 = vxor.u32 %v5518, 2147483648
        %v6245 = vxor.u32 %v5520, 2147483648
        %v6246 = vxor.u32 %v5631, 2147483648
        %v6247 = vxor.u32 %v5633, 2147483648
        %v6248 = vxor.u32 %v5744, 2147483648
        %v6249 = vxor.u32 %v5746, 2147483648
        %v6250 = vxor.u32 %v5857, 2147483648
        %v6251 = vxor.u32 %v5859, 2147483648
        %v6252 = vxor.u32 %v5970, 2147483648
        %v6253 = vxor.u32 %v5972, 2147483648
        %v6254 = vxor.u32 %v6083, 2147483648
        %v6255 = vxor.u32 %v6085, 2147483648
        %v6256 = vxor.u32 %v6196, 2147483648
        %v6257 = vxor.u32 %v6198, 2147483648
        %v6258 = vxor.u32 %v5411, 2147483648
        %v6259 = vxor.u32 %v5413, 2147483648
        %v6260 = vxor.u32 %v5524, 2147483648
        %v6261 = vxor.u32 %v5526, 2147483648
        %v6262 = vxor.u32 %v5637, 2147483648
        %v6263 = vxor.u32 %v5639, 2147483648
        %v6264 = vxor.u32 %v5750, 2147483648
        %v6265 = vxor.u32 %v5752, 2147483648
        %v6266 = vxor.u32 %v5863, 2147483648
        %v6267 = vxor.u32 %v5865, 2147483648
        %v6268 = vxor.u32 %v5976, 2147483648
        %v6269 = vxor.u32 %v5978, 2147483648
        %v6270 = vxor.u32 %v6089, 2147483648
        %v6271 = vxor.u32 %v6091, 2147483648
        %v6272 = vxor.u32 %v6202, 2147483648
        %v6273 = vxor.u32 %v6204, 2147483648
        %v6274 = vxor.u32 %v5417, 2147483648
        %v6275 = vxor.u32 %v5419, 2147483648
        %v6276 = vxor.u32 %v5530, 2147483648
        %v6277 = vxor.u32 %v5532, 2147483648
        %v6278 = vxor.u32 %v5643, 2147483648
        %v6279 = vxor.u32 %v5645, 2147483648
        %v6280 = vxor.u32 %v5756, 2147483648
        %v6281 = vxor.u32 %v5758, 2147483648
        %v6282 = vxor.u32 %v5869, 2147483648
        %v6283 = vxor.u32 %v5871, 2147483648
        %v6284 = vxor.u32 %v5982, 2147483648
        %v6285 = vxor.u32 %v5984, 2147483648
        %v6286 = vxor.u32 %v6095, 2147483648
        %v6287 = vxor.u32 %v6097, 2147483648
        %v6288 = vxor.u32 %v6208, 2147483648
        %v6289 = vxor.u32 %v6210, 2147483648
        %v6290 = vxor.u32 %v5423, 2147483648
        %v6291 = vxor.u32 %v5425, 2147483648
        %v6292 = vxor.u32 %v5536, 2147483648
        %v6293 = vxor.u32 %v5538, 2147483648
        %v6294 = vxor.u32 %v5649, 2147483648
        %v6295 = vxor.u32 %v5651, 2147483648
        %v6296 = vxor.u32 %v5762, 2147483648
        %v6297 = vxor.u32 %v5764, 2147483648
        %v6298 = vxor.u32 %v5875, 2147483648
        %v6299 = vxor.u32 %v5877, 2147483648
        %v6300 = vxor.u32 %v5988, 2147483648
        %v6301 = vxor.u32 %v5990, 2147483648
        %v6302 = vxor.u32 %v6101, 2147483648
        %v6303 = vxor.u32 %v6103, 2147483648
        %v6304 = vxor.u32 %v6214, 2147483648
        %v6305 = vxor.u32 %v6216, 2147483648
        %v6306 = vxor.u32 %v5429, 2147483648
        %v6307 = vxor.u32 %v5431, 2147483648
        %v6308 = vxor.u32 %v5542, 2147483648
        %v6309 = vxor.u32 %v5544, 2147483648
        %v6310 = vxor.u32 %v5655, 2147483648
        %v6311 = vxor.u32 %v5657, 2147483648
        %v6312 = vxor.u32 %v5768, 2147483648
        %v6313 = vxor.u32 %v5770, 2147483648
        %v6314 = vxor.u32 %v5881, 2147483648
        %v6315 = vxor.u32 %v5883, 2147483648
        %v6316 = vxor.u32 %v5994, 2147483648
        %v6317 = vxor.u32 %v5996, 2147483648
        %v6318 = vxor.u32 %v6107, 2147483648
        %v6319 = vxor.u32 %v6109, 2147483648
        %v6320 = vxor.u32 %v6220, 2147483648
        %v6321 = vxor.u32 %v6222, 2147483648
        %v6322 = vxor.u32 %v5435, 2147483648
        %v6323 = vxor.u32 %v5437, 2147483648
        %v6324 = vxor.u32 %v5548, 2147483648
        %v6325 = vxor.u32 %v5550, 2147483648
        %v6326 = vxor.u32 %v5661, 2147483648
        %v6327 = vxor.u32 %v5663, 2147483648
        %v6328 = vxor.u32 %v5774, 2147483648
        %v6329 = vxor.u32 %v5776, 2147483648
        %v6330 = vxor.u32 %v5887, 2147483648
        %v6331 = vxor.u32 %v5889, 2147483648
        %v6332 = vxor.u32 %v6000, 2147483648
        %v6333 = vxor.u32 %v6002, 2147483648
        %v6334 = vxor.u32 %v6113, 2147483648
        %v6335 = vxor.u32 %v6115, 2147483648
        %v6336 = vxor.u32 %v6226, 2147483648
        %v6337 = vxor.u32 %v6228, 2147483648
        %v6338 = vxor.u32 %v5441, 2147483648
        %v6339 = vxor.u32 %v5443, 2147483648
        %v6340 = vxor.u32 %v5554, 2147483648
        %v6341 = vxor.u32 %v5556, 2147483648
        %v6342 = vxor.u32 %v5667, 2147483648
        %v6343 = vxor.u32 %v5669, 2147483648
        %v6344 = vxor.u32 %v5780, 2147483648
        %v6345 = vxor.u32 %v5782, 2147483648
        %v6346 = vxor.u32 %v5893, 2147483648
        %v6347 = vxor.u32 %v5895, 2147483648
        %v6348 = vxor.u32 %v6006, 2147483648
        %v6349 = vxor.u32 %v6008, 2147483648
        %v6350 = vxor.u32 %v6119, 2147483648
        %v6351 = vxor.u32 %v6121, 2147483648
        %v6352 = vxor.u32 %v6232, 2147483648
        %v6353 = vxor.u32 %v6234, 2147483648
        %v6354 = vxor.u32 %v5447, 2147483648
        %v6355 = vxor.u32 %v5449, 2147483648
        %v6356 = vxor.u32 %v5560, 2147483648
        %v6357 = vxor.u32 %v5562, 2147483648
        %v6358 = vxor.u32 %v5673, 2147483648
        %v6359 = vxor.u32 %v5675, 2147483648
        %v6360 = vxor.u32 %v5786, 2147483648
        %v6361 = vxor.u32 %v5788, 2147483648
        %v6362 = vxor.u32 %v5899, 2147483648
        %v6363 = vxor.u32 %v5901, 2147483648
        %v6364 = vxor.u32 %v6012, 2147483648
        %v6365 = vxor.u32 %v6014, 2147483648
        %v6366 = vxor.u32 %v6125, 2147483648
        %v6367 = vxor.u32 %v6127, 2147483648
        %v6368 = vxor.u32 %v6238, 2147483648
        %v6369 = vxor.u32 %v6240, 2147483648
        %v6370 = vmul.f32 %v6242, 1.442695
        %v6371 = vpow.pop %v6370
        %v6372 = vmul.f32 %v6243, 1.442695
        %v6373 = vpow.pop %v6372
        %v6374 = vmul.f32 %v6244, 1.442695
        %v6375 = vpow.pop %v6374
        %v6376 = vmul.f32 %v6245, 1.442695
        %v6377 = vpow.pop %v6376
        %v6378 = vmul.f32 %v6246, 1.442695
        %v6379 = vpow.pop %v6378
        %v6380 = vmul.f32 %v6247, 1.442695
        %v6381 = vpow.pop %v6380
        %v6382 = vmul.f32 %v6248, 1.442695
        %v6383 = vpow.pop %v6382
        %v6384 = vmul.f32 %v6249, 1.442695
        %v6385 = vpow.pop %v6384
        %v6386 = vmul.f32 %v6250, 1.442695
        %v6387 = vpow.pop %v6386
        %v6388 = vmul.f32 %v6251, 1.442695
        %v6389 = vpow.pop %v6388
        %v6390 = vmul.f32 %v6252, 1.442695
        %v6391 = vpow.pop %v6390
        %v6392 = vmul.f32 %v6253, 1.442695
        %v6393 = vpow.pop %v6392
        %v6394 = vmul.f32 %v6254, 1.442695
        %v6395 = vpow.pop %v6394
        %v6396 = vmul.f32 %v6255, 1.442695
        %v6397 = vpow.pop %v6396
        %v6398 = vmul.f32 %v6256, 1.442695
        %v6399 = vpow.pop %v6398
        %v6400 = vmul.f32 %v6257, 1.442695
        %v6401 = vpow.pop %v6400
        %v6402 = vmul.f32 %v6258, 1.442695
        %v6403 = vpow.pop %v6402
        %v6404 = vmul.f32 %v6259, 1.442695
        %v6405 = vpow.pop %v6404
        %v6406 = vmul.f32 %v6260, 1.442695
        %v6407 = vpow.pop %v6406
        %v6408 = vmul.f32 %v6261, 1.442695
        %v6409 = vpow.pop %v6408
        %v6410 = vmul.f32 %v6262, 1.442695
        %v6411 = vpow.pop %v6410
        %v6412 = vmul.f32 %v6263, 1.442695
        %v6413 = vpow.pop %v6412
        %v6414 = vmul.f32 %v6264, 1.442695
        %v6415 = vpow.pop %v6414
        %v6416 = vmul.f32 %v6265, 1.442695
        %v6417 = vpow.pop %v6416
        %v6418 = vmul.f32 %v6266, 1.442695
        %v6419 = vpow.pop %v6418
        %v6420 = vmul.f32 %v6267, 1.442695
        %v6421 = vpow.pop %v6420
        %v6422 = vmul.f32 %v6268, 1.442695
        %v6423 = vpow.pop %v6422
        %v6424 = vmul.f32 %v6269, 1.442695
        %v6425 = vpow.pop %v6424
        %v6426 = vmul.f32 %v6270, 1.442695
        %v6427 = vpow.pop %v6426
        %v6428 = vmul.f32 %v6271, 1.442695
        %v6429 = vpow.pop %v6428
        %v6430 = vmul.f32 %v6272, 1.442695
        %v6431 = vpow.pop %v6430
        %v6432 = vmul.f32 %v6273, 1.442695
        %v6433 = vpow.pop %v6432
        %v6434 = vmul.f32 %v6274, 1.442695
        %v6435 = vpow.pop %v6434
        %v6436 = vmul.f32 %v6275, 1.442695
        %v6437 = vpow.pop %v6436
        %v6438 = vmul.f32 %v6276, 1.442695
        %v6439 = vpow.pop %v6438
        %v6440 = vmul.f32 %v6277, 1.442695
        %v6441 = vpow.pop %v6440
        %v6442 = vmul.f32 %v6278, 1.442695
        %v6443 = vpow.pop %v6442
        %v6444 = vmul.f32 %v6279, 1.442695
        %v6445 = vpow.pop %v6444
        %v6446 = vmul.f32 %v6280, 1.442695
        %v6447 = vpow.pop %v6446
        %v6448 = vmul.f32 %v6281, 1.442695
        %v6449 = vpow.pop %v6448
        %v6450 = vmul.f32 %v6282, 1.442695
        %v6451 = vpow.pop %v6450
        %v6452 = vmul.f32 %v6283, 1.442695
        %v6453 = vpow.pop %v6452
        %v6454 = vmul.f32 %v6284, 1.442695
        %v6455 = vpow.pop %v6454
        %v6456 = vmul.f32 %v6285, 1.442695
        %v6457 = vpow.pop %v6456
        %v6458 = vmul.f32 %v6286, 1.442695
        %v6459 = vpow.pop %v6458
        %v6460 = vmul.f32 %v6287, 1.442695
        %v6461 = vpow.pop %v6460
        %v6462 = vmul.f32 %v6288, 1.442695
        %v6463 = vpow.pop %v6462
        %v6464 = vmul.f32 %v6289, 1.442695
        %v6465 = vpow.pop %v6464
        %v6466 = vmul.f32 %v6290, 1.442695
        %v6467 = vpow.pop %v6466
        %v6468 = vmul.f32 %v6291, 1.442695
        %v6469 = vpow.pop %v6468
        %v6470 = vmul.f32 %v6292, 1.442695
        %v6471 = vpow.pop %v6470
        %v6472 = vmul.f32 %v6293, 1.442695
        %v6473 = vpow.pop %v6472
        %v6474 = vmul.f32 %v6294, 1.442695
        %v6475 = vpow.pop %v6474
        %v6476 = vmul.f32 %v6295, 1.442695
        %v6477 = vpow.pop %v6476
        %v6478 = vmul.f32 %v6296, 1.442695
        %v6479 = vpow.pop %v6478
        %v6480 = vmul.f32 %v6297, 1.442695
        %v6481 = vpow.pop %v6480
        %v6482 = vmul.f32 %v6298, 1.442695
        %v6483 = vpow.pop %v6482
        %v6484 = vmul.f32 %v6299, 1.442695
        %v6485 = vpow.pop %v6484
        %v6486 = vmul.f32 %v6300, 1.442695
        %v6487 = vpow.pop %v6486
        %v6488 = vmul.f32 %v6301, 1.442695
        %v6489 = vpow.pop %v6488
        %v6490 = vmul.f32 %v6302, 1.442695
        %v6491 = vpow.pop %v6490
        %v6492 = vmul.f32 %v6303, 1.442695
        %v6493 = vpow.pop %v6492
        %v6494 = vmul.f32 %v6304, 1.442695
        %v6495 = vpow.pop %v6494
        %v6496 = vmul.f32 %v6305, 1.442695
        %v6497 = vpow.pop %v6496
        %v6498 = vmul.f32 %v6306, 1.442695
        %v6499 = vpow.pop %v6498
        %v6500 = vmul.f32 %v6307, 1.442695
        %v6501 = vpow.pop %v6500
        %v6502 = vmul.f32 %v6308, 1.442695
        %v6503 = vpow.pop %v6502
        %v6504 = vmul.f32 %v6309, 1.442695
        %v6505 = vpow.pop %v6504
        %v6506 = vmul.f32 %v6310, 1.442695
        %v6507 = vpow.pop %v6506
        %v6508 = vmul.f32 %v6311, 1.442695
        %v6509 = vpow.pop %v6508
        %v6510 = vmul.f32 %v6312, 1.442695
        %v6511 = vpow.pop %v6510
        %v6512 = vmul.f32 %v6313, 1.442695
        %v6513 = vpow.pop %v6512
        %v6514 = vmul.f32 %v6314, 1.442695
        %v6515 = vpow.pop %v6514
        %v6516 = vmul.f32 %v6315, 1.442695
        %v6517 = vpow.pop %v6516
        %v6518 = vmul.f32 %v6316, 1.442695
        %v6519 = vpow.pop %v6518
        %v6520 = vmul.f32 %v6317, 1.442695
        %v6521 = vpow.pop %v6520
        %v6522 = vmul.f32 %v6318, 1.442695
        %v6523 = vpow.pop %v6522
        %v6524 = vmul.f32 %v6319, 1.442695
        %v6525 = vpow.pop %v6524
        %v6526 = vmul.f32 %v6320, 1.442695
        %v6527 = vpow.pop %v6526
        %v6528 = vmul.f32 %v6321, 1.442695
        %v6529 = vpow.pop %v6528
        %v6530 = vmul.f32 %v6322, 1.442695
        %v6531 = vpow.pop %v6530
        %v6532 = vmul.f32 %v6323, 1.442695
        %v6533 = vpow.pop %v6532
        %v6534 = vmul.f32 %v6324, 1.442695
        %v6535 = vpow.pop %v6534
        %v6536 = vmul.f32 %v6325, 1.442695
        %v6537 = vpow.pop %v6536
        %v6538 = vmul.f32 %v6326, 1.442695
        %v6539 = vpow.pop %v6538
        %v6540 = vmul.f32 %v6327, 1.442695
        %v6541 = vpow.pop %v6540
        %v6542 = vmul.f32 %v6328, 1.442695
        %v6543 = vpow.pop %v6542
        %v6544 = vmul.f32 %v6329, 1.442695
        %v6545 = vpow.pop %v6544
        %v6546 = vmul.f32 %v6330, 1.442695
        %v6547 = vpow.pop %v6546
        %v6548 = vmul.f32 %v6331, 1.442695
        %v6549 = vpow.pop %v6548
        %v6550 = vmul.f32 %v6332, 1.442695
        %v6551 = vpow.pop %v6550
        %v6552 = vmul.f32 %v6333, 1.442695
        %v6553 = vpow.pop %v6552
        %v6554 = vmul.f32 %v6334, 1.442695
        %v6555 = vpow.pop %v6554
        %v6556 = vmul.f32 %v6335, 1.442695
        %v6557 = vpow.pop %v6556
        %v6558 = vmul.f32 %v6336, 1.442695
        %v6559 = vpow.pop %v6558
        %v6560 = vmul.f32 %v6337, 1.442695
        %v6561 = vpow.pop %v6560
        %v6562 = vmul.f32 %v6338, 1.442695
        %v6563 = vpow.pop %v6562
        %v6564 = vmul.f32 %v6339, 1.442695
        %v6565 = vpow.pop %v6564
        %v6566 = vmul.f32 %v6340, 1.442695
        %v6567 = vpow.pop %v6566
        %v6568 = vmul.f32 %v6341, 1.442695
        %v6569 = vpow.pop %v6568
        %v6570 = vmul.f32 %v6342, 1.442695
        %v6571 = vpow.pop %v6570
        %v6572 = vmul.f32 %v6343, 1.442695
        %v6573 = vpow.pop %v6572
        %v6574 = vmul.f32 %v6344, 1.442695
        %v6575 = vpow.pop %v6574
        %v6576 = vmul.f32 %v6345, 1.442695
        %v6577 = vpow.pop %v6576
        %v6578 = vmul.f32 %v6346, 1.442695
        %v6579 = vpow.pop %v6578
        %v6580 = vmul.f32 %v6347, 1.442695
        %v6581 = vpow.pop %v6580
        %v6582 = vmul.f32 %v6348, 1.442695
        %v6583 = vpow.pop %v6582
        %v6584 = vmul.f32 %v6349, 1.442695
        %v6585 = vpow.pop %v6584
        %v6586 = vmul.f32 %v6350, 1.442695
        %v6587 = vpow.pop %v6586
        %v6588 = vmul.f32 %v6351, 1.442695
        %v6589 = vpow.pop %v6588
        %v6590 = vmul.f32 %v6352, 1.442695
        %v6591 = vpow.pop %v6590
        %v6592 = vmul.f32 %v6353, 1.442695
        %v6593 = vpow.pop %v6592
        %v6594 = vmul.f32 %v6354, 1.442695
        %v6595 = vpow.pop %v6594
        %v6596 = vmul.f32 %v6355, 1.442695
        %v6597 = vpow.pop %v6596
        %v6598 = vmul.f32 %v6356, 1.442695
        %v6599 = vpow.pop %v6598
        %v6600 = vmul.f32 %v6357, 1.442695
        %v6601 = vpow.pop %v6600
        %v6602 = vmul.f32 %v6358, 1.442695
        %v6603 = vpow.pop %v6602
        %v6604 = vmul.f32 %v6359, 1.442695
        %v6605 = vpow.pop %v6604
        %v6606 = vmul.f32 %v6360, 1.442695
        %v6607 = vpow.pop %v6606
        %v6608 = vmul.f32 %v6361, 1.442695
        %v6609 = vpow.pop %v6608
        %v6610 = vmul.f32 %v6362, 1.442695
        %v6611 = vpow.pop %v6610
        %v6612 = vmul.f32 %v6363, 1.442695
        %v6613 = vpow.pop %v6612
        %v6614 = vmul.f32 %v6364, 1.442695
        %v6615 = vpow.pop %v6614
        %v6616 = vmul.f32 %v6365, 1.442695
        %v6617 = vpow.pop %v6616
        %v6618 = vmul.f32 %v6366, 1.442695
        %v6619 = vpow.pop %v6618
        %v6620 = vmul.f32 %v6367, 1.442695
        %v6621 = vpow.pop %v6620
        %v6622 = vmul.f32 %v6368, 1.442695
        %v6623 = vpow.pop %v6622
        %v6624 = vmul.f32 %v6369, 1.442695
        %v6625 = vpow.pop %v6624
        %v6626 = vadd.f32 %v6371, 1.0
        %v6627 = vadd.f32 %v6373, 1.0
        %v6628 = vadd.f32 %v6375, 1.0
        %v6629 = vadd.f32 %v6377, 1.0
        %v6630 = vadd.f32 %v6379, 1.0
        %v6631 = vadd.f32 %v6381, 1.0
        %v6632 = vadd.f32 %v6383, 1.0
        %v6633 = vadd.f32 %v6385, 1.0
        %v6634 = vadd.f32 %v6387, 1.0
        %v6635 = vadd.f32 %v6389, 1.0
        %v6636 = vadd.f32 %v6391, 1.0
        %v6637 = vadd.f32 %v6393, 1.0
        %v6638 = vadd.f32 %v6395, 1.0
        %v6639 = vadd.f32 %v6397, 1.0
        %v6640 = vadd.f32 %v6399, 1.0
        %v6641 = vadd.f32 %v6401, 1.0
        %v6642 = vadd.f32 %v6403, 1.0
        %v6643 = vadd.f32 %v6405, 1.0
        %v6644 = vadd.f32 %v6407, 1.0
        %v6645 = vadd.f32 %v6409, 1.0
        %v6646 = vadd.f32 %v6411, 1.0
        %v6647 = vadd.f32 %v6413, 1.0
        %v6648 = vadd.f32 %v6415, 1.0
        %v6649 = vadd.f32 %v6417, 1.0
        %v6650 = vadd.f32 %v6419, 1.0
        %v6651 = vadd.f32 %v6421, 1.0
        %v6652 = vadd.f32 %v6423, 1.0
        %v6653 = vadd.f32 %v6425, 1.0
        %v6654 = vadd.f32 %v6427, 1.0
        %v6655 = vadd.f32 %v6429, 1.0
        %v6656 = vadd.f32 %v6431, 1.0
        %v6657 = vadd.f32 %v6433, 1.0
        %v6658 = vadd.f32 %v6435, 1.0
        %v6659 = vadd.f32 %v6437, 1.0
        %v6660 = vadd.f32 %v6439, 1.0
        %v6661 = vadd.f32 %v6441, 1.0
        %v6662 = vadd.f32 %v6443, 1.0
        %v6663 = vadd.f32 %v6445, 1.0
        %v6664 = vadd.f32 %v6447, 1.0
        %v6665 = vadd.f32 %v6449, 1.0
        %v6666 = vadd.f32 %v6451, 1.0
        %v6667 = vadd.f32 %v6453, 1.0
        %v6668 = vadd.f32 %v6455, 1.0
        %v6669 = vadd.f32 %v6457, 1.0
        %v6670 = vadd.f32 %v6459, 1.0
        %v6671 = vadd.f32 %v6461, 1.0
        %v6672 = vadd.f32 %v6463, 1.0
        %v6673 = vadd.f32 %v6465, 1.0
        %v6674 = vadd.f32 %v6467, 1.0
        %v6675 = vadd.f32 %v6469, 1.0
        %v6676 = vadd.f32 %v6471, 1.0
        %v6677 = vadd.f32 %v6473, 1.0
        %v6678 = vadd.f32 %v6475, 1.0
        %v6679 = vadd.f32 %v6477, 1.0
        %v6680 = vadd.f32 %v6479, 1.0
        %v6681 = vadd.f32 %v6481, 1.0
        %v6682 = vadd.f32 %v6483, 1.0
        %v6683 = vadd.f32 %v6485, 1.0
        %v6684 = vadd.f32 %v6487, 1.0
        %v6685 = vadd.f32 %v6489, 1.0
        %v6686 = vadd.f32 %v6491, 1.0
        %v6687 = vadd.f32 %v6493, 1.0
        %v6688 = vadd.f32 %v6495, 1.0
        %v6689 = vadd.f32 %v6497, 1.0
        %v6690 = vadd.f32 %v6499, 1.0
        %v6691 = vadd.f32 %v6501, 1.0
        %v6692 = vadd.f32 %v6503, 1.0
        %v6693 = vadd.f32 %v6505, 1.0
        %v6694 = vadd.f32 %v6507, 1.0
        %v6695 = vadd.f32 %v6509, 1.0
        %v6696 = vadd.f32 %v6511, 1.0
        %v6697 = vadd.f32 %v6513, 1.0
        %v6698 = vadd.f32 %v6515, 1.0
        %v6699 = vadd.f32 %v6517, 1.0
        %v6700 = vadd.f32 %v6519, 1.0
        %v6701 = vadd.f32 %v6521, 1.0
        %v6702 = vadd.f32 %v6523, 1.0
        %v6703 = vadd.f32 %v6525, 1.0
        %v6704 = vadd.f32 %v6527, 1.0
        %v6705 = vadd.f32 %v6529, 1.0
        %v6706 = vadd.f32 %v6531, 1.0
        %v6707 = vadd.f32 %v6533, 1.0
        %v6708 = vadd.f32 %v6535, 1.0
        %v6709 = vadd.f32 %v6537, 1.0
        %v6710 = vadd.f32 %v6539, 1.0
        %v6711 = vadd.f32 %v6541, 1.0
        %v6712 = vadd.f32 %v6543, 1.0
        %v6713 = vadd.f32 %v6545, 1.0
        %v6714 = vadd.f32 %v6547, 1.0
        %v6715 = vadd.f32 %v6549, 1.0
        %v6716 = vadd.f32 %v6551, 1.0
        %v6717 = vadd.f32 %v6553, 1.0
        %v6718 = vadd.f32 %v6555, 1.0
        %v6719 = vadd.f32 %v6557, 1.0
        %v6720 = vadd.f32 %v6559, 1.0
        %v6721 = vadd.f32 %v6561, 1.0
        %v6722 = vadd.f32 %v6563, 1.0
        %v6723 = vadd.f32 %v6565, 1.0
        %v6724 = vadd.f32 %v6567, 1.0
        %v6725 = vadd.f32 %v6569, 1.0
        %v6726 = vadd.f32 %v6571, 1.0
        %v6727 = vadd.f32 %v6573, 1.0
        %v6728 = vadd.f32 %v6575, 1.0
        %v6729 = vadd.f32 %v6577, 1.0
        %v6730 = vadd.f32 %v6579, 1.0
        %v6731 = vadd.f32 %v6581, 1.0
        %v6732 = vadd.f32 %v6583, 1.0
        %v6733 = vadd.f32 %v6585, 1.0
        %v6734 = vadd.f32 %v6587, 1.0
        %v6735 = vadd.f32 %v6589, 1.0
        %v6736 = vadd.f32 %v6591, 1.0
        %v6737 = vadd.f32 %v6593, 1.0
        %v6738 = vadd.f32 %v6595, 1.0
        %v6739 = vadd.f32 %v6597, 1.0
        %v6740 = vadd.f32 %v6599, 1.0
        %v6741 = vadd.f32 %v6601, 1.0
        %v6742 = vadd.f32 %v6603, 1.0
        %v6743 = vadd.f32 %v6605, 1.0
        %v6744 = vadd.f32 %v6607, 1.0
        %v6745 = vadd.f32 %v6609, 1.0
        %v6746 = vadd.f32 %v6611, 1.0
        %v6747 = vadd.f32 %v6613, 1.0
        %v6748 = vadd.f32 %v6615, 1.0
        %v6749 = vadd.f32 %v6617, 1.0
        %v6750 = vadd.f32 %v6619, 1.0
        %v6751 = vadd.f32 %v6621, 1.0
        %v6752 = vadd.f32 %v6623, 1.0
        %v6753 = vadd.f32 %v6625, 1.0
        %v6754 = vrcp.pop %v6626
        %v6755 = vmul.f32 1.0, %v6754
        %v6756 = vrcp.pop %v6627
        %v6757 = vmul.f32 1.0, %v6756
        %v6758 = vrcp.pop %v6628
        %v6759 = vmul.f32 1.0, %v6758
        %v6760 = vrcp.pop %v6629
        %v6761 = vmul.f32 1.0, %v6760
        %v6762 = vrcp.pop %v6630
        %v6763 = vmul.f32 1.0, %v6762
        %v6764 = vrcp.pop %v6631
        %v6765 = vmul.f32 1.0, %v6764
        %v6766 = vrcp.pop %v6632
        %v6767 = vmul.f32 1.0, %v6766
        %v6768 = vrcp.pop %v6633
        %v6769 = vmul.f32 1.0, %v6768
        %v6770 = vrcp.pop %v6634
        %v6771 = vmul.f32 1.0, %v6770
        %v6772 = vrcp.pop %v6635
        %v6773 = vmul.f32 1.0, %v6772
        %v6774 = vrcp.pop %v6636
        %v6775 = vmul.f32 1.0, %v6774
        %v6776 = vrcp.pop %v6637
        %v6777 = vmul.f32 1.0, %v6776
        %v6778 = vrcp.pop %v6638
        %v6779 = vmul.f32 1.0, %v6778
        %v6780 = vrcp.pop %v6639
        %v6781 = vmul.f32 1.0, %v6780
        %v6782 = vrcp.pop %v6640
        %v6783 = vmul.f32 1.0, %v6782
        %v6784 = vrcp.pop %v6641
        %v6785 = vmul.f32 1.0, %v6784
        %v6786 = vrcp.pop %v6642
        %v6787 = vmul.f32 1.0, %v6786
        %v6788 = vrcp.pop %v6643
        %v6789 = vmul.f32 1.0, %v6788
        %v6790 = vrcp.pop %v6644
        %v6791 = vmul.f32 1.0, %v6790
        %v6792 = vrcp.pop %v6645
        %v6793 = vmul.f32 1.0, %v6792
        %v6794 = vrcp.pop %v6646
        %v6795 = vmul.f32 1.0, %v6794
        %v6796 = vrcp.pop %v6647
        %v6797 = vmul.f32 1.0, %v6796
        %v6798 = vrcp.pop %v6648
        %v6799 = vmul.f32 1.0, %v6798
        %v6800 = vrcp.pop %v6649
        %v6801 = vmul.f32 1.0, %v6800
        %v6802 = vrcp.pop %v6650
        %v6803 = vmul.f32 1.0, %v6802
        %v6804 = vrcp.pop %v6651
        %v6805 = vmul.f32 1.0, %v6804
        %v6806 = vrcp.pop %v6652
        %v6807 = vmul.f32 1.0, %v6806
        %v6808 = vrcp.pop %v6653
        %v6809 = vmul.f32 1.0, %v6808
        %v6810 = vrcp.pop %v6654
        %v6811 = vmul.f32 1.0, %v6810
        %v6812 = vrcp.pop %v6655
        %v6813 = vmul.f32 1.0, %v6812
        %v6814 = vrcp.pop %v6656
        %v6815 = vmul.f32 1.0, %v6814
        %v6816 = vrcp.pop %v6657
        %v6817 = vmul.f32 1.0, %v6816
        %v6818 = vrcp.pop %v6658
        %v6819 = vmul.f32 1.0, %v6818
        %v6820 = vrcp.pop %v6659
        %v6821 = vmul.f32 1.0, %v6820
        %v6822 = vrcp.pop %v6660
        %v6823 = vmul.f32 1.0, %v6822
        %v6824 = vrcp.pop %v6661
        %v6825 = vmul.f32 1.0, %v6824
        %v6826 = vrcp.pop %v6662
        %v6827 = vmul.f32 1.0, %v6826
        %v6828 = vrcp.pop %v6663
        %v6829 = vmul.f32 1.0, %v6828
        %v6830 = vrcp.pop %v6664
        %v6831 = vmul.f32 1.0, %v6830
        %v6832 = vrcp.pop %v6665
        %v6833 = vmul.f32 1.0, %v6832
        %v6834 = vrcp.pop %v6666
        %v6835 = vmul.f32 1.0, %v6834
        %v6836 = vrcp.pop %v6667
        %v6837 = vmul.f32 1.0, %v6836
        %v6838 = vrcp.pop %v6668
        %v6839 = vmul.f32 1.0, %v6838
        %v6840 = vrcp.pop %v6669
        %v6841 = vmul.f32 1.0, %v6840
        %v6842 = vrcp.pop %v6670
        %v6843 = vmul.f32 1.0, %v6842
        %v6844 = vrcp.pop %v6671
        %v6845 = vmul.f32 1.0, %v6844
        %v6846 = vrcp.pop %v6672
        %v6847 = vmul.f32 1.0, %v6846
        %v6848 = vrcp.pop %v6673
        %v6849 = vmul.f32 1.0, %v6848
        %v6850 = vrcp.pop %v6674
        %v6851 = vmul.f32 1.0, %v6850
        %v6852 = vrcp.pop %v6675
        %v6853 = vmul.f32 1.0, %v6852
        %v6854 = vrcp.pop %v6676
        %v6855 = vmul.f32 1.0, %v6854
        %v6856 = vrcp.pop %v6677
        %v6857 = vmul.f32 1.0, %v6856
        %v6858 = vrcp.pop %v6678
        %v6859 = vmul.f32 1.0, %v6858
        %v6860 = vrcp.pop %v6679
        %v6861 = vmul.f32 1.0, %v6860
        %v6862 = vrcp.pop %v6680
        %v6863 = vmul.f32 1.0, %v6862
        %v6864 = vrcp.pop %v6681
        %v6865 = vmul.f32 1.0, %v6864
        %v6866 = vrcp.pop %v6682
        %v6867 = vmul.f32 1.0, %v6866
        %v6868 = vrcp.pop %v6683
        %v6869 = vmul.f32 1.0, %v6868
        %v6870 = vrcp.pop %v6684
        %v6871 = vmul.f32 1.0, %v6870
        %v6872 = vrcp.pop %v6685
        %v6873 = vmul.f32 1.0, %v6872
        %v6874 = vrcp.pop %v6686
        %v6875 = vmul.f32 1.0, %v6874
        %v6876 = vrcp.pop %v6687
        %v6877 = vmul.f32 1.0, %v6876
        %v6878 = vrcp.pop %v6688
        %v6879 = vmul.f32 1.0, %v6878
        %v6880 = vrcp.pop %v6689
        %v6881 = vmul.f32 1.0, %v6880
        %v6882 = vrcp.pop %v6690
        %v6883 = vmul.f32 1.0, %v6882
        %v6884 = vrcp.pop %v6691
        %v6885 = vmul.f32 1.0, %v6884
        %v6886 = vrcp.pop %v6692
        %v6887 = vmul.f32 1.0, %v6886
        %v6888 = vrcp.pop %v6693
        %v6889 = vmul.f32 1.0, %v6888
        %v6890 = vrcp.pop %v6694
        %v6891 = vmul.f32 1.0, %v6890
        %v6892 = vrcp.pop %v6695
        %v6893 = vmul.f32 1.0, %v6892
        %v6894 = vrcp.pop %v6696
        %v6895 = vmul.f32 1.0, %v6894
        %v6896 = vrcp.pop %v6697
        %v6897 = vmul.f32 1.0, %v6896
        %v6898 = vrcp.pop %v6698
        %v6899 = vmul.f32 1.0, %v6898
        %v6900 = vrcp.pop %v6699
        %v6901 = vmul.f32 1.0, %v6900
        %v6902 = vrcp.pop %v6700
        %v6903 = vmul.f32 1.0, %v6902
        %v6904 = vrcp.pop %v6701
        %v6905 = vmul.f32 1.0, %v6904
        %v6906 = vrcp.pop %v6702
        %v6907 = vmul.f32 1.0, %v6906
        %v6908 = vrcp.pop %v6703
        %v6909 = vmul.f32 1.0, %v6908
        %v6910 = vrcp.pop %v6704
        %v6911 = vmul.f32 1.0, %v6910
        %v6912 = vrcp.pop %v6705
        %v6913 = vmul.f32 1.0, %v6912
        %v6914 = vrcp.pop %v6706
        %v6915 = vmul.f32 1.0, %v6914
        %v6916 = vrcp.pop %v6707
        %v6917 = vmul.f32 1.0, %v6916
        %v6918 = vrcp.pop %v6708
        %v6919 = vmul.f32 1.0, %v6918
        %v6920 = vrcp.pop %v6709
        %v6921 = vmul.f32 1.0, %v6920
        %v6922 = vrcp.pop %v6710
        %v6923 = vmul.f32 1.0, %v6922
        %v6924 = vrcp.pop %v6711
        %v6925 = vmul.f32 1.0, %v6924
        %v6926 = vrcp.pop %v6712
        %v6927 = vmul.f32 1.0, %v6926
        %v6928 = vrcp.pop %v6713
        %v6929 = vmul.f32 1.0, %v6928
        %v6930 = vrcp.pop %v6714
        %v6931 = vmul.f32 1.0, %v6930
        %v6932 = vrcp.pop %v6715
        %v6933 = vmul.f32 1.0, %v6932
        %v6934 = vrcp.pop %v6716
        %v6935 = vmul.f32 1.0, %v6934
        %v6936 = vrcp.pop %v6717
        %v6937 = vmul.f32 1.0, %v6936
        %v6938 = vrcp.pop %v6718
        %v6939 = vmul.f32 1.0, %v6938
        %v6940 = vrcp.pop %v6719
        %v6941 = vmul.f32 1.0, %v6940
        %v6942 = vrcp.pop %v6720
        %v6943 = vmul.f32 1.0, %v6942
        %v6944 = vrcp.pop %v6721
        %v6945 = vmul.f32 1.0, %v6944
        %v6946 = vrcp.pop %v6722
        %v6947 = vmul.f32 1.0, %v6946
        %v6948 = vrcp.pop %v6723
        %v6949 = vmul.f32 1.0, %v6948
        %v6950 = vrcp.pop %v6724
        %v6951 = vmul.f32 1.0, %v6950
        %v6952 = vrcp.pop %v6725
        %v6953 = vmul.f32 1.0, %v6952
        %v6954 = vrcp.pop %v6726
        %v6955 = vmul.f32 1.0, %v6954
        %v6956 = vrcp.pop %v6727
        %v6957 = vmul.f32 1.0, %v6956
        %v6958 = vrcp.pop %v6728
        %v6959 = vmul.f32 1.0, %v6958
        %v6960 = vrcp.pop %v6729
        %v6961 = vmul.f32 1.0, %v6960
        %v6962 = vrcp.pop %v6730
        %v6963 = vmul.f32 1.0, %v6962
        %v6964 = vrcp.pop %v6731
        %v6965 = vmul.f32 1.0, %v6964
        %v6966 = vrcp.pop %v6732
        %v6967 = vmul.f32 1.0, %v6966
        %v6968 = vrcp.pop %v6733
        %v6969 = vmul.f32 1.0, %v6968
        %v6970 = vrcp.pop %v6734
        %v6971 = vmul.f32 1.0, %v6970
        %v6972 = vrcp.pop %v6735
        %v6973 = vmul.f32 1.0, %v6972
        %v6974 = vrcp.pop %v6736
        %v6975 = vmul.f32 1.0, %v6974
        %v6976 = vrcp.pop %v6737
        %v6977 = vmul.f32 1.0, %v6976
        %v6978 = vrcp.pop %v6738
        %v6979 = vmul.f32 1.0, %v6978
        %v6980 = vrcp.pop %v6739
        %v6981 = vmul.f32 1.0, %v6980
        %v6982 = vrcp.pop %v6740
        %v6983 = vmul.f32 1.0, %v6982
        %v6984 = vrcp.pop %v6741
        %v6985 = vmul.f32 1.0, %v6984
        %v6986 = vrcp.pop %v6742
        %v6987 = vmul.f32 1.0, %v6986
        %v6988 = vrcp.pop %v6743
        %v6989 = vmul.f32 1.0, %v6988
        %v6990 = vrcp.pop %v6744
        %v6991 = vmul.f32 1.0, %v6990
        %v6992 = vrcp.pop %v6745
        %v6993 = vmul.f32 1.0, %v6992
        %v6994 = vrcp.pop %v6746
        %v6995 = vmul.f32 1.0, %v6994
        %v6996 = vrcp.pop %v6747
        %v6997 = vmul.f32 1.0, %v6996
        %v6998 = vrcp.pop %v6748
        %v6999 = vmul.f32 1.0, %v6998
        %v7000 = vrcp.pop %v6749
        %v7001 = vmul.f32 1.0, %v7000
        %v7002 = vrcp.pop %v6750
        %v7003 = vmul.f32 1.0, %v7002
        %v7004 = vrcp.pop %v6751
        %v7005 = vmul.f32 1.0, %v7004
        %v7006 = vrcp.pop %v6752
        %v7007 = vmul.f32 1.0, %v7006
        %v7008 = vrcp.pop %v6753
        %v7009 = vmul.f32 1.0, %v7008
        %v7010 = vmul.f32 %v6755, %v5210
        %v7011 = vmul.f32 %v6757, %v5211
        %v7012 = vmul.f32 %v6759, %v5212
        %v7013 = vmul.f32 %v6761, %v5213
        %v7014 = vmul.f32 %v6763, %v5214
        %v7015 = vmul.f32 %v6765, %v5215
        %v7016 = vmul.f32 %v6767, %v5216
        %v7017 = vmul.f32 %v6769, %v5217
        %v7018 = vmul.f32 %v6771, %v5218
        %v7019 = vmul.f32 %v6773, %v5219
        %v7020 = vmul.f32 %v6775, %v5220
        %v7021 = vmul.f32 %v6777, %v5221
        %v7022 = vmul.f32 %v6779, %v5222
        %v7023 = vmul.f32 %v6781, %v5223
        %v7024 = vmul.f32 %v6783, %v5224
        %v7025 = vmul.f32 %v6785, %v5225
        %v7026 = vmul.f32 %v6787, %v5226
        %v7027 = vmul.f32 %v6789, %v5227
        %v7028 = vmul.f32 %v6791, %v5228
        %v7029 = vmul.f32 %v6793, %v5229
        %v7030 = vmul.f32 %v6795, %v5230
        %v7031 = vmul.f32 %v6797, %v5231
        %v7032 = vmul.f32 %v6799, %v5232
        %v7033 = vmul.f32 %v6801, %v5233
        %v7034 = vmul.f32 %v6803, %v5234
        %v7035 = vmul.f32 %v6805, %v5235
        %v7036 = vmul.f32 %v6807, %v5236
        %v7037 = vmul.f32 %v6809, %v5237
        %v7038 = vmul.f32 %v6811, %v5238
        %v7039 = vmul.f32 %v6813, %v5239
        %v7040 = vmul.f32 %v6815, %v5240
        %v7041 = vmul.f32 %v6817, %v5241
        %v7042 = vmul.f32 %v6819, %v6947
        %v7043 = vmul.f32 %v6821, %v6949
        %v7044 = vmul.f32 %v6823, %v6951
        %v7045 = vmul.f32 %v6825, %v6953
        %v7046 = vmul.f32 %v6827, %v6955
        %v7047 = vmul.f32 %v6829, %v6957
        %v7048 = vmul.f32 %v6831, %v6959
        %v7049 = vmul.f32 %v6833, %v6961
        %v7050 = vmul.f32 %v6835, %v6963
        %v7051 = vmul.f32 %v6837, %v6965
        %v7052 = vmul.f32 %v6839, %v6967
        %v7053 = vmul.f32 %v6841, %v6969
        %v7054 = vmul.f32 %v6843, %v6971
        %v7055 = vmul.f32 %v6845, %v6973
        %v7056 = vmul.f32 %v6847, %v6975
        %v7057 = vmul.f32 %v6849, %v6977
        %v7058 = vmul.f32 %v6851, %v6979
        %v7059 = vmul.f32 %v6853, %v6981
        %v7060 = vmul.f32 %v6855, %v6983
        %v7061 = vmul.f32 %v6857, %v6985
        %v7062 = vmul.f32 %v6859, %v6987
        %v7063 = vmul.f32 %v6861, %v6989
        %v7064 = vmul.f32 %v6863, %v6991
        %v7065 = vmul.f32 %v6865, %v6993
        %v7066 = vmul.f32 %v6867, %v6995
        %v7067 = vmul.f32 %v6869, %v6997
        %v7068 = vmul.f32 %v6871, %v6999
        %v7069 = vmul.f32 %v6873, %v7001
        %v7070 = vmul.f32 %v6875, %v7003
        %v7071 = vmul.f32 %v6877, %v7005
        %v7072 = vmul.f32 %v6879, %v7007
        %v7073 = vmul.f32 %v6881, %v7009
        %v7074 = vadd.f32 %v7010, %v7042
        %v7075 = vadd.f32 %v7011, %v7043
        %v7076 = vadd.f32 %v7012, %v7044
        %v7077 = vadd.f32 %v7013, %v7045
        %v7078 = vadd.f32 %v7014, %v7046
        %v7079 = vadd.f32 %v7015, %v7047
        %v7080 = vadd.f32 %v7016, %v7048
        %v7081 = vadd.f32 %v7017, %v7049
        %v7082 = vadd.f32 %v7018, %v7050
        %v7083 = vadd.f32 %v7019, %v7051
        %v7084 = vadd.f32 %v7020, %v7052
        %v7085 = vadd.f32 %v7021, %v7053
        %v7086 = vadd.f32 %v7022, %v7054
        %v7087 = vadd.f32 %v7023, %v7055
        %v7088 = vadd.f32 %v7024, %v7056
        %v7089 = vadd.f32 %v7025, %v7057
        %v7090 = vadd.f32 %v7026, %v7058
        %v7091 = vadd.f32 %v7027, %v7059
        %v7092 = vadd.f32 %v7028, %v7060
        %v7093 = vadd.f32 %v7029, %v7061
        %v7094 = vadd.f32 %v7030, %v7062
        %v7095 = vadd.f32 %v7031, %v7063
        %v7096 = vadd.f32 %v7032, %v7064
        %v7097 = vadd.f32 %v7033, %v7065
        %v7098 = vadd.f32 %v7034, %v7066
        %v7099 = vadd.f32 %v7035, %v7067
        %v7100 = vadd.f32 %v7036, %v7068
        %v7101 = vadd.f32 %v7037, %v7069
        %v7102 = vadd.f32 %v7038, %v7070
        %v7103 = vadd.f32 %v7039, %v7071
        %v7104 = vadd.f32 %v7040, %v7072
        %v7105 = vadd.f32 %v7041, %v7073
        %v7106 = vtanh.pop %v7074
        %v7107 = vtanh.pop %v7075
        %v7108 = vtanh.pop %v7076
        %v7109 = vtanh.pop %v7077
        %v7110 = vtanh.pop %v7078
        %v7111 = vtanh.pop %v7079
        %v7112 = vtanh.pop %v7080
        %v7113 = vtanh.pop %v7081
        %v7114 = vtanh.pop %v7082
        %v7115 = vtanh.pop %v7083
        %v7116 = vtanh.pop %v7084
        %v7117 = vtanh.pop %v7085
        %v7118 = vtanh.pop %v7086
        %v7119 = vtanh.pop %v7087
        %v7120 = vtanh.pop %v7088
        %v7121 = vtanh.pop %v7089
        %v7122 = vtanh.pop %v7090
        %v7123 = vtanh.pop %v7091
        %v7124 = vtanh.pop %v7092
        %v7125 = vtanh.pop %v7093
        %v7126 = vtanh.pop %v7094
        %v7127 = vtanh.pop %v7095
        %v7128 = vtanh.pop %v7096
        %v7129 = vtanh.pop %v7097
        %v7130 = vtanh.pop %v7098
        %v7131 = vtanh.pop %v7099
        %v7132 = vtanh.pop %v7100
        %v7133 = vtanh.pop %v7101
        %v7134 = vtanh.pop %v7102
        %v7135 = vtanh.pop %v7103
        %v7136 = vtanh.pop %v7104
        %v7137 = vtanh.pop %v7105
        %v7138 = vmul.f32 %v6883, %v7106
        %v7139 = vmul.f32 %v6885, %v7107
        %v7140 = vmul.f32 %v6887, %v7108
        %v7141 = vmul.f32 %v6889, %v7109
        %v7142 = vmul.f32 %v6891, %v7110
        %v7143 = vmul.f32 %v6893, %v7111
        %v7144 = vmul.f32 %v6895, %v7112
        %v7145 = vmul.f32 %v6897, %v7113
        %v7146 = vmul.f32 %v6899, %v7114
        %v7147 = vmul.f32 %v6901, %v7115
        %v7148 = vmul.f32 %v6903, %v7116
        %v7149 = vmul.f32 %v6905, %v7117
        %v7150 = vmul.f32 %v6907, %v7118
        %v7151 = vmul.f32 %v6909, %v7119
        %v7152 = vmul.f32 %v6911, %v7120
        %v7153 = vmul.f32 %v6913, %v7121
        %v7154 = vmul.f32 %v6915, %v7122
        %v7155 = vmul.f32 %v6917, %v7123
        %v7156 = vmul.f32 %v6919, %v7124
        %v7157 = vmul.f32 %v6921, %v7125
        %v7158 = vmul.f32 %v6923, %v7126
        %v7159 = vmul.f32 %v6925, %v7127
        %v7160 = vmul.f32 %v6927, %v7128
        %v7161 = vmul.f32 %v6929, %v7129
        %v7162 = vmul.f32 %v6931, %v7130
        %v7163 = vmul.f32 %v6933, %v7131
        %v7164 = vmul.f32 %v6935, %v7132
        %v7165 = vmul.f32 %v6937, %v7133
        %v7166 = vmul.f32 %v6939, %v7134
        %v7167 = vmul.f32 %v6941, %v7135
        %v7168 = vmul.f32 %v6943, %v7136
        %v7169 = vmul.f32 %v6945, %v7137
        %v7170 = vld [vmem:[%s5] sm:$0x1]
        %v7172 = vsel %vm3807, %v7170, 0
        %7174 = vmatprep.subr.mxu0 0.0
        %7175 = vmatpush1.msra.mxu0 0.0
        %7176 = vmatprep.subr.mxu0 0.0
        %7177 = vmatpush1.msra.mxu0 0.0
        %7178 = vmatprep.subr.mxu0 0.0
        %7179 = vmatpush1.msra.mxu0 0.0
        %7180 = vmatprep.subr.mxu0 0.0
        %7181 = vmatpush1.msra.mxu0 0.0
        %7182 = vmatprep.subr.mxu0 0.0
        %7183 = vmatpush1.msra.mxu0 0.0
        %7184 = vmatprep.subr.mxu0 0.0
        %7185 = vmatpush1.msra.mxu0 0.0
        %7186 = vmatprep.subr.mxu0 0.0
        %7187 = vmatpush1.msra.mxu0 0.0
        %7188 = vmatprep.subr.mxu0 0.0
        %7189 = vmatpush1.msra.mxu0 0.0
        %7190 = vmatprep.subr.mxu0 0.0
        %7191 = vmatpush1.msra.mxu0 0.0
        %7192 = vmatprep.subr.mxu0 0.0
        %7193 = vmatpush1.msra.mxu0 0.0
        %7194 = vmatprep.subr.mxu0 0.0
        %7195 = vmatpush1.msra.mxu0 0.0
        %7196 = vmatprep.subr.mxu0 0.0
        %7197 = vmatpush1.msra.mxu0 0.0
        %7198 = vmatprep.subr.mxu0 0.0
        %7199 = vmatpush1.msra.mxu0 0.0
        %7200 = vmatprep.subr.mxu0 0.0
        %7201 = vmatpush1.msra.mxu0 0.0
        %7202 = vmatprep.subr.mxu0 %v7155
        %7203 = vmatpush1.msra.mxu0 %v7154
        %7204 = vmatprep.subr.mxu0 %v7139
        %7205 = vmatpush1.msra.mxu0 %v7138
        %7206 = vmatprep.subr.mxu0 0.0
        %7207 = vmatpush2.msra.mxu0 0.0
        %7208 = vmatprep.subr.mxu0 0.0
        %7209 = vmatpush2.msra.mxu0 0.0
        %7210 = vmatprep.subr.mxu0 0.0
        %7211 = vmatpush2.msra.mxu0 0.0
        %7212 = vmatprep.subr.mxu0 0.0
        %7213 = vmatpush2.msra.mxu0 0.0
        %7214 = vmatprep.subr.mxu0 0.0
        %7215 = vmatpush2.msra.mxu0 0.0
        %7216 = vmatprep.subr.mxu0 0.0
        %7217 = vmatpush2.msra.mxu0 0.0
        %7218 = vmatprep.subr.mxu0 0.0
        %7219 = vmatpush2.msra.mxu0 0.0
        %7220 = vmatprep.subr.mxu0 0.0
        %7221 = vmatpush2.msra.mxu0 0.0
        %7222 = vmatprep.subr.mxu0 0.0
        %7223 = vmatpush2.msra.mxu0 0.0
        %7224 = vmatprep.subr.mxu0 0.0
        %7225 = vmatpush2.msra.mxu0 0.0
        %7226 = vmatprep.subr.mxu0 0.0
        %7227 = vmatpush2.msra.mxu0 0.0
        %7228 = vmatprep.subr.mxu0 0.0
        %7229 = vmatpush2.msra.mxu0 0.0
        %7230 = vmatprep.subr.mxu0 0.0
        %7231 = vmatpush2.msra.mxu0 0.0
        %7232 = vmatprep.subr.mxu0 0.0
        %7233 = vmatpush2.msra.mxu0 0.0
        %7234 = vmatprep.subr.mxu0 0.0
        %7235 = vmatpush2.msra.mxu0 0.0
        %7236 = vmatprep.subr.mxu0 0.0
        %7237 = vmatpush2.msra.mxu0 0.0
        %7238 = vmatprep.mubr.f32.mxu0 0.0
        %7239 = vmatmul.mubr.f32.gmra.mxu0 %v7172
        %v7240 = vpop.f32.mrf.mxu0
        %v7241 = vadd.f32 0.0, %v7240
        %v7242 = vpop.f32.mrf.mxu0
        %v7243 = vadd.f32 0.0, %v7242
        %7244 = vdwg.mxu0
        %7245 = vmatprep.subr.mxu0 0.0
        %7246 = vmatpush1.msra.mxu0 0.0
        %7247 = vmatprep.subr.mxu0 0.0
        %7248 = vmatpush1.msra.mxu0 0.0
        %7249 = vmatprep.subr.mxu0 0.0
        %7250 = vmatpush1.msra.mxu0 0.0
        %7251 = vmatprep.subr.mxu0 0.0
        %7252 = vmatpush1.msra.mxu0 0.0
        %7253 = vmatprep.subr.mxu0 0.0
        %7254 = vmatpush1.msra.mxu0 0.0
        %7255 = vmatprep.subr.mxu0 0.0
        %7256 = vmatpush1.msra.mxu0 0.0
        %7257 = vmatprep.subr.mxu0 0.0
        %7258 = vmatpush1.msra.mxu0 0.0
        %7259 = vmatprep.subr.mxu0 0.0
        %7260 = vmatpush1.msra.mxu0 0.0
        %7261 = vmatprep.subr.mxu0 0.0
        %7262 = vmatpush1.msra.mxu0 0.0
        %7263 = vmatprep.subr.mxu0 0.0
        %7264 = vmatpush1.msra.mxu0 0.0
        %7265 = vmatprep.subr.mxu0 0.0
        %7266 = vmatpush1.msra.mxu0 0.0
        %7267 = vmatprep.subr.mxu0 0.0
        %7268 = vmatpush1.msra.mxu0 0.0
        %7269 = vmatprep.subr.mxu0 0.0
        %7270 = vmatpush1.msra.mxu0 0.0
        %7271 = vmatprep.subr.mxu0 0.0
        %7272 = vmatpush1.msra.mxu0 0.0
        %7273 = vmatprep.subr.mxu0 %v7157
        %7274 = vmatpush1.msra.mxu0 %v7156
        %7275 = vmatprep.subr.mxu0 %v7141
        %7276 = vmatpush1.msra.mxu0 %v7140
        %7277 = vmatprep.subr.mxu0 0.0
        %7278 = vmatpush2.msra.mxu0 0.0
        %7279 = vmatprep.subr.mxu0 0.0
        %7280 = vmatpush2.msra.mxu0 0.0
        %7281 = vmatprep.subr.mxu0 0.0
        %7282 = vmatpush2.msra.mxu0 0.0
        %7283 = vmatprep.subr.mxu0 0.0
        %7284 = vmatpush2.msra.mxu0 0.0
        %7285 = vmatprep.subr.mxu0 0.0
        %7286 = vmatpush2.msra.mxu0 0.0
        %7287 = vmatprep.subr.mxu0 0.0
        %7288 = vmatpush2.msra.mxu0 0.0
        %7289 = vmatprep.subr.mxu0 0.0
        %7290 = vmatpush2.msra.mxu0 0.0
        %7291 = vmatprep.subr.mxu0 0.0
        %7292 = vmatpush2.msra.mxu0 0.0
        %7293 = vmatprep.subr.mxu0 0.0
        %7294 = vmatpush2.msra.mxu0 0.0
        %7295 = vmatprep.subr.mxu0 0.0
        %7296 = vmatpush2.msra.mxu0 0.0
        %7297 = vmatprep.subr.mxu0 0.0
        %7298 = vmatpush2.msra.mxu0 0.0
        %7299 = vmatprep.subr.mxu0 0.0
        %7300 = vmatpush2.msra.mxu0 0.0
        %7301 = vmatprep.subr.mxu0 0.0
        %7302 = vmatpush2.msra.mxu0 0.0
        %7303 = vmatprep.subr.mxu0 0.0
        %7304 = vmatpush2.msra.mxu0 0.0
        %7305 = vmatprep.subr.mxu0 0.0
        %7306 = vmatpush2.msra.mxu0 0.0
        %7307 = vmatprep.subr.mxu0 0.0
        %7308 = vmatpush2.msra.mxu0 0.0
        %7309 = vmatprep.mubr.f32.mxu0 0.0
        %7310 = vmatmul.mubr.f32.gmra.mxu0 %v7172
        %v7311 = vpop.f32.mrf.mxu0
        %v7312 = vadd.f32 0.0, %v7311
        %v7313 = vpop.f32.mrf.mxu0
        %v7314 = vadd.f32 0.0, %v7313
        %7315 = vdwg.mxu0
        %7316 = vmatprep.subr.mxu0 0.0
        %7317 = vmatpush1.msra.mxu0 0.0
        %7318 = vmatprep.subr.mxu0 0.0
        %7319 = vmatpush1.msra.mxu0 0.0
        %7320 = vmatprep.subr.mxu0 0.0
        %7321 = vmatpush1.msra.mxu0 0.0
        %7322 = vmatprep.subr.mxu0 0.0
        %7323 = vmatpush1.msra.mxu0 0.0
        %7324 = vmatprep.subr.mxu0 0.0
        %7325 = vmatpush1.msra.mxu0 0.0
        %7326 = vmatprep.subr.mxu0 0.0
        %7327 = vmatpush1.msra.mxu0 0.0
        %7328 = vmatprep.subr.mxu0 0.0
        %7329 = vmatpush1.msra.mxu0 0.0
        %7330 = vmatprep.subr.mxu0 0.0
        %7331 = vmatpush1.msra.mxu0 0.0
        %7332 = vmatprep.subr.mxu0 0.0
        %7333 = vmatpush1.msra.mxu0 0.0
        %7334 = vmatprep.subr.mxu0 0.0
        %7335 = vmatpush1.msra.mxu0 0.0
        %7336 = vmatprep.subr.mxu0 0.0
        %7337 = vmatpush1.msra.mxu0 0.0
        %7338 = vmatprep.subr.mxu0 0.0
        %7339 = vmatpush1.msra.mxu0 0.0
        %7340 = vmatprep.subr.mxu0 0.0
        %7341 = vmatpush1.msra.mxu0 0.0
        %7342 = vmatprep.subr.mxu0 0.0
        %7343 = vmatpush1.msra.mxu0 0.0
        %7344 = vmatprep.subr.mxu0 %v7159
        %7345 = vmatpush1.msra.mxu0 %v7158
        %7346 = vmatprep.subr.mxu0 %v7143
        %7347 = vmatpush1.msra.mxu0 %v7142
        %7348 = vmatprep.subr.mxu0 0.0
        %7349 = vmatpush2.msra.mxu0 0.0
        %7350 = vmatprep.subr.mxu0 0.0
        %7351 = vmatpush2.msra.mxu0 0.0
        %7352 = vmatprep.subr.mxu0 0.0
        %7353 = vmatpush2.msra.mxu0 0.0
        %7354 = vmatprep.subr.mxu0 0.0
        %7355 = vmatpush2.msra.mxu0 0.0
        %7356 = vmatprep.subr.mxu0 0.0
        %7357 = vmatpush2.msra.mxu0 0.0
        %7358 = vmatprep.subr.mxu0 0.0
        %7359 = vmatpush2.msra.mxu0 0.0
        %7360 = vmatprep.subr.mxu0 0.0
        %7361 = vmatpush2.msra.mxu0 0.0
        %7362 = vmatprep.subr.mxu0 0.0
        %7363 = vmatpush2.msra.mxu0 0.0
        %7364 = vmatprep.subr.mxu0 0.0
        %7365 = vmatpush2.msra.mxu0 0.0
        %7366 = vmatprep.subr.mxu0 0.0
        %7367 = vmatpush2.msra.mxu0 0.0
        %7368 = vmatprep.subr.mxu0 0.0
        %7369 = vmatpush2.msra.mxu0 0.0
        %7370 = vmatprep.subr.mxu0 0.0
        %7371 = vmatpush2.msra.mxu0 0.0
        %7372 = vmatprep.subr.mxu0 0.0
        %7373 = vmatpush2.msra.mxu0 0.0
        %7374 = vmatprep.subr.mxu0 0.0
        %7375 = vmatpush2.msra.mxu0 0.0
        %7376 = vmatprep.subr.mxu0 0.0
        %7377 = vmatpush2.msra.mxu0 0.0
        %7378 = vmatprep.subr.mxu0 0.0
        %7379 = vmatpush2.msra.mxu0 0.0
        %7380 = vmatprep.mubr.f32.mxu0 0.0
        %7381 = vmatmul.mubr.f32.gmra.mxu0 %v7172
        %v7382 = vpop.f32.mrf.mxu0
        %v7383 = vadd.f32 0.0, %v7382
        %v7384 = vpop.f32.mrf.mxu0
        %v7385 = vadd.f32 0.0, %v7384
        %7386 = vdwg.mxu0
        %7387 = vmatprep.subr.mxu0 0.0
        %7388 = vmatpush1.msra.mxu0 0.0
        %7389 = vmatprep.subr.mxu0 0.0
        %7390 = vmatpush1.msra.mxu0 0.0
        %7391 = vmatprep.subr.mxu0 0.0
        %7392 = vmatpush1.msra.mxu0 0.0
        %7393 = vmatprep.subr.mxu0 0.0
        %7394 = vmatpush1.msra.mxu0 0.0
        %7395 = vmatprep.subr.mxu0 0.0
        %7396 = vmatpush1.msra.mxu0 0.0
        %7397 = vmatprep.subr.mxu0 0.0
        %7398 = vmatpush1.msra.mxu0 0.0
        %7399 = vmatprep.subr.mxu0 0.0
        %7400 = vmatpush1.msra.mxu0 0.0
        %7401 = vmatprep.subr.mxu0 0.0
        %7402 = vmatpush1.msra.mxu0 0.0
        %7403 = vmatprep.subr.mxu0 0.0
        %7404 = vmatpush1.msra.mxu0 0.0
        %7405 = vmatprep.subr.mxu0 0.0
        %7406 = vmatpush1.msra.mxu0 0.0
        %7407 = vmatprep.subr.mxu0 0.0
        %7408 = vmatpush1.msra.mxu0 0.0
        %7409 = vmatprep.subr.mxu0 0.0
        %7410 = vmatpush1.msra.mxu0 0.0
        %7411 = vmatprep.subr.mxu0 0.0
        %7412 = vmatpush1.msra.mxu0 0.0
        %7413 = vmatprep.subr.mxu0 0.0
        %7414 = vmatpush1.msra.mxu0 0.0
        %7415 = vmatprep.subr.mxu0 %v7161
        %7416 = vmatpush1.msra.mxu0 %v7160
        %7417 = vmatprep.subr.mxu0 %v7145
        %7418 = vmatpush1.msra.mxu0 %v7144
        %7419 = vmatprep.subr.mxu0 0.0
        %7420 = vmatpush2.msra.mxu0 0.0
        %7421 = vmatprep.subr.mxu0 0.0
        %7422 = vmatpush2.msra.mxu0 0.0
        %7423 = vmatprep.subr.mxu0 0.0
        %7424 = vmatpush2.msra.mxu0 0.0
        %7425 = vmatprep.subr.mxu0 0.0
        %7426 = vmatpush2.msra.mxu0 0.0
        %7427 = vmatprep.subr.mxu0 0.0
        %7428 = vmatpush2.msra.mxu0 0.0
        %7429 = vmatprep.subr.mxu0 0.0
        %7430 = vmatpush2.msra.mxu0 0.0
        %7431 = vmatprep.subr.mxu0 0.0
        %7432 = vmatpush2.msra.mxu0 0.0
        %7433 = vmatprep.subr.mxu0 0.0
        %7434 = vmatpush2.msra.mxu0 0.0
        %7435 = vmatprep.subr.mxu0 0.0
        %7436 = vmatpush2.msra.mxu0 0.0
        %7437 = vmatprep.subr.mxu0 0.0
        %7438 = vmatpush2.msra.mxu0 0.0
        %7439 = vmatprep.subr.mxu0 0.0
        %7440 = vmatpush2.msra.mxu0 0.0
        %7441 = vmatprep.subr.mxu0 0.0
        %7442 = vmatpush2.msra.mxu0 0.0
        %7443 = vmatprep.subr.mxu0 0.0
        %7444 = vmatpush2.msra.mxu0 0.0
        %7445 = vmatprep.subr.mxu0 0.0
        %7446 = vmatpush2.msra.mxu0 0.0
        %7447 = vmatprep.subr.mxu0 0.0
        %7448 = vmatpush2.msra.mxu0 0.0
        %7449 = vmatprep.subr.mxu0 0.0
        %7450 = vmatpush2.msra.mxu0 0.0
        %7451 = vmatprep.mubr.f32.mxu0 0.0
        %7452 = vmatmul.mubr.f32.gmra.mxu0 %v7172
        %v7453 = vpop.f32.mrf.mxu0
        %v7454 = vadd.f32 0.0, %v7453
        %v7455 = vpop.f32.mrf.mxu0
        %v7456 = vadd.f32 0.0, %v7455
        %7457 = vdwg.mxu0
        %7458 = vmatprep.subr.mxu0 0.0
        %7459 = vmatpush1.msra.mxu0 0.0
        %7460 = vmatprep.subr.mxu0 0.0
        %7461 = vmatpush1.msra.mxu0 0.0
        %7462 = vmatprep.subr.mxu0 0.0
        %7463 = vmatpush1.msra.mxu0 0.0
        %7464 = vmatprep.subr.mxu0 0.0
        %7465 = vmatpush1.msra.mxu0 0.0
        %7466 = vmatprep.subr.mxu0 0.0
        %7467 = vmatpush1.msra.mxu0 0.0
        %7468 = vmatprep.subr.mxu0 0.0
        %7469 = vmatpush1.msra.mxu0 0.0
        %7470 = vmatprep.subr.mxu0 0.0
        %7471 = vmatpush1.msra.mxu0 0.0
        %7472 = vmatprep.subr.mxu0 0.0
        %7473 = vmatpush1.msra.mxu0 0.0
        %7474 = vmatprep.subr.mxu0 0.0
        %7475 = vmatpush1.msra.mxu0 0.0
        %7476 = vmatprep.subr.mxu0 0.0
        %7477 = vmatpush1.msra.mxu0 0.0
        %7478 = vmatprep.subr.mxu0 0.0
        %7479 = vmatpush1.msra.mxu0 0.0
        %7480 = vmatprep.subr.mxu0 0.0
        %7481 = vmatpush1.msra.mxu0 0.0
        %7482 = vmatprep.subr.mxu0 0.0
        %7483 = vmatpush1.msra.mxu0 0.0
        %7484 = vmatprep.subr.mxu0 0.0
        %7485 = vmatpush1.msra.mxu0 0.0
        %7486 = vmatprep.subr.mxu0 %v7163
        %7487 = vmatpush1.msra.mxu0 %v7162
        %7488 = vmatprep.subr.mxu0 %v7147
        %7489 = vmatpush1.msra.mxu0 %v7146
        %7490 = vmatprep.subr.mxu0 0.0
        %7491 = vmatpush2.msra.mxu0 0.0
        %7492 = vmatprep.subr.mxu0 0.0
        %7493 = vmatpush2.msra.mxu0 0.0
        %7494 = vmatprep.subr.mxu0 0.0
        %7495 = vmatpush2.msra.mxu0 0.0
        %7496 = vmatprep.subr.mxu0 0.0
        %7497 = vmatpush2.msra.mxu0 0.0
        %7498 = vmatprep.subr.mxu0 0.0
        %7499 = vmatpush2.msra.mxu0 0.0
        %7500 = vmatprep.subr.mxu0 0.0
        %7501 = vmatpush2.msra.mxu0 0.0
        %7502 = vmatprep.subr.mxu0 0.0
        %7503 = vmatpush2.msra.mxu0 0.0
        %7504 = vmatprep.subr.mxu0 0.0
        %7505 = vmatpush2.msra.mxu0 0.0
        %7506 = vmatprep.subr.mxu0 0.0
        %7507 = vmatpush2.msra.mxu0 0.0
        %7508 = vmatprep.subr.mxu0 0.0
        %7509 = vmatpush2.msra.mxu0 0.0
        %7510 = vmatprep.subr.mxu0 0.0
        %7511 = vmatpush2.msra.mxu0 0.0
        %7512 = vmatprep.subr.mxu0 0.0
        %7513 = vmatpush2.msra.mxu0 0.0
        %7514 = vmatprep.subr.mxu0 0.0
        %7515 = vmatpush2.msra.mxu0 0.0
        %7516 = vmatprep.subr.mxu0 0.0
        %7517 = vmatpush2.msra.mxu0 0.0
        %7518 = vmatprep.subr.mxu0 0.0
        %7519 = vmatpush2.msra.mxu0 0.0
        %7520 = vmatprep.subr.mxu0 0.0
        %7521 = vmatpush2.msra.mxu0 0.0
        %7522 = vmatprep.mubr.f32.mxu0 0.0
        %7523 = vmatmul.mubr.f32.gmra.mxu0 %v7172
        %v7524 = vpop.f32.mrf.mxu0
        %v7525 = vadd.f32 0.0, %v7524
        %v7526 = vpop.f32.mrf.mxu0
        %v7527 = vadd.f32 0.0, %v7526
        %7528 = vdwg.mxu0
        %7529 = vmatprep.subr.mxu0 0.0
        %7530 = vmatpush1.msra.mxu0 0.0
        %7531 = vmatprep.subr.mxu0 0.0
        %7532 = vmatpush1.msra.mxu0 0.0
        %7533 = vmatprep.subr.mxu0 0.0
        %7534 = vmatpush1.msra.mxu0 0.0
        %7535 = vmatprep.subr.mxu0 0.0
        %7536 = vmatpush1.msra.mxu0 0.0
        %7537 = vmatprep.subr.mxu0 0.0
        %7538 = vmatpush1.msra.mxu0 0.0
        %7539 = vmatprep.subr.mxu0 0.0
        %7540 = vmatpush1.msra.mxu0 0.0
        %7541 = vmatprep.subr.mxu0 0.0
        %7542 = vmatpush1.msra.mxu0 0.0
        %7543 = vmatprep.subr.mxu0 0.0
        %7544 = vmatpush1.msra.mxu0 0.0
        %7545 = vmatprep.subr.mxu0 0.0
        %7546 = vmatpush1.msra.mxu0 0.0
        %7547 = vmatprep.subr.mxu0 0.0
        %7548 = vmatpush1.msra.mxu0 0.0
        %7549 = vmatprep.subr.mxu0 0.0
        %7550 = vmatpush1.msra.mxu0 0.0
        %7551 = vmatprep.subr.mxu0 0.0
        %7552 = vmatpush1.msra.mxu0 0.0
        %7553 = vmatprep.subr.mxu0 0.0
        %7554 = vmatpush1.msra.mxu0 0.0
        %7555 = vmatprep.subr.mxu0 0.0
        %7556 = vmatpush1.msra.mxu0 0.0
        %7557 = vmatprep.subr.mxu0 %v7165
        %7558 = vmatpush1.msra.mxu0 %v7164
        %7559 = vmatprep.subr.mxu0 %v7149
        %7560 = vmatpush1.msra.mxu0 %v7148
        %7561 = vmatprep.subr.mxu0 0.0
        %7562 = vmatpush2.msra.mxu0 0.0
        %7563 = vmatprep.subr.mxu0 0.0
        %7564 = vmatpush2.msra.mxu0 0.0
        %7565 = vmatprep.subr.mxu0 0.0
        %7566 = vmatpush2.msra.mxu0 0.0
        %7567 = vmatprep.subr.mxu0 0.0
        %7568 = vmatpush2.msra.mxu0 0.0
        %7569 = vmatprep.subr.mxu0 0.0
        %7570 = vmatpush2.msra.mxu0 0.0
        %7571 = vmatprep.subr.mxu0 0.0
        %7572 = vmatpush2.msra.mxu0 0.0
        %7573 = vmatprep.subr.mxu0 0.0
        %7574 = vmatpush2.msra.mxu0 0.0
        %7575 = vmatprep.subr.mxu0 0.0
        %7576 = vmatpush2.msra.mxu0 0.0
        %7577 = vmatprep.subr.mxu0 0.0
        %7578 = vmatpush2.msra.mxu0 0.0
        %7579 = vmatprep.subr.mxu0 0.0
        %7580 = vmatpush2.msra.mxu0 0.0
        %7581 = vmatprep.subr.mxu0 0.0
        %7582 = vmatpush2.msra.mxu0 0.0
        %7583 = vmatprep.subr.mxu0 0.0
        %7584 = vmatpush2.msra.mxu0 0.0
        %7585 = vmatprep.subr.mxu0 0.0
        %7586 = vmatpush2.msra.mxu0 0.0
        %7587 = vmatprep.subr.mxu0 0.0
        %7588 = vmatpush2.msra.mxu0 0.0
        %7589 = vmatprep.subr.mxu0 0.0
        %7590 = vmatpush2.msra.mxu0 0.0
        %7591 = vmatprep.subr.mxu0 0.0
        %7592 = vmatpush2.msra.mxu0 0.0
        %7593 = vmatprep.mubr.f32.mxu0 0.0
        %7594 = vmatmul.mubr.f32.gmra.mxu0 %v7172
        %v7595 = vpop.f32.mrf.mxu0
        %v7596 = vadd.f32 0.0, %v7595
        %v7597 = vpop.f32.mrf.mxu0
        %v7598 = vadd.f32 0.0, %v7597
        %7599 = vdwg.mxu0
        %7600 = vmatprep.subr.mxu0 0.0
        %7601 = vmatpush1.msra.mxu0 0.0
        %7602 = vmatprep.subr.mxu0 0.0
        %7603 = vmatpush1.msra.mxu0 0.0
        %7604 = vmatprep.subr.mxu0 0.0
        %7605 = vmatpush1.msra.mxu0 0.0
        %7606 = vmatprep.subr.mxu0 0.0
        %7607 = vmatpush1.msra.mxu0 0.0
        %7608 = vmatprep.subr.mxu0 0.0
        %7609 = vmatpush1.msra.mxu0 0.0
        %7610 = vmatprep.subr.mxu0 0.0
        %7611 = vmatpush1.msra.mxu0 0.0
        %7612 = vmatprep.subr.mxu0 0.0
        %7613 = vmatpush1.msra.mxu0 0.0
        %7614 = vmatprep.subr.mxu0 0.0
        %7615 = vmatpush1.msra.mxu0 0.0
        %7616 = vmatprep.subr.mxu0 0.0
        %7617 = vmatpush1.msra.mxu0 0.0
        %7618 = vmatprep.subr.mxu0 0.0
        %7619 = vmatpush1.msra.mxu0 0.0
        %7620 = vmatprep.subr.mxu0 0.0
        %7621 = vmatpush1.msra.mxu0 0.0
        %7622 = vmatprep.subr.mxu0 0.0
        %7623 = vmatpush1.msra.mxu0 0.0
        %7624 = vmatprep.subr.mxu0 0.0
        %7625 = vmatpush1.msra.mxu0 0.0
        %7626 = vmatprep.subr.mxu0 0.0
        %7627 = vmatpush1.msra.mxu0 0.0
        %7628 = vmatprep.subr.mxu0 %v7167
        %7629 = vmatpush1.msra.mxu0 %v7166
        %7630 = vmatprep.subr.mxu0 %v7151
        %7631 = vmatpush1.msra.mxu0 %v7150
        %7632 = vmatprep.subr.mxu0 0.0
        %7633 = vmatpush2.msra.mxu0 0.0
        %7634 = vmatprep.subr.mxu0 0.0
        %7635 = vmatpush2.msra.mxu0 0.0
        %7636 = vmatprep.subr.mxu0 0.0
        %7637 = vmatpush2.msra.mxu0 0.0
        %7638 = vmatprep.subr.mxu0 0.0
        %7639 = vmatpush2.msra.mxu0 0.0
        %7640 = vmatprep.subr.mxu0 0.0
        %7641 = vmatpush2.msra.mxu0 0.0
        %7642 = vmatprep.subr.mxu0 0.0
        %7643 = vmatpush2.msra.mxu0 0.0
        %7644 = vmatprep.subr.mxu0 0.0
        %7645 = vmatpush2.msra.mxu0 0.0
        %7646 = vmatprep.subr.mxu0 0.0
        %7647 = vmatpush2.msra.mxu0 0.0
        %7648 = vmatprep.subr.mxu0 0.0
        %7649 = vmatpush2.msra.mxu0 0.0
        %7650 = vmatprep.subr.mxu0 0.0
        %7651 = vmatpush2.msra.mxu0 0.0
        %7652 = vmatprep.subr.mxu0 0.0
        %7653 = vmatpush2.msra.mxu0 0.0
        %7654 = vmatprep.subr.mxu0 0.0
        %7655 = vmatpush2.msra.mxu0 0.0
        %7656 = vmatprep.subr.mxu0 0.0
        %7657 = vmatpush2.msra.mxu0 0.0
        %7658 = vmatprep.subr.mxu0 0.0
        %7659 = vmatpush2.msra.mxu0 0.0
        %7660 = vmatprep.subr.mxu0 0.0
        %7661 = vmatpush2.msra.mxu0 0.0
        %7662 = vmatprep.subr.mxu0 0.0
        %7663 = vmatpush2.msra.mxu0 0.0
        %7664 = vmatprep.mubr.f32.mxu0 0.0
        %7665 = vmatmul.mubr.f32.gmra.mxu0 %v7172
        %v7666 = vpop.f32.mrf.mxu0
        %v7667 = vadd.f32 0.0, %v7666
        %v7668 = vpop.f32.mrf.mxu0
        %v7669 = vadd.f32 0.0, %v7668
        %7670 = vdwg.mxu0
        %7671 = vmatprep.subr.mxu0 0.0
        %7672 = vmatpush1.msra.mxu0 0.0
        %7673 = vmatprep.subr.mxu0 0.0
        %7674 = vmatpush1.msra.mxu0 0.0
        %7675 = vmatprep.subr.mxu0 0.0
        %7676 = vmatpush1.msra.mxu0 0.0
        %7677 = vmatprep.subr.mxu0 0.0
        %7678 = vmatpush1.msra.mxu0 0.0
        %7679 = vmatprep.subr.mxu0 0.0
        %7680 = vmatpush1.msra.mxu0 0.0
        %7681 = vmatprep.subr.mxu0 0.0
        %7682 = vmatpush1.msra.mxu0 0.0
        %7683 = vmatprep.subr.mxu0 0.0
        %7684 = vmatpush1.msra.mxu0 0.0
        %7685 = vmatprep.subr.mxu0 0.0
        %7686 = vmatpush1.msra.mxu0 0.0
        %7687 = vmatprep.subr.mxu0 0.0
        %7688 = vmatpush1.msra.mxu0 0.0
        %7689 = vmatprep.subr.mxu0 0.0
        %7690 = vmatpush1.msra.mxu0 0.0
        %7691 = vmatprep.subr.mxu0 0.0
        %7692 = vmatpush1.msra.mxu0 0.0
        %7693 = vmatprep.subr.mxu0 0.0
        %7694 = vmatpush1.msra.mxu0 0.0
        %7695 = vmatprep.subr.mxu0 0.0
        %7696 = vmatpush1.msra.mxu0 0.0
        %7697 = vmatprep.subr.mxu0 0.0
        %7698 = vmatpush1.msra.mxu0 0.0
        %7699 = vmatprep.subr.mxu0 %v7169
        %7700 = vmatpush1.msra.mxu0 %v7168
        %7701 = vmatprep.subr.mxu0 %v7153
        %7702 = vmatpush1.msra.mxu0 %v7152
        %7703 = vmatprep.subr.mxu0 0.0
        %7704 = vmatpush2.msra.mxu0 0.0
        %7705 = vmatprep.subr.mxu0 0.0
        %7706 = vmatpush2.msra.mxu0 0.0
        %7707 = vmatprep.subr.mxu0 0.0
        %7708 = vmatpush2.msra.mxu0 0.0
        %7709 = vmatprep.subr.mxu0 0.0
        %7710 = vmatpush2.msra.mxu0 0.0
        %7711 = vmatprep.subr.mxu0 0.0
        %7712 = vmatpush2.msra.mxu0 0.0
        %7713 = vmatprep.subr.mxu0 0.0
        %7714 = vmatpush2.msra.mxu0 0.0
        %7715 = vmatprep.subr.mxu0 0.0
        %7716 = vmatpush2.msra.mxu0 0.0
        %7717 = vmatprep.subr.mxu0 0.0
        %7718 = vmatpush2.msra.mxu0 0.0
        %7719 = vmatprep.subr.mxu0 0.0
        %7720 = vmatpush2.msra.mxu0 0.0
        %7721 = vmatprep.subr.mxu0 0.0
        %7722 = vmatpush2.msra.mxu0 0.0
        %7723 = vmatprep.subr.mxu0 0.0
        %7724 = vmatpush2.msra.mxu0 0.0
        %7725 = vmatprep.subr.mxu0 0.0
        %7726 = vmatpush2.msra.mxu0 0.0
        %7727 = vmatprep.subr.mxu0 0.0
        %7728 = vmatpush2.msra.mxu0 0.0
        %7729 = vmatprep.subr.mxu0 0.0
        %7730 = vmatpush2.msra.mxu0 0.0
        %7731 = vmatprep.subr.mxu0 0.0
        %7732 = vmatpush2.msra.mxu0 0.0
        %7733 = vmatprep.subr.mxu0 0.0
        %7734 = vmatpush2.msra.mxu0 0.0
        %7735 = vmatprep.mubr.f32.mxu0 0.0
        %7736 = vmatmul.mubr.f32.gmra.mxu0 %v7172
        %v7737 = vpop.f32.mrf.mxu0
        %v7738 = vadd.f32 0.0, %v7737
        %v7739 = vpop.f32.mrf.mxu0
        %v7740 = vadd.f32 0.0, %v7739
        %7741 = vdwg.mxu0
        %v7742 = vld [vmem:[#allocation11] sm:$0xff]
        %v7743 = vld [vmem:[#allocation11 + $0x8] sm:$0xff]
        %v7744 = vld [vmem:[#allocation11 + $0x10] sm:$0xff]
        %v7745 = vld [vmem:[#allocation11 + $0x18] sm:$0xff]
        %v7746 = vld [vmem:[#allocation11 + $0x20] sm:$0xff]
        %v7747 = vld [vmem:[#allocation11 + $0x28] sm:$0xff]
        %v7748 = vld [vmem:[#allocation11 + $0x30] sm:$0xff]
        %v7749 = vld [vmem:[#allocation11 + $0x38] sm:$0xff]
        %v7750 = vld [vmem:[#allocation11 + $0x40] sm:$0xff]
        %v7751 = vld [vmem:[#allocation11 + $0x48] sm:$0xff]
        %v7752 = vld [vmem:[#allocation11 + $0x50] sm:$0xff]
        %v7753 = vld [vmem:[#allocation11 + $0x58] sm:$0xff]
        %v7754 = vld [vmem:[#allocation11 + $0x60] sm:$0xff]
        %v7755 = vld [vmem:[#allocation11 + $0x68] sm:$0xff]
        %v7756 = vld [vmem:[#allocation11 + $0x70] sm:$0xff]
        %v7757 = vld [vmem:[#allocation11 + $0x78] sm:$0xff]
        %v7758 = vld [vmem:[#allocation11 + $0x80] sm:$0xff]
        %v7759 = vld [vmem:[#allocation11 + $0x88] sm:$0xff]
        %v7760 = vld [vmem:[#allocation11 + $0x90] sm:$0xff]
        %v7761 = vld [vmem:[#allocation11 + $0x98] sm:$0xff]
        %v7762 = vld [vmem:[#allocation11 + $0xa0] sm:$0xff]
        %v7763 = vld [vmem:[#allocation11 + $0xa8] sm:$0xff]
        %v7764 = vld [vmem:[#allocation11 + $0xb0] sm:$0xff]
        %v7765 = vld [vmem:[#allocation11 + $0xb8] sm:$0xff]
        %v7766 = vld [vmem:[#allocation11 + $0xc0] sm:$0xff]
        %v7767 = vld [vmem:[#allocation11 + $0xc8] sm:$0xff]
        %v7768 = vld [vmem:[#allocation11 + $0xd0] sm:$0xff]
        %v7769 = vld [vmem:[#allocation11 + $0xd8] sm:$0xff]
        %v7770 = vld [vmem:[#allocation11 + $0xe0] sm:$0xff]
        %v7771 = vld [vmem:[#allocation11 + $0xe8] sm:$0xff]
        %v7772 = vld [vmem:[#allocation11 + $0xf0] sm:$0xff]
        %v7773 = vld [vmem:[#allocation11 + $0xf8] sm:$0xff]
        %v7774 = vld [vmem:[#allocation11 + $0x100] sm:$0xff]
        %v7775 = vld [vmem:[#allocation11 + $0x108] sm:$0xff]
        %v7776 = vld [vmem:[#allocation11 + $0x110] sm:$0xff]
        %v7777 = vld [vmem:[#allocation11 + $0x118] sm:$0xff]
        %v7778 = vld [vmem:[#allocation11 + $0x120] sm:$0xff]
        %v7779 = vld [vmem:[#allocation11 + $0x128] sm:$0xff]
        %v7780 = vld [vmem:[#allocation11 + $0x130] sm:$0xff]
        %v7781 = vld [vmem:[#allocation11 + $0x138] sm:$0xff]
        %v7782 = vld [vmem:[#allocation11 + $0x140] sm:$0xff]
        %v7783 = vld [vmem:[#allocation11 + $0x148] sm:$0xff]
        %v7784 = vld [vmem:[#allocation11 + $0x150] sm:$0xff]
        %v7785 = vld [vmem:[#allocation11 + $0x158] sm:$0xff]
        %v7786 = vld [vmem:[#allocation11 + $0x160] sm:$0xff]
        %v7787 = vld [vmem:[#allocation11 + $0x168] sm:$0xff]
        %v7788 = vld [vmem:[#allocation11 + $0x170] sm:$0xff]
        %v7789 = vld [vmem:[#allocation11 + $0x178] sm:$0xff]
        %v7790 = vld [vmem:[#allocation11 + $0x180] sm:$0xff]
        %v7791 = vld [vmem:[#allocation11 + $0x188] sm:$0xff]
        %v7792 = vld [vmem:[#allocation11 + $0x190] sm:$0xff]
        %v7793 = vld [vmem:[#allocation11 + $0x198] sm:$0xff]
        %v7794 = vld [vmem:[#allocation11 + $0x1a0] sm:$0xff]
        %v7795 = vld [vmem:[#allocation11 + $0x1a8] sm:$0xff]
        %v7796 = vld [vmem:[#allocation11 + $0x1b0] sm:$0xff]
        %v7797 = vld [vmem:[#allocation11 + $0x1b8] sm:$0xff]
        %v7798 = vld [vmem:[#allocation11 + $0x1c0] sm:$0xff]
        %v7799 = vld [vmem:[#allocation11 + $0x1c8] sm:$0xff]
        %v7800 = vld [vmem:[#allocation11 + $0x1d0] sm:$0xff]
        %v7801 = vld [vmem:[#allocation11 + $0x1d8] sm:$0xff]
        %v7802 = vld [vmem:[#allocation11 + $0x1e0] sm:$0xff]
        %v7803 = vld [vmem:[#allocation11 + $0x1e8] sm:$0xff]
        %v7804 = vld [vmem:[#allocation11 + $0x1f0] sm:$0xff]
        %v7805 = vld [vmem:[#allocation11 + $0x1f8] sm:$0xff]
        %v7806 = vld [vmem:[#allocation11 + $0x200] sm:$0xff]
        %v7807 = vld [vmem:[#allocation11 + $0x208] sm:$0xff]
        %v7808 = vld [vmem:[#allocation11 + $0x210] sm:$0xff]
        %v7809 = vld [vmem:[#allocation11 + $0x218] sm:$0xff]
        %v7810 = vld [vmem:[#allocation11 + $0x220] sm:$0xff]
        %v7811 = vld [vmem:[#allocation11 + $0x228] sm:$0xff]
        %v7812 = vld [vmem:[#allocation11 + $0x230] sm:$0xff]
        %v7813 = vld [vmem:[#allocation11 + $0x238] sm:$0xff]
        %v7814 = vld [vmem:[#allocation11 + $0x240] sm:$0xff]
        %v7815 = vld [vmem:[#allocation11 + $0x248] sm:$0xff]
        %v7816 = vld [vmem:[#allocation11 + $0x250] sm:$0xff]
        %v7817 = vld [vmem:[#allocation11 + $0x258] sm:$0xff]
        %v7818 = vld [vmem:[#allocation11 + $0x260] sm:$0xff]
        %v7819 = vld [vmem:[#allocation11 + $0x268] sm:$0xff]
        %v7820 = vld [vmem:[#allocation11 + $0x270] sm:$0xff]
        %v7821 = vld [vmem:[#allocation11 + $0x278] sm:$0xff]
        %v7822 = vld [vmem:[#allocation11 + $0x280] sm:$0xff]
        %v7823 = vld [vmem:[#allocation11 + $0x288] sm:$0xff]
        %v7824 = vld [vmem:[#allocation11 + $0x290] sm:$0xff]
        %v7825 = vld [vmem:[#allocation11 + $0x298] sm:$0xff]
        %v7826 = vld [vmem:[#allocation11 + $0x2a0] sm:$0xff]
        %v7827 = vld [vmem:[#allocation11 + $0x2a8] sm:$0xff]
        %v7828 = vld [vmem:[#allocation11 + $0x2b0] sm:$0xff]
        %v7829 = vld [vmem:[#allocation11 + $0x2b8] sm:$0xff]
        %v7830 = vld [vmem:[#allocation11 + $0x2c0] sm:$0xff]
        %v7831 = vld [vmem:[#allocation11 + $0x2c8] sm:$0xff]
        %v7832 = vld [vmem:[#allocation11 + $0x2d0] sm:$0xff]
        %v7833 = vld [vmem:[#allocation11 + $0x2d8] sm:$0xff]
        %v7834 = vld [vmem:[#allocation11 + $0x2e0] sm:$0xff]
        %v7835 = vld [vmem:[#allocation11 + $0x2e8] sm:$0xff]
        %v7836 = vld [vmem:[#allocation11 + $0x2f0] sm:$0xff]
        %v7837 = vld [vmem:[#allocation11 + $0x2f8] sm:$0xff]
        %v7838 = vld [vmem:[#allocation11 + $0x300] sm:$0xff]
        %v7839 = vld [vmem:[#allocation11 + $0x308] sm:$0xff]
        %v7840 = vld [vmem:[#allocation11 + $0x310] sm:$0xff]
        %v7841 = vld [vmem:[#allocation11 + $0x318] sm:$0xff]
        %v7842 = vld [vmem:[#allocation11 + $0x320] sm:$0xff]
        %v7843 = vld [vmem:[#allocation11 + $0x328] sm:$0xff]
        %v7844 = vld [vmem:[#allocation11 + $0x330] sm:$0xff]
        %v7845 = vld [vmem:[#allocation11 + $0x338] sm:$0xff]
        %v7846 = vld [vmem:[#allocation11 + $0x340] sm:$0xff]
        %v7847 = vld [vmem:[#allocation11 + $0x348] sm:$0xff]
        %v7848 = vld [vmem:[#allocation11 + $0x350] sm:$0xff]
        %v7849 = vld [vmem:[#allocation11 + $0x358] sm:$0xff]
        %v7850 = vld [vmem:[#allocation11 + $0x360] sm:$0xff]
        %v7851 = vld [vmem:[#allocation11 + $0x368] sm:$0xff]
        %v7852 = vld [vmem:[#allocation11 + $0x370] sm:$0xff]
        %v7853 = vld [vmem:[#allocation11 + $0x378] sm:$0xff]
        %v7854 = vld [vmem:[#allocation11 + $0x380] sm:$0xff]
        %v7855 = vld [vmem:[#allocation11 + $0x388] sm:$0xff]
        %v7856 = vld [vmem:[#allocation11 + $0x390] sm:$0xff]
        %v7857 = vld [vmem:[#allocation11 + $0x398] sm:$0xff]
        %v7858 = vld [vmem:[#allocation11 + $0x3a0] sm:$0xff]
        %v7859 = vld [vmem:[#allocation11 + $0x3a8] sm:$0xff]
        %v7860 = vld [vmem:[#allocation11 + $0x3b0] sm:$0xff]
        %v7861 = vld [vmem:[#allocation11 + $0x3b8] sm:$0xff]
        %v7862 = vld [vmem:[#allocation11 + $0x3c0] sm:$0xff]
        %v7863 = vld [vmem:[#allocation11 + $0x3c8] sm:$0xff]
        %v7864 = vld [vmem:[#allocation11 + $0x3d0] sm:$0xff]
        %v7865 = vld [vmem:[#allocation11 + $0x3d8] sm:$0xff]
        %v7866 = vld [vmem:[#allocation11 + $0x3e0] sm:$0xff]
        %v7867 = vld [vmem:[#allocation11 + $0x3e8] sm:$0xff]
        %v7868 = vld [vmem:[#allocation11 + $0x3f0] sm:$0xff]
        %v7869 = vld [vmem:[#allocation11 + $0x3f8] sm:$0xff]
        %v7870 = vld [vmem:[#allocation11 + $0x400] sm:$0xff]
        %v7871 = vld [vmem:[#allocation11 + $0x408] sm:$0xff]
        %v7872 = vld [vmem:[#allocation11 + $0x410] sm:$0xff]
        %v7873 = vld [vmem:[#allocation11 + $0x418] sm:$0xff]
        %v7874 = vld [vmem:[#allocation11 + $0x420] sm:$0xff]
        %v7875 = vld [vmem:[#allocation11 + $0x428] sm:$0xff]
        %v7876 = vld [vmem:[#allocation11 + $0x430] sm:$0xff]
        %v7877 = vld [vmem:[#allocation11 + $0x438] sm:$0xff]
        %v7878 = vld [vmem:[#allocation11 + $0x440] sm:$0xff]
        %v7879 = vld [vmem:[#allocation11 + $0x448] sm:$0xff]
        %v7880 = vld [vmem:[#allocation11 + $0x450] sm:$0xff]
        %v7881 = vld [vmem:[#allocation11 + $0x458] sm:$0xff]
        %v7882 = vld [vmem:[#allocation11 + $0x460] sm:$0xff]
        %v7883 = vld [vmem:[#allocation11 + $0x468] sm:$0xff]
        %v7884 = vld [vmem:[#allocation11 + $0x470] sm:$0xff]
        %v7885 = vld [vmem:[#allocation11 + $0x478] sm:$0xff]
        %v7886 = vld [vmem:[#allocation11 + $0x480] sm:$0xff]
        %v7887 = vld [vmem:[#allocation11 + $0x488] sm:$0xff]
        %v7888 = vld [vmem:[#allocation11 + $0x490] sm:$0xff]
        %v7889 = vld [vmem:[#allocation11 + $0x498] sm:$0xff]
        %v7890 = vld [vmem:[#allocation11 + $0x4a0] sm:$0xff]
        %v7891 = vld [vmem:[#allocation11 + $0x4a8] sm:$0xff]
        %v7892 = vld [vmem:[#allocation11 + $0x4b0] sm:$0xff]
        %v7893 = vld [vmem:[#allocation11 + $0x4b8] sm:$0xff]
        %v7894 = vld [vmem:[#allocation11 + $0x4c0] sm:$0xff]
        %v7895 = vld [vmem:[#allocation11 + $0x4c8] sm:$0xff]
        %v7896 = vld [vmem:[#allocation11 + $0x4d0] sm:$0xff]
        %v7897 = vld [vmem:[#allocation11 + $0x4d8] sm:$0xff]
        %v7898 = vld [vmem:[#allocation11 + $0x4e0] sm:$0xff]
        %v7899 = vld [vmem:[#allocation11 + $0x4e8] sm:$0xff]
        %v7900 = vld [vmem:[#allocation11 + $0x4f0] sm:$0xff]
        %v7901 = vld [vmem:[#allocation11 + $0x4f8] sm:$0xff]
        %v7902 = vld [vmem:[#allocation11 + $0x500] sm:$0xff]
        %v7903 = vld [vmem:[#allocation11 + $0x508] sm:$0xff]
        %v7904 = vld [vmem:[#allocation11 + $0x510] sm:$0xff]
        %v7905 = vld [vmem:[#allocation11 + $0x518] sm:$0xff]
        %v7906 = vld [vmem:[#allocation11 + $0x520] sm:$0xff]
        %v7907 = vld [vmem:[#allocation11 + $0x528] sm:$0xff]
        %v7908 = vld [vmem:[#allocation11 + $0x530] sm:$0xff]
        %v7909 = vld [vmem:[#allocation11 + $0x538] sm:$0xff]
        %v7910 = vld [vmem:[#allocation11 + $0x540] sm:$0xff]
        %v7911 = vld [vmem:[#allocation11 + $0x548] sm:$0xff]
        %v7912 = vld [vmem:[#allocation11 + $0x550] sm:$0xff]
        %v7913 = vld [vmem:[#allocation11 + $0x558] sm:$0xff]
        %v7914 = vld [vmem:[#allocation11 + $0x560] sm:$0xff]
        %v7915 = vld [vmem:[#allocation11 + $0x568] sm:$0xff]
        %v7916 = vld [vmem:[#allocation11 + $0x570] sm:$0xff]
        %v7917 = vld [vmem:[#allocation11 + $0x578] sm:$0xff]
        %v7918 = vld [vmem:[#allocation11 + $0x580] sm:$0xff]
        %v7919 = vld [vmem:[#allocation11 + $0x588] sm:$0xff]
        %v7920 = vld [vmem:[#allocation11 + $0x590] sm:$0xff]
        %v7921 = vld [vmem:[#allocation11 + $0x598] sm:$0xff]
        %v7922 = vld [vmem:[#allocation11 + $0x5a0] sm:$0xff]
        %v7923 = vld [vmem:[#allocation11 + $0x5a8] sm:$0xff]
        %v7924 = vld [vmem:[#allocation11 + $0x5b0] sm:$0xff]
        %v7925 = vld [vmem:[#allocation11 + $0x5b8] sm:$0xff]
        %v7926 = vld [vmem:[#allocation11 + $0x5c0] sm:$0xff]
        %v7927 = vld [vmem:[#allocation11 + $0x5c8] sm:$0xff]
        %v7928 = vld [vmem:[#allocation11 + $0x5d0] sm:$0xff]
        %v7929 = vld [vmem:[#allocation11 + $0x5d8] sm:$0xff]
        %v7930 = vld [vmem:[#allocation11 + $0x5e0] sm:$0xff]
        %v7931 = vld [vmem:[#allocation11 + $0x5e8] sm:$0xff]
        %v7932 = vld [vmem:[#allocation11 + $0x5f0] sm:$0xff]
        %v7933 = vld [vmem:[#allocation11 + $0x5f8] sm:$0xff]
        %v7934 = vld [vmem:[#allocation11 + $0x600] sm:$0xff]
        %v7935 = vld [vmem:[#allocation11 + $0x608] sm:$0xff]
        %v7936 = vld [vmem:[#allocation11 + $0x610] sm:$0xff]
        %v7937 = vld [vmem:[#allocation11 + $0x618] sm:$0xff]
        %v7938 = vld [vmem:[#allocation11 + $0x620] sm:$0xff]
        %v7939 = vld [vmem:[#allocation11 + $0x628] sm:$0xff]
        %v7940 = vld [vmem:[#allocation11 + $0x630] sm:$0xff]
        %v7941 = vld [vmem:[#allocation11 + $0x638] sm:$0xff]
        %v7942 = vld [vmem:[#allocation11 + $0x640] sm:$0xff]
        %v7943 = vld [vmem:[#allocation11 + $0x648] sm:$0xff]
        %v7944 = vld [vmem:[#allocation11 + $0x650] sm:$0xff]
        %v7945 = vld [vmem:[#allocation11 + $0x658] sm:$0xff]
        %v7946 = vld [vmem:[#allocation11 + $0x660] sm:$0xff]
        %v7947 = vld [vmem:[#allocation11 + $0x668] sm:$0xff]
        %v7948 = vld [vmem:[#allocation11 + $0x670] sm:$0xff]
        %v7949 = vld [vmem:[#allocation11 + $0x678] sm:$0xff]
        %v7950 = vld [vmem:[#allocation11 + $0x680] sm:$0xff]
        %v7951 = vld [vmem:[#allocation11 + $0x688] sm:$0xff]
        %v7952 = vld [vmem:[#allocation11 + $0x690] sm:$0xff]
        %v7953 = vld [vmem:[#allocation11 + $0x698] sm:$0xff]
        %v7954 = vld [vmem:[#allocation11 + $0x6a0] sm:$0xff]
        %v7955 = vld [vmem:[#allocation11 + $0x6a8] sm:$0xff]
        %v7956 = vld [vmem:[#allocation11 + $0x6b0] sm:$0xff]
        %v7957 = vld [vmem:[#allocation11 + $0x6b8] sm:$0xff]
        %v7958 = vld [vmem:[#allocation11 + $0x6c0] sm:$0xff]
        %v7959 = vld [vmem:[#allocation11 + $0x6c8] sm:$0xff]
        %v7960 = vld [vmem:[#allocation11 + $0x6d0] sm:$0xff]
        %v7961 = vld [vmem:[#allocation11 + $0x6d8] sm:$0xff]
        %v7962 = vld [vmem:[#allocation11 + $0x6e0] sm:$0xff]
        %v7963 = vld [vmem:[#allocation11 + $0x6e8] sm:$0xff]
        %v7964 = vld [vmem:[#allocation11 + $0x6f0] sm:$0xff]
        %v7965 = vld [vmem:[#allocation11 + $0x6f8] sm:$0xff]
        %v7966 = vld [vmem:[#allocation11 + $0x700] sm:$0xff]
        %v7967 = vld [vmem:[#allocation11 + $0x708] sm:$0xff]
        %v7968 = vld [vmem:[#allocation11 + $0x710] sm:$0xff]
        %v7969 = vld [vmem:[#allocation11 + $0x718] sm:$0xff]
        %v7970 = vld [vmem:[#allocation11 + $0x720] sm:$0xff]
        %v7971 = vld [vmem:[#allocation11 + $0x728] sm:$0xff]
        %v7972 = vld [vmem:[#allocation11 + $0x730] sm:$0xff]
        %v7973 = vld [vmem:[#allocation11 + $0x738] sm:$0xff]
        %v7974 = vld [vmem:[#allocation11 + $0x740] sm:$0xff]
        %v7975 = vld [vmem:[#allocation11 + $0x748] sm:$0xff]
        %v7976 = vld [vmem:[#allocation11 + $0x750] sm:$0xff]
        %v7977 = vld [vmem:[#allocation11 + $0x758] sm:$0xff]
        %v7978 = vld [vmem:[#allocation11 + $0x760] sm:$0xff]
        %v7979 = vld [vmem:[#allocation11 + $0x768] sm:$0xff]
        %v7980 = vld [vmem:[#allocation11 + $0x770] sm:$0xff]
        %v7981 = vld [vmem:[#allocation11 + $0x778] sm:$0xff]
        %v7982 = vld [vmem:[#allocation11 + $0x780] sm:$0xff]
        %v7983 = vld [vmem:[#allocation11 + $0x788] sm:$0xff]
        %v7984 = vld [vmem:[#allocation11 + $0x790] sm:$0xff]
        %v7985 = vld [vmem:[#allocation11 + $0x798] sm:$0xff]
        %v7986 = vld [vmem:[#allocation11 + $0x7a0] sm:$0xff]
        %v7987 = vld [vmem:[#allocation11 + $0x7a8] sm:$0xff]
        %v7988 = vld [vmem:[#allocation11 + $0x7b0] sm:$0xff]
        %v7989 = vld [vmem:[#allocation11 + $0x7b8] sm:$0xff]
        %v7990 = vld [vmem:[#allocation11 + $0x7c0] sm:$0xff]
        %v7991 = vld [vmem:[#allocation11 + $0x7c8] sm:$0xff]
        %v7992 = vld [vmem:[#allocation11 + $0x7d0] sm:$0xff]
        %v7993 = vld [vmem:[#allocation11 + $0x7d8] sm:$0xff]
        %v7994 = vld [vmem:[#allocation11 + $0x7e0] sm:$0xff]
        %v7995 = vld [vmem:[#allocation11 + $0x7e8] sm:$0xff]
        %v7996 = vld [vmem:[#allocation11 + $0x7f0] sm:$0xff]
        %v7997 = vld [vmem:[#allocation11 + $0x7f8] sm:$0xff]
        %7998 = vmatprep.subr.mxu0 0.0
        %7999 = vmatpush1.msra.mxu0 %v7757
        %8000 = vmatprep.subr.mxu0 0.0
        %8001 = vmatpush1.msra.mxu0 %v7756
        %8002 = vmatprep.subr.mxu0 0.0
        %8003 = vmatpush1.msra.mxu0 %v7755
        %8004 = vmatprep.subr.mxu0 0.0
        %8005 = vmatpush1.msra.mxu0 %v7754
        %8006 = vmatprep.subr.mxu0 0.0
        %8007 = vmatpush1.msra.mxu0 %v7753
        %8008 = vmatprep.subr.mxu0 0.0
        %8009 = vmatpush1.msra.mxu0 %v7752
        %8010 = vmatprep.subr.mxu0 0.0
        %8011 = vmatpush1.msra.mxu0 %v7751
        %8012 = vmatprep.subr.mxu0 0.0
        %8013 = vmatpush1.msra.mxu0 %v7750
        %8014 = vmatprep.subr.mxu0 0.0
        %8015 = vmatpush1.msra.mxu0 %v7749
        %8016 = vmatprep.subr.mxu0 0.0
        %8017 = vmatpush1.msra.mxu0 %v7748
        %8018 = vmatprep.subr.mxu0 0.0
        %8019 = vmatpush1.msra.mxu0 %v7747
        %8020 = vmatprep.subr.mxu0 0.0
        %8021 = vmatpush1.msra.mxu0 %v7746
        %8022 = vmatprep.subr.mxu0 0.0
        %8023 = vmatpush1.msra.mxu0 %v7745
        %8024 = vmatprep.subr.mxu0 0.0
        %8025 = vmatpush1.msra.mxu0 %v7744
        %8026 = vmatprep.subr.mxu0 0.0
        %8027 = vmatpush1.msra.mxu0 %v7743
        %8028 = vmatprep.subr.mxu0 0.0
        %8029 = vmatpush1.msra.mxu0 %v7742
        %8030 = vmatprep.subr.mxu0 0.0
        %8031 = vmatpush2.msra.mxu0 %v7773
        %8032 = vmatprep.subr.mxu0 0.0
        %8033 = vmatpush2.msra.mxu0 %v7772
        %8034 = vmatprep.subr.mxu0 0.0
        %8035 = vmatpush2.msra.mxu0 %v7771
        %8036 = vmatprep.subr.mxu0 0.0
        %8037 = vmatpush2.msra.mxu0 %v7770
        %8038 = vmatprep.subr.mxu0 0.0
        %8039 = vmatpush2.msra.mxu0 %v7769
        %8040 = vmatprep.subr.mxu0 0.0
        %8041 = vmatpush2.msra.mxu0 %v7768
        %8042 = vmatprep.subr.mxu0 0.0
        %8043 = vmatpush2.msra.mxu0 %v7767
        %8044 = vmatprep.subr.mxu0 0.0
        %8045 = vmatpush2.msra.mxu0 %v7766
        %8046 = vmatprep.subr.mxu0 0.0
        %8047 = vmatpush2.msra.mxu0 %v7765
        %8048 = vmatprep.subr.mxu0 0.0
        %8049 = vmatpush2.msra.mxu0 %v7764
        %8050 = vmatprep.subr.mxu0 0.0
        %8051 = vmatpush2.msra.mxu0 %v7763
        %8052 = vmatprep.subr.mxu0 0.0
        %8053 = vmatpush2.msra.mxu0 %v7762
        %8054 = vmatprep.subr.mxu0 0.0
        %8055 = vmatpush2.msra.mxu0 %v7761
        %8056 = vmatprep.subr.mxu0 0.0
        %8057 = vmatpush2.msra.mxu0 %v7760
        %8058 = vmatprep.subr.mxu0 0.0
        %8059 = vmatpush2.msra.mxu0 %v7759
        %8060 = vmatprep.subr.mxu0 0.0
        %8061 = vmatpush2.msra.mxu0 %v7758
        %8062 = vmatprep.mubr.f32.mxu0 %v7243
        %8063 = vmatmul.mubr.f32.gmra.mxu0 %v7241
        %v8064 = vpop.f32.mrf.mxu0
        %v8065 = vadd.f32 0.0, %v8064
        %v8066 = vpop.f32.mrf.mxu0
        %8067 = vdwg.mxu0
        %8068 = vmatprep.subr.mxu0 0.0
        %8069 = vmatpush1.msra.mxu0 %v7789
        %8070 = vmatprep.subr.mxu0 0.0
        %8071 = vmatpush1.msra.mxu0 %v7788
        %8072 = vmatprep.subr.mxu0 0.0
        %8073 = vmatpush1.msra.mxu0 %v7787
        %8074 = vmatprep.subr.mxu0 0.0
        %8075 = vmatpush1.msra.mxu0 %v7786
        %8076 = vmatprep.subr.mxu0 0.0
        %8077 = vmatpush1.msra.mxu0 %v7785
        %8078 = vmatprep.subr.mxu0 0.0
        %8079 = vmatpush1.msra.mxu0 %v7784
        %8080 = vmatprep.subr.mxu0 0.0
        %8081 = vmatpush1.msra.mxu0 %v7783
        %8082 = vmatprep.subr.mxu0 0.0
        %8083 = vmatpush1.msra.mxu0 %v7782
        %8084 = vmatprep.subr.mxu0 0.0
        %8085 = vmatpush1.msra.mxu0 %v7781
        %8086 = vmatprep.subr.mxu0 0.0
        %8087 = vmatpush1.msra.mxu0 %v7780
        %8088 = vmatprep.subr.mxu0 0.0
        %8089 = vmatpush1.msra.mxu0 %v7779
        %8090 = vmatprep.subr.mxu0 0.0
        %8091 = vmatpush1.msra.mxu0 %v7778
        %8092 = vmatprep.subr.mxu0 0.0
        %8093 = vmatpush1.msra.mxu0 %v7777
        %8094 = vmatprep.subr.mxu0 0.0
        %8095 = vmatpush1.msra.mxu0 %v7776
        %8096 = vmatprep.subr.mxu0 0.0
        %8097 = vmatpush1.msra.mxu0 %v7775
        %8098 = vmatprep.subr.mxu0 0.0
        %8099 = vmatpush1.msra.mxu0 %v7774
        %8100 = vmatprep.subr.mxu0 0.0
        %8101 = vmatpush2.msra.mxu0 %v7805
        %8102 = vmatprep.subr.mxu0 0.0
        %8103 = vmatpush2.msra.mxu0 %v7804
        %8104 = vmatprep.subr.mxu0 0.0
        %8105 = vmatpush2.msra.mxu0 %v7803
        %8106 = vmatprep.subr.mxu0 0.0
        %8107 = vmatpush2.msra.mxu0 %v7802
        %8108 = vmatprep.subr.mxu0 0.0
        %8109 = vmatpush2.msra.mxu0 %v7801
        %8110 = vmatprep.subr.mxu0 0.0
        %8111 = vmatpush2.msra.mxu0 %v7800
        %8112 = vmatprep.subr.mxu0 0.0
        %8113 = vmatpush2.msra.mxu0 %v7799
        %8114 = vmatprep.subr.mxu0 0.0
        %8115 = vmatpush2.msra.mxu0 %v7798
        %8116 = vmatprep.subr.mxu0 0.0
        %8117 = vmatpush2.msra.mxu0 %v7797
        %8118 = vmatprep.subr.mxu0 0.0
        %8119 = vmatpush2.msra.mxu0 %v7796
        %8120 = vmatprep.subr.mxu0 0.0
        %8121 = vmatpush2.msra.mxu0 %v7795
        %8122 = vmatprep.subr.mxu0 0.0
        %8123 = vmatpush2.msra.mxu0 %v7794
        %8124 = vmatprep.subr.mxu0 0.0
        %8125 = vmatpush2.msra.mxu0 %v7793
        %8126 = vmatprep.subr.mxu0 0.0
        %8127 = vmatpush2.msra.mxu0 %v7792
        %8128 = vmatprep.subr.mxu0 0.0
        %8129 = vmatpush2.msra.mxu0 %v7791
        %8130 = vmatprep.subr.mxu0 0.0
        %8131 = vmatpush2.msra.mxu0 %v7790
        %8132 = vmatprep.mubr.f32.mxu0 %v7314
        %8133 = vmatmul.mubr.f32.gmra.mxu0 %v7312
        %v8134 = vpop.f32.mrf.mxu0
        %v8135 = vadd.f32 %v8065, %v8134
        %v8136 = vpop.f32.mrf.mxu0
        %8137 = vdwg.mxu0
        %8138 = vmatprep.subr.mxu0 0.0
        %8139 = vmatpush1.msra.mxu0 %v7821
        %8140 = vmatprep.subr.mxu0 0.0
        %8141 = vmatpush1.msra.mxu0 %v7820
        %8142 = vmatprep.subr.mxu0 0.0
        %8143 = vmatpush1.msra.mxu0 %v7819
        %8144 = vmatprep.subr.mxu0 0.0
        %8145 = vmatpush1.msra.mxu0 %v7818
        %8146 = vmatprep.subr.mxu0 0.0
        %8147 = vmatpush1.msra.mxu0 %v7817
        %8148 = vmatprep.subr.mxu0 0.0
        %8149 = vmatpush1.msra.mxu0 %v7816
        %8150 = vmatprep.subr.mxu0 0.0
        %8151 = vmatpush1.msra.mxu0 %v7815
        %8152 = vmatprep.subr.mxu0 0.0
        %8153 = vmatpush1.msra.mxu0 %v7814
        %8154 = vmatprep.subr.mxu0 0.0
        %8155 = vmatpush1.msra.mxu0 %v7813
        %8156 = vmatprep.subr.mxu0 0.0
        %8157 = vmatpush1.msra.mxu0 %v7812
        %8158 = vmatprep.subr.mxu0 0.0
        %8159 = vmatpush1.msra.mxu0 %v7811
        %8160 = vmatprep.subr.mxu0 0.0
        %8161 = vmatpush1.msra.mxu0 %v7810
        %8162 = vmatprep.subr.mxu0 0.0
        %8163 = vmatpush1.msra.mxu0 %v7809
        %8164 = vmatprep.subr.mxu0 0.0
        %8165 = vmatpush1.msra.mxu0 %v7808
        %8166 = vmatprep.subr.mxu0 0.0
        %8167 = vmatpush1.msra.mxu0 %v7807
        %8168 = vmatprep.subr.mxu0 0.0
        %8169 = vmatpush1.msra.mxu0 %v7806
        %8170 = vmatprep.subr.mxu0 0.0
        %8171 = vmatpush2.msra.mxu0 %v7837
        %8172 = vmatprep.subr.mxu0 0.0
        %8173 = vmatpush2.msra.mxu0 %v7836
        %8174 = vmatprep.subr.mxu0 0.0
        %8175 = vmatpush2.msra.mxu0 %v7835
        %8176 = vmatprep.subr.mxu0 0.0
        %8177 = vmatpush2.msra.mxu0 %v7834
        %8178 = vmatprep.subr.mxu0 0.0
        %8179 = vmatpush2.msra.mxu0 %v7833
        %8180 = vmatprep.subr.mxu0 0.0
        %8181 = vmatpush2.msra.mxu0 %v7832
        %8182 = vmatprep.subr.mxu0 0.0
        %8183 = vmatpush2.msra.mxu0 %v7831
        %8184 = vmatprep.subr.mxu0 0.0
        %8185 = vmatpush2.msra.mxu0 %v7830
        %8186 = vmatprep.subr.mxu0 0.0
        %8187 = vmatpush2.msra.mxu0 %v7829
        %8188 = vmatprep.subr.mxu0 0.0
        %8189 = vmatpush2.msra.mxu0 %v7828
        %8190 = vmatprep.subr.mxu0 0.0
        %8191 = vmatpush2.msra.mxu0 %v7827
        %8192 = vmatprep.subr.mxu0 0.0
        %8193 = vmatpush2.msra.mxu0 %v7826
        %8194 = vmatprep.subr.mxu0 0.0
        %8195 = vmatpush2.msra.mxu0 %v7825
        %8196 = vmatprep.subr.mxu0 0.0
        %8197 = vmatpush2.msra.mxu0 %v7824
        %8198 = vmatprep.subr.mxu0 0.0
        %8199 = vmatpush2.msra.mxu0 %v7823
        %8200 = vmatprep.subr.mxu0 0.0
        %8201 = vmatpush2.msra.mxu0 %v7822
        %8202 = vmatprep.mubr.f32.mxu0 %v7385
        %8203 = vmatmul.mubr.f32.gmra.mxu0 %v7383
        %v8204 = vpop.f32.mrf.mxu0
        %v8205 = vadd.f32 %v8135, %v8204
        %v8206 = vpop.f32.mrf.mxu0
        %8207 = vdwg.mxu0
        %8208 = vmatprep.subr.mxu0 0.0
        %8209 = vmatpush1.msra.mxu0 %v7853
        %8210 = vmatprep.subr.mxu0 0.0
        %8211 = vmatpush1.msra.mxu0 %v7852
        %8212 = vmatprep.subr.mxu0 0.0
        %8213 = vmatpush1.msra.mxu0 %v7851
        %8214 = vmatprep.subr.mxu0 0.0
        %8215 = vmatpush1.msra.mxu0 %v7850
        %8216 = vmatprep.subr.mxu0 0.0
        %8217 = vmatpush1.msra.mxu0 %v7849
        %8218 = vmatprep.subr.mxu0 0.0
        %8219 = vmatpush1.msra.mxu0 %v7848
        %8220 = vmatprep.subr.mxu0 0.0
        %8221 = vmatpush1.msra.mxu0 %v7847
        %8222 = vmatprep.subr.mxu0 0.0
        %8223 = vmatpush1.msra.mxu0 %v7846
        %8224 = vmatprep.subr.mxu0 0.0
        %8225 = vmatpush1.msra.mxu0 %v7845
        %8226 = vmatprep.subr.mxu0 0.0
        %8227 = vmatpush1.msra.mxu0 %v7844
        %8228 = vmatprep.subr.mxu0 0.0
        %8229 = vmatpush1.msra.mxu0 %v7843
        %8230 = vmatprep.subr.mxu0 0.0
        %8231 = vmatpush1.msra.mxu0 %v7842
        %8232 = vmatprep.subr.mxu0 0.0
        %8233 = vmatpush1.msra.mxu0 %v7841
        %8234 = vmatprep.subr.mxu0 0.0
        %8235 = vmatpush1.msra.mxu0 %v7840
        %8236 = vmatprep.subr.mxu0 0.0
        %8237 = vmatpush1.msra.mxu0 %v7839
        %8238 = vmatprep.subr.mxu0 0.0
        %8239 = vmatpush1.msra.mxu0 %v7838
        %8240 = vmatprep.subr.mxu0 0.0
        %8241 = vmatpush2.msra.mxu0 %v7869
        %8242 = vmatprep.subr.mxu0 0.0
        %8243 = vmatpush2.msra.mxu0 %v7868
        %8244 = vmatprep.subr.mxu0 0.0
        %8245 = vmatpush2.msra.mxu0 %v7867
        %8246 = vmatprep.subr.mxu0 0.0
        %8247 = vmatpush2.msra.mxu0 %v7866
        %8248 = vmatprep.subr.mxu0 0.0
        %8249 = vmatpush2.msra.mxu0 %v7865
        %8250 = vmatprep.subr.mxu0 0.0
        %8251 = vmatpush2.msra.mxu0 %v7864
        %8252 = vmatprep.subr.mxu0 0.0
        %8253 = vmatpush2.msra.mxu0 %v7863
        %8254 = vmatprep.subr.mxu0 0.0
        %8255 = vmatpush2.msra.mxu0 %v7862
        %8256 = vmatprep.subr.mxu0 0.0
        %8257 = vmatpush2.msra.mxu0 %v7861
        %8258 = vmatprep.subr.mxu0 0.0
        %8259 = vmatpush2.msra.mxu0 %v7860
        %8260 = vmatprep.subr.mxu0 0.0
        %8261 = vmatpush2.msra.mxu0 %v7859
        %8262 = vmatprep.subr.mxu0 0.0
        %8263 = vmatpush2.msra.mxu0 %v7858
        %8264 = vmatprep.subr.mxu0 0.0
        %8265 = vmatpush2.msra.mxu0 %v7857
        %8266 = vmatprep.subr.mxu0 0.0
        %8267 = vmatpush2.msra.mxu0 %v7856
        %8268 = vmatprep.subr.mxu0 0.0
        %8269 = vmatpush2.msra.mxu0 %v7855
        %8270 = vmatprep.subr.mxu0 0.0
        %8271 = vmatpush2.msra.mxu0 %v7854
        %8272 = vmatprep.mubr.f32.mxu0 %v7456
        %8273 = vmatmul.mubr.f32.gmra.mxu0 %v7454
        %v8274 = vpop.f32.mrf.mxu0
        %v8275 = vadd.f32 %v8205, %v8274
        %v8276 = vpop.f32.mrf.mxu0
        %8277 = vdwg.mxu0
        %8278 = vmatprep.subr.mxu0 0.0
        %8279 = vmatpush1.msra.mxu0 %v7885
        %8280 = vmatprep.subr.mxu0 0.0
        %8281 = vmatpush1.msra.mxu0 %v7884
        %8282 = vmatprep.subr.mxu0 0.0
        %8283 = vmatpush1.msra.mxu0 %v7883
        %8284 = vmatprep.subr.mxu0 0.0
        %8285 = vmatpush1.msra.mxu0 %v7882
        %8286 = vmatprep.subr.mxu0 0.0
        %8287 = vmatpush1.msra.mxu0 %v7881
        %8288 = vmatprep.subr.mxu0 0.0
        %8289 = vmatpush1.msra.mxu0 %v7880
        %8290 = vmatprep.subr.mxu0 0.0
        %8291 = vmatpush1.msra.mxu0 %v7879
        %8292 = vmatprep.subr.mxu0 0.0
        %8293 = vmatpush1.msra.mxu0 %v7878
        %8294 = vmatprep.subr.mxu0 0.0
        %8295 = vmatpush1.msra.mxu0 %v7877
        %8296 = vmatprep.subr.mxu0 0.0
        %8297 = vmatpush1.msra.mxu0 %v7876
        %8298 = vmatprep.subr.mxu0 0.0
        %8299 = vmatpush1.msra.mxu0 %v7875
        %8300 = vmatprep.subr.mxu0 0.0
        %8301 = vmatpush1.msra.mxu0 %v7874
        %8302 = vmatprep.subr.mxu0 0.0
        %8303 = vmatpush1.msra.mxu0 %v7873
        %8304 = vmatprep.subr.mxu0 0.0
        %8305 = vmatpush1.msra.mxu0 %v7872
        %8306 = vmatprep.subr.mxu0 0.0
        %8307 = vmatpush1.msra.mxu0 %v7871
        %8308 = vmatprep.subr.mxu0 0.0
        %8309 = vmatpush1.msra.mxu0 %v7870
        %8310 = vmatprep.subr.mxu0 0.0
        %8311 = vmatpush2.msra.mxu0 %v7901
        %8312 = vmatprep.subr.mxu0 0.0
        %8313 = vmatpush2.msra.mxu0 %v7900
        %8314 = vmatprep.subr.mxu0 0.0
        %8315 = vmatpush2.msra.mxu0 %v7899
        %8316 = vmatprep.subr.mxu0 0.0
        %8317 = vmatpush2.msra.mxu0 %v7898
        %8318 = vmatprep.subr.mxu0 0.0
        %8319 = vmatpush2.msra.mxu0 %v7897
        %8320 = vmatprep.subr.mxu0 0.0
        %8321 = vmatpush2.msra.mxu0 %v7896
        %8322 = vmatprep.subr.mxu0 0.0
        %8323 = vmatpush2.msra.mxu0 %v7895
        %8324 = vmatprep.subr.mxu0 0.0
        %8325 = vmatpush2.msra.mxu0 %v7894
        %8326 = vmatprep.subr.mxu0 0.0
        %8327 = vmatpush2.msra.mxu0 %v7893
        %8328 = vmatprep.subr.mxu0 0.0
        %8329 = vmatpush2.msra.mxu0 %v7892
        %8330 = vmatprep.subr.mxu0 0.0
        %8331 = vmatpush2.msra.mxu0 %v7891
        %8332 = vmatprep.subr.mxu0 0.0
        %8333 = vmatpush2.msra.mxu0 %v7890
        %8334 = vmatprep.subr.mxu0 0.0
        %8335 = vmatpush2.msra.mxu0 %v7889
        %8336 = vmatprep.subr.mxu0 0.0
        %8337 = vmatpush2.msra.mxu0 %v7888
        %8338 = vmatprep.subr.mxu0 0.0
        %8339 = vmatpush2.msra.mxu0 %v7887
        %8340 = vmatprep.subr.mxu0 0.0
        %8341 = vmatpush2.msra.mxu0 %v7886
        %8342 = vmatprep.mubr.f32.mxu0 %v7527
        %8343 = vmatmul.mubr.f32.gmra.mxu0 %v7525
        %v8344 = vpop.f32.mrf.mxu0
        %v8345 = vadd.f32 %v8275, %v8344
        %v8346 = vpop.f32.mrf.mxu0
        %8347 = vdwg.mxu0
        %8348 = vmatprep.subr.mxu0 0.0
        %8349 = vmatpush1.msra.mxu0 %v7917
        %8350 = vmatprep.subr.mxu0 0.0
        %8351 = vmatpush1.msra.mxu0 %v7916
        %8352 = vmatprep.subr.mxu0 0.0
        %8353 = vmatpush1.msra.mxu0 %v7915
        %8354 = vmatprep.subr.mxu0 0.0
        %8355 = vmatpush1.msra.mxu0 %v7914
        %8356 = vmatprep.subr.mxu0 0.0
        %8357 = vmatpush1.msra.mxu0 %v7913
        %8358 = vmatprep.subr.mxu0 0.0
        %8359 = vmatpush1.msra.mxu0 %v7912
        %8360 = vmatprep.subr.mxu0 0.0
        %8361 = vmatpush1.msra.mxu0 %v7911
        %8362 = vmatprep.subr.mxu0 0.0
        %8363 = vmatpush1.msra.mxu0 %v7910
        %8364 = vmatprep.subr.mxu0 0.0
        %8365 = vmatpush1.msra.mxu0 %v7909
        %8366 = vmatprep.subr.mxu0 0.0
        %8367 = vmatpush1.msra.mxu0 %v7908
        %8368 = vmatprep.subr.mxu0 0.0
        %8369 = vmatpush1.msra.mxu0 %v7907
        %8370 = vmatprep.subr.mxu0 0.0
        %8371 = vmatpush1.msra.mxu0 %v7906
        %8372 = vmatprep.subr.mxu0 0.0
        %8373 = vmatpush1.msra.mxu0 %v7905
        %8374 = vmatprep.subr.mxu0 0.0
        %8375 = vmatpush1.msra.mxu0 %v7904
        %8376 = vmatprep.subr.mxu0 0.0
        %8377 = vmatpush1.msra.mxu0 %v7903
        %8378 = vmatprep.subr.mxu0 0.0
        %8379 = vmatpush1.msra.mxu0 %v7902
        %8380 = vmatprep.subr.mxu0 0.0
        %8381 = vmatpush2.msra.mxu0 %v7933
        %8382 = vmatprep.subr.mxu0 0.0
        %8383 = vmatpush2.msra.mxu0 %v7932
        %8384 = vmatprep.subr.mxu0 0.0
        %8385 = vmatpush2.msra.mxu0 %v7931
        %8386 = vmatprep.subr.mxu0 0.0
        %8387 = vmatpush2.msra.mxu0 %v7930
        %8388 = vmatprep.subr.mxu0 0.0
        %8389 = vmatpush2.msra.mxu0 %v7929
        %8390 = vmatprep.subr.mxu0 0.0
        %8391 = vmatpush2.msra.mxu0 %v7928
        %8392 = vmatprep.subr.mxu0 0.0
        %8393 = vmatpush2.msra.mxu0 %v7927
        %8394 = vmatprep.subr.mxu0 0.0
        %8395 = vmatpush2.msra.mxu0 %v7926
        %8396 = vmatprep.subr.mxu0 0.0
        %8397 = vmatpush2.msra.mxu0 %v7925
        %8398 = vmatprep.subr.mxu0 0.0
        %8399 = vmatpush2.msra.mxu0 %v7924
        %8400 = vmatprep.subr.mxu0 0.0
        %8401 = vmatpush2.msra.mxu0 %v7923
        %8402 = vmatprep.subr.mxu0 0.0
        %8403 = vmatpush2.msra.mxu0 %v7922
        %8404 = vmatprep.subr.mxu0 0.0
        %8405 = vmatpush2.msra.mxu0 %v7921
        %8406 = vmatprep.subr.mxu0 0.0
        %8407 = vmatpush2.msra.mxu0 %v7920
        %8408 = vmatprep.subr.mxu0 0.0
        %8409 = vmatpush2.msra.mxu0 %v7919
        %8410 = vmatprep.subr.mxu0 0.0
        %8411 = vmatpush2.msra.mxu0 %v7918
        %8412 = vmatprep.mubr.f32.mxu0 %v7598
        %8413 = vmatmul.mubr.f32.gmra.mxu0 %v7596
        %v8414 = vpop.f32.mrf.mxu0
        %v8415 = vadd.f32 %v8345, %v8414
        %v8416 = vpop.f32.mrf.mxu0
        %8417 = vdwg.mxu0
        %8418 = vmatprep.subr.mxu0 0.0
        %8419 = vmatpush1.msra.mxu0 %v7949
        %8420 = vmatprep.subr.mxu0 0.0
        %8421 = vmatpush1.msra.mxu0 %v7948
        %8422 = vmatprep.subr.mxu0 0.0
        %8423 = vmatpush1.msra.mxu0 %v7947
        %8424 = vmatprep.subr.mxu0 0.0
        %8425 = vmatpush1.msra.mxu0 %v7946
        %8426 = vmatprep.subr.mxu0 0.0
        %8427 = vmatpush1.msra.mxu0 %v7945
        %8428 = vmatprep.subr.mxu0 0.0
        %8429 = vmatpush1.msra.mxu0 %v7944
        %8430 = vmatprep.subr.mxu0 0.0
        %8431 = vmatpush1.msra.mxu0 %v7943
        %8432 = vmatprep.subr.mxu0 0.0
        %8433 = vmatpush1.msra.mxu0 %v7942
        %8434 = vmatprep.subr.mxu0 0.0
        %8435 = vmatpush1.msra.mxu0 %v7941
        %8436 = vmatprep.subr.mxu0 0.0
        %8437 = vmatpush1.msra.mxu0 %v7940
        %8438 = vmatprep.subr.mxu0 0.0
        %8439 = vmatpush1.msra.mxu0 %v7939
        %8440 = vmatprep.subr.mxu0 0.0
        %8441 = vmatpush1.msra.mxu0 %v7938
        %8442 = vmatprep.subr.mxu0 0.0
        %8443 = vmatpush1.msra.mxu0 %v7937
        %8444 = vmatprep.subr.mxu0 0.0
        %8445 = vmatpush1.msra.mxu0 %v7936
        %8446 = vmatprep.subr.mxu0 0.0
        %8447 = vmatpush1.msra.mxu0 %v7935
        %8448 = vmatprep.subr.mxu0 0.0
        %8449 = vmatpush1.msra.mxu0 %v7934
        %8450 = vmatprep.subr.mxu0 0.0
        %8451 = vmatpush2.msra.mxu0 %v7965
        %8452 = vmatprep.subr.mxu0 0.0
        %8453 = vmatpush2.msra.mxu0 %v7964
        %8454 = vmatprep.subr.mxu0 0.0
        %8455 = vmatpush2.msra.mxu0 %v7963
        %8456 = vmatprep.subr.mxu0 0.0
        %8457 = vmatpush2.msra.mxu0 %v7962
        %8458 = vmatprep.subr.mxu0 0.0
        %8459 = vmatpush2.msra.mxu0 %v7961
        %8460 = vmatprep.subr.mxu0 0.0
        %8461 = vmatpush2.msra.mxu0 %v7960
        %8462 = vmatprep.subr.mxu0 0.0
        %8463 = vmatpush2.msra.mxu0 %v7959
        %8464 = vmatprep.subr.mxu0 0.0
        %8465 = vmatpush2.msra.mxu0 %v7958
        %8466 = vmatprep.subr.mxu0 0.0
        %8467 = vmatpush2.msra.mxu0 %v7957
        %8468 = vmatprep.subr.mxu0 0.0
        %8469 = vmatpush2.msra.mxu0 %v7956
        %8470 = vmatprep.subr.mxu0 0.0
        %8471 = vmatpush2.msra.mxu0 %v7955
        %8472 = vmatprep.subr.mxu0 0.0
        %8473 = vmatpush2.msra.mxu0 %v7954
        %8474 = vmatprep.subr.mxu0 0.0
        %8475 = vmatpush2.msra.mxu0 %v7953
        %8476 = vmatprep.subr.mxu0 0.0
        %8477 = vmatpush2.msra.mxu0 %v7952
        %8478 = vmatprep.subr.mxu0 0.0
        %8479 = vmatpush2.msra.mxu0 %v7951
        %8480 = vmatprep.subr.mxu0 0.0
        %8481 = vmatpush2.msra.mxu0 %v7950
        %8482 = vmatprep.mubr.f32.mxu0 %v7669
        %8483 = vmatmul.mubr.f32.gmra.mxu0 %v7667
        %v8484 = vpop.f32.mrf.mxu0
        %v8485 = vadd.f32 %v8415, %v8484
        %v8486 = vpop.f32.mrf.mxu0
        %8487 = vdwg.mxu0
        %8488 = vmatprep.subr.mxu0 0.0
        %8489 = vmatpush1.msra.mxu0 %v7981
        %8490 = vmatprep.subr.mxu0 0.0
        %8491 = vmatpush1.msra.mxu0 %v7980
        %8492 = vmatprep.subr.mxu0 0.0
        %8493 = vmatpush1.msra.mxu0 %v7979
        %8494 = vmatprep.subr.mxu0 0.0
        %8495 = vmatpush1.msra.mxu0 %v7978
        %8496 = vmatprep.subr.mxu0 0.0
        %8497 = vmatpush1.msra.mxu0 %v7977
        %8498 = vmatprep.subr.mxu0 0.0
        %8499 = vmatpush1.msra.mxu0 %v7976
        %8500 = vmatprep.subr.mxu0 0.0
        %8501 = vmatpush1.msra.mxu0 %v7975
        %8502 = vmatprep.subr.mxu0 0.0
        %8503 = vmatpush1.msra.mxu0 %v7974
        %8504 = vmatprep.subr.mxu0 0.0
        %8505 = vmatpush1.msra.mxu0 %v7973
        %8506 = vmatprep.subr.mxu0 0.0
        %8507 = vmatpush1.msra.mxu0 %v7972
        %8508 = vmatprep.subr.mxu0 0.0
        %8509 = vmatpush1.msra.mxu0 %v7971
        %8510 = vmatprep.subr.mxu0 0.0
        %8511 = vmatpush1.msra.mxu0 %v7970
        %8512 = vmatprep.subr.mxu0 0.0
        %8513 = vmatpush1.msra.mxu0 %v7969
        %8514 = vmatprep.subr.mxu0 0.0
        %8515 = vmatpush1.msra.mxu0 %v7968
        %8516 = vmatprep.subr.mxu0 0.0
        %8517 = vmatpush1.msra.mxu0 %v7967
        %8518 = vmatprep.subr.mxu0 0.0
        %8519 = vmatpush1.msra.mxu0 %v7966
        %8520 = vmatprep.subr.mxu0 0.0
        %8521 = vmatpush2.msra.mxu0 %v7997
        %8522 = vmatprep.subr.mxu0 0.0
        %8523 = vmatpush2.msra.mxu0 %v7996
        %8524 = vmatprep.subr.mxu0 0.0
        %8525 = vmatpush2.msra.mxu0 %v7995
        %8526 = vmatprep.subr.mxu0 0.0
        %8527 = vmatpush2.msra.mxu0 %v7994
        %8528 = vmatprep.subr.mxu0 0.0
        %8529 = vmatpush2.msra.mxu0 %v7993
        %8530 = vmatprep.subr.mxu0 0.0
        %8531 = vmatpush2.msra.mxu0 %v7992
        %8532 = vmatprep.subr.mxu0 0.0
        %8533 = vmatpush2.msra.mxu0 %v7991
        %8534 = vmatprep.subr.mxu0 0.0
        %8535 = vmatpush2.msra.mxu0 %v7990
        %8536 = vmatprep.subr.mxu0 0.0
        %8537 = vmatpush2.msra.mxu0 %v7989
        %8538 = vmatprep.subr.mxu0 0.0
        %8539 = vmatpush2.msra.mxu0 %v7988
        %8540 = vmatprep.subr.mxu0 0.0
        %8541 = vmatpush2.msra.mxu0 %v7987
        %8542 = vmatprep.subr.mxu0 0.0
        %8543 = vmatpush2.msra.mxu0 %v7986
        %8544 = vmatprep.subr.mxu0 0.0
        %8545 = vmatpush2.msra.mxu0 %v7985
        %8546 = vmatprep.subr.mxu0 0.0
        %8547 = vmatpush2.msra.mxu0 %v7984
        %8548 = vmatprep.subr.mxu0 0.0
        %8549 = vmatpush2.msra.mxu0 %v7983
        %8550 = vmatprep.subr.mxu0 0.0
        %8551 = vmatpush2.msra.mxu0 %v7982
        %8552 = vmatprep.mubr.f32.mxu0 %v7740
        %8553 = vmatmul.mubr.f32.gmra.mxu0 %v7738
        %v8554 = vpop.f32.mrf.mxu0
        %v8555 = vadd.f32 %v8485, %v8554
        %v8556 = vpop.f32.mrf.mxu0
        %8557 = vdwg.mxu0
        %8558 = vst [vmem:[%s422] sm:$0x1] %v8555
        %s8559 = sand.u32 %s231, 1
        %s8560 = scalar_lea.sflag [#allocation4], %s8559
        %s8561 = sand.u32 %s231, 1
        %s8562 = scalar_lea.vmem [#allocation13], %s8561
        // Predicated region
        $region81: #{tpu_custom_call.1} parent=55 // pred_check
          %p8563 = pneg %p241
        $region82: #{tpu_custom_call.1} parent=55 // pred_check_branch
          %8565 = sbr.rel (%p8563) target = $region84
        $region83: #{tpu_custom_call.1} parent=55 // pred_region
          %s8567 = ssub.s32 16, 16
          %8568 = vsyncadd %s8560, %s8567
          %s8569 = smul.addr %s29, 16
          %s8570 = scalar_lea.hbm %s9, %s8569
          %s8572 = sshll.u32 %s8562, 4
          %s8573 = int_to_ptr.vmem [resolvable:$true] %s8572
          %8575 = dma.vmem_to_hbm [thread:$0]  %s8573, 16, %s8570, %s8560
        $region84: #{tpu_custom_call.1} parent=55 // pred_fallthru
          _
      $region56: #{tpu_custom_call.1} parent=5 // pred_fallthru
        _
      %p8576 = scmp.le.s32.totalorder 2, %s24
      // Predicated region
      $region85: #{tpu_custom_call.1} parent=5 // pred_check
        %p8577 = pneg %p8576
      $region86: #{tpu_custom_call.1} parent=5 // pred_check_branch
        %8579 = sbr.rel (%p8577) target = $region88
      $region87: #{tpu_custom_call.1} parent=5 // pred_region
        %s8580 = ssub.s32 %s24, 2
        // Predicated region
        $region89: #{tpu_custom_call.1} parent=87 // pred_check
          %p8581 = pneg %p247
        $region90: #{tpu_custom_call.1} parent=87 // pred_check_branch
          %8583 = sbr.rel (%p8581) target = $region92
        $region91: #{tpu_custom_call.1} parent=87 // pred_region
          %s8584 = sand.u32 %s232, 1
          %s8585 = scalar_lea.sflag [#allocation4], %s8584
          %s8586 = sand.u32 %s232, 1
          %s8587 = scalar_lea.vmem [#allocation13], %s8586
          %8588 = dma.done %s8585, 16
        $region92: #{tpu_custom_call.1} parent=87 // pred_fallthru
          _
      $region88: #{tpu_custom_call.1} parent=5 // pred_fallthru
        _
    $region6: #{tpu_custom_call.1} parent=1 // loop_footer
      %s28 = sadd.s32 1, %s24
    $region7: #{tpu_custom_call.1} parent=1 // loop_footer_branch
      %23 = sbr.rel target = $region3
    $region8: #{tpu_custom_call.1} parent=1 // loop_exit
      _
    %8589 = vsyncpa [#allocation3], 1
    %s8590 = scalar_lea.sflag [#allocation3], 1
    %8591 = vsyncpa %s8590, 1
    %8592 = vsyncpa [#allocation6], 1
    %8593 = vsyncpa [#allocation9], 1
    %8594 = vsyncpa [#allocation12], 1
    %8595 = vsyncpa [#allocation4], 1
    %s8596 = scalar_lea.sflag [#allocation4], 1
    %8597 = vsyncpa %s8596, 1

</llo_original>
